<compile_context>
chip_gen: v6e
topology: v6e:2x2x1
jax: 0.10.0
libtpu: 0.0.40
codegen_flags: <defaults>
</compile_context>

<pallas_src>
import jax
import jax.numpy as jnp
from jax.experimental import pallas as pl
from jax.experimental.pallas import tpu as pltpu

OC_PAD = 128  # every channel axis padded to one full 128-lane tile


def _pick_batch_tile(n, h, cap=8):
    """Largest B <= cap dividing N that keeps grid >= 2 (v7x: both TensorCores
    busy) and keeps the bf16 activation block sublane-tile aligned."""
    if n <= 1:
        return max(n, 1)
    best = None
    for d in range(1, min(n, cap) + 1):
        if n % d == 0 and n // d >= 2 and (d * h) % 16 == 0:
            best = d
    return best if best is not None else n   # fallback: single full-batch step


# ----------------------------------------------------------------------------
# Fused Pallas kernel (one grid step == one tile of B batch elements)
# ----------------------------------------------------------------------------
def _make_kernel(B, H, KH1, OH1, PW1, KH2, OH2, PW2):
    OCP = OC_PAD
    R1 = (B - 1) * H + OH1           # conv1 rows (per-image row stride = H)
    R2 = (B - 1) * H + 2 * OH2 - 1   # conv2 rows (valid rows sit at stride 2)

    def kernel(x_ref, w1_ref, sh1_ref, w2_ref, sh2_ref, out_ref):
        sh1 = sh1_ref[...]           # (1, 128) f32: BN1 shift (+ conv1 bias)
        sh2 = sh2_ref[...]           # (1, 128) f32: BN2 shift (+ conv2 bias)

        # -------- conv1 (BN1 scale pre-folded) -> maxpool1 -> +shift -> relu1 ----
        # One 256-lane slab (= one pooled output column pw) at a time.
        pooled_slabs = []
        for pw in range(PW1):
            cs = 2 * pw * OCP
            acc = jnp.dot(x_ref[0:R1, :], w1_ref[0, :, cs:cs + 2 * OCP],
                          preferred_element_type=jnp.float32)
            for kh in range(1, KH1):
                acc = acc + jnp.dot(x_ref[kh:kh + R1, :],
                                    w1_ref[kh, :, cs:cs + 2 * OCP],
                                    preferred_element_type=jnp.float32)
            vmax = jnp.maximum(acc[:-1, :], acc[1:, :])          # 2x1 row pool
            hmax = jnp.maximum(vmax[:, :OCP], vmax[:, OCP:])     # 1x2 col pool
            pooled_slabs.append(jnp.maximum(hmax + sh1, 0.0).astype(jnp.bfloat16))
        pooled = jnp.concatenate(pooled_slabs, axis=-1)          # (R1-1, PW1*128)

        # ---- conv2 -> (Dropout2d == id, eval) -> maxpool2 -> +shift -> relu2 ----
        for pw in range(PW2):
            cs = 2 * pw * OCP
            acc = jnp.dot(pooled[0:R2, :], w2_ref[0, :, cs:cs + 2 * OCP],
                          preferred_element_type=jnp.float32)
            for kh in range(1, KH2):
                acc = acc + jnp.dot(pooled[2 * kh:2 * kh + R2, :],
                                    w2_ref[kh, :, cs:cs + 2 * OCP],
                                    preferred_element_type=jnp.float32)
            vmax = jnp.maximum(acc[:-2, :], acc[2:, :])          # valid rows: stride 2
            hmax = jnp.maximum(vmax[:, :OCP], vmax[:, OCP:])
            out_ref[0, :, pw * OCP:(pw + 1) * OCP] = jnp.maximum(hmax + sh2, 0.0)

    return kernel


# ----------------------------------------------------------------------------
# One-time constant preparation (hoisted out of the forward path)
# ----------------------------------------------------------------------------
def prepare_params(params, in_h, in_w, eps=1e-5):
    w1, b1 = params["w1"], params["b1"]
    g1, be1, rm1, rv1 = params["g1"], params["be1"], params["rm1"], params["rv1"]
    w2, b2 = params["w2"], params["b2"]
    g2, be2, rm2, rv2 = params["g2"], params["be2"], params["rm2"], params["rv2"]

    OC1, C1, KH1, KW1 = w1.shape
    OC2, C2, KH2, KW2 = w2.shape
    assert C2 == OC1 and OC1 <= OC_PAD and OC2 <= OC_PAD

    OH1, OW1 = in_h - KH1 + 1, in_w - KW1 + 1
    PH1, PW1 = OH1 // 2, OW1 // 2
    OH2, OW2 = PH1 - KH2 + 1, PW1 - KW2 + 1
    PH2, PW2 = OH2 // 2, OW2 // 2
    assert OH1 >= 2 and OW1 >= 2 and OH2 >= 2 and OW2 >= 2
    assert PH2 >= 1 and PW2 >= 1

    # layer 1: BN scale folded into width-folded conv weights
    #   w1_big[kh, w*C1+c, ow*128+oc] = s1[oc] * w1[oc, c, kh, w-ow]
    s1 = g1 / jnp.sqrt(rv1 + eps)
    sh1 = (b1 - rm1) * s1 + be1
    wt1 = jnp.transpose(w1 * s1[:, None, None, None], (2, 3, 1, 0))  # (KH1,KW1,C1,OC1)
    w1_big = jnp.zeros((KH1, in_w, C1, OW1, OC_PAD), jnp.float32)
    for ow in range(OW1):
        for j in range(KW1):
            w1_big = w1_big.at[:, ow + j, :, ow, :OC1].set(wt1[:, j])
    w1_big = w1_big.reshape(KH1, in_w * C1, OW1 * OC_PAD).astype(jnp.bfloat16)
    sh1_p = jnp.pad(sh1, (0, OC_PAD - OC1)).astype(jnp.float32)[None, :]

    # layer 2: same, over the pooled layout [row, pw*128 + c]
    s2 = g2 / jnp.sqrt(rv2 + eps)
    sh2 = (b2 - rm2) * s2 + be2
    wt2 = jnp.transpose(w2 * s2[:, None, None, None], (2, 3, 1, 0))  # (KH2,KW2,C2,OC2)
    w2_big = jnp.zeros((KH2, PW1, OC_PAD, OW2, OC_PAD), jnp.float32)
    for ow in range(OW2):
        for j in range(KW2):
            w2_big = w2_big.at[:, ow + j, :C2, ow, :OC2].set(wt2[:, j])
    w2_big = w2_big.reshape(KH2, PW1 * OC_PAD, OW2 * OC_PAD).astype(jnp.bfloat16)
    sh2_p = jnp.pad(sh2, (0, OC_PAD - OC2)).astype(jnp.float32)[None, :]

    dims = dict(C1=C1, OC1=OC1, OC2=OC2, KH1=KH1, KW1=KW1, KH2=KH2, KW2=KW2,
                in_h=in_h, in_w=in_w, OH1=OH1, OW1=OW1, PH1=PH1, PW1=PW1,
                OH2=OH2, OW2=OW2, PH2=PH2, PW2=PW2)
    return {"w1_big": w1_big, "sh1_p": sh1_p,
            "w2_big": w2_big, "sh2_p": sh2_p, "dims": dims}


# ----------------------------------------------------------------------------
# Forward wrapper: one pallas_call for the whole network
# ----------------------------------------------------------------------------
def cnn_forward(x_nchw, prep, batch_tile=None):
    d = prep["dims"]
    N, C, H, W = x_nchw.shape
    assert (C, H, W) == (d["C1"], d["in_h"], d["in_w"]), "input shape mismatch"

    KH1, OH1, OW1, PW1 = d["KH1"], d["OH1"], d["OW1"], d["PW1"]
    KH2, OH2, OW2, PH2, PW2 = d["KH2"], d["OH2"], d["OW2"], d["PH2"], d["PW2"]
    OC2 = d["OC2"]

    B = _pick_batch_tile(N, H) if batch_tile is None else batch_tile
    assert N % B == 0
    G = N // B
    WC = W * C
    RO = (B - 1) * H + 2 * OH2 - 3           # rows produced per grid step
    LO = PW2 * OC_PAD

    # NCHW -> (N*H, W*C) bf16: rows = (image, image-row), lanes = (w, c).
    x2d = jnp.transpose(x_nchw, (0, 2, 3, 1)).reshape(N * H, WC).astype(jnp.bfloat16)

    kernel = _make_kernel(B, H, KH1, OH1, PW1, KH2, OH2, PW2)

    flops = 2 * N * (OH1 * OW1 * d["OC1"] * KH1 * d["KW1"] * C
                     + OH2 * OW2 * OC2 * KH2 * d["KW2"] * d["OC1"])
    bytes_accessed = (x2d.size * 2 + prep["w1_big"].size * 2 +
                      prep["w2_big"].size * 2 + 2 * OC_PAD * 4 + G * RO * LO * 4)

    out = pl.pallas_call(
        kernel,
        out_shape=jax.ShapeDtypeStruct((G, RO, LO), jnp.float32),
        grid=(G,),
        in_specs=[
            pl.BlockSpec((B * H, WC), lambda g: (g, 0)),
            pl.BlockSpec((KH1, WC, OW1 * OC_PAD), lambda g: (0, 0, 0)),
            pl.BlockSpec((1, OC_PAD), lambda g: (0, 0)),
            pl.BlockSpec((KH2, PW1 * OC_PAD, OW2 * OC_PAD), lambda g: (0, 0, 0)),
            pl.BlockSpec((1, OC_PAD), lambda g: (0, 0)),
        ],
        out_specs=pl.BlockSpec((1, RO, LO), lambda g: (g, 0, 0)),
        compiler_params=pltpu.CompilerParams(
            dimension_semantics=("parallel",),
            vmem_limit_bytes=32 * 1024 * 1024),
        cost_estimate=pl.CostEstimate(flops=flops, transcendentals=0,
                                      bytes_accessed=bytes_accessed),
    )(x2d, prep["w1_big"], prep["sh1_p"], prep["w2_big"], prep["sh2_p"])

    # Per grid step the valid outputs sit at rows b*H + 4*ph2 (the rest is
    # ignored over-compute).  Extract them and strip the channel padding.
    out = jnp.pad(out, ((0, 0), (0, B * H - RO), (0, 0)))
    out = out.reshape(G, B, H, PW2, OC_PAD)[:, :, 0:4 * PH2:4, :, :OC2]
    out = out.reshape(N, PH2, PW2, OC2)
    return jnp.transpose(out, (0, 3, 1, 2))                     # NCHW


# ----------------------------------------------------------------------------
# Plain-JAX reference (same eval-mode semantics) for a sanity check
# ----------------------------------------------------------------------------
def _reference_forward(x, params, eps=1e-5):
    def conv_bn(h, w, b, g, be, rm, rv):
        y = jax.lax.conv_general_dilated(
            h, w, (1, 1), "VALID",
            dimension_numbers=("NCHW", "OIHW", "NCHW"),
            precision=jax.lax.Precision.HIGHEST)
        y = y + b[None, :, None, None]
        s = g / jnp.sqrt(rv + eps)
        return y * s[None, :, None, None] + (be - rm * s)[None, :, None, None]

    def pool_relu(h):
        y = jax.lax.reduce_window(h, -jnp.inf, jax.lax.max,
                                  (1, 1, 2, 2), (1, 1, 2, 2), "VALID")
        return jnp.maximum(y, 0.0)

    h = conv_bn(x, params["w1"], params["b1"], params["g1"], params["be1"],
                params["rm1"], params["rv1"])
    h = pool_relu(h)
    h = conv_bn(h, params["w2"], params["b2"], params["g2"], params["be2"],
                params["rm2"], params["rv2"])
    return pool_relu(h)


def init_params(key, in_c):
    k1, k2, k3, k4 = jax.random.split(key, 4)
    return {
        "w1": 0.1 * jax.random.normal(k1, (64, in_c, 5, 5), jnp.float32),
        "b1": 0.1 * jax.random.normal(k2, (64,), jnp.float32),
        "g1": jnp.ones((64,), jnp.float32), "be1": jnp.zeros((64,), jnp.float32),
        "rm1": jnp.zeros((64,), jnp.float32), "rv1": jnp.ones((64,), jnp.float32),
        "w2": 0.1 * jax.random.normal(k3, (50, 64, 5, 5), jnp.float32),
        "b2": 0.1 * jax.random.normal(k4, (50,), jnp.float32),
        "g2": jnp.ones((50,), jnp.float32), "be2": jnp.zeros((50,), jnp.float32),
        "rm2": jnp.zeros((50,), jnp.float32), "rv2": jnp.ones((50,), jnp.float32),
    }


if __name__ == "__main__":
    key = jax.random.PRNGKey(0)
    kx, kp = jax.random.split(key)
    in_c, H, W = 4, 16, 16
    params = init_params(kp, in_c)
    prep = prepare_params(params, in_h=H, in_w=W)   # constants, hoisted

    # N=2 exercises the B_TILE=1 / grid=2 path; N=8 exercises batch tiling
    # (B_TILE=4, grid=2, conv matmuls with M ~ 60).
    for N in (2, 8):
        x = jax.random.normal(jax.random.fold_in(kx, N),
                              (N, in_c, H, W), jnp.float32)    # NCHW like PyTorch
        out = jax.block_until_ready(cnn_forward(x, prep))
        assert out.shape == (N, 50, 1, 1), out.shape

        ref = jax.block_until_ready(_reference_forward(x, params))
        rel = float(jnp.linalg.norm(out - ref) / jnp.linalg.norm(ref))
        assert rel < 5e-2, f"relative error too large (N={N}): {rel}"  # bf16 MXU tol

    print("KERNEL_OK")
</pallas_src>

<mosaic_0001>
module attributes {stable_mosaic.version = 11 : i64} {
  func.func @kernel(%arg0: i32, %arg1: memref<16x64xbf16, #tpu.memory_space<vmem>>, %arg2: memref<5x64x1536xbf16, #tpu.memory_space<vmem>>, %arg3: memref<1x128xf32, #tpu.memory_space<vmem>>, %arg4: memref<5x768x256xbf16, #tpu.memory_space<vmem>>, %arg5: memref<1x128xf32, #tpu.memory_space<vmem>>, %arg6: memref<1x1x128xf32, #tpu.memory_space<vmem>>) attributes {dimension_semantics = [#tpu.dimension_semantics<parallel>], iteration_bounds = array<i64: 2>, scalar_prefetch = 0 : i64, scratch_operands = 0 : i64, tpu.core_type = #tpu.core_type<tc>, window_params = [{transform_indices = @transform_0, window_bounds = array<i64: 16, 64>}, {pipeline_mode = #tpu.pipeline_mode<synchronous>, transform_indices = @transform_1, window_bounds = array<i64: 5, 64, 1536>}, {pipeline_mode = #tpu.pipeline_mode<synchronous>, transform_indices = @transform_2, window_bounds = array<i64: 1, 128>}, {pipeline_mode = #tpu.pipeline_mode<synchronous>, transform_indices = @transform_3, window_bounds = array<i64: 5, 768, 256>}, {pipeline_mode = #tpu.pipeline_mode<synchronous>, transform_indices = @transform_4, window_bounds = array<i64: 1, 128>}, {transform_indices = @transform_5, window_bounds = array<i64: 1, 1, 128>}]} {
    %c0 = arith.constant 0 : index
    %c0_0 = arith.constant 0 : index
    %0 = vector.load %arg3[%c0, %c0_0] : memref<1x128xf32, #tpu.memory_space<vmem>>, vector<1x128xf32>
    %c0_1 = arith.constant 0 : index
    %c0_2 = arith.constant 0 : index
    %1 = vector.load %arg5[%c0_1, %c0_2] : memref<1x128xf32, #tpu.memory_space<vmem>>, vector<1x128xf32>
    %c0_3 = arith.constant 0 : index
    %c0_4 = arith.constant 0 : index
    %2 = vector.load %arg1[%c0_3, %c0_4] : memref<16x64xbf16, #tpu.memory_space<vmem>>, vector<12x64xbf16>
    %c0_5 = arith.constant 0 : index
    %c0_6 = arith.constant 0 : index
    %c0_7 = arith.constant 0 : index
    %3 = vector.load %arg2[%c0_5, %c0_6, %c0_7] : memref<5x64x1536xbf16, #tpu.memory_space<vmem>>, vector<1x64x256xbf16>
    %4 = vector.shape_cast %3 : vector<1x64x256xbf16> to vector<64x256xbf16>
    %cst = arith.constant dense<0.000000e+00> : vector<12x256xf32>
    %5 = tpu.matmul %2, %4, %cst {dimension_numbers = #tpu.dot_dimension_numbers<[1], [0], [0], [1], [0, 0, 1, 1], [], []>} : vector<12x64xbf16>, vector<64x256xbf16>, vector<12x256xf32> -> vector<12x256xf32>
    %c1 = arith.constant 1 : index
    %c0_8 = arith.constant 0 : index
    %6 = vector.load %arg1[%c1, %c0_8] : memref<16x64xbf16, #tpu.memory_space<vmem>>, vector<12x64xbf16>
    %c1_9 = arith.constant 1 : index
    %c0_10 = arith.constant 0 : index
    %c0_11 = arith.constant 0 : index
    %7 = vector.load %arg2[%c1_9, %c0_10, %c0_11] : memref<5x64x1536xbf16, #tpu.memory_space<vmem>>, vector<1x64x256xbf16>
    %8 = vector.shape_cast %7 : vector<1x64x256xbf16> to vector<64x256xbf16>
    %cst_12 = arith.constant dense<0.000000e+00> : vector<12x256xf32>
    %9 = tpu.matmul %6, %8, %cst_12 {dimension_numbers = #tpu.dot_dimension_numbers<[1], [0], [0], [1], [0, 0, 1, 1], [], []>} : vector<12x64xbf16>, vector<64x256xbf16>, vector<12x256xf32> -> vector<12x256xf32>
    %10 = arith.addf %5, %9 : vector<12x256xf32>
    %c2 = arith.constant 2 : index
    %c0_13 = arith.constant 0 : index
    %11 = vector.load %arg1[%c2, %c0_13] : memref<16x64xbf16, #tpu.memory_space<vmem>>, vector<12x64xbf16>
    %c2_14 = arith.constant 2 : index
    %c0_15 = arith.constant 0 : index
    %c0_16 = arith.constant 0 : index
    %12 = vector.load %arg2[%c2_14, %c0_15, %c0_16] : memref<5x64x1536xbf16, #tpu.memory_space<vmem>>, vector<1x64x256xbf16>
    %13 = vector.shape_cast %12 : vector<1x64x256xbf16> to vector<64x256xbf16>
    %cst_17 = arith.constant dense<0.000000e+00> : vector<12x256xf32>
    %14 = tpu.matmul %11, %13, %cst_17 {dimension_numbers = #tpu.dot_dimension_numbers<[1], [0], [0], [1], [0, 0, 1, 1], [], []>} : vector<12x64xbf16>, vector<64x256xbf16>, vector<12x256xf32> -> vector<12x256xf32>
    %15 = arith.addf %10, %14 : vector<12x256xf32>
    %c3 = arith.constant 3 : index
    %c0_18 = arith.constant 0 : index
    %16 = vector.load %arg1[%c3, %c0_18] : memref<16x64xbf16, #tpu.memory_space<vmem>>, vector<12x64xbf16>
    %c3_19 = arith.constant 3 : index
    %c0_20 = arith.constant 0 : index
    %c0_21 = arith.constant 0 : index
    %17 = vector.load %arg2[%c3_19, %c0_20, %c0_21] : memref<5x64x1536xbf16, #tpu.memory_space<vmem>>, vector<1x64x256xbf16>
    %18 = vector.shape_cast %17 : vector<1x64x256xbf16> to vector<64x256xbf16>
    %cst_22 = arith.constant dense<0.000000e+00> : vector<12x256xf32>
    %19 = tpu.matmul %16, %18, %cst_22 {dimension_numbers = #tpu.dot_dimension_numbers<[1], [0], [0], [1], [0, 0, 1, 1], [], []>} : vector<12x64xbf16>, vector<64x256xbf16>, vector<12x256xf32> -> vector<12x256xf32>
    %20 = arith.addf %15, %19 : vector<12x256xf32>
    %c4 = arith.constant 4 : index
    %c0_23 = arith.constant 0 : index
    %21 = vector.load %arg1[%c4, %c0_23] : memref<16x64xbf16, #tpu.memory_space<vmem>>, vector<12x64xbf16>
    %c4_24 = arith.constant 4 : index
    %c0_25 = arith.constant 0 : index
    %c0_26 = arith.constant 0 : index
    %22 = vector.load %arg2[%c4_24, %c0_25, %c0_26] : memref<5x64x1536xbf16, #tpu.memory_space<vmem>>, vector<1x64x256xbf16>
    %23 = vector.shape_cast %22 : vector<1x64x256xbf16> to vector<64x256xbf16>
    %cst_27 = arith.constant dense<0.000000e+00> : vector<12x256xf32>
    %24 = tpu.matmul %21, %23, %cst_27 {dimension_numbers = #tpu.dot_dimension_numbers<[1], [0], [0], [1], [0, 0, 1, 1], [], []>} : vector<12x64xbf16>, vector<64x256xbf16>, vector<12x256xf32> -> vector<12x256xf32>
    %25 = arith.addf %20, %24 : vector<12x256xf32>
    %26 = vector.extract_strided_slice %25 {offsets = [0, 0], sizes = [11, 256], strides = [1, 1]} : vector<12x256xf32> to vector<11x256xf32>
    %27 = vector.extract_strided_slice %25 {offsets = [1, 0], sizes = [11, 256], strides = [1, 1]} : vector<12x256xf32> to vector<11x256xf32>
    %28 = arith.maximumf %26, %27 : vector<11x256xf32>
    %29 = vector.extract_strided_slice %28 {offsets = [0, 0], sizes = [11, 128], strides = [1, 1]} : vector<11x256xf32> to vector<11x128xf32>
    %30 = vector.extract_strided_slice %28 {offsets = [0, 128], sizes = [11, 128], strides = [1, 1]} : vector<11x256xf32> to vector<11x128xf32>
    %31 = arith.maximumf %29, %30 : vector<11x128xf32>
    %32 = vector.broadcast %0 : vector<1x128xf32> to vector<11x128xf32>
    %33 = arith.addf %31, %32 : vector<11x128xf32>
    %cst_28 = arith.constant 0.000000e+00 : f32
    %34 = vector.broadcast %cst_28 : f32 to vector<11x128xf32>
    %35 = arith.maximumf %33, %34 : vector<11x128xf32>
    %36 = arith.truncf %35 : vector<11x128xf32> to vector<11x128xbf16>
    %c0_29 = arith.constant 0 : index
    %c0_30 = arith.constant 0 : index
    %37 = vector.load %arg1[%c0_29, %c0_30] : memref<16x64xbf16, #tpu.memory_space<vmem>>, vector<12x64xbf16>
    %c0_31 = arith.constant 0 : index
    %c0_32 = arith.constant 0 : index
    %c256 = arith.constant 256 : index
    %38 = vector.load %arg2[%c0_31, %c0_32, %c256] : memref<5x64x1536xbf16, #tpu.memory_space<vmem>>, vector<1x64x256xbf16>
    %39 = vector.shape_cast %38 : vector<1x64x256xbf16> to vector<64x256xbf16>
    %cst_33 = arith.constant dense<0.000000e+00> : vector<12x256xf32>
    %40 = tpu.matmul %37, %39, %cst_33 {dimension_numbers = #tpu.dot_dimension_numbers<[1], [0], [0], [1], [0, 0, 1, 1], [], []>} : vector<12x64xbf16>, vector<64x256xbf16>, vector<12x256xf32> -> vector<12x256xf32>
    %c1_34 = arith.constant 1 : index
    %c0_35 = arith.constant 0 : index
    %41 = vector.load %arg1[%c1_34, %c0_35] : memref<16x64xbf16, #tpu.memory_space<vmem>>, vector<12x64xbf16>
    %c1_36 = arith.constant 1 : index
    %c0_37 = arith.constant 0 : index
    %c256_38 = arith.constant 256 : index
    %42 = vector.load %arg2[%c1_36, %c0_37, %c256_38] : memref<5x64x1536xbf16, #tpu.memory_space<vmem>>, vector<1x64x256xbf16>
    %43 = vector.shape_cast %42 : vector<1x64x256xbf16> to vector<64x256xbf16>
    %cst_39 = arith.constant dense<0.000000e+00> : vector<12x256xf32>
    %44 = tpu.matmul %41, %43, %cst_39 {dimension_numbers = #tpu.dot_dimension_numbers<[1], [0], [0], [1], [0, 0, 1, 1], [], []>} : vector<12x64xbf16>, vector<64x256xbf16>, vector<12x256xf32> -> vector<12x256xf32>
    %45 = arith.addf %40, %44 : vector<12x256xf32>
    %c2_40 = arith.constant 2 : index
    %c0_41 = arith.constant 0 : index
    %46 = vector.load %arg1[%c2_40, %c0_41] : memref<16x64xbf16, #tpu.memory_space<vmem>>, vector<12x64xbf16>
    %c2_42 = arith.constant 2 : index
    %c0_43 = arith.constant 0 : index
    %c256_44 = arith.constant 256 : index
    %47 = vector.load %arg2[%c2_42, %c0_43, %c256_44] : memref<5x64x1536xbf16, #tpu.memory_space<vmem>>, vector<1x64x256xbf16>
    %48 = vector.shape_cast %47 : vector<1x64x256xbf16> to vector<64x256xbf16>
    %cst_45 = arith.constant dense<0.000000e+00> : vector<12x256xf32>
    %49 = tpu.matmul %46, %48, %cst_45 {dimension_numbers = #tpu.dot_dimension_numbers<[1], [0], [0], [1], [0, 0, 1, 1], [], []>} : vector<12x64xbf16>, vector<64x256xbf16>, vector<12x256xf32> -> vector<12x256xf32>
    %50 = arith.addf %45, %49 : vector<12x256xf32>
    %c3_46 = arith.constant 3 : index
    %c0_47 = arith.constant 0 : index
    %51 = vector.load %arg1[%c3_46, %c0_47] : memref<16x64xbf16, #tpu.memory_space<vmem>>, vector<12x64xbf16>
    %c3_48 = arith.constant 3 : index
    %c0_49 = arith.constant 0 : index
    %c256_50 = arith.constant 256 : index
    %52 = vector.load %arg2[%c3_48, %c0_49, %c256_50] : memref<5x64x1536xbf16, #tpu.memory_space<vmem>>, vector<1x64x256xbf16>
    %53 = vector.shape_cast %52 : vector<1x64x256xbf16> to vector<64x256xbf16>
    %cst_51 = arith.constant dense<0.000000e+00> : vector<12x256xf32>
    %54 = tpu.matmul %51, %53, %cst_51 {dimension_numbers = #tpu.dot_dimension_numbers<[1], [0], [0], [1], [0, 0, 1, 1], [], []>} : vector<12x64xbf16>, vector<64x256xbf16>, vector<12x256xf32> -> vector<12x256xf32>
    %55 = arith.addf %50, %54 : vector<12x256xf32>
    %c4_52 = arith.constant 4 : index
    %c0_53 = arith.constant 0 : index
    %56 = vector.load %arg1[%c4_52, %c0_53] : memref<16x64xbf16, #tpu.memory_space<vmem>>, vector<12x64xbf16>
    %c4_54 = arith.constant 4 : index
    %c0_55 = arith.constant 0 : index
    %c256_56 = arith.constant 256 : index
    %57 = vector.load %arg2[%c4_54, %c0_55, %c256_56] : memref<5x64x1536xbf16, #tpu.memory_space<vmem>>, vector<1x64x256xbf16>
    %58 = vector.shape_cast %57 : vector<1x64x256xbf16> to vector<64x256xbf16>
    %cst_57 = arith.constant dense<0.000000e+00> : vector<12x256xf32>
    %59 = tpu.matmul %56, %58, %cst_57 {dimension_numbers = #tpu.dot_dimension_numbers<[1], [0], [0], [1], [0, 0, 1, 1], [], []>} : vector<12x64xbf16>, vector<64x256xbf16>, vector<12x256xf32> -> vector<12x256xf32>
    %60 = arith.addf %55, %59 : vector<12x256xf32>
    %61 = vector.extract_strided_slice %60 {offsets = [0, 0], sizes = [11, 256], strides = [1, 1]} : vector<12x256xf32> to vector<11x256xf32>
    %62 = vector.extract_strided_slice %60 {offsets = [1, 0], sizes = [11, 256], strides = [1, 1]} : vector<12x256xf32> to vector<11x256xf32>
    %63 = arith.maximumf %61, %62 : vector<11x256xf32>
    %64 = vector.extract_strided_slice %63 {offsets = [0, 0], sizes = [11, 128], strides = [1, 1]} : vector<11x256xf32> to vector<11x128xf32>
    %65 = vector.extract_strided_slice %63 {offsets = [0, 128], sizes = [11, 128], strides = [1, 1]} : vector<11x256xf32> to vector<11x128xf32>
    %66 = arith.maximumf %64, %65 : vector<11x128xf32>
    %67 = vector.broadcast %0 : vector<1x128xf32> to vector<11x128xf32>
    %68 = arith.addf %66, %67 : vector<11x128xf32>
    %cst_58 = arith.constant 0.000000e+00 : f32
    %69 = vector.broadcast %cst_58 : f32 to vector<11x128xf32>
    %70 = arith.maximumf %68, %69 : vector<11x128xf32>
    %71 = arith.truncf %70 : vector<11x128xf32> to vector<11x128xbf16>
    %c0_59 = arith.constant 0 : index
    %c0_60 = arith.constant 0 : index
    %72 = vector.load %arg1[%c0_59, %c0_60] : memref<16x64xbf16, #tpu.memory_space<vmem>>, vector<12x64xbf16>
    %c0_61 = arith.constant 0 : index
    %c0_62 = arith.constant 0 : index
    %c512 = arith.constant 512 : index
    %73 = vector.load %arg2[%c0_61, %c0_62, %c512] : memref<5x64x1536xbf16, #tpu.memory_space<vmem>>, vector<1x64x256xbf16>
    %74 = vector.shape_cast %73 : vector<1x64x256xbf16> to vector<64x256xbf16>
    %cst_63 = arith.constant dense<0.000000e+00> : vector<12x256xf32>
    %75 = tpu.matmul %72, %74, %cst_63 {dimension_numbers = #tpu.dot_dimension_numbers<[1], [0], [0], [1], [0, 0, 1, 1], [], []>} : vector<12x64xbf16>, vector<64x256xbf16>, vector<12x256xf32> -> vector<12x256xf32>
    %c1_64 = arith.constant 1 : index
    %c0_65 = arith.constant 0 : index
    %76 = vector.load %arg1[%c1_64, %c0_65] : memref<16x64xbf16, #tpu.memory_space<vmem>>, vector<12x64xbf16>
    %c1_66 = arith.constant 1 : index
    %c0_67 = arith.constant 0 : index
    %c512_68 = arith.constant 512 : index
    %77 = vector.load %arg2[%c1_66, %c0_67, %c512_68] : memref<5x64x1536xbf16, #tpu.memory_space<vmem>>, vector<1x64x256xbf16>
    %78 = vector.shape_cast %77 : vector<1x64x256xbf16> to vector<64x256xbf16>
    %cst_69 = arith.constant dense<0.000000e+00> : vector<12x256xf32>
    %79 = tpu.matmul %76, %78, %cst_69 {dimension_numbers = #tpu.dot_dimension_numbers<[1], [0], [0], [1], [0, 0, 1, 1], [], []>} : vector<12x64xbf16>, vector<64x256xbf16>, vector<12x256xf32> -> vector<12x256xf32>
    %80 = arith.addf %75, %79 : vector<12x256xf32>
    %c2_70 = arith.constant 2 : index
    %c0_71 = arith.constant 0 : index
    %81 = vector.load %arg1[%c2_70, %c0_71] : memref<16x64xbf16, #tpu.memory_space<vmem>>, vector<12x64xbf16>
    %c2_72 = arith.constant 2 : index
    %c0_73 = arith.constant 0 : index
    %c512_74 = arith.constant 512 : index
    %82 = vector.load %arg2[%c2_72, %c0_73, %c512_74] : memref<5x64x1536xbf16, #tpu.memory_space<vmem>>, vector<1x64x256xbf16>
    %83 = vector.shape_cast %82 : vector<1x64x256xbf16> to vector<64x256xbf16>
    %cst_75 = arith.constant dense<0.000000e+00> : vector<12x256xf32>
    %84 = tpu.matmul %81, %83, %cst_75 {dimension_numbers = #tpu.dot_dimension_numbers<[1], [0], [0], [1], [0, 0, 1, 1], [], []>} : vector<12x64xbf16>, vector<64x256xbf16>, vector<12x256xf32> -> vector<12x256xf32>
    %85 = arith.addf %80, %84 : vector<12x256xf32>
    %c3_76 = arith.constant 3 : index
    %c0_77 = arith.constant 0 : index
    %86 = vector.load %arg1[%c3_76, %c0_77] : memref<16x64xbf16, #tpu.memory_space<vmem>>, vector<12x64xbf16>
    %c3_78 = arith.constant 3 : index
    %c0_79 = arith.constant 0 : index
    %c512_80 = arith.constant 512 : index
    %87 = vector.load %arg2[%c3_78, %c0_79, %c512_80] : memref<5x64x1536xbf16, #tpu.memory_space<vmem>>, vector<1x64x256xbf16>
    %88 = vector.shape_cast %87 : vector<1x64x256xbf16> to vector<64x256xbf16>
    %cst_81 = arith.constant dense<0.000000e+00> : vector<12x256xf32>
    %89 = tpu.matmul %86, %88, %cst_81 {dimension_numbers = #tpu.dot_dimension_numbers<[1], [0], [0], [1], [0, 0, 1, 1], [], []>} : vector<12x64xbf16>, vector<64x256xbf16>, vector<12x256xf32> -> vector<12x256xf32>
    %90 = arith.addf %85, %89 : vector<12x256xf32>
    %c4_82 = arith.constant 4 : index
    %c0_83 = arith.constant 0 : index
    %91 = vector.load %arg1[%c4_82, %c0_83] : memref<16x64xbf16, #tpu.memory_space<vmem>>, vector<12x64xbf16>
    %c4_84 = arith.constant 4 : index
    %c0_85 = arith.constant 0 : index
    %c512_86 = arith.constant 512 : index
    %92 = vector.load %arg2[%c4_84, %c0_85, %c512_86] : memref<5x64x1536xbf16, #tpu.memory_space<vmem>>, vector<1x64x256xbf16>
    %93 = vector.shape_cast %92 : vector<1x64x256xbf16> to vector<64x256xbf16>
    %cst_87 = arith.constant dense<0.000000e+00> : vector<12x256xf32>
    %94 = tpu.matmul %91, %93, %cst_87 {dimension_numbers = #tpu.dot_dimension_numbers<[1], [0], [0], [1], [0, 0, 1, 1], [], []>} : vector<12x64xbf16>, vector<64x256xbf16>, vector<12x256xf32> -> vector<12x256xf32>
    %95 = arith.addf %90, %94 : vector<12x256xf32>
    %96 = vector.extract_strided_slice %95 {offsets = [0, 0], sizes = [11, 256], strides = [1, 1]} : vector<12x256xf32> to vector<11x256xf32>
    %97 = vector.extract_strided_slice %95 {offsets = [1, 0], sizes = [11, 256], strides = [1, 1]} : vector<12x256xf32> to vector<11x256xf32>
    %98 = arith.maximumf %96, %97 : vector<11x256xf32>
    %99 = vector.extract_strided_slice %98 {offsets = [0, 0], sizes = [11, 128], strides = [1, 1]} : vector<11x256xf32> to vector<11x128xf32>
    %100 = vector.extract_strided_slice %98 {offsets = [0, 128], sizes = [11, 128], strides = [1, 1]} : vector<11x256xf32> to vector<11x128xf32>
    %101 = arith.maximumf %99, %100 : vector<11x128xf32>
    %102 = vector.broadcast %0 : vector<1x128xf32> to vector<11x128xf32>
    %103 = arith.addf %101, %102 : vector<11x128xf32>
    %cst_88 = arith.constant 0.000000e+00 : f32
    %104 = vector.broadcast %cst_88 : f32 to vector<11x128xf32>
    %105 = arith.maximumf %103, %104 : vector<11x128xf32>
    %106 = arith.truncf %105 : vector<11x128xf32> to vector<11x128xbf16>
    %c0_89 = arith.constant 0 : index
    %c0_90 = arith.constant 0 : index
    %107 = vector.load %arg1[%c0_89, %c0_90] : memref<16x64xbf16, #tpu.memory_space<vmem>>, vector<12x64xbf16>
    %c0_91 = arith.constant 0 : index
    %c0_92 = arith.constant 0 : index
    %c768 = arith.constant 768 : index
    %108 = vector.load %arg2[%c0_91, %c0_92, %c768] : memref<5x64x1536xbf16, #tpu.memory_space<vmem>>, vector<1x64x256xbf16>
    %109 = vector.shape_cast %108 : vector<1x64x256xbf16> to vector<64x256xbf16>
    %cst_93 = arith.constant dense<0.000000e+00> : vector<12x256xf32>
    %110 = tpu.matmul %107, %109, %cst_93 {dimension_numbers = #tpu.dot_dimension_numbers<[1], [0], [0], [1], [0, 0, 1, 1], [], []>} : vector<12x64xbf16>, vector<64x256xbf16>, vector<12x256xf32> -> vector<12x256xf32>
    %c1_94 = arith.constant 1 : index
    %c0_95 = arith.constant 0 : index
    %111 = vector.load %arg1[%c1_94, %c0_95] : memref<16x64xbf16, #tpu.memory_space<vmem>>, vector<12x64xbf16>
    %c1_96 = arith.constant 1 : index
    %c0_97 = arith.constant 0 : index
    %c768_98 = arith.constant 768 : index
    %112 = vector.load %arg2[%c1_96, %c0_97, %c768_98] : memref<5x64x1536xbf16, #tpu.memory_space<vmem>>, vector<1x64x256xbf16>
    %113 = vector.shape_cast %112 : vector<1x64x256xbf16> to vector<64x256xbf16>
    %cst_99 = arith.constant dense<0.000000e+00> : vector<12x256xf32>
    %114 = tpu.matmul %111, %113, %cst_99 {dimension_numbers = #tpu.dot_dimension_numbers<[1], [0], [0], [1], [0, 0, 1, 1], [], []>} : vector<12x64xbf16>, vector<64x256xbf16>, vector<12x256xf32> -> vector<12x256xf32>
    %115 = arith.addf %110, %114 : vector<12x256xf32>
    %c2_100 = arith.constant 2 : index
    %c0_101 = arith.constant 0 : index
    %116 = vector.load %arg1[%c2_100, %c0_101] : memref<16x64xbf16, #tpu.memory_space<vmem>>, vector<12x64xbf16>
    %c2_102 = arith.constant 2 : index
    %c0_103 = arith.constant 0 : index
    %c768_104 = arith.constant 768 : index
    %117 = vector.load %arg2[%c2_102, %c0_103, %c768_104] : memref<5x64x1536xbf16, #tpu.memory_space<vmem>>, vector<1x64x256xbf16>
    %118 = vector.shape_cast %117 : vector<1x64x256xbf16> to vector<64x256xbf16>
    %cst_105 = arith.constant dense<0.000000e+00> : vector<12x256xf32>
    %119 = tpu.matmul %116, %118, %cst_105 {dimension_numbers = #tpu.dot_dimension_numbers<[1], [0], [0], [1], [0, 0, 1, 1], [], []>} : vector<12x64xbf16>, vector<64x256xbf16>, vector<12x256xf32> -> vector<12x256xf32>
    %120 = arith.addf %115, %119 : vector<12x256xf32>
    %c3_106 = arith.constant 3 : index
    %c0_107 = arith.constant 0 : index
    %121 = vector.load %arg1[%c3_106, %c0_107] : memref<16x64xbf16, #tpu.memory_space<vmem>>, vector<12x64xbf16>
    %c3_108 = arith.constant 3 : index
    %c0_109 = arith.constant 0 : index
    %c768_110 = arith.constant 768 : index
    %122 = vector.load %arg2[%c3_108, %c0_109, %c768_110] : memref<5x64x1536xbf16, #tpu.memory_space<vmem>>, vector<1x64x256xbf16>
    %123 = vector.shape_cast %122 : vector<1x64x256xbf16> to vector<64x256xbf16>
    %cst_111 = arith.constant dense<0.000000e+00> : vector<12x256xf32>
    %124 = tpu.matmul %121, %123, %cst_111 {dimension_numbers = #tpu.dot_dimension_numbers<[1], [0], [0], [1], [0, 0, 1, 1], [], []>} : vector<12x64xbf16>, vector<64x256xbf16>, vector<12x256xf32> -> vector<12x256xf32>
    %125 = arith.addf %120, %124 : vector<12x256xf32>
    %c4_112 = arith.constant 4 : index
    %c0_113 = arith.constant 0 : index
    %126 = vector.load %arg1[%c4_112, %c0_113] : memref<16x64xbf16, #tpu.memory_space<vmem>>, vector<12x64xbf16>
    %c4_114 = arith.constant 4 : index
    %c0_115 = arith.constant 0 : index
    %c768_116 = arith.constant 768 : index
    %127 = vector.load %arg2[%c4_114, %c0_115, %c768_116] : memref<5x64x1536xbf16, #tpu.memory_space<vmem>>, vector<1x64x256xbf16>
    %128 = vector.shape_cast %127 : vector<1x64x256xbf16> to vector<64x256xbf16>
    %cst_117 = arith.constant dense<0.000000e+00> : vector<12x256xf32>
    %129 = tpu.matmul %126, %128, %cst_117 {dimension_numbers = #tpu.dot_dimension_numbers<[1], [0], [0], [1], [0, 0, 1, 1], [], []>} : vector<12x64xbf16>, vector<64x256xbf16>, vector<12x256xf32> -> vector<12x256xf32>
    %130 = arith.addf %125, %129 : vector<12x256xf32>
    %131 = vector.extract_strided_slice %130 {offsets = [0, 0], sizes = [11, 256], strides = [1, 1]} : vector<12x256xf32> to vector<11x256xf32>
    %132 = vector.extract_strided_slice %130 {offsets = [1, 0], sizes = [11, 256], strides = [1, 1]} : vector<12x256xf32> to vector<11x256xf32>
    %133 = arith.maximumf %131, %132 : vector<11x256xf32>
    %134 = vector.extract_strided_slice %133 {offsets = [0, 0], sizes = [11, 128], strides = [1, 1]} : vector<11x256xf32> to vector<11x128xf32>
    %135 = vector.extract_strided_slice %133 {offsets = [0, 128], sizes = [11, 128], strides = [1, 1]} : vector<11x256xf32> to vector<11x128xf32>
    %136 = arith.maximumf %134, %135 : vector<11x128xf32>
    %137 = vector.broadcast %0 : vector<1x128xf32> to vector<11x128xf32>
    %138 = arith.addf %136, %137 : vector<11x128xf32>
    %cst_118 = arith.constant 0.000000e+00 : f32
    %139 = vector.broadcast %cst_118 : f32 to vector<11x128xf32>
    %140 = arith.maximumf %138, %139 : vector<11x128xf32>
    %141 = arith.truncf %140 : vector<11x128xf32> to vector<11x128xbf16>
    %c0_119 = arith.constant 0 : index
    %c0_120 = arith.constant 0 : index
    %142 = vector.load %arg1[%c0_119, %c0_120] : memref<16x64xbf16, #tpu.memory_space<vmem>>, vector<12x64xbf16>
    %c0_121 = arith.constant 0 : index
    %c0_122 = arith.constant 0 : index
    %c1024 = arith.constant 1024 : index
    %143 = vector.load %arg2[%c0_121, %c0_122, %c1024] : memref<5x64x1536xbf16, #tpu.memory_space<vmem>>, vector<1x64x256xbf16>
    %144 = vector.shape_cast %143 : vector<1x64x256xbf16> to vector<64x256xbf16>
    %cst_123 = arith.constant dense<0.000000e+00> : vector<12x256xf32>
    %145 = tpu.matmul %142, %144, %cst_123 {dimension_numbers = #tpu.dot_dimension_numbers<[1], [0], [0], [1], [0, 0, 1, 1], [], []>} : vector<12x64xbf16>, vector<64x256xbf16>, vector<12x256xf32> -> vector<12x256xf32>
    %c1_124 = arith.constant 1 : index
    %c0_125 = arith.constant 0 : index
    %146 = vector.load %arg1[%c1_124, %c0_125] : memref<16x64xbf16, #tpu.memory_space<vmem>>, vector<12x64xbf16>
    %c1_126 = arith.constant 1 : index
    %c0_127 = arith.constant 0 : index
    %c1024_128 = arith.constant 1024 : index
    %147 = vector.load %arg2[%c1_126, %c0_127, %c1024_128] : memref<5x64x1536xbf16, #tpu.memory_space<vmem>>, vector<1x64x256xbf16>
    %148 = vector.shape_cast %147 : vector<1x64x256xbf16> to vector<64x256xbf16>
    %cst_129 = arith.constant dense<0.000000e+00> : vector<12x256xf32>
    %149 = tpu.matmul %146, %148, %cst_129 {dimension_numbers = #tpu.dot_dimension_numbers<[1], [0], [0], [1], [0, 0, 1, 1], [], []>} : vector<12x64xbf16>, vector<64x256xbf16>, vector<12x256xf32> -> vector<12x256xf32>
    %150 = arith.addf %145, %149 : vector<12x256xf32>
    %c2_130 = arith.constant 2 : index
    %c0_131 = arith.constant 0 : index
    %151 = vector.load %arg1[%c2_130, %c0_131] : memref<16x64xbf16, #tpu.memory_space<vmem>>, vector<12x64xbf16>
    %c2_132 = arith.constant 2 : index
    %c0_133 = arith.constant 0 : index
    %c1024_134 = arith.constant 1024 : index
    %152 = vector.load %arg2[%c2_132, %c0_133, %c1024_134] : memref<5x64x1536xbf16, #tpu.memory_space<vmem>>, vector<1x64x256xbf16>
    %153 = vector.shape_cast %152 : vector<1x64x256xbf16> to vector<64x256xbf16>
    %cst_135 = arith.constant dense<0.000000e+00> : vector<12x256xf32>
    %154 = tpu.matmul %151, %153, %cst_135 {dimension_numbers = #tpu.dot_dimension_numbers<[1], [0], [0], [1], [0, 0, 1, 1], [], []>} : vector<12x64xbf16>, vector<64x256xbf16>, vector<12x256xf32> -> vector<12x256xf32>
    %155 = arith.addf %150, %154 : vector<12x256xf32>
    %c3_136 = arith.constant 3 : index
    %c0_137 = arith.constant 0 : index
    %156 = vector.load %arg1[%c3_136, %c0_137] : memref<16x64xbf16, #tpu.memory_space<vmem>>, vector<12x64xbf16>
    %c3_138 = arith.constant 3 : index
    %c0_139 = arith.constant 0 : index
    %c1024_140 = arith.constant 1024 : index
    %157 = vector.load %arg2[%c3_138, %c0_139, %c1024_140] : memref<5x64x1536xbf16, #tpu.memory_space<vmem>>, vector<1x64x256xbf16>
    %158 = vector.shape_cast %157 : vector<1x64x256xbf16> to vector<64x256xbf16>
    %cst_141 = arith.constant dense<0.000000e+00> : vector<12x256xf32>
    %159 = tpu.matmul %156, %158, %cst_141 {dimension_numbers = #tpu.dot_dimension_numbers<[1], [0], [0], [1], [0, 0, 1, 1], [], []>} : vector<12x64xbf16>, vector<64x256xbf16>, vector<12x256xf32> -> vector<12x256xf32>
    %160 = arith.addf %155, %159 : vector<12x256xf32>
    %c4_142 = arith.constant 4 : index
    %c0_143 = arith.constant 0 : index
    %161 = vector.load %arg1[%c4_142, %c0_143] : memref<16x64xbf16, #tpu.memory_space<vmem>>, vector<12x64xbf16>
    %c4_144 = arith.constant 4 : index
    %c0_145 = arith.constant 0 : index
    %c1024_146 = arith.constant 1024 : index
    %162 = vector.load %arg2[%c4_144, %c0_145, %c1024_146] : memref<5x64x1536xbf16, #tpu.memory_space<vmem>>, vector<1x64x256xbf16>
    %163 = vector.shape_cast %162 : vector<1x64x256xbf16> to vector<64x256xbf16>
    %cst_147 = arith.constant dense<0.000000e+00> : vector<12x256xf32>
    %164 = tpu.matmul %161, %163, %cst_147 {dimension_numbers = #tpu.dot_dimension_numbers<[1], [0], [0], [1], [0, 0, 1, 1], [], []>} : vector<12x64xbf16>, vector<64x256xbf16>, vector<12x256xf32> -> vector<12x256xf32>
    %165 = arith.addf %160, %164 : vector<12x256xf32>
    %166 = vector.extract_strided_slice %165 {offsets = [0, 0], sizes = [11, 256], strides = [1, 1]} : vector<12x256xf32> to vector<11x256xf32>
    %167 = vector.extract_strided_slice %165 {offsets = [1, 0], sizes = [11, 256], strides = [1, 1]} : vector<12x256xf32> to vector<11x256xf32>
    %168 = arith.maximumf %166, %167 : vector<11x256xf32>
    %169 = vector.extract_strided_slice %168 {offsets = [0, 0], sizes = [11, 128], strides = [1, 1]} : vector<11x256xf32> to vector<11x128xf32>
    %170 = vector.extract_strided_slice %168 {offsets = [0, 128], sizes = [11, 128], strides = [1, 1]} : vector<11x256xf32> to vector<11x128xf32>
    %171 = arith.maximumf %169, %170 : vector<11x128xf32>
    %172 = vector.broadcast %0 : vector<1x128xf32> to vector<11x128xf32>
    %173 = arith.addf %171, %172 : vector<11x128xf32>
    %cst_148 = arith.constant 0.000000e+00 : f32
    %174 = vector.broadcast %cst_148 : f32 to vector<11x128xf32>
    %175 = arith.maximumf %173, %174 : vector<11x128xf32>
    %176 = arith.truncf %175 : vector<11x128xf32> to vector<11x128xbf16>
    %c0_149 = arith.constant 0 : index
    %c0_150 = arith.constant 0 : index
    %177 = vector.load %arg1[%c0_149, %c0_150] : memref<16x64xbf16, #tpu.memory_space<vmem>>, vector<12x64xbf16>
    %c0_151 = arith.constant 0 : index
    %c0_152 = arith.constant 0 : index
    %c1280 = arith.constant 1280 : index
    %178 = vector.load %arg2[%c0_151, %c0_152, %c1280] : memref<5x64x1536xbf16, #tpu.memory_space<vmem>>, vector<1x64x256xbf16>
    %179 = vector.shape_cast %178 : vector<1x64x256xbf16> to vector<64x256xbf16>
    %cst_153 = arith.constant dense<0.000000e+00> : vector<12x256xf32>
    %180 = tpu.matmul %177, %179, %cst_153 {dimension_numbers = #tpu.dot_dimension_numbers<[1], [0], [0], [1], [0, 0, 1, 1], [], []>} : vector<12x64xbf16>, vector<64x256xbf16>, vector<12x256xf32> -> vector<12x256xf32>
    %c1_154 = arith.constant 1 : index
    %c0_155 = arith.constant 0 : index
    %181 = vector.load %arg1[%c1_154, %c0_155] : memref<16x64xbf16, #tpu.memory_space<vmem>>, vector<12x64xbf16>
    %c1_156 = arith.constant 1 : index
    %c0_157 = arith.constant 0 : index
    %c1280_158 = arith.constant 1280 : index
    %182 = vector.load %arg2[%c1_156, %c0_157, %c1280_158] : memref<5x64x1536xbf16, #tpu.memory_space<vmem>>, vector<1x64x256xbf16>
    %183 = vector.shape_cast %182 : vector<1x64x256xbf16> to vector<64x256xbf16>
    %cst_159 = arith.constant dense<0.000000e+00> : vector<12x256xf32>
    %184 = tpu.matmul %181, %183, %cst_159 {dimension_numbers = #tpu.dot_dimension_numbers<[1], [0], [0], [1], [0, 0, 1, 1], [], []>} : vector<12x64xbf16>, vector<64x256xbf16>, vector<12x256xf32> -> vector<12x256xf32>
    %185 = arith.addf %180, %184 : vector<12x256xf32>
    %c2_160 = arith.constant 2 : index
    %c0_161 = arith.constant 0 : index
    %186 = vector.load %arg1[%c2_160, %c0_161] : memref<16x64xbf16, #tpu.memory_space<vmem>>, vector<12x64xbf16>
    %c2_162 = arith.constant 2 : index
    %c0_163 = arith.constant 0 : index
    %c1280_164 = arith.constant 1280 : index
    %187 = vector.load %arg2[%c2_162, %c0_163, %c1280_164] : memref<5x64x1536xbf16, #tpu.memory_space<vmem>>, vector<1x64x256xbf16>
    %188 = vector.shape_cast %187 : vector<1x64x256xbf16> to vector<64x256xbf16>
    %cst_165 = arith.constant dense<0.000000e+00> : vector<12x256xf32>
    %189 = tpu.matmul %186, %188, %cst_165 {dimension_numbers = #tpu.dot_dimension_numbers<[1], [0], [0], [1], [0, 0, 1, 1], [], []>} : vector<12x64xbf16>, vector<64x256xbf16>, vector<12x256xf32> -> vector<12x256xf32>
    %190 = arith.addf %185, %189 : vector<12x256xf32>
    %c3_166 = arith.constant 3 : index
    %c0_167 = arith.constant 0 : index
    %191 = vector.load %arg1[%c3_166, %c0_167] : memref<16x64xbf16, #tpu.memory_space<vmem>>, vector<12x64xbf16>
    %c3_168 = arith.constant 3 : index
    %c0_169 = arith.constant 0 : index
    %c1280_170 = arith.constant 1280 : index
    %192 = vector.load %arg2[%c3_168, %c0_169, %c1280_170] : memref<5x64x1536xbf16, #tpu.memory_space<vmem>>, vector<1x64x256xbf16>
    %193 = vector.shape_cast %192 : vector<1x64x256xbf16> to vector<64x256xbf16>
    %cst_171 = arith.constant dense<0.000000e+00> : vector<12x256xf32>
    %194 = tpu.matmul %191, %193, %cst_171 {dimension_numbers = #tpu.dot_dimension_numbers<[1], [0], [0], [1], [0, 0, 1, 1], [], []>} : vector<12x64xbf16>, vector<64x256xbf16>, vector<12x256xf32> -> vector<12x256xf32>
    %195 = arith.addf %190, %194 : vector<12x256xf32>
    %c4_172 = arith.constant 4 : index
    %c0_173 = arith.constant 0 : index
    %196 = vector.load %arg1[%c4_172, %c0_173] : memref<16x64xbf16, #tpu.memory_space<vmem>>, vector<12x64xbf16>
    %c4_174 = arith.constant 4 : index
    %c0_175 = arith.constant 0 : index
    %c1280_176 = arith.constant 1280 : index
    %197 = vector.load %arg2[%c4_174, %c0_175, %c1280_176] : memref<5x64x1536xbf16, #tpu.memory_space<vmem>>, vector<1x64x256xbf16>
    %198 = vector.shape_cast %197 : vector<1x64x256xbf16> to vector<64x256xbf16>
    %cst_177 = arith.constant dense<0.000000e+00> : vector<12x256xf32>
    %199 = tpu.matmul %196, %198, %cst_177 {dimension_numbers = #tpu.dot_dimension_numbers<[1], [0], [0], [1], [0, 0, 1, 1], [], []>} : vector<12x64xbf16>, vector<64x256xbf16>, vector<12x256xf32> -> vector<12x256xf32>
    %200 = arith.addf %195, %199 : vector<12x256xf32>
    %201 = vector.extract_strided_slice %200 {offsets = [0, 0], sizes = [11, 256], strides = [1, 1]} : vector<12x256xf32> to vector<11x256xf32>
    %202 = vector.extract_strided_slice %200 {offsets = [1, 0], sizes = [11, 256], strides = [1, 1]} : vector<12x256xf32> to vector<11x256xf32>
    %203 = arith.maximumf %201, %202 : vector<11x256xf32>
    %204 = vector.extract_strided_slice %203 {offsets = [0, 0], sizes = [11, 128], strides = [1, 1]} : vector<11x256xf32> to vector<11x128xf32>
    %205 = vector.extract_strided_slice %203 {offsets = [0, 128], sizes = [11, 128], strides = [1, 1]} : vector<11x256xf32> to vector<11x128xf32>
    %206 = arith.maximumf %204, %205 : vector<11x128xf32>
    %207 = vector.broadcast %0 : vector<1x128xf32> to vector<11x128xf32>
    %208 = arith.addf %206, %207 : vector<11x128xf32>
    %cst_178 = arith.constant 0.000000e+00 : f32
    %209 = vector.broadcast %cst_178 : f32 to vector<11x128xf32>
    %210 = arith.maximumf %208, %209 : vector<11x128xf32>
    %211 = arith.truncf %210 : vector<11x128xf32> to vector<11x128xbf16>
    %212 = tpu.concatenate %36, %71, %106, %141, %176, %211 in 1 : vector<11x128xbf16>, vector<11x128xbf16>, vector<11x128xbf16>, vector<11x128xbf16>, vector<11x128xbf16>, vector<11x128xbf16> -> vector<11x768xbf16>
    %213 = vector.extract_strided_slice %212 {offsets = [0, 0], sizes = [3, 768], strides = [1, 1]} : vector<11x768xbf16> to vector<3x768xbf16>
    %c0_179 = arith.constant 0 : index
    %c0_180 = arith.constant 0 : index
    %c0_181 = arith.constant 0 : index
    %214 = vector.load %arg4[%c0_179, %c0_180, %c0_181] : memref<5x768x256xbf16, #tpu.memory_space<vmem>>, vector<1x768x256xbf16>
    %215 = vector.shape_cast %214 : vector<1x768x256xbf16> to vector<768x256xbf16>
    %cst_182 = arith.constant dense<0.000000e+00> : vector<3x256xf32>
    %216 = tpu.matmul %213, %215, %cst_182 {dimension_numbers = #tpu.dot_dimension_numbers<[1], [0], [0], [1], [0, 0, 1, 1], [], []>} : vector<3x768xbf16>, vector<768x256xbf16>, vector<3x256xf32> -> vector<3x256xf32>
    %217 = vector.extract_strided_slice %212 {offsets = [2, 0], sizes = [3, 768], strides = [1, 1]} : vector<11x768xbf16> to vector<3x768xbf16>
    %c1_183 = arith.constant 1 : index
    %c0_184 = arith.constant 0 : index
    %c0_185 = arith.constant 0 : index
    %218 = vector.load %arg4[%c1_183, %c0_184, %c0_185] : memref<5x768x256xbf16, #tpu.memory_space<vmem>>, vector<1x768x256xbf16>
    %219 = vector.shape_cast %218 : vector<1x768x256xbf16> to vector<768x256xbf16>
    %cst_186 = arith.constant dense<0.000000e+00> : vector<3x256xf32>
    %220 = tpu.matmul %217, %219, %cst_186 {dimension_numbers = #tpu.dot_dimension_numbers<[1], [0], [0], [1], [0, 0, 1, 1], [], []>} : vector<3x768xbf16>, vector<768x256xbf16>, vector<3x256xf32> -> vector<3x256xf32>
    %221 = arith.addf %216, %220 : vector<3x256xf32>
    %222 = vector.extract_strided_slice %212 {offsets = [4, 0], sizes = [3, 768], strides = [1, 1]} : vector<11x768xbf16> to vector<3x768xbf16>
    %c2_187 = arith.constant 2 : index
    %c0_188 = arith.constant 0 : index
    %c0_189 = arith.constant 0 : index
    %223 = vector.load %arg4[%c2_187, %c0_188, %c0_189] : memref<5x768x256xbf16, #tpu.memory_space<vmem>>, vector<1x768x256xbf16>
    %224 = vector.shape_cast %223 : vector<1x768x256xbf16> to vector<768x256xbf16>
    %cst_190 = arith.constant dense<0.000000e+00> : vector<3x256xf32>
    %225 = tpu.matmul %222, %224, %cst_190 {dimension_numbers = #tpu.dot_dimension_numbers<[1], [0], [0], [1], [0, 0, 1, 1], [], []>} : vector<3x768xbf16>, vector<768x256xbf16>, vector<3x256xf32> -> vector<3x256xf32>
    %226 = arith.addf %221, %225 : vector<3x256xf32>
    %227 = vector.extract_strided_slice %212 {offsets = [6, 0], sizes = [3, 768], strides = [1, 1]} : vector<11x768xbf16> to vector<3x768xbf16>
    %c3_191 = arith.constant 3 : index
    %c0_192 = arith.constant 0 : index
    %c0_193 = arith.constant 0 : index
    %228 = vector.load %arg4[%c3_191, %c0_192, %c0_193] : memref<5x768x256xbf16, #tpu.memory_space<vmem>>, vector<1x768x256xbf16>
    %229 = vector.shape_cast %228 : vector<1x768x256xbf16> to vector<768x256xbf16>
    %cst_194 = arith.constant dense<0.000000e+00> : vector<3x256xf32>
    %230 = tpu.matmul %227, %229, %cst_194 {dimension_numbers = #tpu.dot_dimension_numbers<[1], [0], [0], [1], [0, 0, 1, 1], [], []>} : vector<3x768xbf16>, vector<768x256xbf16>, vector<3x256xf32> -> vector<3x256xf32>
    %231 = arith.addf %226, %230 : vector<3x256xf32>
    %232 = vector.extract_strided_slice %212 {offsets = [8, 0], sizes = [3, 768], strides = [1, 1]} : vector<11x768xbf16> to vector<3x768xbf16>
    %c4_195 = arith.constant 4 : index
    %c0_196 = arith.constant 0 : index
    %c0_197 = arith.constant 0 : index
    %233 = vector.load %arg4[%c4_195, %c0_196, %c0_197] : memref<5x768x256xbf16, #tpu.memory_space<vmem>>, vector<1x768x256xbf16>
    %234 = vector.shape_cast %233 : vector<1x768x256xbf16> to vector<768x256xbf16>
    %cst_198 = arith.constant dense<0.000000e+00> : vector<3x256xf32>
    %235 = tpu.matmul %232, %234, %cst_198 {dimension_numbers = #tpu.dot_dimension_numbers<[1], [0], [0], [1], [0, 0, 1, 1], [], []>} : vector<3x768xbf16>, vector<768x256xbf16>, vector<3x256xf32> -> vector<3x256xf32>
    %236 = arith.addf %231, %235 : vector<3x256xf32>
    %237 = vector.extract_strided_slice %236 {offsets = [0, 0], sizes = [1, 256], strides = [1, 1]} : vector<3x256xf32> to vector<1x256xf32>
    %238 = vector.extract_strided_slice %236 {offsets = [2, 0], sizes = [1, 256], strides = [1, 1]} : vector<3x256xf32> to vector<1x256xf32>
    %239 = arith.maximumf %237, %238 : vector<1x256xf32>
    %240 = vector.extract_strided_slice %239 {offsets = [0, 0], sizes = [1, 128], strides = [1, 1]} : vector<1x256xf32> to vector<1x128xf32>
    %241 = vector.extract_strided_slice %239 {offsets = [0, 128], sizes = [1, 128], strides = [1, 1]} : vector<1x256xf32> to vector<1x128xf32>
    %242 = arith.maximumf %240, %241 : vector<1x128xf32>
    %243 = arith.addf %242, %1 : vector<1x128xf32>
    %cst_199 = arith.constant 0.000000e+00 : f32
    %244 = vector.broadcast %cst_199 : f32 to vector<1x128xf32>
    %245 = arith.maximumf %243, %244 : vector<1x128xf32>
    %c0_200 = arith.constant 0 : index
    %c0_201 = arith.constant 0 : index
    %c0_202 = arith.constant 0 : index
    %246 = vector.load %arg6[%c0_200, %c0_201, %c0_202] : memref<1x1x128xf32, #tpu.memory_space<vmem>>, vector<1x1x128xf32>
    %247 = vector.shape_cast %246 : vector<1x1x128xf32> to vector<1x128xf32>
    %248 = vector.shape_cast %245 : vector<1x128xf32> to vector<1x1x128xf32>
    tpu.vector_store %arg6[%c0_200, %c0_201, %c0_202], %248 {strides = array<i32>} : memref<1x1x128xf32, #tpu.memory_space<vmem>>, vector<1x1x128xf32>,
    return
  }
  func.func @transform_0(%arg0: i32) -> (i32, i32) {
    %c0_i32 = arith.constant 0 : i32
    %c0_i32_0 = arith.constant 0 : i32
    return %arg0, %c0_i32 : i32, i32
  }
  func.func @transform_1(%arg0: i32) -> (i32, i32, i32) {
    %c0_i32 = arith.constant 0 : i32
    %c0_i32_0 = arith.constant 0 : i32
    %c0_i32_1 = arith.constant 0 : i32
    %c0_i32_2 = arith.constant 0 : i32
    return %c0_i32, %c0_i32_0, %c0_i32_1 : i32, i32, i32
  }
  func.func @transform_2(%arg0: i32) -> (i32, i32) {
    %c0_i32 = arith.constant 0 : i32
    %c0_i32_0 = arith.constant 0 : i32
    %c0_i32_1 = arith.constant 0 : i32
    return %c0_i32, %c0_i32_0 : i32, i32
  }
  func.func @transform_3(%arg0: i32) -> (i32, i32, i32) {
    %c0_i32 = arith.constant 0 : i32
    %c0_i32_0 = arith.constant 0 : i32
    %c0_i32_1 = arith.constant 0 : i32
    %c0_i32_2 = arith.constant 0 : i32
    return %c0_i32, %c0_i32_0, %c0_i32_1 : i32, i32, i32
  }
  func.func @transform_4(%arg0: i32) -> (i32, i32) {
    %c0_i32 = arith.constant 0 : i32
    %c0_i32_0 = arith.constant 0 : i32
    %c0_i32_1 = arith.constant 0 : i32
    return %c0_i32, %c0_i32_0 : i32, i32
  }
  func.func @transform_5(%arg0: i32) -> (i32, i32, i32) {
    %c0_i32 = arith.constant 0 : i32
    %c0_i32_0 = arith.constant 0 : i32
    %c0_i32_1 = arith.constant 0 : i32
    return %arg0, %c0_i32, %c0_i32_0 : i32, i32, i32
  }
}

</mosaic_0001>

<llo_original>
// kernel: tpu_custom_call.1
$region0: #{tpu_custom_call.1}
  #allocation0 [shape = 'u32[]', space=smem, size = 0x4, offset = 0x4, fixed_abs, tag = 'smem constant byte address 0x4 - core index']
  #allocation1 [shape = 'u32[144,128]{1,0:T(1,128)}', space=vmem, size = 0x12000, scoped, tag = 'internal scratch']
  %s0 = inlined_call_operand.hbm [shape: bf16[32,64], index: 0, kind: input, shape index: {}]
  %s1 = inlined_call_operand.hbm [shape: bf16[5,64,1536], index: 1, kind: input, shape index: {}]
  %s2 = inlined_call_operand.hbm [shape: f32[1,128], index: 2, kind: input, shape index: {}]
  %s3 = inlined_call_operand.hbm [shape: bf16[5,768,256], index: 3, kind: input, shape index: {}]
  %s4 = inlined_call_operand.hbm [shape: f32[1,128], index: 4, kind: input, shape index: {}]
  %s5 = inlined_call_operand.hbm [shape: f32[2,1,128], index: 5, kind: output, shape index: {}]
  %s6 = sld [smem:[#allocation0]]
  $region73: #{tpu_custom_call.1} parent=0
    _
  %s8 = ssub.s32 1, %s6
  %s9 = scalar_select 0, %s8, %s6
  $region1: #{tpu_custom_call.1} parent=0
    #allocation2 [shape = 'u8[8192]{0}', space=vmem, size = 0x2000, scoped, tag = 'input window, operand 0']
    #allocation3 [shape = 's32[2]{0}', space=sflag, size = 0x8, scoped, tag = 'scoped memory for tpu_custom_call.1']
    #allocation4 [shape = 's32[2]{0}', space=sflag, size = 0x8, scoped, tag = 'scoped memory for tpu_custom_call.1']
    #allocation5 [shape = 'u8[983040]{0}', space=vmem, size = 0xf0000, scoped, tag = 'input window, operand 1, single buffered']
    #allocation6 [shape = 's32[1]{0}', space=sflag, size = 0x4, scoped, tag = 'scoped memory for tpu_custom_call.1']
    #allocation7 [shape = 'u8[512]{0}', space=vmem, size = 0x400, scoped, tag = 'input window, operand 2, single buffered']
    #allocation8 [shape = 'u8[1966080]{0}', space=vmem, size = 0x1e0000, scoped, tag = 'input window, operand 3, single buffered']
    #allocation9 [shape = 's32[1]{0}', space=sflag, size = 0x4, scoped, tag = 'scoped memory for tpu_custom_call.1']
    #allocation10 [shape = 'u8[512]{0}', space=vmem, size = 0x400, scoped, tag = 'input window, operand 4, single buffered']
    #allocation11 [shape = 'u8[1024]{0}', space=vmem, size = 0x400, scoped, tag = 'output window, operand 0']
    %10 = vsyncpa [#allocation3], 0
    %s11 = scalar_lea.sflag [#allocation3], 1
    %12 = vsyncpa %s11, 0
    %13 = vsyncpa [#allocation6], 0
    %14 = vsyncpa [#allocation9], 0
    %15 = vsyncpa [#allocation4], 0
    %s16 = scalar_lea.sflag [#allocation4], 1
    %17 = vsyncpa %s16, 0
    loop: start=0, step=1, limit=4
    $region2: #{tpu_custom_call.1} parent=1 // loop_pre_header
      _
    $region3: #{tpu_custom_call.1} parent=1 // loop_header
      %s19 = sphi 0, %s23
      %p20 = scmp.ge.s32.totalorder %s19, 4
      %s29 = sphi 0, %s31
      %s32 = sphi 0, %s29
      %s33 = sphi 0, %s32
      %s49 = sphi 0, %s33
      %s53 = sphi 0, %s53
      %s55 = sphi 0, %s53
      %s56 = sphi 0, %s55
      %s70 = sphi 0, %s56
      %s74 = sphi 0, %s74
      %s76 = sphi 0, %s74
      %s77 = sphi 0, %s76
      %s91 = sphi 0, %s77
      %s95 = sphi 0, %s95
      %s97 = sphi 0, %s95
      %s98 = sphi 0, %s97
      %s112 = sphi 0, %s98
      %s116 = sphi 0, %s116
      %s118 = sphi 0, %s116
      %s119 = sphi 0, %s118
      %s133 = sphi 0, %s119
      %s139 = sphi 0, %s141
      %s142 = sphi 0, %s139
      %s143 = sphi 0, %s142
      %s159 = sphi 0, %s143
    $region4: #{tpu_custom_call.1} parent=1 // loop_header_branch
      %22 = sbr.rel (%p20) target = $region8
    $region5: #{tpu_custom_call.1} parent=1 // loop_body
      %s24 = ssub.s32 %s19, 1
      %s25 = ssub.s32 %s19, 2
      %s26 = sadd.s32 %s19, 1
      %s27 = ssub.s32 %s19, %s26
      %p28 = scmp.eq.s32.totalorder %s27, 0
      %s30 = sadd.s32 %s29, 1
      %s31 = scalar_select %p28, %s29, %s30
      %p34 = pneg %p28
      %p35 = scmp.eq.s32.totalorder %s19, 1
      %p36 = por %p34, %p35
      %p37 = scmp.ne.s32.totalorder %s29, %s32
      %p38 = scmp.eq.s32.totalorder %s19, 0
      %p39 = por %p37, %p38
      %p40 = scmp.ne.s32.totalorder %s29, %s32
      %p41 = scmp.eq.s32.totalorder %s24, 1
      %p42 = por %p40, %p41
      %p43 = scmp.ne.s32.totalorder %s32, %s33
      %p44 = scmp.eq.s32.totalorder %s24, 0
      %p45 = por %p43, %p44
      %p46 = scmp.ne.s32.totalorder %s32, %s33
      %p47 = scmp.eq.s32.totalorder %s25, 1
      %p48 = por %p46, %p47
      %p50 = scmp.ne.s32.totalorder %s33, %s49
      %p51 = scmp.eq.s32.totalorder %s25, 0
      %p52 = por %p50, %p51
      %s54 = sadd.s32 %s53, 1
      %p57 = scmp.eq.s32.totalorder %s19, 1
      %p58 = scmp.ne.s32.totalorder %s53, %s55
      %p59 = scmp.eq.s32.totalorder %s19, 0
      %p60 = por %p58, %p59
      %p61 = scmp.ne.s32.totalorder %s53, %s55
      %p62 = scmp.eq.s32.totalorder %s24, 1
      %p63 = por %p61, %p62
      %p64 = scmp.ne.s32.totalorder %s55, %s56
      %p65 = scmp.eq.s32.totalorder %s24, 0
      %p66 = por %p64, %p65
      %p67 = scmp.ne.s32.totalorder %s55, %s56
      %p68 = scmp.eq.s32.totalorder %s25, 1
      %p69 = por %p67, %p68
      %p71 = scmp.ne.s32.totalorder %s56, %s70
      %p72 = scmp.eq.s32.totalorder %s25, 0
      %p73 = por %p71, %p72
      %s75 = sadd.s32 %s74, 1
      %p78 = scmp.eq.s32.totalorder %s19, 1
      %p79 = scmp.ne.s32.totalorder %s74, %s76
      %p80 = scmp.eq.s32.totalorder %s19, 0
      %p81 = por %p79, %p80
      %p82 = scmp.ne.s32.totalorder %s74, %s76
      %p83 = scmp.eq.s32.totalorder %s24, 1
      %p84 = por %p82, %p83
      %p85 = scmp.ne.s32.totalorder %s76, %s77
      %p86 = scmp.eq.s32.totalorder %s24, 0
      %p87 = por %p85, %p86
      %p88 = scmp.ne.s32.totalorder %s76, %s77
      %p89 = scmp.eq.s32.totalorder %s25, 1
      %p90 = por %p88, %p89
      %p92 = scmp.ne.s32.totalorder %s77, %s91
      %p93 = scmp.eq.s32.totalorder %s25, 0
      %p94 = por %p92, %p93
      %s96 = sadd.s32 %s95, 1
      %p99 = scmp.eq.s32.totalorder %s19, 1
      %p100 = scmp.ne.s32.totalorder %s95, %s97
      %p101 = scmp.eq.s32.totalorder %s19, 0
      %p102 = por %p100, %p101
      %p103 = scmp.ne.s32.totalorder %s95, %s97
      %p104 = scmp.eq.s32.totalorder %s24, 1
      %p105 = por %p103, %p104
      %p106 = scmp.ne.s32.totalorder %s97, %s98
      %p107 = scmp.eq.s32.totalorder %s24, 0
      %p108 = por %p106, %p107
      %p109 = scmp.ne.s32.totalorder %s97, %s98
      %p110 = scmp.eq.s32.totalorder %s25, 1
      %p111 = por %p109, %p110
      %p113 = scmp.ne.s32.totalorder %s98, %s112
      %p114 = scmp.eq.s32.totalorder %s25, 0
      %p115 = por %p113, %p114
      %s117 = sadd.s32 %s116, 1
      %p120 = scmp.eq.s32.totalorder %s19, 1
      %p121 = scmp.ne.s32.totalorder %s116, %s118
      %p122 = scmp.eq.s32.totalorder %s19, 0
      %p123 = por %p121, %p122
      %p124 = scmp.ne.s32.totalorder %s116, %s118
      %p125 = scmp.eq.s32.totalorder %s24, 1
      %p126 = por %p124, %p125
      %p127 = scmp.ne.s32.totalorder %s118, %s119
      %p128 = scmp.eq.s32.totalorder %s24, 0
      %p129 = por %p127, %p128
      %p130 = scmp.ne.s32.totalorder %s118, %s119
      %p131 = scmp.eq.s32.totalorder %s25, 1
      %p132 = por %p130, %p131
      %p134 = scmp.ne.s32.totalorder %s119, %s133
      %p135 = scmp.eq.s32.totalorder %s25, 0
      %p136 = por %p134, %p135
      %s137 = ssub.s32 %s19, %s26
      %p138 = scmp.eq.s32.totalorder %s137, 0
      %s140 = sadd.s32 %s139, 1
      %s141 = scalar_select %p138, %s139, %s140
      %p144 = pneg %p138
      %p145 = scmp.eq.s32.totalorder %s19, 1
      %p146 = por %p144, %p145
      %p147 = scmp.ne.s32.totalorder %s139, %s142
      %p148 = scmp.eq.s32.totalorder %s19, 0
      %p149 = por %p147, %p148
      %p150 = scmp.ne.s32.totalorder %s139, %s142
      %p151 = scmp.eq.s32.totalorder %s24, 1
      %p152 = por %p150, %p151
      %p153 = scmp.ne.s32.totalorder %s142, %s143
      %p154 = scmp.eq.s32.totalorder %s24, 0
      %p155 = por %p153, %p154
      %p156 = scmp.ne.s32.totalorder %s142, %s143
      %p157 = scmp.eq.s32.totalorder %s25, 1
      %p158 = por %p156, %p157
      %p160 = scmp.ne.s32.totalorder %s143, %s159
      %p161 = scmp.eq.s32.totalorder %s25, 0
      %p162 = por %p160, %p161
      %p163 = scmp.le.s32.totalorder 1, %s19
      %p164 = scmp.lt.s32.totalorder %s19, 3
      %p165 = pnand %p163, %p164
      %p166 = pneg %p165
      // Predicated region
      $region9: #{tpu_custom_call.1} parent=5 // pred_check
        _
      $region10: #{tpu_custom_call.1} parent=5 // pred_check_branch
        %168 = sbr.rel (%p165) target = $region12
      $region11: #{tpu_custom_call.1} parent=5 // pred_region
        %s169 = ssub.s32 %s19, 1
        // Predicated region
        $region13: #{tpu_custom_call.1} parent=11 // pred_check
          %p170 = pneg %p66
        $region14: #{tpu_custom_call.1} parent=11 // pred_check_branch
          %172 = sbr.rel (%p170) target = $region16
        $region15: #{tpu_custom_call.1} parent=11 // pred_region
          %s174 = ssub.s32 30720, 30720
          %175 = vsyncadd [#allocation6], %s174
          %s176 = sshll.u32 [#allocation5], 4
          %s177 = int_to_ptr.vmem [resolvable:$true] %s176
          %182 = dma.hbm_to_vmem [thread:$0]  %s1, 30720, %s177, [#allocation6], 768, 768, 48
        $region16: #{tpu_custom_call.1} parent=11 // pred_fallthru
          _
        // Predicated region
        $region17: #{tpu_custom_call.1} parent=11 // pred_check
          %p183 = pneg %p87
        $region18: #{tpu_custom_call.1} parent=11 // pred_check_branch
          %185 = sbr.rel (%p183) target = $region20
        $region19: #{tpu_custom_call.1} parent=11 // pred_region
          %s187 = ssub.s32 16, 16
          %188 = vsyncadd [#allocation6], %s187
          %s190 = sshll.u32 [#allocation7], 4
          %s191 = int_to_ptr.vmem [resolvable:$true] %s190
          %193 = dma.hbm_to_vmem [thread:$0]  %s2, 16, %s191, [#allocation6]
        $region20: #{tpu_custom_call.1} parent=11 // pred_fallthru
          _
        // Predicated region
        $region21: #{tpu_custom_call.1} parent=11 // pred_check
          %p194 = pneg %p108
        $region22: #{tpu_custom_call.1} parent=11 // pred_check_branch
          %196 = sbr.rel (%p194) target = $region24
        $region23: #{tpu_custom_call.1} parent=11 // pred_region
          %s198 = ssub.s32 61440, 61440
          %199 = vsyncadd [#allocation9], %s198
          %s200 = sshll.u32 [#allocation8], 4
          %s201 = int_to_ptr.vmem [resolvable:$true] %s200
          %206 = dma.hbm_to_vmem [thread:$0]  %s3, 61440, %s201, [#allocation9], 128, 128, 8
        $region24: #{tpu_custom_call.1} parent=11 // pred_fallthru
          _
        // Predicated region
        $region25: #{tpu_custom_call.1} parent=11 // pred_check
          %p207 = pneg %p129
        $region26: #{tpu_custom_call.1} parent=11 // pred_check_branch
          %209 = sbr.rel (%p207) target = $region28
        $region27: #{tpu_custom_call.1} parent=11 // pred_region
          %s211 = ssub.s32 16, 16
          %212 = vsyncadd [#allocation9], %s211
          %s214 = sshll.u32 [#allocation10], 4
          %s215 = int_to_ptr.vmem [resolvable:$true] %s214
          %217 = dma.hbm_to_vmem [thread:$0]  %s4, 16, %s215, [#allocation9]
        $region28: #{tpu_custom_call.1} parent=11 // pred_fallthru
          _
      $region12: #{tpu_custom_call.1} parent=5 // pred_fallthru
        _
      %p218 = scmp.lt.s32.totalorder %s19, 2
      // Predicated region
      $region29: #{tpu_custom_call.1} parent=5 // pred_check
        %p219 = pneg %p218
      $region30: #{tpu_custom_call.1} parent=5 // pred_check_branch
        %221 = sbr.rel (%p219) target = $region32
      $region31: #{tpu_custom_call.1} parent=5 // pred_region
        // Predicated region
        $region33: #{tpu_custom_call.1} parent=31 // pred_check
          %p222 = pneg %p39
        $region34: #{tpu_custom_call.1} parent=31 // pred_check_branch
          %224 = sbr.rel (%p222) target = $region36
        $region35: #{tpu_custom_call.1} parent=31 // pred_region
          %s225 = sand.u32 %s29, 1
          %s226 = scalar_lea.sflag [#allocation3], %s225
          %s227 = sand.u32 %s29, 1
          %s228 = smul.addr %s227, 8
          %s229 = scalar_lea.vmem [#allocation2], %s228
          %s230 = smul.u32 2, %s19
          %s232 = ssub.s32 128, 128
          %233 = vsyncadd %s226, %s232
          %s234 = smul.addr %s230, 64
          %s235 = scalar_lea.hbm %s0, %s234
          %s236 = sshll.u32 %s229, 4
          %s237 = int_to_ptr.vmem [resolvable:$true] %s236
          %242 = dma.hbm_to_vmem [thread:$0]  %s235, 128, %s237, %s226, 64, 64, 4
        $region36: #{tpu_custom_call.1} parent=31 // pred_fallthru
          _
      $region32: #{tpu_custom_call.1} parent=5 // pred_fallthru
        _
      %p243 = scmp.le.s32.totalorder 1, %s19
      %p244 = scmp.lt.s32.totalorder %s19, 3
      %p245 = pnand %p243, %p244
      %p246 = pneg %p245
      // Predicated region
      $region37: #{tpu_custom_call.1} parent=5 // pred_check
        _
      $region38: #{tpu_custom_call.1} parent=5 // pred_check_branch
        %248 = sbr.rel (%p245) target = $region40
      $region39: #{tpu_custom_call.1} parent=5 // pred_region
        %s249 = ssub.s32 %s19, 1
        %s250 = sand.u32 %s32, 1
        %s251 = scalar_lea.sflag [#allocation3], %s250
        %s252 = sand.u32 %s32, 1
        %s253 = smul.addr %s252, 8
        %s254 = scalar_lea.vmem [#allocation2], %s253
        // Predicated region
        $region41: #{tpu_custom_call.1} parent=39 // pred_check
          %p255 = pneg %p45
        $region42: #{tpu_custom_call.1} parent=39 // pred_check_branch
          %257 = sbr.rel (%p255) target = $region44
        $region43: #{tpu_custom_call.1} parent=39 // pred_region
          %258 = dma.done %s251, 128
        $region44: #{tpu_custom_call.1} parent=39 // pred_fallthru
          _
        // Predicated region
        $region45: #{tpu_custom_call.1} parent=39 // pred_check
          %p259 = pneg %p66
        $region46: #{tpu_custom_call.1} parent=39 // pred_check_branch
          %261 = sbr.rel (%p259) target = $region48
        $region47: #{tpu_custom_call.1} parent=39 // pred_region
          %262 = dma.done [#allocation6], 30720
        $region48: #{tpu_custom_call.1} parent=39 // pred_fallthru
          _
        // Predicated region
        $region49: #{tpu_custom_call.1} parent=39 // pred_check
          %p263 = pneg %p87
        $region50: #{tpu_custom_call.1} parent=39 // pred_check_branch
          %265 = sbr.rel (%p263) target = $region52
        $region51: #{tpu_custom_call.1} parent=39 // pred_region
          %266 = dma.done [#allocation6], 16
        $region52: #{tpu_custom_call.1} parent=39 // pred_fallthru
          _
        // Predicated region
        $region53: #{tpu_custom_call.1} parent=39 // pred_check
          %p267 = pneg %p108
        $region54: #{tpu_custom_call.1} parent=39 // pred_check_branch
          %269 = sbr.rel (%p267) target = $region56
        $region55: #{tpu_custom_call.1} parent=39 // pred_region
          %270 = dma.done [#allocation9], 61440
        $region56: #{tpu_custom_call.1} parent=39 // pred_fallthru
          _
        // Predicated region
        $region57: #{tpu_custom_call.1} parent=39 // pred_check
          %p271 = pneg %p129
        $region58: #{tpu_custom_call.1} parent=39 // pred_check_branch
          %273 = sbr.rel (%p271) target = $region60
        $region59: #{tpu_custom_call.1} parent=39 // pred_region
          %274 = dma.done [#allocation9], 16
        $region60: #{tpu_custom_call.1} parent=39 // pred_fallthru
          _
        %s275 = sand.u32 %s32, 1
        %s276 = scalar_lea.sflag [#allocation3], %s275
        %s277 = sand.u32 %s32, 1
        %s278 = smul.addr %s277, 8
        %s279 = scalar_lea.vmem [#allocation2], %s278
        %p280 = pneg %p45
        %p281 = pneg %p42
        %p282 = pneg %p66
        %p283 = pneg %p63
        %p284 = pneg %p87
        %p285 = pneg %p84
        %p286 = pneg %p108
        %p287 = pneg %p105
        %p288 = pneg %p129
        %p289 = pneg %p126
        %p290 = pneg %p155
        %p291 = pneg %p152
        %s292 = sand.u32 %s142, 1
        %s293 = scalar_lea.sflag [#allocation4], %s292
        %s294 = sand.u32 %s142, 1
        %s295 = scalar_lea.vmem [#allocation11], %s294
        %s296 = smul.u32 2, %s24
        %v298 = vld [vmem:[#allocation7] sm:$0x1]
        %v299 = vld [vmem:[#allocation10] sm:$0x1]
        %v300 = vld [vmem:[%s254] sm:$0xf]
        %v301 = vld [vmem:[%s254 + $0x4] sm:$0x3]
        %v302 = vld [vmem:[#allocation5] sm:$0xff]
        %v303 = vld [vmem:[#allocation5 + $0x30] sm:$0xff]
        %v304 = vld [vmem:[#allocation5 + $0x60] sm:$0xff]
        %v305 = vld [vmem:[#allocation5 + $0x90] sm:$0xff]
        %v306 = vld [vmem:[#allocation5 + $0xc0] sm:$0xff]
        %v307 = vld [vmem:[#allocation5 + $0xf0] sm:$0xff]
        %v308 = vld [vmem:[#allocation5 + $0x120] sm:$0xff]
        %v309 = vld [vmem:[#allocation5 + $0x150] sm:$0xff]
        %v310 = vld [vmem:[%s254 + $0x4] sm:$0x7]
        %s311 = scalar_lea.vmem [#allocation5], 384
        %v312 = vld [vmem:[%s311] sm:$0xff]
        %v313 = vld [vmem:[%s311 + $0x30] sm:$0xff]
        %v314 = vld [vmem:[%s311 + $0x60] sm:$0xff]
        %v315 = vld [vmem:[%s311 + $0x90] sm:$0xff]
        %v316 = vld [vmem:[%s311 + $0xc0] sm:$0xff]
        %v317 = vld [vmem:[%s311 + $0xf0] sm:$0xff]
        %v318 = vld [vmem:[%s311 + $0x120] sm:$0xff]
        %v319 = vld [vmem:[%s311 + $0x150] sm:$0xff]
        %v322 = vunpack.c.l.b16 %v300
        %v323 = vunpack.c.l.b16 %v310
        %v324 = vpack.c.b16 %v323, %v322
        %v326 = vshrl.u32 %v324, 16
        %v328 = vshll.u32 %v324, 16
        %v330 = vrot.slane %v328, 1
        %v331 = vor.u32 %v326, %v330
        %v340 = vunpack.c.l.b16 %v312
        %v341 = vunpack.c.h.b16 %v312
        %v342 = vunpack.c.l.b16 %v313
        %v343 = vunpack.c.h.b16 %v313
        %v344 = vunpack.c.l.b16 %v314
        %v345 = vunpack.c.h.b16 %v314
        %v346 = vunpack.c.l.b16 %v315
        %v347 = vunpack.c.h.b16 %v315
        %v348 = vunpack.c.l.b16 %v316
        %v349 = vunpack.c.h.b16 %v316
        %v350 = vunpack.c.l.b16 %v317
        %v351 = vunpack.c.h.b16 %v317
        %v352 = vunpack.c.l.b16 %v318
        %v353 = vunpack.c.h.b16 %v318
        %v354 = vunpack.c.l.b16 %v319
        %v355 = vunpack.c.h.b16 %v319
        %v356 = vpack.c.b16 %v342, %v340
        %v357 = vpack.c.b16 %v343, %v341
        %v358 = vpack.c.b16 %v346, %v344
        %v359 = vpack.c.b16 %v347, %v345
        %v360 = vpack.c.b16 %v350, %v348
        %v361 = vpack.c.b16 %v351, %v349
        %v362 = vpack.c.b16 %v354, %v352
        %v363 = vpack.c.b16 %v355, %v353
        %vm372 = vcmask 523264
        %v374 = vsel %vm372, %v331, 0
        %376 = vmatprep.subr.bf16.mxu0 0
        %377 = vmatpush1.bf16.msra.mxu0 0
        %378 = vmatprep.subr.bf16.mxu0 0
        %379 = vmatpush1.bf16.msra.mxu0 0
        %380 = vmatprep.subr.bf16.mxu0 0
        %381 = vmatpush1.bf16.msra.mxu0 0
        %382 = vmatprep.subr.bf16.mxu0 0
        %383 = vmatpush1.bf16.msra.mxu0 0
        %384 = vmatprep.subr.bf16.mxu0 %v363
        %385 = vmatpush1.bf16.msra.mxu0 %v362
        %386 = vmatprep.subr.bf16.mxu0 %v361
        %387 = vmatpush1.bf16.msra.mxu0 %v360
        %388 = vmatprep.subr.bf16.mxu0 %v359
        %389 = vmatpush1.bf16.msra.mxu0 %v358
        %390 = vmatprep.subr.bf16.mxu0 %v357
        %391 = vmatpush1.bf16.msra.mxu0 %v356
        %392 = vmatprep.subr.bf16.mxu0 0
        %393 = vmatpush2.bf16.msra.mxu0 0
        %394 = vmatprep.subr.bf16.mxu0 0
        %395 = vmatpush2.bf16.msra.mxu0 0
        %396 = vmatprep.subr.bf16.mxu0 0
        %397 = vmatpush2.bf16.msra.mxu0 0
        %398 = vmatprep.subr.bf16.mxu0 0
        %399 = vmatpush2.bf16.msra.mxu0 0
        %400 = vmatprep.subr.bf16.mxu0 0
        %401 = vmatpush2.bf16.msra.mxu0 0
        %402 = vmatprep.subr.bf16.mxu0 0
        %403 = vmatpush2.bf16.msra.mxu0 0
        %404 = vmatprep.subr.bf16.mxu0 0
        %405 = vmatpush2.bf16.msra.mxu0 0
        %406 = vmatprep.subr.bf16.mxu0 0
        %407 = vmatpush2.bf16.msra.mxu0 0
        %408 = vmatprep.mubr.bf16.mxu0 0
        %409 = vmatmul.mubr.bf16.gmra.mxu0 %v374
        %v410 = vpop.f32.mrf.mxu0
        %v411 = vadd.f32 0.0, %v410
        %v412 = vpop.f32.mrf.mxu0
        %v413 = vadd.f32 0.0, %v412
        %v414 = vpop.f32.mrf.mxu0
        %v415 = vadd.f32 0.0, %v414
        %v416 = vpop.f32.mrf.mxu0
        %v417 = vadd.f32 0.0, %v416
        %418 = vdwg.mxu0
        %v420 = vunpack.c.l.b16 %v301
        %v421 = vpack.c.b16 %v420, %v322
        %v430 = vunpack.c.l.b16 %v302
        %v431 = vunpack.c.h.b16 %v302
        %v432 = vunpack.c.l.b16 %v303
        %v433 = vunpack.c.h.b16 %v303
        %v434 = vunpack.c.l.b16 %v304
        %v435 = vunpack.c.h.b16 %v304
        %v436 = vunpack.c.l.b16 %v305
        %v437 = vunpack.c.h.b16 %v305
        %v438 = vunpack.c.l.b16 %v306
        %v439 = vunpack.c.h.b16 %v306
        %v440 = vunpack.c.l.b16 %v307
        %v441 = vunpack.c.h.b16 %v307
        %v442 = vunpack.c.l.b16 %v308
        %v443 = vunpack.c.h.b16 %v308
        %v444 = vunpack.c.l.b16 %v309
        %v445 = vunpack.c.h.b16 %v309
        %v446 = vpack.c.b16 %v432, %v430
        %v447 = vpack.c.b16 %v433, %v431
        %v448 = vpack.c.b16 %v436, %v434
        %v449 = vpack.c.b16 %v437, %v435
        %v450 = vpack.c.b16 %v440, %v438
        %v451 = vpack.c.b16 %v441, %v439
        %v452 = vpack.c.b16 %v444, %v442
        %v453 = vpack.c.b16 %v445, %v443
        %v463 = vsel %vm372, %v421, 0
        %465 = vmatprep.subr.bf16.mxu0 0
        %466 = vmatpush1.bf16.msra.mxu0 0
        %467 = vmatprep.subr.bf16.mxu0 0
        %468 = vmatpush1.bf16.msra.mxu0 0
        %469 = vmatprep.subr.bf16.mxu0 0
        %470 = vmatpush1.bf16.msra.mxu0 0
        %471 = vmatprep.subr.bf16.mxu0 0
        %472 = vmatpush1.bf16.msra.mxu0 0
        %473 = vmatprep.subr.bf16.mxu0 %v453
        %474 = vmatpush1.bf16.msra.mxu0 %v452
        %475 = vmatprep.subr.bf16.mxu0 %v451
        %476 = vmatpush1.bf16.msra.mxu0 %v450
        %477 = vmatprep.subr.bf16.mxu0 %v449
        %478 = vmatpush1.bf16.msra.mxu0 %v448
        %479 = vmatprep.subr.bf16.mxu0 %v447
        %480 = vmatpush1.bf16.msra.mxu0 %v446
        %481 = vmatprep.subr.bf16.mxu0 0
        %482 = vmatpush2.bf16.msra.mxu0 0
        %483 = vmatprep.subr.bf16.mxu0 0
        %484 = vmatpush2.bf16.msra.mxu0 0
        %485 = vmatprep.subr.bf16.mxu0 0
        %486 = vmatpush2.bf16.msra.mxu0 0
        %487 = vmatprep.subr.bf16.mxu0 0
        %488 = vmatpush2.bf16.msra.mxu0 0
        %489 = vmatprep.subr.bf16.mxu0 0
        %490 = vmatpush2.bf16.msra.mxu0 0
        %491 = vmatprep.subr.bf16.mxu0 0
        %492 = vmatpush2.bf16.msra.mxu0 0
        %493 = vmatprep.subr.bf16.mxu0 0
        %494 = vmatpush2.bf16.msra.mxu0 0
        %495 = vmatprep.subr.bf16.mxu0 0
        %496 = vmatpush2.bf16.msra.mxu0 0
        %497 = vmatprep.mubr.bf16.mxu0 0
        %498 = vmatmul.mubr.bf16.gmra.mxu0 %v463
        %v499 = vpop.f32.mrf.mxu0
        %v500 = vadd.f32 %v411, %v499
        %v501 = vpop.f32.mrf.mxu0
        %v502 = vadd.f32 %v413, %v501
        %v503 = vpop.f32.mrf.mxu0
        %v504 = vadd.f32 %v415, %v503
        %v505 = vpop.f32.mrf.mxu0
        %v506 = vadd.f32 %v417, %v505
        %507 = vdwg.mxu0
        %v508 = vld [vmem:[%s254] sm:$0xe]
        %s509 = scalar_lea.vmem [#allocation5], 768
        %v510 = vld [vmem:[%s509] sm:$0xff]
        %v511 = vld [vmem:[%s509 + $0x30] sm:$0xff]
        %v512 = vld [vmem:[%s509 + $0x60] sm:$0xff]
        %v513 = vld [vmem:[%s509 + $0x90] sm:$0xff]
        %v514 = vld [vmem:[%s509 + $0xc0] sm:$0xff]
        %v515 = vld [vmem:[%s509 + $0xf0] sm:$0xff]
        %v516 = vld [vmem:[%s509 + $0x120] sm:$0xff]
        %v517 = vld [vmem:[%s509 + $0x150] sm:$0xff]
        %v519 = vunpack.c.l.b16 %v508
        %v520 = vpack.c.b16 %v323, %v519
        %v521 = vrot.slane %v520, 1
        %v530 = vunpack.c.l.b16 %v510
        %v531 = vunpack.c.h.b16 %v510
        %v532 = vunpack.c.l.b16 %v511
        %v533 = vunpack.c.h.b16 %v511
        %v534 = vunpack.c.l.b16 %v512
        %v535 = vunpack.c.h.b16 %v512
        %v536 = vunpack.c.l.b16 %v513
        %v537 = vunpack.c.h.b16 %v513
        %v538 = vunpack.c.l.b16 %v514
        %v539 = vunpack.c.h.b16 %v514
        %v540 = vunpack.c.l.b16 %v515
        %v541 = vunpack.c.h.b16 %v515
        %v542 = vunpack.c.l.b16 %v516
        %v543 = vunpack.c.h.b16 %v516
        %v544 = vunpack.c.l.b16 %v517
        %v545 = vunpack.c.h.b16 %v517
        %v546 = vpack.c.b16 %v532, %v530
        %v547 = vpack.c.b16 %v533, %v531
        %v548 = vpack.c.b16 %v536, %v534
        %v549 = vpack.c.b16 %v537, %v535
        %v550 = vpack.c.b16 %v540, %v538
        %v551 = vpack.c.b16 %v541, %v539
        %v552 = vpack.c.b16 %v544, %v542
        %v553 = vpack.c.b16 %v545, %v543
        %v563 = vsel %vm372, %v521, 0
        %565 = vmatprep.subr.bf16.mxu0 0
        %566 = vmatpush1.bf16.msra.mxu0 0
        %567 = vmatprep.subr.bf16.mxu0 0
        %568 = vmatpush1.bf16.msra.mxu0 0
        %569 = vmatprep.subr.bf16.mxu0 0
        %570 = vmatpush1.bf16.msra.mxu0 0
        %571 = vmatprep.subr.bf16.mxu0 0
        %572 = vmatpush1.bf16.msra.mxu0 0
        %573 = vmatprep.subr.bf16.mxu0 %v553
        %574 = vmatpush1.bf16.msra.mxu0 %v552
        %575 = vmatprep.subr.bf16.mxu0 %v551
        %576 = vmatpush1.bf16.msra.mxu0 %v550
        %577 = vmatprep.subr.bf16.mxu0 %v549
        %578 = vmatpush1.bf16.msra.mxu0 %v548
        %579 = vmatprep.subr.bf16.mxu0 %v547
        %580 = vmatpush1.bf16.msra.mxu0 %v546
        %581 = vmatprep.subr.bf16.mxu0 0
        %582 = vmatpush2.bf16.msra.mxu0 0
        %583 = vmatprep.subr.bf16.mxu0 0
        %584 = vmatpush2.bf16.msra.mxu0 0
        %585 = vmatprep.subr.bf16.mxu0 0
        %586 = vmatpush2.bf16.msra.mxu0 0
        %587 = vmatprep.subr.bf16.mxu0 0
        %588 = vmatpush2.bf16.msra.mxu0 0
        %589 = vmatprep.subr.bf16.mxu0 0
        %590 = vmatpush2.bf16.msra.mxu0 0
        %591 = vmatprep.subr.bf16.mxu0 0
        %592 = vmatpush2.bf16.msra.mxu0 0
        %593 = vmatprep.subr.bf16.mxu0 0
        %594 = vmatpush2.bf16.msra.mxu0 0
        %595 = vmatprep.subr.bf16.mxu0 0
        %596 = vmatpush2.bf16.msra.mxu0 0
        %597 = vmatprep.mubr.bf16.mxu0 0
        %598 = vmatmul.mubr.bf16.gmra.mxu0 %v563
        %v599 = vpop.f32.mrf.mxu0
        %v600 = vadd.f32 0.0, %v599
        %v601 = vpop.f32.mrf.mxu0
        %v602 = vadd.f32 0.0, %v601
        %v603 = vpop.f32.mrf.mxu0
        %v604 = vadd.f32 0.0, %v603
        %v605 = vpop.f32.mrf.mxu0
        %v606 = vadd.f32 0.0, %v605
        %607 = vdwg.mxu0
        %v608 = vadd.f32 %v500, %v600
        %v609 = vadd.f32 %v502, %v602
        %v610 = vadd.f32 %v504, %v604
        %v611 = vadd.f32 %v506, %v606
        %v612 = vld [vmem:[%s254 + $0x4] sm:$0xf]
        %s613 = scalar_lea.vmem [#allocation5], 1152
        %v614 = vld [vmem:[%s613] sm:$0xff]
        %v615 = vld [vmem:[%s613 + $0x30] sm:$0xff]
        %v616 = vld [vmem:[%s613 + $0x60] sm:$0xff]
        %v617 = vld [vmem:[%s613 + $0x90] sm:$0xff]
        %v618 = vld [vmem:[%s613 + $0xc0] sm:$0xff]
        %v619 = vld [vmem:[%s613 + $0xf0] sm:$0xff]
        %v620 = vld [vmem:[%s613 + $0x120] sm:$0xff]
        %v621 = vld [vmem:[%s613 + $0x150] sm:$0xff]
        %v623 = vunpack.c.l.b16 %v612
        %v624 = vpack.c.b16 %v623, %v519
        %v626 = vshrl.u32 %v624, 16
        %v628 = vrot.slane %v626, 1
        %v629 = vshll.u32 %v624, 16
        %v631 = vrot.slane %v629, 2
        %v632 = vor.u32 %v628, %v631
        %v641 = vunpack.c.l.b16 %v614
        %v642 = vunpack.c.h.b16 %v614
        %v643 = vunpack.c.l.b16 %v615
        %v644 = vunpack.c.h.b16 %v615
        %v645 = vunpack.c.l.b16 %v616
        %v646 = vunpack.c.h.b16 %v616
        %v647 = vunpack.c.l.b16 %v617
        %v648 = vunpack.c.h.b16 %v617
        %v649 = vunpack.c.l.b16 %v618
        %v650 = vunpack.c.h.b16 %v618
        %v651 = vunpack.c.l.b16 %v619
        %v652 = vunpack.c.h.b16 %v619
        %v653 = vunpack.c.l.b16 %v620
        %v654 = vunpack.c.h.b16 %v620
        %v655 = vunpack.c.l.b16 %v621
        %v656 = vunpack.c.h.b16 %v621
        %v657 = vpack.c.b16 %v643, %v641
        %v658 = vpack.c.b16 %v644, %v642
        %v659 = vpack.c.b16 %v647, %v645
        %v660 = vpack.c.b16 %v648, %v646
        %v661 = vpack.c.b16 %v651, %v649
        %v662 = vpack.c.b16 %v652, %v650
        %v663 = vpack.c.b16 %v655, %v653
        %v664 = vpack.c.b16 %v656, %v654
        %v674 = vsel %vm372, %v632, 0
        %676 = vmatprep.subr.bf16.mxu0 0
        %677 = vmatpush1.bf16.msra.mxu0 0
        %678 = vmatprep.subr.bf16.mxu0 0
        %679 = vmatpush1.bf16.msra.mxu0 0
        %680 = vmatprep.subr.bf16.mxu0 0
        %681 = vmatpush1.bf16.msra.mxu0 0
        %682 = vmatprep.subr.bf16.mxu0 0
        %683 = vmatpush1.bf16.msra.mxu0 0
        %684 = vmatprep.subr.bf16.mxu0 %v664
        %685 = vmatpush1.bf16.msra.mxu0 %v663
        %686 = vmatprep.subr.bf16.mxu0 %v662
        %687 = vmatpush1.bf16.msra.mxu0 %v661
        %688 = vmatprep.subr.bf16.mxu0 %v660
        %689 = vmatpush1.bf16.msra.mxu0 %v659
        %690 = vmatprep.subr.bf16.mxu0 %v658
        %691 = vmatpush1.bf16.msra.mxu0 %v657
        %692 = vmatprep.subr.bf16.mxu0 0
        %693 = vmatpush2.bf16.msra.mxu0 0
        %694 = vmatprep.subr.bf16.mxu0 0
        %695 = vmatpush2.bf16.msra.mxu0 0
        %696 = vmatprep.subr.bf16.mxu0 0
        %697 = vmatpush2.bf16.msra.mxu0 0
        %698 = vmatprep.subr.bf16.mxu0 0
        %699 = vmatpush2.bf16.msra.mxu0 0
        %700 = vmatprep.subr.bf16.mxu0 0
        %701 = vmatpush2.bf16.msra.mxu0 0
        %702 = vmatprep.subr.bf16.mxu0 0
        %703 = vmatpush2.bf16.msra.mxu0 0
        %704 = vmatprep.subr.bf16.mxu0 0
        %705 = vmatpush2.bf16.msra.mxu0 0
        %706 = vmatprep.subr.bf16.mxu0 0
        %707 = vmatpush2.bf16.msra.mxu0 0
        %708 = vmatprep.mubr.bf16.mxu0 0
        %709 = vmatmul.mubr.bf16.gmra.mxu0 %v674
        %v710 = vpop.f32.mrf.mxu0
        %v711 = vadd.f32 0.0, %v710
        %v712 = vpop.f32.mrf.mxu0
        %v713 = vadd.f32 0.0, %v712
        %v714 = vpop.f32.mrf.mxu0
        %v715 = vadd.f32 0.0, %v714
        %v716 = vpop.f32.mrf.mxu0
        %v717 = vadd.f32 0.0, %v716
        %718 = vdwg.mxu0
        %v719 = vadd.f32 %v608, %v711
        %v720 = vadd.f32 %v609, %v713
        %v721 = vadd.f32 %v610, %v715
        %v722 = vadd.f32 %v611, %v717
        %v723 = vld [vmem:[%s254] sm:$0xc]
        %s724 = scalar_lea.vmem [#allocation5], 1536
        %v725 = vld [vmem:[%s724] sm:$0xff]
        %v726 = vld [vmem:[%s724 + $0x30] sm:$0xff]
        %v727 = vld [vmem:[%s724 + $0x60] sm:$0xff]
        %v728 = vld [vmem:[%s724 + $0x90] sm:$0xff]
        %v729 = vld [vmem:[%s724 + $0xc0] sm:$0xff]
        %v730 = vld [vmem:[%s724 + $0xf0] sm:$0xff]
        %v731 = vld [vmem:[%s724 + $0x120] sm:$0xff]
        %v732 = vld [vmem:[%s724 + $0x150] sm:$0xff]
        %v734 = vunpack.c.l.b16 %v723
        %v735 = vpack.c.b16 %v623, %v734
        %v736 = vrot.slane %v735, 2
        %v745 = vunpack.c.l.b16 %v725
        %v746 = vunpack.c.h.b16 %v725
        %v747 = vunpack.c.l.b16 %v726
        %v748 = vunpack.c.h.b16 %v726
        %v749 = vunpack.c.l.b16 %v727
        %v750 = vunpack.c.h.b16 %v727
        %v751 = vunpack.c.l.b16 %v728
        %v752 = vunpack.c.h.b16 %v728
        %v753 = vunpack.c.l.b16 %v729
        %v754 = vunpack.c.h.b16 %v729
        %v755 = vunpack.c.l.b16 %v730
        %v756 = vunpack.c.h.b16 %v730
        %v757 = vunpack.c.l.b16 %v731
        %v758 = vunpack.c.h.b16 %v731
        %v759 = vunpack.c.l.b16 %v732
        %v760 = vunpack.c.h.b16 %v732
        %v761 = vpack.c.b16 %v747, %v745
        %v762 = vpack.c.b16 %v748, %v746
        %v763 = vpack.c.b16 %v751, %v749
        %v764 = vpack.c.b16 %v752, %v750
        %v765 = vpack.c.b16 %v755, %v753
        %v766 = vpack.c.b16 %v756, %v754
        %v767 = vpack.c.b16 %v759, %v757
        %v768 = vpack.c.b16 %v760, %v758
        %v778 = vsel %vm372, %v736, 0
        %780 = vmatprep.subr.bf16.mxu0 0
        %781 = vmatpush1.bf16.msra.mxu0 0
        %782 = vmatprep.subr.bf16.mxu0 0
        %783 = vmatpush1.bf16.msra.mxu0 0
        %784 = vmatprep.subr.bf16.mxu0 0
        %785 = vmatpush1.bf16.msra.mxu0 0
        %786 = vmatprep.subr.bf16.mxu0 0
        %787 = vmatpush1.bf16.msra.mxu0 0
        %788 = vmatprep.subr.bf16.mxu0 %v768
        %789 = vmatpush1.bf16.msra.mxu0 %v767
        %790 = vmatprep.subr.bf16.mxu0 %v766
        %791 = vmatpush1.bf16.msra.mxu0 %v765
        %792 = vmatprep.subr.bf16.mxu0 %v764
        %793 = vmatpush1.bf16.msra.mxu0 %v763
        %794 = vmatprep.subr.bf16.mxu0 %v762
        %795 = vmatpush1.bf16.msra.mxu0 %v761
        %796 = vmatprep.subr.bf16.mxu0 0
        %797 = vmatpush2.bf16.msra.mxu0 0
        %798 = vmatprep.subr.bf16.mxu0 0
        %799 = vmatpush2.bf16.msra.mxu0 0
        %800 = vmatprep.subr.bf16.mxu0 0
        %801 = vmatpush2.bf16.msra.mxu0 0
        %802 = vmatprep.subr.bf16.mxu0 0
        %803 = vmatpush2.bf16.msra.mxu0 0
        %804 = vmatprep.subr.bf16.mxu0 0
        %805 = vmatpush2.bf16.msra.mxu0 0
        %806 = vmatprep.subr.bf16.mxu0 0
        %807 = vmatpush2.bf16.msra.mxu0 0
        %808 = vmatprep.subr.bf16.mxu0 0
        %809 = vmatpush2.bf16.msra.mxu0 0
        %810 = vmatprep.subr.bf16.mxu0 0
        %811 = vmatpush2.bf16.msra.mxu0 0
        %812 = vmatprep.mubr.bf16.mxu0 0
        %813 = vmatmul.mubr.bf16.gmra.mxu0 %v778
        %v814 = vpop.f32.mrf.mxu0
        %v815 = vadd.f32 0.0, %v814
        %v816 = vpop.f32.mrf.mxu0
        %v817 = vadd.f32 0.0, %v816
        %v818 = vpop.f32.mrf.mxu0
        %v819 = vadd.f32 0.0, %v818
        %v820 = vpop.f32.mrf.mxu0
        %v821 = vadd.f32 0.0, %v820
        %822 = vdwg.mxu0
        %v823 = vadd.f32 %v719, %v815
        %v824 = vadd.f32 %v720, %v817
        %v825 = vadd.f32 %v721, %v819
        %v826 = vadd.f32 %v722, %v821
        %vm831 = vcmask 1046528
        %v832 = vrot.slane %v823, 1
        %v833 = vrot.slane %v825, 1
        %v834 = vsel %vm831, %v832, %v833
        %v835 = vrot.slane %v824, 1
        %v836 = vrot.slane %v826, 1
        %v837 = vsel %vm831, %v835, %v836
        %v842 = vmax.f32 %v823, %v834
        %v843 = vmax.f32 %v824, %v837
        %v844 = vmax.f32 %v825, %v833
        %v845 = vmax.f32 %v826, %v836
        %v846 = vmax.f32 %v842, %v843
        %v847 = vmax.f32 %v844, %v845
        %v849 = vlaneseq
        %v850 = vshrl.u32 %v849, 7
        %v851 = vsub.s32 0, %v850
        %v852 = vrot.slane %v298, %v851
        %v854 = vadd.f32 %v846, %v852
        %v855 = vadd.f32 %v847, %v852
        %v856 = vmax.f32 %v854, 0.0
        %v857 = vmax.f32 %v855, 0.0
        %v858 = vpack.c.bf16 %v857, %v856
        %v859 = vld [vmem:[#allocation5 + $0x8] sm:$0xff]
        %v860 = vld [vmem:[#allocation5 + $0x38] sm:$0xff]
        %v861 = vld [vmem:[#allocation5 + $0x68] sm:$0xff]
        %v862 = vld [vmem:[#allocation5 + $0x98] sm:$0xff]
        %v863 = vld [vmem:[#allocation5 + $0xc8] sm:$0xff]
        %v864 = vld [vmem:[#allocation5 + $0xf8] sm:$0xff]
        %v865 = vld [vmem:[#allocation5 + $0x128] sm:$0xff]
        %v866 = vld [vmem:[#allocation5 + $0x158] sm:$0xff]
        %v867 = vld [vmem:[%s311 + $0x8] sm:$0xff]
        %v868 = vld [vmem:[%s311 + $0x38] sm:$0xff]
        %v869 = vld [vmem:[%s311 + $0x68] sm:$0xff]
        %v870 = vld [vmem:[%s311 + $0x98] sm:$0xff]
        %v871 = vld [vmem:[%s311 + $0xc8] sm:$0xff]
        %v872 = vld [vmem:[%s311 + $0xf8] sm:$0xff]
        %v873 = vld [vmem:[%s311 + $0x128] sm:$0xff]
        %v874 = vld [vmem:[%s311 + $0x158] sm:$0xff]
        %v883 = vunpack.c.l.b16 %v867
        %v884 = vunpack.c.h.b16 %v867
        %v885 = vunpack.c.l.b16 %v868
        %v886 = vunpack.c.h.b16 %v868
        %v887 = vunpack.c.l.b16 %v869
        %v888 = vunpack.c.h.b16 %v869
        %v889 = vunpack.c.l.b16 %v870
        %v890 = vunpack.c.h.b16 %v870
        %v891 = vunpack.c.l.b16 %v871
        %v892 = vunpack.c.h.b16 %v871
        %v893 = vunpack.c.l.b16 %v872
        %v894 = vunpack.c.h.b16 %v872
        %v895 = vunpack.c.l.b16 %v873
        %v896 = vunpack.c.h.b16 %v873
        %v897 = vunpack.c.l.b16 %v874
        %v898 = vunpack.c.h.b16 %v874
        %v899 = vpack.c.b16 %v885, %v883
        %v900 = vpack.c.b16 %v886, %v884
        %v901 = vpack.c.b16 %v889, %v887
        %v902 = vpack.c.b16 %v890, %v888
        %v903 = vpack.c.b16 %v893, %v891
        %v904 = vpack.c.b16 %v894, %v892
        %v905 = vpack.c.b16 %v897, %v895
        %v906 = vpack.c.b16 %v898, %v896
        %915 = vmatprep.subr.bf16.mxu0 0
        %916 = vmatpush1.bf16.msra.mxu0 0
        %917 = vmatprep.subr.bf16.mxu0 0
        %918 = vmatpush1.bf16.msra.mxu0 0
        %919 = vmatprep.subr.bf16.mxu0 0
        %920 = vmatpush1.bf16.msra.mxu0 0
        %921 = vmatprep.subr.bf16.mxu0 0
        %922 = vmatpush1.bf16.msra.mxu0 0
        %923 = vmatprep.subr.bf16.mxu0 %v906
        %924 = vmatpush1.bf16.msra.mxu0 %v905
        %925 = vmatprep.subr.bf16.mxu0 %v904
        %926 = vmatpush1.bf16.msra.mxu0 %v903
        %927 = vmatprep.subr.bf16.mxu0 %v902
        %928 = vmatpush1.bf16.msra.mxu0 %v901
        %929 = vmatprep.subr.bf16.mxu0 %v900
        %930 = vmatpush1.bf16.msra.mxu0 %v899
        %931 = vmatprep.subr.bf16.mxu0 0
        %932 = vmatpush2.bf16.msra.mxu0 0
        %933 = vmatprep.subr.bf16.mxu0 0
        %934 = vmatpush2.bf16.msra.mxu0 0
        %935 = vmatprep.subr.bf16.mxu0 0
        %936 = vmatpush2.bf16.msra.mxu0 0
        %937 = vmatprep.subr.bf16.mxu0 0
        %938 = vmatpush2.bf16.msra.mxu0 0
        %939 = vmatprep.subr.bf16.mxu0 0
        %940 = vmatpush2.bf16.msra.mxu0 0
        %941 = vmatprep.subr.bf16.mxu0 0
        %942 = vmatpush2.bf16.msra.mxu0 0
        %943 = vmatprep.subr.bf16.mxu0 0
        %944 = vmatpush2.bf16.msra.mxu0 0
        %945 = vmatprep.subr.bf16.mxu0 0
        %946 = vmatpush2.bf16.msra.mxu0 0
        %947 = vmatprep.mubr.bf16.mxu0 0
        %948 = vmatmul.mubr.bf16.gmra.mxu0 %v374
        %v949 = vpop.f32.mrf.mxu0
        %v950 = vadd.f32 0.0, %v949
        %v951 = vpop.f32.mrf.mxu0
        %v952 = vadd.f32 0.0, %v951
        %v953 = vpop.f32.mrf.mxu0
        %v954 = vadd.f32 0.0, %v953
        %v955 = vpop.f32.mrf.mxu0
        %v956 = vadd.f32 0.0, %v955
        %957 = vdwg.mxu0
        %v966 = vunpack.c.l.b16 %v859
        %v967 = vunpack.c.h.b16 %v859
        %v968 = vunpack.c.l.b16 %v860
        %v969 = vunpack.c.h.b16 %v860
        %v970 = vunpack.c.l.b16 %v861
        %v971 = vunpack.c.h.b16 %v861
        %v972 = vunpack.c.l.b16 %v862
        %v973 = vunpack.c.h.b16 %v862
        %v974 = vunpack.c.l.b16 %v863
        %v975 = vunpack.c.h.b16 %v863
        %v976 = vunpack.c.l.b16 %v864
        %v977 = vunpack.c.h.b16 %v864
        %v978 = vunpack.c.l.b16 %v865
        %v979 = vunpack.c.h.b16 %v865
        %v980 = vunpack.c.l.b16 %v866
        %v981 = vunpack.c.h.b16 %v866
        %v982 = vpack.c.b16 %v968, %v966
        %v983 = vpack.c.b16 %v969, %v967
        %v984 = vpack.c.b16 %v972, %v970
        %v985 = vpack.c.b16 %v973, %v971
        %v986 = vpack.c.b16 %v976, %v974
        %v987 = vpack.c.b16 %v977, %v975
        %v988 = vpack.c.b16 %v980, %v978
        %v989 = vpack.c.b16 %v981, %v979
        %998 = vmatprep.subr.bf16.mxu0 0
        %999 = vmatpush1.bf16.msra.mxu0 0
        %1000 = vmatprep.subr.bf16.mxu0 0
        %1001 = vmatpush1.bf16.msra.mxu0 0
        %1002 = vmatprep.subr.bf16.mxu0 0
        %1003 = vmatpush1.bf16.msra.mxu0 0
        %1004 = vmatprep.subr.bf16.mxu0 0
        %1005 = vmatpush1.bf16.msra.mxu0 0
        %1006 = vmatprep.subr.bf16.mxu0 %v989
        %1007 = vmatpush1.bf16.msra.mxu0 %v988
        %1008 = vmatprep.subr.bf16.mxu0 %v987
        %1009 = vmatpush1.bf16.msra.mxu0 %v986
        %1010 = vmatprep.subr.bf16.mxu0 %v985
        %1011 = vmatpush1.bf16.msra.mxu0 %v984
        %1012 = vmatprep.subr.bf16.mxu0 %v983
        %1013 = vmatpush1.bf16.msra.mxu0 %v982
        %1014 = vmatprep.subr.bf16.mxu0 0
        %1015 = vmatpush2.bf16.msra.mxu0 0
        %1016 = vmatprep.subr.bf16.mxu0 0
        %1017 = vmatpush2.bf16.msra.mxu0 0
        %1018 = vmatprep.subr.bf16.mxu0 0
        %1019 = vmatpush2.bf16.msra.mxu0 0
        %1020 = vmatprep.subr.bf16.mxu0 0
        %1021 = vmatpush2.bf16.msra.mxu0 0
        %1022 = vmatprep.subr.bf16.mxu0 0
        %1023 = vmatpush2.bf16.msra.mxu0 0
        %1024 = vmatprep.subr.bf16.mxu0 0
        %1025 = vmatpush2.bf16.msra.mxu0 0
        %1026 = vmatprep.subr.bf16.mxu0 0
        %1027 = vmatpush2.bf16.msra.mxu0 0
        %1028 = vmatprep.subr.bf16.mxu0 0
        %1029 = vmatpush2.bf16.msra.mxu0 0
        %1030 = vmatprep.mubr.bf16.mxu0 0
        %1031 = vmatmul.mubr.bf16.gmra.mxu0 %v463
        %v1032 = vpop.f32.mrf.mxu0
        %v1033 = vadd.f32 %v950, %v1032
        %v1034 = vpop.f32.mrf.mxu0
        %v1035 = vadd.f32 %v952, %v1034
        %v1036 = vpop.f32.mrf.mxu0
        %v1037 = vadd.f32 %v954, %v1036
        %v1038 = vpop.f32.mrf.mxu0
        %v1039 = vadd.f32 %v956, %v1038
        %1040 = vdwg.mxu0
        %v1041 = vld [vmem:[%s509 + $0x8] sm:$0xff]
        %v1042 = vld [vmem:[%s509 + $0x38] sm:$0xff]
        %v1043 = vld [vmem:[%s509 + $0x68] sm:$0xff]
        %v1044 = vld [vmem:[%s509 + $0x98] sm:$0xff]
        %v1045 = vld [vmem:[%s509 + $0xc8] sm:$0xff]
        %v1046 = vld [vmem:[%s509 + $0xf8] sm:$0xff]
        %v1047 = vld [vmem:[%s509 + $0x128] sm:$0xff]
        %v1048 = vld [vmem:[%s509 + $0x158] sm:$0xff]
        %v1057 = vunpack.c.l.b16 %v1041
        %v1058 = vunpack.c.h.b16 %v1041
        %v1059 = vunpack.c.l.b16 %v1042
        %v1060 = vunpack.c.h.b16 %v1042
        %v1061 = vunpack.c.l.b16 %v1043
        %v1062 = vunpack.c.h.b16 %v1043
        %v1063 = vunpack.c.l.b16 %v1044
        %v1064 = vunpack.c.h.b16 %v1044
        %v1065 = vunpack.c.l.b16 %v1045
        %v1066 = vunpack.c.h.b16 %v1045
        %v1067 = vunpack.c.l.b16 %v1046
        %v1068 = vunpack.c.h.b16 %v1046
        %v1069 = vunpack.c.l.b16 %v1047
        %v1070 = vunpack.c.h.b16 %v1047
        %v1071 = vunpack.c.l.b16 %v1048
        %v1072 = vunpack.c.h.b16 %v1048
        %v1073 = vpack.c.b16 %v1059, %v1057
        %v1074 = vpack.c.b16 %v1060, %v1058
        %v1075 = vpack.c.b16 %v1063, %v1061
        %v1076 = vpack.c.b16 %v1064, %v1062
        %v1077 = vpack.c.b16 %v1067, %v1065
        %v1078 = vpack.c.b16 %v1068, %v1066
        %v1079 = vpack.c.b16 %v1071, %v1069
        %v1080 = vpack.c.b16 %v1072, %v1070
        %1089 = vmatprep.subr.bf16.mxu0 0
        %1090 = vmatpush1.bf16.msra.mxu0 0
        %1091 = vmatprep.subr.bf16.mxu0 0
        %1092 = vmatpush1.bf16.msra.mxu0 0
        %1093 = vmatprep.subr.bf16.mxu0 0
        %1094 = vmatpush1.bf16.msra.mxu0 0
        %1095 = vmatprep.subr.bf16.mxu0 0
        %1096 = vmatpush1.bf16.msra.mxu0 0
        %1097 = vmatprep.subr.bf16.mxu0 %v1080
        %1098 = vmatpush1.bf16.msra.mxu0 %v1079
        %1099 = vmatprep.subr.bf16.mxu0 %v1078
        %1100 = vmatpush1.bf16.msra.mxu0 %v1077
        %1101 = vmatprep.subr.bf16.mxu0 %v1076
        %1102 = vmatpush1.bf16.msra.mxu0 %v1075
        %1103 = vmatprep.subr.bf16.mxu0 %v1074
        %1104 = vmatpush1.bf16.msra.mxu0 %v1073
        %1105 = vmatprep.subr.bf16.mxu0 0
        %1106 = vmatpush2.bf16.msra.mxu0 0
        %1107 = vmatprep.subr.bf16.mxu0 0
        %1108 = vmatpush2.bf16.msra.mxu0 0
        %1109 = vmatprep.subr.bf16.mxu0 0
        %1110 = vmatpush2.bf16.msra.mxu0 0
        %1111 = vmatprep.subr.bf16.mxu0 0
        %1112 = vmatpush2.bf16.msra.mxu0 0
        %1113 = vmatprep.subr.bf16.mxu0 0
        %1114 = vmatpush2.bf16.msra.mxu0 0
        %1115 = vmatprep.subr.bf16.mxu0 0
        %1116 = vmatpush2.bf16.msra.mxu0 0
        %1117 = vmatprep.subr.bf16.mxu0 0
        %1118 = vmatpush2.bf16.msra.mxu0 0
        %1119 = vmatprep.subr.bf16.mxu0 0
        %1120 = vmatpush2.bf16.msra.mxu0 0
        %1121 = vmatprep.mubr.bf16.mxu0 0
        %1122 = vmatmul.mubr.bf16.gmra.mxu0 %v563
        %v1123 = vpop.f32.mrf.mxu0
        %v1124 = vadd.f32 0.0, %v1123
        %v1125 = vpop.f32.mrf.mxu0
        %v1126 = vadd.f32 0.0, %v1125
        %v1127 = vpop.f32.mrf.mxu0
        %v1128 = vadd.f32 0.0, %v1127
        %v1129 = vpop.f32.mrf.mxu0
        %v1130 = vadd.f32 0.0, %v1129
        %1131 = vdwg.mxu0
        %v1132 = vadd.f32 %v1033, %v1124
        %v1133 = vadd.f32 %v1035, %v1126
        %v1134 = vadd.f32 %v1037, %v1128
        %v1135 = vadd.f32 %v1039, %v1130
        %v1136 = vld [vmem:[%s613 + $0x8] sm:$0xff]
        %v1137 = vld [vmem:[%s613 + $0x38] sm:$0xff]
        %v1138 = vld [vmem:[%s613 + $0x68] sm:$0xff]
        %v1139 = vld [vmem:[%s613 + $0x98] sm:$0xff]
        %v1140 = vld [vmem:[%s613 + $0xc8] sm:$0xff]
        %v1141 = vld [vmem:[%s613 + $0xf8] sm:$0xff]
        %v1142 = vld [vmem:[%s613 + $0x128] sm:$0xff]
        %v1143 = vld [vmem:[%s613 + $0x158] sm:$0xff]
        %v1152 = vunpack.c.l.b16 %v1136
        %v1153 = vunpack.c.h.b16 %v1136
        %v1154 = vunpack.c.l.b16 %v1137
        %v1155 = vunpack.c.h.b16 %v1137
        %v1156 = vunpack.c.l.b16 %v1138
        %v1157 = vunpack.c.h.b16 %v1138
        %v1158 = vunpack.c.l.b16 %v1139
        %v1159 = vunpack.c.h.b16 %v1139
        %v1160 = vunpack.c.l.b16 %v1140
        %v1161 = vunpack.c.h.b16 %v1140
        %v1162 = vunpack.c.l.b16 %v1141
        %v1163 = vunpack.c.h.b16 %v1141
        %v1164 = vunpack.c.l.b16 %v1142
        %v1165 = vunpack.c.h.b16 %v1142
        %v1166 = vunpack.c.l.b16 %v1143
        %v1167 = vunpack.c.h.b16 %v1143
        %v1168 = vpack.c.b16 %v1154, %v1152
        %v1169 = vpack.c.b16 %v1155, %v1153
        %v1170 = vpack.c.b16 %v1158, %v1156
        %v1171 = vpack.c.b16 %v1159, %v1157
        %v1172 = vpack.c.b16 %v1162, %v1160
        %v1173 = vpack.c.b16 %v1163, %v1161
        %v1174 = vpack.c.b16 %v1166, %v1164
        %v1175 = vpack.c.b16 %v1167, %v1165
        %1184 = vmatprep.subr.bf16.mxu0 0
        %1185 = vmatpush1.bf16.msra.mxu0 0
        %1186 = vmatprep.subr.bf16.mxu0 0
        %1187 = vmatpush1.bf16.msra.mxu0 0
        %1188 = vmatprep.subr.bf16.mxu0 0
        %1189 = vmatpush1.bf16.msra.mxu0 0
        %1190 = vmatprep.subr.bf16.mxu0 0
        %1191 = vmatpush1.bf16.msra.mxu0 0
        %1192 = vmatprep.subr.bf16.mxu0 %v1175
        %1193 = vmatpush1.bf16.msra.mxu0 %v1174
        %1194 = vmatprep.subr.bf16.mxu0 %v1173
        %1195 = vmatpush1.bf16.msra.mxu0 %v1172
        %1196 = vmatprep.subr.bf16.mxu0 %v1171
        %1197 = vmatpush1.bf16.msra.mxu0 %v1170
        %1198 = vmatprep.subr.bf16.mxu0 %v1169
        %1199 = vmatpush1.bf16.msra.mxu0 %v1168
        %1200 = vmatprep.subr.bf16.mxu0 0
        %1201 = vmatpush2.bf16.msra.mxu0 0
        %1202 = vmatprep.subr.bf16.mxu0 0
        %1203 = vmatpush2.bf16.msra.mxu0 0
        %1204 = vmatprep.subr.bf16.mxu0 0
        %1205 = vmatpush2.bf16.msra.mxu0 0
        %1206 = vmatprep.subr.bf16.mxu0 0
        %1207 = vmatpush2.bf16.msra.mxu0 0
        %1208 = vmatprep.subr.bf16.mxu0 0
        %1209 = vmatpush2.bf16.msra.mxu0 0
        %1210 = vmatprep.subr.bf16.mxu0 0
        %1211 = vmatpush2.bf16.msra.mxu0 0
        %1212 = vmatprep.subr.bf16.mxu0 0
        %1213 = vmatpush2.bf16.msra.mxu0 0
        %1214 = vmatprep.subr.bf16.mxu0 0
        %1215 = vmatpush2.bf16.msra.mxu0 0
        %1216 = vmatprep.mubr.bf16.mxu0 0
        %1217 = vmatmul.mubr.bf16.gmra.mxu0 %v674
        %v1218 = vpop.f32.mrf.mxu0
        %v1219 = vadd.f32 0.0, %v1218
        %v1220 = vpop.f32.mrf.mxu0
        %v1221 = vadd.f32 0.0, %v1220
        %v1222 = vpop.f32.mrf.mxu0
        %v1223 = vadd.f32 0.0, %v1222
        %v1224 = vpop.f32.mrf.mxu0
        %v1225 = vadd.f32 0.0, %v1224
        %1226 = vdwg.mxu0
        %v1227 = vadd.f32 %v1132, %v1219
        %v1228 = vadd.f32 %v1133, %v1221
        %v1229 = vadd.f32 %v1134, %v1223
        %v1230 = vadd.f32 %v1135, %v1225
        %v1231 = vld [vmem:[%s724 + $0x8] sm:$0xff]
        %v1232 = vld [vmem:[%s724 + $0x38] sm:$0xff]
        %v1233 = vld [vmem:[%s724 + $0x68] sm:$0xff]
        %v1234 = vld [vmem:[%s724 + $0x98] sm:$0xff]
        %v1235 = vld [vmem:[%s724 + $0xc8] sm:$0xff]
        %v1236 = vld [vmem:[%s724 + $0xf8] sm:$0xff]
        %v1237 = vld [vmem:[%s724 + $0x128] sm:$0xff]
        %v1238 = vld [vmem:[%s724 + $0x158] sm:$0xff]
        %v1247 = vunpack.c.l.b16 %v1231
        %v1248 = vunpack.c.h.b16 %v1231
        %v1249 = vunpack.c.l.b16 %v1232
        %v1250 = vunpack.c.h.b16 %v1232
        %v1251 = vunpack.c.l.b16 %v1233
        %v1252 = vunpack.c.h.b16 %v1233
        %v1253 = vunpack.c.l.b16 %v1234
        %v1254 = vunpack.c.h.b16 %v1234
        %v1255 = vunpack.c.l.b16 %v1235
        %v1256 = vunpack.c.h.b16 %v1235
        %v1257 = vunpack.c.l.b16 %v1236
        %v1258 = vunpack.c.h.b16 %v1236
        %v1259 = vunpack.c.l.b16 %v1237
        %v1260 = vunpack.c.h.b16 %v1237
        %v1261 = vunpack.c.l.b16 %v1238
        %v1262 = vunpack.c.h.b16 %v1238
        %v1263 = vpack.c.b16 %v1249, %v1247
        %v1264 = vpack.c.b16 %v1250, %v1248
        %v1265 = vpack.c.b16 %v1253, %v1251
        %v1266 = vpack.c.b16 %v1254, %v1252
        %v1267 = vpack.c.b16 %v1257, %v1255
        %v1268 = vpack.c.b16 %v1258, %v1256
        %v1269 = vpack.c.b16 %v1261, %v1259
        %v1270 = vpack.c.b16 %v1262, %v1260
        %1279 = vmatprep.subr.bf16.mxu0 0
        %1280 = vmatpush1.bf16.msra.mxu0 0
        %1281 = vmatprep.subr.bf16.mxu0 0
        %1282 = vmatpush1.bf16.msra.mxu0 0
        %1283 = vmatprep.subr.bf16.mxu0 0
        %1284 = vmatpush1.bf16.msra.mxu0 0
        %1285 = vmatprep.subr.bf16.mxu0 0
        %1286 = vmatpush1.bf16.msra.mxu0 0
        %1287 = vmatprep.subr.bf16.mxu0 %v1270
        %1288 = vmatpush1.bf16.msra.mxu0 %v1269
        %1289 = vmatprep.subr.bf16.mxu0 %v1268
        %1290 = vmatpush1.bf16.msra.mxu0 %v1267
        %1291 = vmatprep.subr.bf16.mxu0 %v1266
        %1292 = vmatpush1.bf16.msra.mxu0 %v1265
        %1293 = vmatprep.subr.bf16.mxu0 %v1264
        %1294 = vmatpush1.bf16.msra.mxu0 %v1263
        %1295 = vmatprep.subr.bf16.mxu0 0
        %1296 = vmatpush2.bf16.msra.mxu0 0
        %1297 = vmatprep.subr.bf16.mxu0 0
        %1298 = vmatpush2.bf16.msra.mxu0 0
        %1299 = vmatprep.subr.bf16.mxu0 0
        %1300 = vmatpush2.bf16.msra.mxu0 0
        %1301 = vmatprep.subr.bf16.mxu0 0
        %1302 = vmatpush2.bf16.msra.mxu0 0
        %1303 = vmatprep.subr.bf16.mxu0 0
        %1304 = vmatpush2.bf16.msra.mxu0 0
        %1305 = vmatprep.subr.bf16.mxu0 0
        %1306 = vmatpush2.bf16.msra.mxu0 0
        %1307 = vmatprep.subr.bf16.mxu0 0
        %1308 = vmatpush2.bf16.msra.mxu0 0
        %1309 = vmatprep.subr.bf16.mxu0 0
        %1310 = vmatpush2.bf16.msra.mxu0 0
        %1311 = vmatprep.mubr.bf16.mxu0 0
        %1312 = vmatmul.mubr.bf16.gmra.mxu0 %v778
        %v1313 = vpop.f32.mrf.mxu0
        %v1314 = vadd.f32 0.0, %v1313
        %v1315 = vpop.f32.mrf.mxu0
        %v1316 = vadd.f32 0.0, %v1315
        %v1317 = vpop.f32.mrf.mxu0
        %v1318 = vadd.f32 0.0, %v1317
        %v1319 = vpop.f32.mrf.mxu0
        %v1320 = vadd.f32 0.0, %v1319
        %1321 = vdwg.mxu0
        %v1322 = vadd.f32 %v1227, %v1314
        %v1323 = vadd.f32 %v1228, %v1316
        %v1324 = vadd.f32 %v1229, %v1318
        %v1325 = vadd.f32 %v1230, %v1320
        %v1330 = vrot.slane %v1322, 1
        %v1331 = vrot.slane %v1324, 1
        %v1332 = vsel %vm831, %v1330, %v1331
        %v1333 = vrot.slane %v1323, 1
        %v1334 = vrot.slane %v1325, 1
        %v1335 = vsel %vm831, %v1333, %v1334
        %v1340 = vmax.f32 %v1322, %v1332
        %v1341 = vmax.f32 %v1323, %v1335
        %v1342 = vmax.f32 %v1324, %v1331
        %v1343 = vmax.f32 %v1325, %v1334
        %v1344 = vmax.f32 %v1340, %v1341
        %v1345 = vmax.f32 %v1342, %v1343
        %v1346 = vadd.f32 %v1344, %v852
        %v1347 = vadd.f32 %v1345, %v852
        %v1348 = vmax.f32 %v1346, 0.0
        %v1349 = vmax.f32 %v1347, 0.0
        %v1350 = vpack.c.bf16 %v1349, %v1348
        %v1351 = vld [vmem:[#allocation5 + $0x10] sm:$0xff]
        %v1352 = vld [vmem:[#allocation5 + $0x40] sm:$0xff]
        %v1353 = vld [vmem:[#allocation5 + $0x70] sm:$0xff]
        %v1354 = vld [vmem:[#allocation5 + $0xa0] sm:$0xff]
        %v1355 = vld [vmem:[#allocation5 + $0xd0] sm:$0xff]
        %v1356 = vld [vmem:[#allocation5 + $0x100] sm:$0xff]
        %v1357 = vld [vmem:[#allocation5 + $0x130] sm:$0xff]
        %v1358 = vld [vmem:[#allocation5 + $0x160] sm:$0xff]
        %v1359 = vld [vmem:[%s311 + $0x10] sm:$0xff]
        %v1360 = vld [vmem:[%s311 + $0x40] sm:$0xff]
        %v1361 = vld [vmem:[%s311 + $0x70] sm:$0xff]
        %v1362 = vld [vmem:[%s311 + $0xa0] sm:$0xff]
        %v1363 = vld [vmem:[%s311 + $0xd0] sm:$0xff]
        %v1364 = vld [vmem:[%s311 + $0x100] sm:$0xff]
        %v1365 = vld [vmem:[%s311 + $0x130] sm:$0xff]
        %v1366 = vld [vmem:[%s311 + $0x160] sm:$0xff]
        %v1375 = vunpack.c.l.b16 %v1359
        %v1376 = vunpack.c.h.b16 %v1359
        %v1377 = vunpack.c.l.b16 %v1360
        %v1378 = vunpack.c.h.b16 %v1360
        %v1379 = vunpack.c.l.b16 %v1361
        %v1380 = vunpack.c.h.b16 %v1361
        %v1381 = vunpack.c.l.b16 %v1362
        %v1382 = vunpack.c.h.b16 %v1362
        %v1383 = vunpack.c.l.b16 %v1363
        %v1384 = vunpack.c.h.b16 %v1363
        %v1385 = vunpack.c.l.b16 %v1364
        %v1386 = vunpack.c.h.b16 %v1364
        %v1387 = vunpack.c.l.b16 %v1365
        %v1388 = vunpack.c.h.b16 %v1365
        %v1389 = vunpack.c.l.b16 %v1366
        %v1390 = vunpack.c.h.b16 %v1366
        %v1391 = vpack.c.b16 %v1377, %v1375
        %v1392 = vpack.c.b16 %v1378, %v1376
        %v1393 = vpack.c.b16 %v1381, %v1379
        %v1394 = vpack.c.b16 %v1382, %v1380
        %v1395 = vpack.c.b16 %v1385, %v1383
        %v1396 = vpack.c.b16 %v1386, %v1384
        %v1397 = vpack.c.b16 %v1389, %v1387
        %v1398 = vpack.c.b16 %v1390, %v1388
        %1407 = vmatprep.subr.bf16.mxu0 0
        %1408 = vmatpush1.bf16.msra.mxu0 0
        %1409 = vmatprep.subr.bf16.mxu0 0
        %1410 = vmatpush1.bf16.msra.mxu0 0
        %1411 = vmatprep.subr.bf16.mxu0 0
        %1412 = vmatpush1.bf16.msra.mxu0 0
        %1413 = vmatprep.subr.bf16.mxu0 0
        %1414 = vmatpush1.bf16.msra.mxu0 0
        %1415 = vmatprep.subr.bf16.mxu0 %v1398
        %1416 = vmatpush1.bf16.msra.mxu0 %v1397
        %1417 = vmatprep.subr.bf16.mxu0 %v1396
        %1418 = vmatpush1.bf16.msra.mxu0 %v1395
        %1419 = vmatprep.subr.bf16.mxu0 %v1394
        %1420 = vmatpush1.bf16.msra.mxu0 %v1393
        %1421 = vmatprep.subr.bf16.mxu0 %v1392
        %1422 = vmatpush1.bf16.msra.mxu0 %v1391
        %1423 = vmatprep.subr.bf16.mxu0 0
        %1424 = vmatpush2.bf16.msra.mxu0 0
        %1425 = vmatprep.subr.bf16.mxu0 0
        %1426 = vmatpush2.bf16.msra.mxu0 0
        %1427 = vmatprep.subr.bf16.mxu0 0
        %1428 = vmatpush2.bf16.msra.mxu0 0
        %1429 = vmatprep.subr.bf16.mxu0 0
        %1430 = vmatpush2.bf16.msra.mxu0 0
        %1431 = vmatprep.subr.bf16.mxu0 0
        %1432 = vmatpush2.bf16.msra.mxu0 0
        %1433 = vmatprep.subr.bf16.mxu0 0
        %1434 = vmatpush2.bf16.msra.mxu0 0
        %1435 = vmatprep.subr.bf16.mxu0 0
        %1436 = vmatpush2.bf16.msra.mxu0 0
        %1437 = vmatprep.subr.bf16.mxu0 0
        %1438 = vmatpush2.bf16.msra.mxu0 0
        %1439 = vmatprep.mubr.bf16.mxu0 0
        %1440 = vmatmul.mubr.bf16.gmra.mxu0 %v374
        %v1441 = vpop.f32.mrf.mxu0
        %v1442 = vadd.f32 0.0, %v1441
        %v1443 = vpop.f32.mrf.mxu0
        %v1444 = vadd.f32 0.0, %v1443
        %v1445 = vpop.f32.mrf.mxu0
        %v1446 = vadd.f32 0.0, %v1445
        %v1447 = vpop.f32.mrf.mxu0
        %v1448 = vadd.f32 0.0, %v1447
        %1449 = vdwg.mxu0
        %v1458 = vunpack.c.l.b16 %v1351
        %v1459 = vunpack.c.h.b16 %v1351
        %v1460 = vunpack.c.l.b16 %v1352
        %v1461 = vunpack.c.h.b16 %v1352
        %v1462 = vunpack.c.l.b16 %v1353
        %v1463 = vunpack.c.h.b16 %v1353
        %v1464 = vunpack.c.l.b16 %v1354
        %v1465 = vunpack.c.h.b16 %v1354
        %v1466 = vunpack.c.l.b16 %v1355
        %v1467 = vunpack.c.h.b16 %v1355
        %v1468 = vunpack.c.l.b16 %v1356
        %v1469 = vunpack.c.h.b16 %v1356
        %v1470 = vunpack.c.l.b16 %v1357
        %v1471 = vunpack.c.h.b16 %v1357
        %v1472 = vunpack.c.l.b16 %v1358
        %v1473 = vunpack.c.h.b16 %v1358
        %v1474 = vpack.c.b16 %v1460, %v1458
        %v1475 = vpack.c.b16 %v1461, %v1459
        %v1476 = vpack.c.b16 %v1464, %v1462
        %v1477 = vpack.c.b16 %v1465, %v1463
        %v1478 = vpack.c.b16 %v1468, %v1466
        %v1479 = vpack.c.b16 %v1469, %v1467
        %v1480 = vpack.c.b16 %v1472, %v1470
        %v1481 = vpack.c.b16 %v1473, %v1471
        %1490 = vmatprep.subr.bf16.mxu0 0
        %1491 = vmatpush1.bf16.msra.mxu0 0
        %1492 = vmatprep.subr.bf16.mxu0 0
        %1493 = vmatpush1.bf16.msra.mxu0 0
        %1494 = vmatprep.subr.bf16.mxu0 0
        %1495 = vmatpush1.bf16.msra.mxu0 0
        %1496 = vmatprep.subr.bf16.mxu0 0
        %1497 = vmatpush1.bf16.msra.mxu0 0
        %1498 = vmatprep.subr.bf16.mxu0 %v1481
        %1499 = vmatpush1.bf16.msra.mxu0 %v1480
        %1500 = vmatprep.subr.bf16.mxu0 %v1479
        %1501 = vmatpush1.bf16.msra.mxu0 %v1478
        %1502 = vmatprep.subr.bf16.mxu0 %v1477
        %1503 = vmatpush1.bf16.msra.mxu0 %v1476
        %1504 = vmatprep.subr.bf16.mxu0 %v1475
        %1505 = vmatpush1.bf16.msra.mxu0 %v1474
        %1506 = vmatprep.subr.bf16.mxu0 0
        %1507 = vmatpush2.bf16.msra.mxu0 0
        %1508 = vmatprep.subr.bf16.mxu0 0
        %1509 = vmatpush2.bf16.msra.mxu0 0
        %1510 = vmatprep.subr.bf16.mxu0 0
        %1511 = vmatpush2.bf16.msra.mxu0 0
        %1512 = vmatprep.subr.bf16.mxu0 0
        %1513 = vmatpush2.bf16.msra.mxu0 0
        %1514 = vmatprep.subr.bf16.mxu0 0
        %1515 = vmatpush2.bf16.msra.mxu0 0
        %1516 = vmatprep.subr.bf16.mxu0 0
        %1517 = vmatpush2.bf16.msra.mxu0 0
        %1518 = vmatprep.subr.bf16.mxu0 0
        %1519 = vmatpush2.bf16.msra.mxu0 0
        %1520 = vmatprep.subr.bf16.mxu0 0
        %1521 = vmatpush2.bf16.msra.mxu0 0
        %1522 = vmatprep.mubr.bf16.mxu0 0
        %1523 = vmatmul.mubr.bf16.gmra.mxu0 %v463
        %v1524 = vpop.f32.mrf.mxu0
        %v1525 = vadd.f32 %v1442, %v1524
        %v1526 = vpop.f32.mrf.mxu0
        %v1527 = vadd.f32 %v1444, %v1526
        %v1528 = vpop.f32.mrf.mxu0
        %v1529 = vadd.f32 %v1446, %v1528
        %v1530 = vpop.f32.mrf.mxu0
        %v1531 = vadd.f32 %v1448, %v1530
        %1532 = vdwg.mxu0
        %v1533 = vld [vmem:[%s509 + $0x10] sm:$0xff]
        %v1534 = vld [vmem:[%s509 + $0x40] sm:$0xff]
        %v1535 = vld [vmem:[%s509 + $0x70] sm:$0xff]
        %v1536 = vld [vmem:[%s509 + $0xa0] sm:$0xff]
        %v1537 = vld [vmem:[%s509 + $0xd0] sm:$0xff]
        %v1538 = vld [vmem:[%s509 + $0x100] sm:$0xff]
        %v1539 = vld [vmem:[%s509 + $0x130] sm:$0xff]
        %v1540 = vld [vmem:[%s509 + $0x160] sm:$0xff]
        %v1549 = vunpack.c.l.b16 %v1533
        %v1550 = vunpack.c.h.b16 %v1533
        %v1551 = vunpack.c.l.b16 %v1534
        %v1552 = vunpack.c.h.b16 %v1534
        %v1553 = vunpack.c.l.b16 %v1535
        %v1554 = vunpack.c.h.b16 %v1535
        %v1555 = vunpack.c.l.b16 %v1536
        %v1556 = vunpack.c.h.b16 %v1536
        %v1557 = vunpack.c.l.b16 %v1537
        %v1558 = vunpack.c.h.b16 %v1537
        %v1559 = vunpack.c.l.b16 %v1538
        %v1560 = vunpack.c.h.b16 %v1538
        %v1561 = vunpack.c.l.b16 %v1539
        %v1562 = vunpack.c.h.b16 %v1539
        %v1563 = vunpack.c.l.b16 %v1540
        %v1564 = vunpack.c.h.b16 %v1540
        %v1565 = vpack.c.b16 %v1551, %v1549
        %v1566 = vpack.c.b16 %v1552, %v1550
        %v1567 = vpack.c.b16 %v1555, %v1553
        %v1568 = vpack.c.b16 %v1556, %v1554
        %v1569 = vpack.c.b16 %v1559, %v1557
        %v1570 = vpack.c.b16 %v1560, %v1558
        %v1571 = vpack.c.b16 %v1563, %v1561
        %v1572 = vpack.c.b16 %v1564, %v1562
        %1581 = vmatprep.subr.bf16.mxu0 0
        %1582 = vmatpush1.bf16.msra.mxu0 0
        %1583 = vmatprep.subr.bf16.mxu0 0
        %1584 = vmatpush1.bf16.msra.mxu0 0
        %1585 = vmatprep.subr.bf16.mxu0 0
        %1586 = vmatpush1.bf16.msra.mxu0 0
        %1587 = vmatprep.subr.bf16.mxu0 0
        %1588 = vmatpush1.bf16.msra.mxu0 0
        %1589 = vmatprep.subr.bf16.mxu0 %v1572
        %1590 = vmatpush1.bf16.msra.mxu0 %v1571
        %1591 = vmatprep.subr.bf16.mxu0 %v1570
        %1592 = vmatpush1.bf16.msra.mxu0 %v1569
        %1593 = vmatprep.subr.bf16.mxu0 %v1568
        %1594 = vmatpush1.bf16.msra.mxu0 %v1567
        %1595 = vmatprep.subr.bf16.mxu0 %v1566
        %1596 = vmatpush1.bf16.msra.mxu0 %v1565
        %1597 = vmatprep.subr.bf16.mxu0 0
        %1598 = vmatpush2.bf16.msra.mxu0 0
        %1599 = vmatprep.subr.bf16.mxu0 0
        %1600 = vmatpush2.bf16.msra.mxu0 0
        %1601 = vmatprep.subr.bf16.mxu0 0
        %1602 = vmatpush2.bf16.msra.mxu0 0
        %1603 = vmatprep.subr.bf16.mxu0 0
        %1604 = vmatpush2.bf16.msra.mxu0 0
        %1605 = vmatprep.subr.bf16.mxu0 0
        %1606 = vmatpush2.bf16.msra.mxu0 0
        %1607 = vmatprep.subr.bf16.mxu0 0
        %1608 = vmatpush2.bf16.msra.mxu0 0
        %1609 = vmatprep.subr.bf16.mxu0 0
        %1610 = vmatpush2.bf16.msra.mxu0 0
        %1611 = vmatprep.subr.bf16.mxu0 0
        %1612 = vmatpush2.bf16.msra.mxu0 0
        %1613 = vmatprep.mubr.bf16.mxu0 0
        %1614 = vmatmul.mubr.bf16.gmra.mxu0 %v563
        %v1615 = vpop.f32.mrf.mxu0
        %v1616 = vadd.f32 0.0, %v1615
        %v1617 = vpop.f32.mrf.mxu0
        %v1618 = vadd.f32 0.0, %v1617
        %v1619 = vpop.f32.mrf.mxu0
        %v1620 = vadd.f32 0.0, %v1619
        %v1621 = vpop.f32.mrf.mxu0
        %v1622 = vadd.f32 0.0, %v1621
        %1623 = vdwg.mxu0
        %v1624 = vadd.f32 %v1525, %v1616
        %v1625 = vadd.f32 %v1527, %v1618
        %v1626 = vadd.f32 %v1529, %v1620
        %v1627 = vadd.f32 %v1531, %v1622
        %v1628 = vld [vmem:[%s613 + $0x10] sm:$0xff]
        %v1629 = vld [vmem:[%s613 + $0x40] sm:$0xff]
        %v1630 = vld [vmem:[%s613 + $0x70] sm:$0xff]
        %v1631 = vld [vmem:[%s613 + $0xa0] sm:$0xff]
        %v1632 = vld [vmem:[%s613 + $0xd0] sm:$0xff]
        %v1633 = vld [vmem:[%s613 + $0x100] sm:$0xff]
        %v1634 = vld [vmem:[%s613 + $0x130] sm:$0xff]
        %v1635 = vld [vmem:[%s613 + $0x160] sm:$0xff]
        %v1644 = vunpack.c.l.b16 %v1628
        %v1645 = vunpack.c.h.b16 %v1628
        %v1646 = vunpack.c.l.b16 %v1629
        %v1647 = vunpack.c.h.b16 %v1629
        %v1648 = vunpack.c.l.b16 %v1630
        %v1649 = vunpack.c.h.b16 %v1630
        %v1650 = vunpack.c.l.b16 %v1631
        %v1651 = vunpack.c.h.b16 %v1631
        %v1652 = vunpack.c.l.b16 %v1632
        %v1653 = vunpack.c.h.b16 %v1632
        %v1654 = vunpack.c.l.b16 %v1633
        %v1655 = vunpack.c.h.b16 %v1633
        %v1656 = vunpack.c.l.b16 %v1634
        %v1657 = vunpack.c.h.b16 %v1634
        %v1658 = vunpack.c.l.b16 %v1635
        %v1659 = vunpack.c.h.b16 %v1635
        %v1660 = vpack.c.b16 %v1646, %v1644
        %v1661 = vpack.c.b16 %v1647, %v1645
        %v1662 = vpack.c.b16 %v1650, %v1648
        %v1663 = vpack.c.b16 %v1651, %v1649
        %v1664 = vpack.c.b16 %v1654, %v1652
        %v1665 = vpack.c.b16 %v1655, %v1653
        %v1666 = vpack.c.b16 %v1658, %v1656
        %v1667 = vpack.c.b16 %v1659, %v1657
        %1676 = vmatprep.subr.bf16.mxu0 0
        %1677 = vmatpush1.bf16.msra.mxu0 0
        %1678 = vmatprep.subr.bf16.mxu0 0
        %1679 = vmatpush1.bf16.msra.mxu0 0
        %1680 = vmatprep.subr.bf16.mxu0 0
        %1681 = vmatpush1.bf16.msra.mxu0 0
        %1682 = vmatprep.subr.bf16.mxu0 0
        %1683 = vmatpush1.bf16.msra.mxu0 0
        %1684 = vmatprep.subr.bf16.mxu0 %v1667
        %1685 = vmatpush1.bf16.msra.mxu0 %v1666
        %1686 = vmatprep.subr.bf16.mxu0 %v1665
        %1687 = vmatpush1.bf16.msra.mxu0 %v1664
        %1688 = vmatprep.subr.bf16.mxu0 %v1663
        %1689 = vmatpush1.bf16.msra.mxu0 %v1662
        %1690 = vmatprep.subr.bf16.mxu0 %v1661
        %1691 = vmatpush1.bf16.msra.mxu0 %v1660
        %1692 = vmatprep.subr.bf16.mxu0 0
        %1693 = vmatpush2.bf16.msra.mxu0 0
        %1694 = vmatprep.subr.bf16.mxu0 0
        %1695 = vmatpush2.bf16.msra.mxu0 0
        %1696 = vmatprep.subr.bf16.mxu0 0
        %1697 = vmatpush2.bf16.msra.mxu0 0
        %1698 = vmatprep.subr.bf16.mxu0 0
        %1699 = vmatpush2.bf16.msra.mxu0 0
        %1700 = vmatprep.subr.bf16.mxu0 0
        %1701 = vmatpush2.bf16.msra.mxu0 0
        %1702 = vmatprep.subr.bf16.mxu0 0
        %1703 = vmatpush2.bf16.msra.mxu0 0
        %1704 = vmatprep.subr.bf16.mxu0 0
        %1705 = vmatpush2.bf16.msra.mxu0 0
        %1706 = vmatprep.subr.bf16.mxu0 0
        %1707 = vmatpush2.bf16.msra.mxu0 0
        %1708 = vmatprep.mubr.bf16.mxu0 0
        %1709 = vmatmul.mubr.bf16.gmra.mxu0 %v674
        %v1710 = vpop.f32.mrf.mxu0
        %v1711 = vadd.f32 0.0, %v1710
        %v1712 = vpop.f32.mrf.mxu0
        %v1713 = vadd.f32 0.0, %v1712
        %v1714 = vpop.f32.mrf.mxu0
        %v1715 = vadd.f32 0.0, %v1714
        %v1716 = vpop.f32.mrf.mxu0
        %v1717 = vadd.f32 0.0, %v1716
        %1718 = vdwg.mxu0
        %v1719 = vadd.f32 %v1624, %v1711
        %v1720 = vadd.f32 %v1625, %v1713
        %v1721 = vadd.f32 %v1626, %v1715
        %v1722 = vadd.f32 %v1627, %v1717
        %v1723 = vld [vmem:[%s724 + $0x10] sm:$0xff]
        %v1724 = vld [vmem:[%s724 + $0x40] sm:$0xff]
        %v1725 = vld [vmem:[%s724 + $0x70] sm:$0xff]
        %v1726 = vld [vmem:[%s724 + $0xa0] sm:$0xff]
        %v1727 = vld [vmem:[%s724 + $0xd0] sm:$0xff]
        %v1728 = vld [vmem:[%s724 + $0x100] sm:$0xff]
        %v1729 = vld [vmem:[%s724 + $0x130] sm:$0xff]
        %v1730 = vld [vmem:[%s724 + $0x160] sm:$0xff]
        %v1739 = vunpack.c.l.b16 %v1723
        %v1740 = vunpack.c.h.b16 %v1723
        %v1741 = vunpack.c.l.b16 %v1724
        %v1742 = vunpack.c.h.b16 %v1724
        %v1743 = vunpack.c.l.b16 %v1725
        %v1744 = vunpack.c.h.b16 %v1725
        %v1745 = vunpack.c.l.b16 %v1726
        %v1746 = vunpack.c.h.b16 %v1726
        %v1747 = vunpack.c.l.b16 %v1727
        %v1748 = vunpack.c.h.b16 %v1727
        %v1749 = vunpack.c.l.b16 %v1728
        %v1750 = vunpack.c.h.b16 %v1728
        %v1751 = vunpack.c.l.b16 %v1729
        %v1752 = vunpack.c.h.b16 %v1729
        %v1753 = vunpack.c.l.b16 %v1730
        %v1754 = vunpack.c.h.b16 %v1730
        %v1755 = vpack.c.b16 %v1741, %v1739
        %v1756 = vpack.c.b16 %v1742, %v1740
        %v1757 = vpack.c.b16 %v1745, %v1743
        %v1758 = vpack.c.b16 %v1746, %v1744
        %v1759 = vpack.c.b16 %v1749, %v1747
        %v1760 = vpack.c.b16 %v1750, %v1748
        %v1761 = vpack.c.b16 %v1753, %v1751
        %v1762 = vpack.c.b16 %v1754, %v1752
        %1771 = vmatprep.subr.bf16.mxu0 0
        %1772 = vmatpush1.bf16.msra.mxu0 0
        %1773 = vmatprep.subr.bf16.mxu0 0
        %1774 = vmatpush1.bf16.msra.mxu0 0
        %1775 = vmatprep.subr.bf16.mxu0 0
        %1776 = vmatpush1.bf16.msra.mxu0 0
        %1777 = vmatprep.subr.bf16.mxu0 0
        %1778 = vmatpush1.bf16.msra.mxu0 0
        %1779 = vmatprep.subr.bf16.mxu0 %v1762
        %1780 = vmatpush1.bf16.msra.mxu0 %v1761
        %1781 = vmatprep.subr.bf16.mxu0 %v1760
        %1782 = vmatpush1.bf16.msra.mxu0 %v1759
        %1783 = vmatprep.subr.bf16.mxu0 %v1758
        %1784 = vmatpush1.bf16.msra.mxu0 %v1757
        %1785 = vmatprep.subr.bf16.mxu0 %v1756
        %1786 = vmatpush1.bf16.msra.mxu0 %v1755
        %1787 = vmatprep.subr.bf16.mxu0 0
        %1788 = vmatpush2.bf16.msra.mxu0 0
        %1789 = vmatprep.subr.bf16.mxu0 0
        %1790 = vmatpush2.bf16.msra.mxu0 0
        %1791 = vmatprep.subr.bf16.mxu0 0
        %1792 = vmatpush2.bf16.msra.mxu0 0
        %1793 = vmatprep.subr.bf16.mxu0 0
        %1794 = vmatpush2.bf16.msra.mxu0 0
        %1795 = vmatprep.subr.bf16.mxu0 0
        %1796 = vmatpush2.bf16.msra.mxu0 0
        %1797 = vmatprep.subr.bf16.mxu0 0
        %1798 = vmatpush2.bf16.msra.mxu0 0
        %1799 = vmatprep.subr.bf16.mxu0 0
        %1800 = vmatpush2.bf16.msra.mxu0 0
        %1801 = vmatprep.subr.bf16.mxu0 0
        %1802 = vmatpush2.bf16.msra.mxu0 0
        %1803 = vmatprep.mubr.bf16.mxu0 0
        %1804 = vmatmul.mubr.bf16.gmra.mxu0 %v778
        %v1805 = vpop.f32.mrf.mxu0
        %v1806 = vadd.f32 0.0, %v1805
        %v1807 = vpop.f32.mrf.mxu0
        %v1808 = vadd.f32 0.0, %v1807
        %v1809 = vpop.f32.mrf.mxu0
        %v1810 = vadd.f32 0.0, %v1809
        %v1811 = vpop.f32.mrf.mxu0
        %v1812 = vadd.f32 0.0, %v1811
        %1813 = vdwg.mxu0
        %v1814 = vadd.f32 %v1719, %v1806
        %v1815 = vadd.f32 %v1720, %v1808
        %v1816 = vadd.f32 %v1721, %v1810
        %v1817 = vadd.f32 %v1722, %v1812
        %v1822 = vrot.slane %v1814, 1
        %v1823 = vrot.slane %v1816, 1
        %v1824 = vsel %vm831, %v1822, %v1823
        %v1825 = vrot.slane %v1815, 1
        %v1826 = vrot.slane %v1817, 1
        %v1827 = vsel %vm831, %v1825, %v1826
        %v1832 = vmax.f32 %v1814, %v1824
        %v1833 = vmax.f32 %v1815, %v1827
        %v1834 = vmax.f32 %v1816, %v1823
        %v1835 = vmax.f32 %v1817, %v1826
        %v1836 = vmax.f32 %v1832, %v1833
        %v1837 = vmax.f32 %v1834, %v1835
        %v1838 = vadd.f32 %v1836, %v852
        %v1839 = vadd.f32 %v1837, %v852
        %v1840 = vmax.f32 %v1838, 0.0
        %v1841 = vmax.f32 %v1839, 0.0
        %v1842 = vpack.c.bf16 %v1841, %v1840
        %v1843 = vld [vmem:[#allocation5 + $0x18] sm:$0xff]
        %v1844 = vld [vmem:[#allocation5 + $0x48] sm:$0xff]
        %v1845 = vld [vmem:[#allocation5 + $0x78] sm:$0xff]
        %v1846 = vld [vmem:[#allocation5 + $0xa8] sm:$0xff]
        %v1847 = vld [vmem:[#allocation5 + $0xd8] sm:$0xff]
        %v1848 = vld [vmem:[#allocation5 + $0x108] sm:$0xff]
        %v1849 = vld [vmem:[#allocation5 + $0x138] sm:$0xff]
        %v1850 = vld [vmem:[#allocation5 + $0x168] sm:$0xff]
        %v1851 = vld [vmem:[%s311 + $0x18] sm:$0xff]
        %v1852 = vld [vmem:[%s311 + $0x48] sm:$0xff]
        %v1853 = vld [vmem:[%s311 + $0x78] sm:$0xff]
        %v1854 = vld [vmem:[%s311 + $0xa8] sm:$0xff]
        %v1855 = vld [vmem:[%s311 + $0xd8] sm:$0xff]
        %v1856 = vld [vmem:[%s311 + $0x108] sm:$0xff]
        %v1857 = vld [vmem:[%s311 + $0x138] sm:$0xff]
        %v1858 = vld [vmem:[%s311 + $0x168] sm:$0xff]
        %v1867 = vunpack.c.l.b16 %v1851
        %v1868 = vunpack.c.h.b16 %v1851
        %v1869 = vunpack.c.l.b16 %v1852
        %v1870 = vunpack.c.h.b16 %v1852
        %v1871 = vunpack.c.l.b16 %v1853
        %v1872 = vunpack.c.h.b16 %v1853
        %v1873 = vunpack.c.l.b16 %v1854
        %v1874 = vunpack.c.h.b16 %v1854
        %v1875 = vunpack.c.l.b16 %v1855
        %v1876 = vunpack.c.h.b16 %v1855
        %v1877 = vunpack.c.l.b16 %v1856
        %v1878 = vunpack.c.h.b16 %v1856
        %v1879 = vunpack.c.l.b16 %v1857
        %v1880 = vunpack.c.h.b16 %v1857
        %v1881 = vunpack.c.l.b16 %v1858
        %v1882 = vunpack.c.h.b16 %v1858
        %v1883 = vpack.c.b16 %v1869, %v1867
        %v1884 = vpack.c.b16 %v1870, %v1868
        %v1885 = vpack.c.b16 %v1873, %v1871
        %v1886 = vpack.c.b16 %v1874, %v1872
        %v1887 = vpack.c.b16 %v1877, %v1875
        %v1888 = vpack.c.b16 %v1878, %v1876
        %v1889 = vpack.c.b16 %v1881, %v1879
        %v1890 = vpack.c.b16 %v1882, %v1880
        %1899 = vmatprep.subr.bf16.mxu0 0
        %1900 = vmatpush1.bf16.msra.mxu0 0
        %1901 = vmatprep.subr.bf16.mxu0 0
        %1902 = vmatpush1.bf16.msra.mxu0 0
        %1903 = vmatprep.subr.bf16.mxu0 0
        %1904 = vmatpush1.bf16.msra.mxu0 0
        %1905 = vmatprep.subr.bf16.mxu0 0
        %1906 = vmatpush1.bf16.msra.mxu0 0
        %1907 = vmatprep.subr.bf16.mxu0 %v1890
        %1908 = vmatpush1.bf16.msra.mxu0 %v1889
        %1909 = vmatprep.subr.bf16.mxu0 %v1888
        %1910 = vmatpush1.bf16.msra.mxu0 %v1887
        %1911 = vmatprep.subr.bf16.mxu0 %v1886
        %1912 = vmatpush1.bf16.msra.mxu0 %v1885
        %1913 = vmatprep.subr.bf16.mxu0 %v1884
        %1914 = vmatpush1.bf16.msra.mxu0 %v1883
        %1915 = vmatprep.subr.bf16.mxu0 0
        %1916 = vmatpush2.bf16.msra.mxu0 0
        %1917 = vmatprep.subr.bf16.mxu0 0
        %1918 = vmatpush2.bf16.msra.mxu0 0
        %1919 = vmatprep.subr.bf16.mxu0 0
        %1920 = vmatpush2.bf16.msra.mxu0 0
        %1921 = vmatprep.subr.bf16.mxu0 0
        %1922 = vmatpush2.bf16.msra.mxu0 0
        %1923 = vmatprep.subr.bf16.mxu0 0
        %1924 = vmatpush2.bf16.msra.mxu0 0
        %1925 = vmatprep.subr.bf16.mxu0 0
        %1926 = vmatpush2.bf16.msra.mxu0 0
        %1927 = vmatprep.subr.bf16.mxu0 0
        %1928 = vmatpush2.bf16.msra.mxu0 0
        %1929 = vmatprep.subr.bf16.mxu0 0
        %1930 = vmatpush2.bf16.msra.mxu0 0
        %1931 = vmatprep.mubr.bf16.mxu0 0
        %1932 = vmatmul.mubr.bf16.gmra.mxu0 %v374
        %v1933 = vpop.f32.mrf.mxu0
        %v1934 = vadd.f32 0.0, %v1933
        %v1935 = vpop.f32.mrf.mxu0
        %v1936 = vadd.f32 0.0, %v1935
        %v1937 = vpop.f32.mrf.mxu0
        %v1938 = vadd.f32 0.0, %v1937
        %v1939 = vpop.f32.mrf.mxu0
        %v1940 = vadd.f32 0.0, %v1939
        %1941 = vdwg.mxu0
        %v1950 = vunpack.c.l.b16 %v1843
        %v1951 = vunpack.c.h.b16 %v1843
        %v1952 = vunpack.c.l.b16 %v1844
        %v1953 = vunpack.c.h.b16 %v1844
        %v1954 = vunpack.c.l.b16 %v1845
        %v1955 = vunpack.c.h.b16 %v1845
        %v1956 = vunpack.c.l.b16 %v1846
        %v1957 = vunpack.c.h.b16 %v1846
        %v1958 = vunpack.c.l.b16 %v1847
        %v1959 = vunpack.c.h.b16 %v1847
        %v1960 = vunpack.c.l.b16 %v1848
        %v1961 = vunpack.c.h.b16 %v1848
        %v1962 = vunpack.c.l.b16 %v1849
        %v1963 = vunpack.c.h.b16 %v1849
        %v1964 = vunpack.c.l.b16 %v1850
        %v1965 = vunpack.c.h.b16 %v1850
        %v1966 = vpack.c.b16 %v1952, %v1950
        %v1967 = vpack.c.b16 %v1953, %v1951
        %v1968 = vpack.c.b16 %v1956, %v1954
        %v1969 = vpack.c.b16 %v1957, %v1955
        %v1970 = vpack.c.b16 %v1960, %v1958
        %v1971 = vpack.c.b16 %v1961, %v1959
        %v1972 = vpack.c.b16 %v1964, %v1962
        %v1973 = vpack.c.b16 %v1965, %v1963
        %1982 = vmatprep.subr.bf16.mxu0 0
        %1983 = vmatpush1.bf16.msra.mxu0 0
        %1984 = vmatprep.subr.bf16.mxu0 0
        %1985 = vmatpush1.bf16.msra.mxu0 0
        %1986 = vmatprep.subr.bf16.mxu0 0
        %1987 = vmatpush1.bf16.msra.mxu0 0
        %1988 = vmatprep.subr.bf16.mxu0 0
        %1989 = vmatpush1.bf16.msra.mxu0 0
        %1990 = vmatprep.subr.bf16.mxu0 %v1973
        %1991 = vmatpush1.bf16.msra.mxu0 %v1972
        %1992 = vmatprep.subr.bf16.mxu0 %v1971
        %1993 = vmatpush1.bf16.msra.mxu0 %v1970
        %1994 = vmatprep.subr.bf16.mxu0 %v1969
        %1995 = vmatpush1.bf16.msra.mxu0 %v1968
        %1996 = vmatprep.subr.bf16.mxu0 %v1967
        %1997 = vmatpush1.bf16.msra.mxu0 %v1966
        %1998 = vmatprep.subr.bf16.mxu0 0
        %1999 = vmatpush2.bf16.msra.mxu0 0
        %2000 = vmatprep.subr.bf16.mxu0 0
        %2001 = vmatpush2.bf16.msra.mxu0 0
        %2002 = vmatprep.subr.bf16.mxu0 0
        %2003 = vmatpush2.bf16.msra.mxu0 0
        %2004 = vmatprep.subr.bf16.mxu0 0
        %2005 = vmatpush2.bf16.msra.mxu0 0
        %2006 = vmatprep.subr.bf16.mxu0 0
        %2007 = vmatpush2.bf16.msra.mxu0 0
        %2008 = vmatprep.subr.bf16.mxu0 0
        %2009 = vmatpush2.bf16.msra.mxu0 0
        %2010 = vmatprep.subr.bf16.mxu0 0
        %2011 = vmatpush2.bf16.msra.mxu0 0
        %2012 = vmatprep.subr.bf16.mxu0 0
        %2013 = vmatpush2.bf16.msra.mxu0 0
        %2014 = vmatprep.mubr.bf16.mxu0 0
        %2015 = vmatmul.mubr.bf16.gmra.mxu0 %v463
        %v2016 = vpop.f32.mrf.mxu0
        %v2017 = vadd.f32 %v1934, %v2016
        %v2018 = vpop.f32.mrf.mxu0
        %v2019 = vadd.f32 %v1936, %v2018
        %v2020 = vpop.f32.mrf.mxu0
        %v2021 = vadd.f32 %v1938, %v2020
        %v2022 = vpop.f32.mrf.mxu0
        %v2023 = vadd.f32 %v1940, %v2022
        %2024 = vdwg.mxu0
        %v2025 = vld [vmem:[%s509 + $0x18] sm:$0xff]
        %v2026 = vld [vmem:[%s509 + $0x48] sm:$0xff]
        %v2027 = vld [vmem:[%s509 + $0x78] sm:$0xff]
        %v2028 = vld [vmem:[%s509 + $0xa8] sm:$0xff]
        %v2029 = vld [vmem:[%s509 + $0xd8] sm:$0xff]
        %v2030 = vld [vmem:[%s509 + $0x108] sm:$0xff]
        %v2031 = vld [vmem:[%s509 + $0x138] sm:$0xff]
        %v2032 = vld [vmem:[%s509 + $0x168] sm:$0xff]
        %v2041 = vunpack.c.l.b16 %v2025
        %v2042 = vunpack.c.h.b16 %v2025
        %v2043 = vunpack.c.l.b16 %v2026
        %v2044 = vunpack.c.h.b16 %v2026
        %v2045 = vunpack.c.l.b16 %v2027
        %v2046 = vunpack.c.h.b16 %v2027
        %v2047 = vunpack.c.l.b16 %v2028
        %v2048 = vunpack.c.h.b16 %v2028
        %v2049 = vunpack.c.l.b16 %v2029
        %v2050 = vunpack.c.h.b16 %v2029
        %v2051 = vunpack.c.l.b16 %v2030
        %v2052 = vunpack.c.h.b16 %v2030
        %v2053 = vunpack.c.l.b16 %v2031
        %v2054 = vunpack.c.h.b16 %v2031
        %v2055 = vunpack.c.l.b16 %v2032
        %v2056 = vunpack.c.h.b16 %v2032
        %v2057 = vpack.c.b16 %v2043, %v2041
        %v2058 = vpack.c.b16 %v2044, %v2042
        %v2059 = vpack.c.b16 %v2047, %v2045
        %v2060 = vpack.c.b16 %v2048, %v2046
        %v2061 = vpack.c.b16 %v2051, %v2049
        %v2062 = vpack.c.b16 %v2052, %v2050
        %v2063 = vpack.c.b16 %v2055, %v2053
        %v2064 = vpack.c.b16 %v2056, %v2054
        %2073 = vmatprep.subr.bf16.mxu0 0
        %2074 = vmatpush1.bf16.msra.mxu0 0
        %2075 = vmatprep.subr.bf16.mxu0 0
        %2076 = vmatpush1.bf16.msra.mxu0 0
        %2077 = vmatprep.subr.bf16.mxu0 0
        %2078 = vmatpush1.bf16.msra.mxu0 0
        %2079 = vmatprep.subr.bf16.mxu0 0
        %2080 = vmatpush1.bf16.msra.mxu0 0
        %2081 = vmatprep.subr.bf16.mxu0 %v2064
        %2082 = vmatpush1.bf16.msra.mxu0 %v2063
        %2083 = vmatprep.subr.bf16.mxu0 %v2062
        %2084 = vmatpush1.bf16.msra.mxu0 %v2061
        %2085 = vmatprep.subr.bf16.mxu0 %v2060
        %2086 = vmatpush1.bf16.msra.mxu0 %v2059
        %2087 = vmatprep.subr.bf16.mxu0 %v2058
        %2088 = vmatpush1.bf16.msra.mxu0 %v2057
        %2089 = vmatprep.subr.bf16.mxu0 0
        %2090 = vmatpush2.bf16.msra.mxu0 0
        %2091 = vmatprep.subr.bf16.mxu0 0
        %2092 = vmatpush2.bf16.msra.mxu0 0
        %2093 = vmatprep.subr.bf16.mxu0 0
        %2094 = vmatpush2.bf16.msra.mxu0 0
        %2095 = vmatprep.subr.bf16.mxu0 0
        %2096 = vmatpush2.bf16.msra.mxu0 0
        %2097 = vmatprep.subr.bf16.mxu0 0
        %2098 = vmatpush2.bf16.msra.mxu0 0
        %2099 = vmatprep.subr.bf16.mxu0 0
        %2100 = vmatpush2.bf16.msra.mxu0 0
        %2101 = vmatprep.subr.bf16.mxu0 0
        %2102 = vmatpush2.bf16.msra.mxu0 0
        %2103 = vmatprep.subr.bf16.mxu0 0
        %2104 = vmatpush2.bf16.msra.mxu0 0
        %2105 = vmatprep.mubr.bf16.mxu0 0
        %2106 = vmatmul.mubr.bf16.gmra.mxu0 %v563
        %v2107 = vpop.f32.mrf.mxu0
        %v2108 = vadd.f32 0.0, %v2107
        %v2109 = vpop.f32.mrf.mxu0
        %v2110 = vadd.f32 0.0, %v2109
        %v2111 = vpop.f32.mrf.mxu0
        %v2112 = vadd.f32 0.0, %v2111
        %v2113 = vpop.f32.mrf.mxu0
        %v2114 = vadd.f32 0.0, %v2113
        %2115 = vdwg.mxu0
        %v2116 = vadd.f32 %v2017, %v2108
        %v2117 = vadd.f32 %v2019, %v2110
        %v2118 = vadd.f32 %v2021, %v2112
        %v2119 = vadd.f32 %v2023, %v2114
        %v2120 = vld [vmem:[%s613 + $0x18] sm:$0xff]
        %v2121 = vld [vmem:[%s613 + $0x48] sm:$0xff]
        %v2122 = vld [vmem:[%s613 + $0x78] sm:$0xff]
        %v2123 = vld [vmem:[%s613 + $0xa8] sm:$0xff]
        %v2124 = vld [vmem:[%s613 + $0xd8] sm:$0xff]
        %v2125 = vld [vmem:[%s613 + $0x108] sm:$0xff]
        %v2126 = vld [vmem:[%s613 + $0x138] sm:$0xff]
        %v2127 = vld [vmem:[%s613 + $0x168] sm:$0xff]
        %v2136 = vunpack.c.l.b16 %v2120
        %v2137 = vunpack.c.h.b16 %v2120
        %v2138 = vunpack.c.l.b16 %v2121
        %v2139 = vunpack.c.h.b16 %v2121
        %v2140 = vunpack.c.l.b16 %v2122
        %v2141 = vunpack.c.h.b16 %v2122
        %v2142 = vunpack.c.l.b16 %v2123
        %v2143 = vunpack.c.h.b16 %v2123
        %v2144 = vunpack.c.l.b16 %v2124
        %v2145 = vunpack.c.h.b16 %v2124
        %v2146 = vunpack.c.l.b16 %v2125
        %v2147 = vunpack.c.h.b16 %v2125
        %v2148 = vunpack.c.l.b16 %v2126
        %v2149 = vunpack.c.h.b16 %v2126
        %v2150 = vunpack.c.l.b16 %v2127
        %v2151 = vunpack.c.h.b16 %v2127
        %v2152 = vpack.c.b16 %v2138, %v2136
        %v2153 = vpack.c.b16 %v2139, %v2137
        %v2154 = vpack.c.b16 %v2142, %v2140
        %v2155 = vpack.c.b16 %v2143, %v2141
        %v2156 = vpack.c.b16 %v2146, %v2144
        %v2157 = vpack.c.b16 %v2147, %v2145
        %v2158 = vpack.c.b16 %v2150, %v2148
        %v2159 = vpack.c.b16 %v2151, %v2149
        %2168 = vmatprep.subr.bf16.mxu0 0
        %2169 = vmatpush1.bf16.msra.mxu0 0
        %2170 = vmatprep.subr.bf16.mxu0 0
        %2171 = vmatpush1.bf16.msra.mxu0 0
        %2172 = vmatprep.subr.bf16.mxu0 0
        %2173 = vmatpush1.bf16.msra.mxu0 0
        %2174 = vmatprep.subr.bf16.mxu0 0
        %2175 = vmatpush1.bf16.msra.mxu0 0
        %2176 = vmatprep.subr.bf16.mxu0 %v2159
        %2177 = vmatpush1.bf16.msra.mxu0 %v2158
        %2178 = vmatprep.subr.bf16.mxu0 %v2157
        %2179 = vmatpush1.bf16.msra.mxu0 %v2156
        %2180 = vmatprep.subr.bf16.mxu0 %v2155
        %2181 = vmatpush1.bf16.msra.mxu0 %v2154
        %2182 = vmatprep.subr.bf16.mxu0 %v2153
        %2183 = vmatpush1.bf16.msra.mxu0 %v2152
        %2184 = vmatprep.subr.bf16.mxu0 0
        %2185 = vmatpush2.bf16.msra.mxu0 0
        %2186 = vmatprep.subr.bf16.mxu0 0
        %2187 = vmatpush2.bf16.msra.mxu0 0
        %2188 = vmatprep.subr.bf16.mxu0 0
        %2189 = vmatpush2.bf16.msra.mxu0 0
        %2190 = vmatprep.subr.bf16.mxu0 0
        %2191 = vmatpush2.bf16.msra.mxu0 0
        %2192 = vmatprep.subr.bf16.mxu0 0
        %2193 = vmatpush2.bf16.msra.mxu0 0
        %2194 = vmatprep.subr.bf16.mxu0 0
        %2195 = vmatpush2.bf16.msra.mxu0 0
        %2196 = vmatprep.subr.bf16.mxu0 0
        %2197 = vmatpush2.bf16.msra.mxu0 0
        %2198 = vmatprep.subr.bf16.mxu0 0
        %2199 = vmatpush2.bf16.msra.mxu0 0
        %2200 = vmatprep.mubr.bf16.mxu0 0
        %2201 = vmatmul.mubr.bf16.gmra.mxu0 %v674
        %v2202 = vpop.f32.mrf.mxu0
        %v2203 = vadd.f32 0.0, %v2202
        %v2204 = vpop.f32.mrf.mxu0
        %v2205 = vadd.f32 0.0, %v2204
        %v2206 = vpop.f32.mrf.mxu0
        %v2207 = vadd.f32 0.0, %v2206
        %v2208 = vpop.f32.mrf.mxu0
        %v2209 = vadd.f32 0.0, %v2208
        %2210 = vdwg.mxu0
        %v2211 = vadd.f32 %v2116, %v2203
        %v2212 = vadd.f32 %v2117, %v2205
        %v2213 = vadd.f32 %v2118, %v2207
        %v2214 = vadd.f32 %v2119, %v2209
        %v2215 = vld [vmem:[%s724 + $0x18] sm:$0xff]
        %v2216 = vld [vmem:[%s724 + $0x48] sm:$0xff]
        %v2217 = vld [vmem:[%s724 + $0x78] sm:$0xff]
        %v2218 = vld [vmem:[%s724 + $0xa8] sm:$0xff]
        %v2219 = vld [vmem:[%s724 + $0xd8] sm:$0xff]
        %v2220 = vld [vmem:[%s724 + $0x108] sm:$0xff]
        %v2221 = vld [vmem:[%s724 + $0x138] sm:$0xff]
        %v2222 = vld [vmem:[%s724 + $0x168] sm:$0xff]
        %v2231 = vunpack.c.l.b16 %v2215
        %v2232 = vunpack.c.h.b16 %v2215
        %v2233 = vunpack.c.l.b16 %v2216
        %v2234 = vunpack.c.h.b16 %v2216
        %v2235 = vunpack.c.l.b16 %v2217
        %v2236 = vunpack.c.h.b16 %v2217
        %v2237 = vunpack.c.l.b16 %v2218
        %v2238 = vunpack.c.h.b16 %v2218
        %v2239 = vunpack.c.l.b16 %v2219
        %v2240 = vunpack.c.h.b16 %v2219
        %v2241 = vunpack.c.l.b16 %v2220
        %v2242 = vunpack.c.h.b16 %v2220
        %v2243 = vunpack.c.l.b16 %v2221
        %v2244 = vunpack.c.h.b16 %v2221
        %v2245 = vunpack.c.l.b16 %v2222
        %v2246 = vunpack.c.h.b16 %v2222
        %v2247 = vpack.c.b16 %v2233, %v2231
        %v2248 = vpack.c.b16 %v2234, %v2232
        %v2249 = vpack.c.b16 %v2237, %v2235
        %v2250 = vpack.c.b16 %v2238, %v2236
        %v2251 = vpack.c.b16 %v2241, %v2239
        %v2252 = vpack.c.b16 %v2242, %v2240
        %v2253 = vpack.c.b16 %v2245, %v2243
        %v2254 = vpack.c.b16 %v2246, %v2244
        %2263 = vmatprep.subr.bf16.mxu0 0
        %2264 = vmatpush1.bf16.msra.mxu0 0
        %2265 = vmatprep.subr.bf16.mxu0 0
        %2266 = vmatpush1.bf16.msra.mxu0 0
        %2267 = vmatprep.subr.bf16.mxu0 0
        %2268 = vmatpush1.bf16.msra.mxu0 0
        %2269 = vmatprep.subr.bf16.mxu0 0
        %2270 = vmatpush1.bf16.msra.mxu0 0
        %2271 = vmatprep.subr.bf16.mxu0 %v2254
        %2272 = vmatpush1.bf16.msra.mxu0 %v2253
        %2273 = vmatprep.subr.bf16.mxu0 %v2252
        %2274 = vmatpush1.bf16.msra.mxu0 %v2251
        %2275 = vmatprep.subr.bf16.mxu0 %v2250
        %2276 = vmatpush1.bf16.msra.mxu0 %v2249
        %2277 = vmatprep.subr.bf16.mxu0 %v2248
        %2278 = vmatpush1.bf16.msra.mxu0 %v2247
        %2279 = vmatprep.subr.bf16.mxu0 0
        %2280 = vmatpush2.bf16.msra.mxu0 0
        %2281 = vmatprep.subr.bf16.mxu0 0
        %2282 = vmatpush2.bf16.msra.mxu0 0
        %2283 = vmatprep.subr.bf16.mxu0 0
        %2284 = vmatpush2.bf16.msra.mxu0 0
        %2285 = vmatprep.subr.bf16.mxu0 0
        %2286 = vmatpush2.bf16.msra.mxu0 0
        %2287 = vmatprep.subr.bf16.mxu0 0
        %2288 = vmatpush2.bf16.msra.mxu0 0
        %2289 = vmatprep.subr.bf16.mxu0 0
        %2290 = vmatpush2.bf16.msra.mxu0 0
        %2291 = vmatprep.subr.bf16.mxu0 0
        %2292 = vmatpush2.bf16.msra.mxu0 0
        %2293 = vmatprep.subr.bf16.mxu0 0
        %2294 = vmatpush2.bf16.msra.mxu0 0
        %2295 = vmatprep.mubr.bf16.mxu0 0
        %2296 = vmatmul.mubr.bf16.gmra.mxu0 %v778
        %v2297 = vpop.f32.mrf.mxu0
        %v2298 = vadd.f32 0.0, %v2297
        %v2299 = vpop.f32.mrf.mxu0
        %v2300 = vadd.f32 0.0, %v2299
        %v2301 = vpop.f32.mrf.mxu0
        %v2302 = vadd.f32 0.0, %v2301
        %v2303 = vpop.f32.mrf.mxu0
        %v2304 = vadd.f32 0.0, %v2303
        %2305 = vdwg.mxu0
        %v2306 = vadd.f32 %v2211, %v2298
        %v2307 = vadd.f32 %v2212, %v2300
        %v2308 = vadd.f32 %v2213, %v2302
        %v2309 = vadd.f32 %v2214, %v2304
        %v2314 = vrot.slane %v2306, 1
        %v2315 = vrot.slane %v2308, 1
        %v2316 = vsel %vm831, %v2314, %v2315
        %v2317 = vrot.slane %v2307, 1
        %v2318 = vrot.slane %v2309, 1
        %v2319 = vsel %vm831, %v2317, %v2318
        %v2324 = vmax.f32 %v2306, %v2316
        %v2325 = vmax.f32 %v2307, %v2319
        %v2326 = vmax.f32 %v2308, %v2315
        %v2327 = vmax.f32 %v2309, %v2318
        %v2328 = vmax.f32 %v2324, %v2325
        %v2329 = vmax.f32 %v2326, %v2327
        %v2330 = vadd.f32 %v2328, %v852
        %v2331 = vadd.f32 %v2329, %v852
        %v2332 = vmax.f32 %v2330, 0.0
        %v2333 = vmax.f32 %v2331, 0.0
        %v2334 = vpack.c.bf16 %v2333, %v2332
        %v2335 = vld [vmem:[#allocation5 + $0x20] sm:$0xff]
        %v2336 = vld [vmem:[#allocation5 + $0x50] sm:$0xff]
        %v2337 = vld [vmem:[#allocation5 + $0x80] sm:$0xff]
        %v2338 = vld [vmem:[#allocation5 + $0xb0] sm:$0xff]
        %v2339 = vld [vmem:[#allocation5 + $0xe0] sm:$0xff]
        %v2340 = vld [vmem:[#allocation5 + $0x110] sm:$0xff]
        %v2341 = vld [vmem:[#allocation5 + $0x140] sm:$0xff]
        %v2342 = vld [vmem:[#allocation5 + $0x170] sm:$0xff]
        %v2343 = vld [vmem:[%s311 + $0x20] sm:$0xff]
        %v2344 = vld [vmem:[%s311 + $0x50] sm:$0xff]
        %v2345 = vld [vmem:[%s311 + $0x80] sm:$0xff]
        %v2346 = vld [vmem:[%s311 + $0xb0] sm:$0xff]
        %v2347 = vld [vmem:[%s311 + $0xe0] sm:$0xff]
        %v2348 = vld [vmem:[%s311 + $0x110] sm:$0xff]
        %v2349 = vld [vmem:[%s311 + $0x140] sm:$0xff]
        %v2350 = vld [vmem:[%s311 + $0x170] sm:$0xff]
        %v2359 = vunpack.c.l.b16 %v2343
        %v2360 = vunpack.c.h.b16 %v2343
        %v2361 = vunpack.c.l.b16 %v2344
        %v2362 = vunpack.c.h.b16 %v2344
        %v2363 = vunpack.c.l.b16 %v2345
        %v2364 = vunpack.c.h.b16 %v2345
        %v2365 = vunpack.c.l.b16 %v2346
        %v2366 = vunpack.c.h.b16 %v2346
        %v2367 = vunpack.c.l.b16 %v2347
        %v2368 = vunpack.c.h.b16 %v2347
        %v2369 = vunpack.c.l.b16 %v2348
        %v2370 = vunpack.c.h.b16 %v2348
        %v2371 = vunpack.c.l.b16 %v2349
        %v2372 = vunpack.c.h.b16 %v2349
        %v2373 = vunpack.c.l.b16 %v2350
        %v2374 = vunpack.c.h.b16 %v2350
        %v2375 = vpack.c.b16 %v2361, %v2359
        %v2376 = vpack.c.b16 %v2362, %v2360
        %v2377 = vpack.c.b16 %v2365, %v2363
        %v2378 = vpack.c.b16 %v2366, %v2364
        %v2379 = vpack.c.b16 %v2369, %v2367
        %v2380 = vpack.c.b16 %v2370, %v2368
        %v2381 = vpack.c.b16 %v2373, %v2371
        %v2382 = vpack.c.b16 %v2374, %v2372
        %2391 = vmatprep.subr.bf16.mxu0 0
        %2392 = vmatpush1.bf16.msra.mxu0 0
        %2393 = vmatprep.subr.bf16.mxu0 0
        %2394 = vmatpush1.bf16.msra.mxu0 0
        %2395 = vmatprep.subr.bf16.mxu0 0
        %2396 = vmatpush1.bf16.msra.mxu0 0
        %2397 = vmatprep.subr.bf16.mxu0 0
        %2398 = vmatpush1.bf16.msra.mxu0 0
        %2399 = vmatprep.subr.bf16.mxu0 %v2382
        %2400 = vmatpush1.bf16.msra.mxu0 %v2381
        %2401 = vmatprep.subr.bf16.mxu0 %v2380
        %2402 = vmatpush1.bf16.msra.mxu0 %v2379
        %2403 = vmatprep.subr.bf16.mxu0 %v2378
        %2404 = vmatpush1.bf16.msra.mxu0 %v2377
        %2405 = vmatprep.subr.bf16.mxu0 %v2376
        %2406 = vmatpush1.bf16.msra.mxu0 %v2375
        %2407 = vmatprep.subr.bf16.mxu0 0
        %2408 = vmatpush2.bf16.msra.mxu0 0
        %2409 = vmatprep.subr.bf16.mxu0 0
        %2410 = vmatpush2.bf16.msra.mxu0 0
        %2411 = vmatprep.subr.bf16.mxu0 0
        %2412 = vmatpush2.bf16.msra.mxu0 0
        %2413 = vmatprep.subr.bf16.mxu0 0
        %2414 = vmatpush2.bf16.msra.mxu0 0
        %2415 = vmatprep.subr.bf16.mxu0 0
        %2416 = vmatpush2.bf16.msra.mxu0 0
        %2417 = vmatprep.subr.bf16.mxu0 0
        %2418 = vmatpush2.bf16.msra.mxu0 0
        %2419 = vmatprep.subr.bf16.mxu0 0
        %2420 = vmatpush2.bf16.msra.mxu0 0
        %2421 = vmatprep.subr.bf16.mxu0 0
        %2422 = vmatpush2.bf16.msra.mxu0 0
        %2423 = vmatprep.mubr.bf16.mxu0 0
        %2424 = vmatmul.mubr.bf16.gmra.mxu0 %v374
        %v2425 = vpop.f32.mrf.mxu0
        %v2426 = vadd.f32 0.0, %v2425
        %v2427 = vpop.f32.mrf.mxu0
        %v2428 = vadd.f32 0.0, %v2427
        %v2429 = vpop.f32.mrf.mxu0
        %v2430 = vadd.f32 0.0, %v2429
        %v2431 = vpop.f32.mrf.mxu0
        %v2432 = vadd.f32 0.0, %v2431
        %2433 = vdwg.mxu0
        %v2442 = vunpack.c.l.b16 %v2335
        %v2443 = vunpack.c.h.b16 %v2335
        %v2444 = vunpack.c.l.b16 %v2336
        %v2445 = vunpack.c.h.b16 %v2336
        %v2446 = vunpack.c.l.b16 %v2337
        %v2447 = vunpack.c.h.b16 %v2337
        %v2448 = vunpack.c.l.b16 %v2338
        %v2449 = vunpack.c.h.b16 %v2338
        %v2450 = vunpack.c.l.b16 %v2339
        %v2451 = vunpack.c.h.b16 %v2339
        %v2452 = vunpack.c.l.b16 %v2340
        %v2453 = vunpack.c.h.b16 %v2340
        %v2454 = vunpack.c.l.b16 %v2341
        %v2455 = vunpack.c.h.b16 %v2341
        %v2456 = vunpack.c.l.b16 %v2342
        %v2457 = vunpack.c.h.b16 %v2342
        %v2458 = vpack.c.b16 %v2444, %v2442
        %v2459 = vpack.c.b16 %v2445, %v2443
        %v2460 = vpack.c.b16 %v2448, %v2446
        %v2461 = vpack.c.b16 %v2449, %v2447
        %v2462 = vpack.c.b16 %v2452, %v2450
        %v2463 = vpack.c.b16 %v2453, %v2451
        %v2464 = vpack.c.b16 %v2456, %v2454
        %v2465 = vpack.c.b16 %v2457, %v2455
        %2474 = vmatprep.subr.bf16.mxu0 0
        %2475 = vmatpush1.bf16.msra.mxu0 0
        %2476 = vmatprep.subr.bf16.mxu0 0
        %2477 = vmatpush1.bf16.msra.mxu0 0
        %2478 = vmatprep.subr.bf16.mxu0 0
        %2479 = vmatpush1.bf16.msra.mxu0 0
        %2480 = vmatprep.subr.bf16.mxu0 0
        %2481 = vmatpush1.bf16.msra.mxu0 0
        %2482 = vmatprep.subr.bf16.mxu0 %v2465
        %2483 = vmatpush1.bf16.msra.mxu0 %v2464
        %2484 = vmatprep.subr.bf16.mxu0 %v2463
        %2485 = vmatpush1.bf16.msra.mxu0 %v2462
        %2486 = vmatprep.subr.bf16.mxu0 %v2461
        %2487 = vmatpush1.bf16.msra.mxu0 %v2460
        %2488 = vmatprep.subr.bf16.mxu0 %v2459
        %2489 = vmatpush1.bf16.msra.mxu0 %v2458
        %2490 = vmatprep.subr.bf16.mxu0 0
        %2491 = vmatpush2.bf16.msra.mxu0 0
        %2492 = vmatprep.subr.bf16.mxu0 0
        %2493 = vmatpush2.bf16.msra.mxu0 0
        %2494 = vmatprep.subr.bf16.mxu0 0
        %2495 = vmatpush2.bf16.msra.mxu0 0
        %2496 = vmatprep.subr.bf16.mxu0 0
        %2497 = vmatpush2.bf16.msra.mxu0 0
        %2498 = vmatprep.subr.bf16.mxu0 0
        %2499 = vmatpush2.bf16.msra.mxu0 0
        %2500 = vmatprep.subr.bf16.mxu0 0
        %2501 = vmatpush2.bf16.msra.mxu0 0
        %2502 = vmatprep.subr.bf16.mxu0 0
        %2503 = vmatpush2.bf16.msra.mxu0 0
        %2504 = vmatprep.subr.bf16.mxu0 0
        %2505 = vmatpush2.bf16.msra.mxu0 0
        %2506 = vmatprep.mubr.bf16.mxu0 0
        %2507 = vmatmul.mubr.bf16.gmra.mxu0 %v463
        %v2508 = vpop.f32.mrf.mxu0
        %v2509 = vadd.f32 %v2426, %v2508
        %v2510 = vpop.f32.mrf.mxu0
        %v2511 = vadd.f32 %v2428, %v2510
        %v2512 = vpop.f32.mrf.mxu0
        %v2513 = vadd.f32 %v2430, %v2512
        %v2514 = vpop.f32.mrf.mxu0
        %v2515 = vadd.f32 %v2432, %v2514
        %2516 = vdwg.mxu0
        %v2517 = vld [vmem:[%s509 + $0x20] sm:$0xff]
        %v2518 = vld [vmem:[%s509 + $0x50] sm:$0xff]
        %v2519 = vld [vmem:[%s509 + $0x80] sm:$0xff]
        %v2520 = vld [vmem:[%s509 + $0xb0] sm:$0xff]
        %v2521 = vld [vmem:[%s509 + $0xe0] sm:$0xff]
        %v2522 = vld [vmem:[%s509 + $0x110] sm:$0xff]
        %v2523 = vld [vmem:[%s509 + $0x140] sm:$0xff]
        %v2524 = vld [vmem:[%s509 + $0x170] sm:$0xff]
        %v2533 = vunpack.c.l.b16 %v2517
        %v2534 = vunpack.c.h.b16 %v2517
        %v2535 = vunpack.c.l.b16 %v2518
        %v2536 = vunpack.c.h.b16 %v2518
        %v2537 = vunpack.c.l.b16 %v2519
        %v2538 = vunpack.c.h.b16 %v2519
        %v2539 = vunpack.c.l.b16 %v2520
        %v2540 = vunpack.c.h.b16 %v2520
        %v2541 = vunpack.c.l.b16 %v2521
        %v2542 = vunpack.c.h.b16 %v2521
        %v2543 = vunpack.c.l.b16 %v2522
        %v2544 = vunpack.c.h.b16 %v2522
        %v2545 = vunpack.c.l.b16 %v2523
        %v2546 = vunpack.c.h.b16 %v2523
        %v2547 = vunpack.c.l.b16 %v2524
        %v2548 = vunpack.c.h.b16 %v2524
        %v2549 = vpack.c.b16 %v2535, %v2533
        %v2550 = vpack.c.b16 %v2536, %v2534
        %v2551 = vpack.c.b16 %v2539, %v2537
        %v2552 = vpack.c.b16 %v2540, %v2538
        %v2553 = vpack.c.b16 %v2543, %v2541
        %v2554 = vpack.c.b16 %v2544, %v2542
        %v2555 = vpack.c.b16 %v2547, %v2545
        %v2556 = vpack.c.b16 %v2548, %v2546
        %2565 = vmatprep.subr.bf16.mxu0 0
        %2566 = vmatpush1.bf16.msra.mxu0 0
        %2567 = vmatprep.subr.bf16.mxu0 0
        %2568 = vmatpush1.bf16.msra.mxu0 0
        %2569 = vmatprep.subr.bf16.mxu0 0
        %2570 = vmatpush1.bf16.msra.mxu0 0
        %2571 = vmatprep.subr.bf16.mxu0 0
        %2572 = vmatpush1.bf16.msra.mxu0 0
        %2573 = vmatprep.subr.bf16.mxu0 %v2556
        %2574 = vmatpush1.bf16.msra.mxu0 %v2555
        %2575 = vmatprep.subr.bf16.mxu0 %v2554
        %2576 = vmatpush1.bf16.msra.mxu0 %v2553
        %2577 = vmatprep.subr.bf16.mxu0 %v2552
        %2578 = vmatpush1.bf16.msra.mxu0 %v2551
        %2579 = vmatprep.subr.bf16.mxu0 %v2550
        %2580 = vmatpush1.bf16.msra.mxu0 %v2549
        %2581 = vmatprep.subr.bf16.mxu0 0
        %2582 = vmatpush2.bf16.msra.mxu0 0
        %2583 = vmatprep.subr.bf16.mxu0 0
        %2584 = vmatpush2.bf16.msra.mxu0 0
        %2585 = vmatprep.subr.bf16.mxu0 0
        %2586 = vmatpush2.bf16.msra.mxu0 0
        %2587 = vmatprep.subr.bf16.mxu0 0
        %2588 = vmatpush2.bf16.msra.mxu0 0
        %2589 = vmatprep.subr.bf16.mxu0 0
        %2590 = vmatpush2.bf16.msra.mxu0 0
        %2591 = vmatprep.subr.bf16.mxu0 0
        %2592 = vmatpush2.bf16.msra.mxu0 0
        %2593 = vmatprep.subr.bf16.mxu0 0
        %2594 = vmatpush2.bf16.msra.mxu0 0
        %2595 = vmatprep.subr.bf16.mxu0 0
        %2596 = vmatpush2.bf16.msra.mxu0 0
        %2597 = vmatprep.mubr.bf16.mxu0 0
        %2598 = vmatmul.mubr.bf16.gmra.mxu0 %v563
        %v2599 = vpop.f32.mrf.mxu0
        %v2600 = vadd.f32 0.0, %v2599
        %v2601 = vpop.f32.mrf.mxu0
        %v2602 = vadd.f32 0.0, %v2601
        %v2603 = vpop.f32.mrf.mxu0
        %v2604 = vadd.f32 0.0, %v2603
        %v2605 = vpop.f32.mrf.mxu0
        %v2606 = vadd.f32 0.0, %v2605
        %2607 = vdwg.mxu0
        %v2608 = vadd.f32 %v2509, %v2600
        %v2609 = vadd.f32 %v2511, %v2602
        %v2610 = vadd.f32 %v2513, %v2604
        %v2611 = vadd.f32 %v2515, %v2606
        %v2612 = vld [vmem:[%s613 + $0x20] sm:$0xff]
        %v2613 = vld [vmem:[%s613 + $0x50] sm:$0xff]
        %v2614 = vld [vmem:[%s613 + $0x80] sm:$0xff]
        %v2615 = vld [vmem:[%s613 + $0xb0] sm:$0xff]
        %v2616 = vld [vmem:[%s613 + $0xe0] sm:$0xff]
        %v2617 = vld [vmem:[%s613 + $0x110] sm:$0xff]
        %v2618 = vld [vmem:[%s613 + $0x140] sm:$0xff]
        %v2619 = vld [vmem:[%s613 + $0x170] sm:$0xff]
        %v2628 = vunpack.c.l.b16 %v2612
        %v2629 = vunpack.c.h.b16 %v2612
        %v2630 = vunpack.c.l.b16 %v2613
        %v2631 = vunpack.c.h.b16 %v2613
        %v2632 = vunpack.c.l.b16 %v2614
        %v2633 = vunpack.c.h.b16 %v2614
        %v2634 = vunpack.c.l.b16 %v2615
        %v2635 = vunpack.c.h.b16 %v2615
        %v2636 = vunpack.c.l.b16 %v2616
        %v2637 = vunpack.c.h.b16 %v2616
        %v2638 = vunpack.c.l.b16 %v2617
        %v2639 = vunpack.c.h.b16 %v2617
        %v2640 = vunpack.c.l.b16 %v2618
        %v2641 = vunpack.c.h.b16 %v2618
        %v2642 = vunpack.c.l.b16 %v2619
        %v2643 = vunpack.c.h.b16 %v2619
        %v2644 = vpack.c.b16 %v2630, %v2628
        %v2645 = vpack.c.b16 %v2631, %v2629
        %v2646 = vpack.c.b16 %v2634, %v2632
        %v2647 = vpack.c.b16 %v2635, %v2633
        %v2648 = vpack.c.b16 %v2638, %v2636
        %v2649 = vpack.c.b16 %v2639, %v2637
        %v2650 = vpack.c.b16 %v2642, %v2640
        %v2651 = vpack.c.b16 %v2643, %v2641
        %2660 = vmatprep.subr.bf16.mxu0 0
        %2661 = vmatpush1.bf16.msra.mxu0 0
        %2662 = vmatprep.subr.bf16.mxu0 0
        %2663 = vmatpush1.bf16.msra.mxu0 0
        %2664 = vmatprep.subr.bf16.mxu0 0
        %2665 = vmatpush1.bf16.msra.mxu0 0
        %2666 = vmatprep.subr.bf16.mxu0 0
        %2667 = vmatpush1.bf16.msra.mxu0 0
        %2668 = vmatprep.subr.bf16.mxu0 %v2651
        %2669 = vmatpush1.bf16.msra.mxu0 %v2650
        %2670 = vmatprep.subr.bf16.mxu0 %v2649
        %2671 = vmatpush1.bf16.msra.mxu0 %v2648
        %2672 = vmatprep.subr.bf16.mxu0 %v2647
        %2673 = vmatpush1.bf16.msra.mxu0 %v2646
        %2674 = vmatprep.subr.bf16.mxu0 %v2645
        %2675 = vmatpush1.bf16.msra.mxu0 %v2644
        %2676 = vmatprep.subr.bf16.mxu0 0
        %2677 = vmatpush2.bf16.msra.mxu0 0
        %2678 = vmatprep.subr.bf16.mxu0 0
        %2679 = vmatpush2.bf16.msra.mxu0 0
        %2680 = vmatprep.subr.bf16.mxu0 0
        %2681 = vmatpush2.bf16.msra.mxu0 0
        %2682 = vmatprep.subr.bf16.mxu0 0
        %2683 = vmatpush2.bf16.msra.mxu0 0
        %2684 = vmatprep.subr.bf16.mxu0 0
        %2685 = vmatpush2.bf16.msra.mxu0 0
        %2686 = vmatprep.subr.bf16.mxu0 0
        %2687 = vmatpush2.bf16.msra.mxu0 0
        %2688 = vmatprep.subr.bf16.mxu0 0
        %2689 = vmatpush2.bf16.msra.mxu0 0
        %2690 = vmatprep.subr.bf16.mxu0 0
        %2691 = vmatpush2.bf16.msra.mxu0 0
        %2692 = vmatprep.mubr.bf16.mxu0 0
        %2693 = vmatmul.mubr.bf16.gmra.mxu0 %v674
        %v2694 = vpop.f32.mrf.mxu0
        %v2695 = vadd.f32 0.0, %v2694
        %v2696 = vpop.f32.mrf.mxu0
        %v2697 = vadd.f32 0.0, %v2696
        %v2698 = vpop.f32.mrf.mxu0
        %v2699 = vadd.f32 0.0, %v2698
        %v2700 = vpop.f32.mrf.mxu0
        %v2701 = vadd.f32 0.0, %v2700
        %2702 = vdwg.mxu0
        %v2703 = vadd.f32 %v2608, %v2695
        %v2704 = vadd.f32 %v2609, %v2697
        %v2705 = vadd.f32 %v2610, %v2699
        %v2706 = vadd.f32 %v2611, %v2701
        %v2707 = vld [vmem:[%s724 + $0x20] sm:$0xff]
        %v2708 = vld [vmem:[%s724 + $0x50] sm:$0xff]
        %v2709 = vld [vmem:[%s724 + $0x80] sm:$0xff]
        %v2710 = vld [vmem:[%s724 + $0xb0] sm:$0xff]
        %v2711 = vld [vmem:[%s724 + $0xe0] sm:$0xff]
        %v2712 = vld [vmem:[%s724 + $0x110] sm:$0xff]
        %v2713 = vld [vmem:[%s724 + $0x140] sm:$0xff]
        %v2714 = vld [vmem:[%s724 + $0x170] sm:$0xff]
        %v2723 = vunpack.c.l.b16 %v2707
        %v2724 = vunpack.c.h.b16 %v2707
        %v2725 = vunpack.c.l.b16 %v2708
        %v2726 = vunpack.c.h.b16 %v2708
        %v2727 = vunpack.c.l.b16 %v2709
        %v2728 = vunpack.c.h.b16 %v2709
        %v2729 = vunpack.c.l.b16 %v2710
        %v2730 = vunpack.c.h.b16 %v2710
        %v2731 = vunpack.c.l.b16 %v2711
        %v2732 = vunpack.c.h.b16 %v2711
        %v2733 = vunpack.c.l.b16 %v2712
        %v2734 = vunpack.c.h.b16 %v2712
        %v2735 = vunpack.c.l.b16 %v2713
        %v2736 = vunpack.c.h.b16 %v2713
        %v2737 = vunpack.c.l.b16 %v2714
        %v2738 = vunpack.c.h.b16 %v2714
        %v2739 = vpack.c.b16 %v2725, %v2723
        %v2740 = vpack.c.b16 %v2726, %v2724
        %v2741 = vpack.c.b16 %v2729, %v2727
        %v2742 = vpack.c.b16 %v2730, %v2728
        %v2743 = vpack.c.b16 %v2733, %v2731
        %v2744 = vpack.c.b16 %v2734, %v2732
        %v2745 = vpack.c.b16 %v2737, %v2735
        %v2746 = vpack.c.b16 %v2738, %v2736
        %2755 = vmatprep.subr.bf16.mxu0 0
        %2756 = vmatpush1.bf16.msra.mxu0 0
        %2757 = vmatprep.subr.bf16.mxu0 0
        %2758 = vmatpush1.bf16.msra.mxu0 0
        %2759 = vmatprep.subr.bf16.mxu0 0
        %2760 = vmatpush1.bf16.msra.mxu0 0
        %2761 = vmatprep.subr.bf16.mxu0 0
        %2762 = vmatpush1.bf16.msra.mxu0 0
        %2763 = vmatprep.subr.bf16.mxu0 %v2746
        %2764 = vmatpush1.bf16.msra.mxu0 %v2745
        %2765 = vmatprep.subr.bf16.mxu0 %v2744
        %2766 = vmatpush1.bf16.msra.mxu0 %v2743
        %2767 = vmatprep.subr.bf16.mxu0 %v2742
        %2768 = vmatpush1.bf16.msra.mxu0 %v2741
        %2769 = vmatprep.subr.bf16.mxu0 %v2740
        %2770 = vmatpush1.bf16.msra.mxu0 %v2739
        %2771 = vmatprep.subr.bf16.mxu0 0
        %2772 = vmatpush2.bf16.msra.mxu0 0
        %2773 = vmatprep.subr.bf16.mxu0 0
        %2774 = vmatpush2.bf16.msra.mxu0 0
        %2775 = vmatprep.subr.bf16.mxu0 0
        %2776 = vmatpush2.bf16.msra.mxu0 0
        %2777 = vmatprep.subr.bf16.mxu0 0
        %2778 = vmatpush2.bf16.msra.mxu0 0
        %2779 = vmatprep.subr.bf16.mxu0 0
        %2780 = vmatpush2.bf16.msra.mxu0 0
        %2781 = vmatprep.subr.bf16.mxu0 0
        %2782 = vmatpush2.bf16.msra.mxu0 0
        %2783 = vmatprep.subr.bf16.mxu0 0
        %2784 = vmatpush2.bf16.msra.mxu0 0
        %2785 = vmatprep.subr.bf16.mxu0 0
        %2786 = vmatpush2.bf16.msra.mxu0 0
        %2787 = vmatprep.mubr.bf16.mxu0 0
        %2788 = vmatmul.mubr.bf16.gmra.mxu0 %v778
        %v2789 = vpop.f32.mrf.mxu0
        %v2790 = vadd.f32 0.0, %v2789
        %v2791 = vpop.f32.mrf.mxu0
        %v2792 = vadd.f32 0.0, %v2791
        %v2793 = vpop.f32.mrf.mxu0
        %v2794 = vadd.f32 0.0, %v2793
        %v2795 = vpop.f32.mrf.mxu0
        %v2796 = vadd.f32 0.0, %v2795
        %2797 = vdwg.mxu0
        %v2798 = vadd.f32 %v2703, %v2790
        %v2799 = vadd.f32 %v2704, %v2792
        %v2800 = vadd.f32 %v2705, %v2794
        %v2801 = vadd.f32 %v2706, %v2796
        %v2806 = vrot.slane %v2798, 1
        %v2807 = vrot.slane %v2800, 1
        %v2808 = vsel %vm831, %v2806, %v2807
        %v2809 = vrot.slane %v2799, 1
        %v2810 = vrot.slane %v2801, 1
        %v2811 = vsel %vm831, %v2809, %v2810
        %v2816 = vmax.f32 %v2798, %v2808
        %v2817 = vmax.f32 %v2799, %v2811
        %v2818 = vmax.f32 %v2800, %v2807
        %v2819 = vmax.f32 %v2801, %v2810
        %v2820 = vmax.f32 %v2816, %v2817
        %v2821 = vmax.f32 %v2818, %v2819
        %v2822 = vadd.f32 %v2820, %v852
        %v2823 = vadd.f32 %v2821, %v852
        %v2824 = vmax.f32 %v2822, 0.0
        %v2825 = vmax.f32 %v2823, 0.0
        %v2826 = vpack.c.bf16 %v2825, %v2824
        %v2827 = vld [vmem:[#allocation5 + $0x28] sm:$0xff]
        %v2828 = vld [vmem:[#allocation5 + $0x58] sm:$0xff]
        %v2829 = vld [vmem:[#allocation5 + $0x88] sm:$0xff]
        %v2830 = vld [vmem:[#allocation5 + $0xb8] sm:$0xff]
        %v2831 = vld [vmem:[#allocation5 + $0xe8] sm:$0xff]
        %v2832 = vld [vmem:[#allocation5 + $0x118] sm:$0xff]
        %v2833 = vld [vmem:[#allocation5 + $0x148] sm:$0xff]
        %v2834 = vld [vmem:[#allocation5 + $0x178] sm:$0xff]
        %v2835 = vld [vmem:[%s311 + $0x28] sm:$0xff]
        %v2836 = vld [vmem:[%s311 + $0x58] sm:$0xff]
        %v2837 = vld [vmem:[%s311 + $0x88] sm:$0xff]
        %v2838 = vld [vmem:[%s311 + $0xb8] sm:$0xff]
        %v2839 = vld [vmem:[%s311 + $0xe8] sm:$0xff]
        %v2840 = vld [vmem:[%s311 + $0x118] sm:$0xff]
        %v2841 = vld [vmem:[%s311 + $0x148] sm:$0xff]
        %v2842 = vld [vmem:[%s311 + $0x178] sm:$0xff]
        %v2851 = vunpack.c.l.b16 %v2835
        %v2852 = vunpack.c.h.b16 %v2835
        %v2853 = vunpack.c.l.b16 %v2836
        %v2854 = vunpack.c.h.b16 %v2836
        %v2855 = vunpack.c.l.b16 %v2837
        %v2856 = vunpack.c.h.b16 %v2837
        %v2857 = vunpack.c.l.b16 %v2838
        %v2858 = vunpack.c.h.b16 %v2838
        %v2859 = vunpack.c.l.b16 %v2839
        %v2860 = vunpack.c.h.b16 %v2839
        %v2861 = vunpack.c.l.b16 %v2840
        %v2862 = vunpack.c.h.b16 %v2840
        %v2863 = vunpack.c.l.b16 %v2841
        %v2864 = vunpack.c.h.b16 %v2841
        %v2865 = vunpack.c.l.b16 %v2842
        %v2866 = vunpack.c.h.b16 %v2842
        %v2867 = vpack.c.b16 %v2853, %v2851
        %v2868 = vpack.c.b16 %v2854, %v2852
        %v2869 = vpack.c.b16 %v2857, %v2855
        %v2870 = vpack.c.b16 %v2858, %v2856
        %v2871 = vpack.c.b16 %v2861, %v2859
        %v2872 = vpack.c.b16 %v2862, %v2860
        %v2873 = vpack.c.b16 %v2865, %v2863
        %v2874 = vpack.c.b16 %v2866, %v2864
        %2883 = vmatprep.subr.bf16.mxu0 0
        %2884 = vmatpush1.bf16.msra.mxu0 0
        %2885 = vmatprep.subr.bf16.mxu0 0
        %2886 = vmatpush1.bf16.msra.mxu0 0
        %2887 = vmatprep.subr.bf16.mxu0 0
        %2888 = vmatpush1.bf16.msra.mxu0 0
        %2889 = vmatprep.subr.bf16.mxu0 0
        %2890 = vmatpush1.bf16.msra.mxu0 0
        %2891 = vmatprep.subr.bf16.mxu0 %v2874
        %2892 = vmatpush1.bf16.msra.mxu0 %v2873
        %2893 = vmatprep.subr.bf16.mxu0 %v2872
        %2894 = vmatpush1.bf16.msra.mxu0 %v2871
        %2895 = vmatprep.subr.bf16.mxu0 %v2870
        %2896 = vmatpush1.bf16.msra.mxu0 %v2869
        %2897 = vmatprep.subr.bf16.mxu0 %v2868
        %2898 = vmatpush1.bf16.msra.mxu0 %v2867
        %2899 = vmatprep.subr.bf16.mxu0 0
        %2900 = vmatpush2.bf16.msra.mxu0 0
        %2901 = vmatprep.subr.bf16.mxu0 0
        %2902 = vmatpush2.bf16.msra.mxu0 0
        %2903 = vmatprep.subr.bf16.mxu0 0
        %2904 = vmatpush2.bf16.msra.mxu0 0
        %2905 = vmatprep.subr.bf16.mxu0 0
        %2906 = vmatpush2.bf16.msra.mxu0 0
        %2907 = vmatprep.subr.bf16.mxu0 0
        %2908 = vmatpush2.bf16.msra.mxu0 0
        %2909 = vmatprep.subr.bf16.mxu0 0
        %2910 = vmatpush2.bf16.msra.mxu0 0
        %2911 = vmatprep.subr.bf16.mxu0 0
        %2912 = vmatpush2.bf16.msra.mxu0 0
        %2913 = vmatprep.subr.bf16.mxu0 0
        %2914 = vmatpush2.bf16.msra.mxu0 0
        %2915 = vmatprep.mubr.bf16.mxu0 0
        %2916 = vmatmul.mubr.bf16.gmra.mxu0 %v374
        %v2917 = vpop.f32.mrf.mxu0
        %v2918 = vadd.f32 0.0, %v2917
        %v2919 = vpop.f32.mrf.mxu0
        %v2920 = vadd.f32 0.0, %v2919
        %v2921 = vpop.f32.mrf.mxu0
        %v2922 = vadd.f32 0.0, %v2921
        %v2923 = vpop.f32.mrf.mxu0
        %v2924 = vadd.f32 0.0, %v2923
        %2925 = vdwg.mxu0
        %v2934 = vunpack.c.l.b16 %v2827
        %v2935 = vunpack.c.h.b16 %v2827
        %v2936 = vunpack.c.l.b16 %v2828
        %v2937 = vunpack.c.h.b16 %v2828
        %v2938 = vunpack.c.l.b16 %v2829
        %v2939 = vunpack.c.h.b16 %v2829
        %v2940 = vunpack.c.l.b16 %v2830
        %v2941 = vunpack.c.h.b16 %v2830
        %v2942 = vunpack.c.l.b16 %v2831
        %v2943 = vunpack.c.h.b16 %v2831
        %v2944 = vunpack.c.l.b16 %v2832
        %v2945 = vunpack.c.h.b16 %v2832
        %v2946 = vunpack.c.l.b16 %v2833
        %v2947 = vunpack.c.h.b16 %v2833
        %v2948 = vunpack.c.l.b16 %v2834
        %v2949 = vunpack.c.h.b16 %v2834
        %v2950 = vpack.c.b16 %v2936, %v2934
        %v2951 = vpack.c.b16 %v2937, %v2935
        %v2952 = vpack.c.b16 %v2940, %v2938
        %v2953 = vpack.c.b16 %v2941, %v2939
        %v2954 = vpack.c.b16 %v2944, %v2942
        %v2955 = vpack.c.b16 %v2945, %v2943
        %v2956 = vpack.c.b16 %v2948, %v2946
        %v2957 = vpack.c.b16 %v2949, %v2947
        %2966 = vmatprep.subr.bf16.mxu0 0
        %2967 = vmatpush1.bf16.msra.mxu0 0
        %2968 = vmatprep.subr.bf16.mxu0 0
        %2969 = vmatpush1.bf16.msra.mxu0 0
        %2970 = vmatprep.subr.bf16.mxu0 0
        %2971 = vmatpush1.bf16.msra.mxu0 0
        %2972 = vmatprep.subr.bf16.mxu0 0
        %2973 = vmatpush1.bf16.msra.mxu0 0
        %2974 = vmatprep.subr.bf16.mxu0 %v2957
        %2975 = vmatpush1.bf16.msra.mxu0 %v2956
        %2976 = vmatprep.subr.bf16.mxu0 %v2955
        %2977 = vmatpush1.bf16.msra.mxu0 %v2954
        %2978 = vmatprep.subr.bf16.mxu0 %v2953
        %2979 = vmatpush1.bf16.msra.mxu0 %v2952
        %2980 = vmatprep.subr.bf16.mxu0 %v2951
        %2981 = vmatpush1.bf16.msra.mxu0 %v2950
        %2982 = vmatprep.subr.bf16.mxu0 0
        %2983 = vmatpush2.bf16.msra.mxu0 0
        %2984 = vmatprep.subr.bf16.mxu0 0
        %2985 = vmatpush2.bf16.msra.mxu0 0
        %2986 = vmatprep.subr.bf16.mxu0 0
        %2987 = vmatpush2.bf16.msra.mxu0 0
        %2988 = vmatprep.subr.bf16.mxu0 0
        %2989 = vmatpush2.bf16.msra.mxu0 0
        %2990 = vmatprep.subr.bf16.mxu0 0
        %2991 = vmatpush2.bf16.msra.mxu0 0
        %2992 = vmatprep.subr.bf16.mxu0 0
        %2993 = vmatpush2.bf16.msra.mxu0 0
        %2994 = vmatprep.subr.bf16.mxu0 0
        %2995 = vmatpush2.bf16.msra.mxu0 0
        %2996 = vmatprep.subr.bf16.mxu0 0
        %2997 = vmatpush2.bf16.msra.mxu0 0
        %2998 = vmatprep.mubr.bf16.mxu0 0
        %2999 = vmatmul.mubr.bf16.gmra.mxu0 %v463
        %v3000 = vpop.f32.mrf.mxu0
        %v3001 = vadd.f32 %v2918, %v3000
        %v3002 = vpop.f32.mrf.mxu0
        %v3003 = vadd.f32 %v2920, %v3002
        %v3004 = vpop.f32.mrf.mxu0
        %v3005 = vadd.f32 %v2922, %v3004
        %v3006 = vpop.f32.mrf.mxu0
        %v3007 = vadd.f32 %v2924, %v3006
        %3008 = vdwg.mxu0
        %v3009 = vld [vmem:[%s509 + $0x28] sm:$0xff]
        %v3010 = vld [vmem:[%s509 + $0x58] sm:$0xff]
        %v3011 = vld [vmem:[%s509 + $0x88] sm:$0xff]
        %v3012 = vld [vmem:[%s509 + $0xb8] sm:$0xff]
        %v3013 = vld [vmem:[%s509 + $0xe8] sm:$0xff]
        %v3014 = vld [vmem:[%s509 + $0x118] sm:$0xff]
        %v3015 = vld [vmem:[%s509 + $0x148] sm:$0xff]
        %v3016 = vld [vmem:[%s509 + $0x178] sm:$0xff]
        %v3025 = vunpack.c.l.b16 %v3009
        %v3026 = vunpack.c.h.b16 %v3009
        %v3027 = vunpack.c.l.b16 %v3010
        %v3028 = vunpack.c.h.b16 %v3010
        %v3029 = vunpack.c.l.b16 %v3011
        %v3030 = vunpack.c.h.b16 %v3011
        %v3031 = vunpack.c.l.b16 %v3012
        %v3032 = vunpack.c.h.b16 %v3012
        %v3033 = vunpack.c.l.b16 %v3013
        %v3034 = vunpack.c.h.b16 %v3013
        %v3035 = vunpack.c.l.b16 %v3014
        %v3036 = vunpack.c.h.b16 %v3014
        %v3037 = vunpack.c.l.b16 %v3015
        %v3038 = vunpack.c.h.b16 %v3015
        %v3039 = vunpack.c.l.b16 %v3016
        %v3040 = vunpack.c.h.b16 %v3016
        %v3041 = vpack.c.b16 %v3027, %v3025
        %v3042 = vpack.c.b16 %v3028, %v3026
        %v3043 = vpack.c.b16 %v3031, %v3029
        %v3044 = vpack.c.b16 %v3032, %v3030
        %v3045 = vpack.c.b16 %v3035, %v3033
        %v3046 = vpack.c.b16 %v3036, %v3034
        %v3047 = vpack.c.b16 %v3039, %v3037
        %v3048 = vpack.c.b16 %v3040, %v3038
        %3057 = vmatprep.subr.bf16.mxu0 0
        %3058 = vmatpush1.bf16.msra.mxu0 0
        %3059 = vmatprep.subr.bf16.mxu0 0
        %3060 = vmatpush1.bf16.msra.mxu0 0
        %3061 = vmatprep.subr.bf16.mxu0 0
        %3062 = vmatpush1.bf16.msra.mxu0 0
        %3063 = vmatprep.subr.bf16.mxu0 0
        %3064 = vmatpush1.bf16.msra.mxu0 0
        %3065 = vmatprep.subr.bf16.mxu0 %v3048
        %3066 = vmatpush1.bf16.msra.mxu0 %v3047
        %3067 = vmatprep.subr.bf16.mxu0 %v3046
        %3068 = vmatpush1.bf16.msra.mxu0 %v3045
        %3069 = vmatprep.subr.bf16.mxu0 %v3044
        %3070 = vmatpush1.bf16.msra.mxu0 %v3043
        %3071 = vmatprep.subr.bf16.mxu0 %v3042
        %3072 = vmatpush1.bf16.msra.mxu0 %v3041
        %3073 = vmatprep.subr.bf16.mxu0 0
        %3074 = vmatpush2.bf16.msra.mxu0 0
        %3075 = vmatprep.subr.bf16.mxu0 0
        %3076 = vmatpush2.bf16.msra.mxu0 0
        %3077 = vmatprep.subr.bf16.mxu0 0
        %3078 = vmatpush2.bf16.msra.mxu0 0
        %3079 = vmatprep.subr.bf16.mxu0 0
        %3080 = vmatpush2.bf16.msra.mxu0 0
        %3081 = vmatprep.subr.bf16.mxu0 0
        %3082 = vmatpush2.bf16.msra.mxu0 0
        %3083 = vmatprep.subr.bf16.mxu0 0
        %3084 = vmatpush2.bf16.msra.mxu0 0
        %3085 = vmatprep.subr.bf16.mxu0 0
        %3086 = vmatpush2.bf16.msra.mxu0 0
        %3087 = vmatprep.subr.bf16.mxu0 0
        %3088 = vmatpush2.bf16.msra.mxu0 0
        %3089 = vmatprep.mubr.bf16.mxu0 0
        %3090 = vmatmul.mubr.bf16.gmra.mxu0 %v563
        %v3091 = vpop.f32.mrf.mxu0
        %v3092 = vadd.f32 0.0, %v3091
        %v3093 = vpop.f32.mrf.mxu0
        %v3094 = vadd.f32 0.0, %v3093
        %v3095 = vpop.f32.mrf.mxu0
        %v3096 = vadd.f32 0.0, %v3095
        %v3097 = vpop.f32.mrf.mxu0
        %v3098 = vadd.f32 0.0, %v3097
        %3099 = vdwg.mxu0
        %v3100 = vadd.f32 %v3001, %v3092
        %v3101 = vadd.f32 %v3003, %v3094
        %v3102 = vadd.f32 %v3005, %v3096
        %v3103 = vadd.f32 %v3007, %v3098
        %v3104 = vld [vmem:[%s613 + $0x28] sm:$0xff]
        %v3105 = vld [vmem:[%s613 + $0x58] sm:$0xff]
        %v3106 = vld [vmem:[%s613 + $0x88] sm:$0xff]
        %v3107 = vld [vmem:[%s613 + $0xb8] sm:$0xff]
        %v3108 = vld [vmem:[%s613 + $0xe8] sm:$0xff]
        %v3109 = vld [vmem:[%s613 + $0x118] sm:$0xff]
        %v3110 = vld [vmem:[%s613 + $0x148] sm:$0xff]
        %v3111 = vld [vmem:[%s613 + $0x178] sm:$0xff]
        %v3120 = vunpack.c.l.b16 %v3104
        %v3121 = vunpack.c.h.b16 %v3104
        %v3122 = vunpack.c.l.b16 %v3105
        %v3123 = vunpack.c.h.b16 %v3105
        %v3124 = vunpack.c.l.b16 %v3106
        %v3125 = vunpack.c.h.b16 %v3106
        %v3126 = vunpack.c.l.b16 %v3107
        %v3127 = vunpack.c.h.b16 %v3107
        %v3128 = vunpack.c.l.b16 %v3108
        %v3129 = vunpack.c.h.b16 %v3108
        %v3130 = vunpack.c.l.b16 %v3109
        %v3131 = vunpack.c.h.b16 %v3109
        %v3132 = vunpack.c.l.b16 %v3110
        %v3133 = vunpack.c.h.b16 %v3110
        %v3134 = vunpack.c.l.b16 %v3111
        %v3135 = vunpack.c.h.b16 %v3111
        %v3136 = vpack.c.b16 %v3122, %v3120
        %v3137 = vpack.c.b16 %v3123, %v3121
        %v3138 = vpack.c.b16 %v3126, %v3124
        %v3139 = vpack.c.b16 %v3127, %v3125
        %v3140 = vpack.c.b16 %v3130, %v3128
        %v3141 = vpack.c.b16 %v3131, %v3129
        %v3142 = vpack.c.b16 %v3134, %v3132
        %v3143 = vpack.c.b16 %v3135, %v3133
        %3152 = vmatprep.subr.bf16.mxu0 0
        %3153 = vmatpush1.bf16.msra.mxu0 0
        %3154 = vmatprep.subr.bf16.mxu0 0
        %3155 = vmatpush1.bf16.msra.mxu0 0
        %3156 = vmatprep.subr.bf16.mxu0 0
        %3157 = vmatpush1.bf16.msra.mxu0 0
        %3158 = vmatprep.subr.bf16.mxu0 0
        %3159 = vmatpush1.bf16.msra.mxu0 0
        %3160 = vmatprep.subr.bf16.mxu0 %v3143
        %3161 = vmatpush1.bf16.msra.mxu0 %v3142
        %3162 = vmatprep.subr.bf16.mxu0 %v3141
        %3163 = vmatpush1.bf16.msra.mxu0 %v3140
        %3164 = vmatprep.subr.bf16.mxu0 %v3139
        %3165 = vmatpush1.bf16.msra.mxu0 %v3138
        %3166 = vmatprep.subr.bf16.mxu0 %v3137
        %3167 = vmatpush1.bf16.msra.mxu0 %v3136
        %3168 = vmatprep.subr.bf16.mxu0 0
        %3169 = vmatpush2.bf16.msra.mxu0 0
        %3170 = vmatprep.subr.bf16.mxu0 0
        %3171 = vmatpush2.bf16.msra.mxu0 0
        %3172 = vmatprep.subr.bf16.mxu0 0
        %3173 = vmatpush2.bf16.msra.mxu0 0
        %3174 = vmatprep.subr.bf16.mxu0 0
        %3175 = vmatpush2.bf16.msra.mxu0 0
        %3176 = vmatprep.subr.bf16.mxu0 0
        %3177 = vmatpush2.bf16.msra.mxu0 0
        %3178 = vmatprep.subr.bf16.mxu0 0
        %3179 = vmatpush2.bf16.msra.mxu0 0
        %3180 = vmatprep.subr.bf16.mxu0 0
        %3181 = vmatpush2.bf16.msra.mxu0 0
        %3182 = vmatprep.subr.bf16.mxu0 0
        %3183 = vmatpush2.bf16.msra.mxu0 0
        %3184 = vmatprep.mubr.bf16.mxu0 0
        %3185 = vmatmul.mubr.bf16.gmra.mxu0 %v674
        %v3186 = vpop.f32.mrf.mxu0
        %v3187 = vadd.f32 0.0, %v3186
        %v3188 = vpop.f32.mrf.mxu0
        %v3189 = vadd.f32 0.0, %v3188
        %v3190 = vpop.f32.mrf.mxu0
        %v3191 = vadd.f32 0.0, %v3190
        %v3192 = vpop.f32.mrf.mxu0
        %v3193 = vadd.f32 0.0, %v3192
        %3194 = vdwg.mxu0
        %v3195 = vadd.f32 %v3100, %v3187
        %v3196 = vadd.f32 %v3101, %v3189
        %v3197 = vadd.f32 %v3102, %v3191
        %v3198 = vadd.f32 %v3103, %v3193
        %v3199 = vld [vmem:[%s724 + $0x28] sm:$0xff]
        %v3200 = vld [vmem:[%s724 + $0x58] sm:$0xff]
        %v3201 = vld [vmem:[%s724 + $0x88] sm:$0xff]
        %v3202 = vld [vmem:[%s724 + $0xb8] sm:$0xff]
        %v3203 = vld [vmem:[%s724 + $0xe8] sm:$0xff]
        %v3204 = vld [vmem:[%s724 + $0x118] sm:$0xff]
        %v3205 = vld [vmem:[%s724 + $0x148] sm:$0xff]
        %v3206 = vld [vmem:[%s724 + $0x178] sm:$0xff]
        %v3215 = vunpack.c.l.b16 %v3199
        %v3216 = vunpack.c.h.b16 %v3199
        %v3217 = vunpack.c.l.b16 %v3200
        %v3218 = vunpack.c.h.b16 %v3200
        %v3219 = vunpack.c.l.b16 %v3201
        %v3220 = vunpack.c.h.b16 %v3201
        %v3221 = vunpack.c.l.b16 %v3202
        %v3222 = vunpack.c.h.b16 %v3202
        %v3223 = vunpack.c.l.b16 %v3203
        %v3224 = vunpack.c.h.b16 %v3203
        %v3225 = vunpack.c.l.b16 %v3204
        %v3226 = vunpack.c.h.b16 %v3204
        %v3227 = vunpack.c.l.b16 %v3205
        %v3228 = vunpack.c.h.b16 %v3205
        %v3229 = vunpack.c.l.b16 %v3206
        %v3230 = vunpack.c.h.b16 %v3206
        %v3231 = vpack.c.b16 %v3217, %v3215
        %v3232 = vpack.c.b16 %v3218, %v3216
        %v3233 = vpack.c.b16 %v3221, %v3219
        %v3234 = vpack.c.b16 %v3222, %v3220
        %v3235 = vpack.c.b16 %v3225, %v3223
        %v3236 = vpack.c.b16 %v3226, %v3224
        %v3237 = vpack.c.b16 %v3229, %v3227
        %v3238 = vpack.c.b16 %v3230, %v3228
        %3247 = vmatprep.subr.bf16.mxu0 0
        %3248 = vmatpush1.bf16.msra.mxu0 0
        %3249 = vmatprep.subr.bf16.mxu0 0
        %3250 = vmatpush1.bf16.msra.mxu0 0
        %3251 = vmatprep.subr.bf16.mxu0 0
        %3252 = vmatpush1.bf16.msra.mxu0 0
        %3253 = vmatprep.subr.bf16.mxu0 0
        %3254 = vmatpush1.bf16.msra.mxu0 0
        %3255 = vmatprep.subr.bf16.mxu0 %v3238
        %3256 = vmatpush1.bf16.msra.mxu0 %v3237
        %3257 = vmatprep.subr.bf16.mxu0 %v3236
        %3258 = vmatpush1.bf16.msra.mxu0 %v3235
        %3259 = vmatprep.subr.bf16.mxu0 %v3234
        %3260 = vmatpush1.bf16.msra.mxu0 %v3233
        %3261 = vmatprep.subr.bf16.mxu0 %v3232
        %3262 = vmatpush1.bf16.msra.mxu0 %v3231
        %3263 = vmatprep.subr.bf16.mxu0 0
        %3264 = vmatpush2.bf16.msra.mxu0 0
        %3265 = vmatprep.subr.bf16.mxu0 0
        %3266 = vmatpush2.bf16.msra.mxu0 0
        %3267 = vmatprep.subr.bf16.mxu0 0
        %3268 = vmatpush2.bf16.msra.mxu0 0
        %3269 = vmatprep.subr.bf16.mxu0 0
        %3270 = vmatpush2.bf16.msra.mxu0 0
        %3271 = vmatprep.subr.bf16.mxu0 0
        %3272 = vmatpush2.bf16.msra.mxu0 0
        %3273 = vmatprep.subr.bf16.mxu0 0
        %3274 = vmatpush2.bf16.msra.mxu0 0
        %3275 = vmatprep.subr.bf16.mxu0 0
        %3276 = vmatpush2.bf16.msra.mxu0 0
        %3277 = vmatprep.subr.bf16.mxu0 0
        %3278 = vmatpush2.bf16.msra.mxu0 0
        %3279 = vmatprep.mubr.bf16.mxu0 0
        %3280 = vmatmul.mubr.bf16.gmra.mxu0 %v778
        %v3281 = vpop.f32.mrf.mxu0
        %v3282 = vadd.f32 0.0, %v3281
        %v3283 = vpop.f32.mrf.mxu0
        %v3284 = vadd.f32 0.0, %v3283
        %v3285 = vpop.f32.mrf.mxu0
        %v3286 = vadd.f32 0.0, %v3285
        %v3287 = vpop.f32.mrf.mxu0
        %v3288 = vadd.f32 0.0, %v3287
        %3289 = vdwg.mxu0
        %v3290 = vadd.f32 %v3195, %v3282
        %v3291 = vadd.f32 %v3196, %v3284
        %v3292 = vadd.f32 %v3197, %v3286
        %v3293 = vadd.f32 %v3198, %v3288
        %v3298 = vrot.slane %v3290, 1
        %v3299 = vrot.slane %v3292, 1
        %v3300 = vsel %vm831, %v3298, %v3299
        %v3301 = vrot.slane %v3291, 1
        %v3302 = vrot.slane %v3293, 1
        %v3303 = vsel %vm831, %v3301, %v3302
        %v3308 = vmax.f32 %v3290, %v3300
        %v3309 = vmax.f32 %v3291, %v3303
        %v3310 = vmax.f32 %v3292, %v3299
        %v3311 = vmax.f32 %v3293, %v3302
        %v3312 = vmax.f32 %v3308, %v3309
        %v3313 = vmax.f32 %v3310, %v3311
        %v3314 = vadd.f32 %v3312, %v852
        %v3315 = vadd.f32 %v3313, %v852
        %v3316 = vmax.f32 %v3314, 0.0
        %v3317 = vmax.f32 %v3315, 0.0
        %v3318 = vpack.c.bf16 %v3317, %v3316
        %v3319 = vld [vmem:[#allocation8] sm:$0xff]
        %v3320 = vld [vmem:[#allocation8 + $0x8] sm:$0xff]
        %v3321 = vld [vmem:[#allocation8 + $0x10] sm:$0xff]
        %v3322 = vld [vmem:[#allocation8 + $0x18] sm:$0xff]
        %v3323 = vld [vmem:[#allocation8 + $0x20] sm:$0xff]
        %v3324 = vld [vmem:[#allocation8 + $0x28] sm:$0xff]
        %v3325 = vld [vmem:[#allocation8 + $0x30] sm:$0xff]
        %v3326 = vld [vmem:[#allocation8 + $0x38] sm:$0xff]
        %v3327 = vld [vmem:[#allocation8 + $0x40] sm:$0xff]
        %v3328 = vld [vmem:[#allocation8 + $0x48] sm:$0xff]
        %v3329 = vld [vmem:[#allocation8 + $0x50] sm:$0xff]
        %v3330 = vld [vmem:[#allocation8 + $0x58] sm:$0xff]
        %v3331 = vld [vmem:[#allocation8 + $0x60] sm:$0xff]
        %v3332 = vld [vmem:[#allocation8 + $0x68] sm:$0xff]
        %v3333 = vld [vmem:[#allocation8 + $0x70] sm:$0xff]
        %v3334 = vld [vmem:[#allocation8 + $0x78] sm:$0xff]
        %v3335 = vld [vmem:[#allocation8 + $0x80] sm:$0xff]
        %v3336 = vld [vmem:[#allocation8 + $0x88] sm:$0xff]
        %v3337 = vld [vmem:[#allocation8 + $0x90] sm:$0xff]
        %v3338 = vld [vmem:[#allocation8 + $0x98] sm:$0xff]
        %v3339 = vld [vmem:[#allocation8 + $0xa0] sm:$0xff]
        %v3340 = vld [vmem:[#allocation8 + $0xa8] sm:$0xff]
        %v3341 = vld [vmem:[#allocation8 + $0xb0] sm:$0xff]
        %v3342 = vld [vmem:[#allocation8 + $0xb8] sm:$0xff]
        %v3343 = vld [vmem:[#allocation8 + $0xc0] sm:$0xff]
        %v3344 = vld [vmem:[#allocation8 + $0xc8] sm:$0xff]
        %v3345 = vld [vmem:[#allocation8 + $0xd0] sm:$0xff]
        %v3346 = vld [vmem:[#allocation8 + $0xd8] sm:$0xff]
        %v3347 = vld [vmem:[#allocation8 + $0xe0] sm:$0xff]
        %v3348 = vld [vmem:[#allocation8 + $0xe8] sm:$0xff]
        %v3349 = vld [vmem:[#allocation8 + $0xf0] sm:$0xff]
        %v3350 = vld [vmem:[#allocation8 + $0xf8] sm:$0xff]
        %v3351 = vld [vmem:[#allocation8 + $0x100] sm:$0xff]
        %v3352 = vld [vmem:[#allocation8 + $0x108] sm:$0xff]
        %v3353 = vld [vmem:[#allocation8 + $0x110] sm:$0xff]
        %v3354 = vld [vmem:[#allocation8 + $0x118] sm:$0xff]
        %v3355 = vld [vmem:[#allocation8 + $0x120] sm:$0xff]
        %v3356 = vld [vmem:[#allocation8 + $0x128] sm:$0xff]
        %v3357 = vld [vmem:[#allocation8 + $0x130] sm:$0xff]
        %v3358 = vld [vmem:[#allocation8 + $0x138] sm:$0xff]
        %v3359 = vld [vmem:[#allocation8 + $0x140] sm:$0xff]
        %v3360 = vld [vmem:[#allocation8 + $0x148] sm:$0xff]
        %v3361 = vld [vmem:[#allocation8 + $0x150] sm:$0xff]
        %v3362 = vld [vmem:[#allocation8 + $0x158] sm:$0xff]
        %v3363 = vld [vmem:[#allocation8 + $0x160] sm:$0xff]
        %v3364 = vld [vmem:[#allocation8 + $0x168] sm:$0xff]
        %v3365 = vld [vmem:[#allocation8 + $0x170] sm:$0xff]
        %v3366 = vld [vmem:[#allocation8 + $0x178] sm:$0xff]
        %v3367 = vld [vmem:[#allocation8 + $0x180] sm:$0xff]
        %v3368 = vld [vmem:[#allocation8 + $0x188] sm:$0xff]
        %v3369 = vld [vmem:[#allocation8 + $0x190] sm:$0xff]
        %v3370 = vld [vmem:[#allocation8 + $0x198] sm:$0xff]
        %v3371 = vld [vmem:[#allocation8 + $0x1a0] sm:$0xff]
        %v3372 = vld [vmem:[#allocation8 + $0x1a8] sm:$0xff]
        %v3373 = vld [vmem:[#allocation8 + $0x1b0] sm:$0xff]
        %v3374 = vld [vmem:[#allocation8 + $0x1b8] sm:$0xff]
        %v3375 = vld [vmem:[#allocation8 + $0x1c0] sm:$0xff]
        %v3376 = vld [vmem:[#allocation8 + $0x1c8] sm:$0xff]
        %v3377 = vld [vmem:[#allocation8 + $0x1d0] sm:$0xff]
        %v3378 = vld [vmem:[#allocation8 + $0x1d8] sm:$0xff]
        %v3379 = vld [vmem:[#allocation8 + $0x1e0] sm:$0xff]
        %v3380 = vld [vmem:[#allocation8 + $0x1e8] sm:$0xff]
        %v3381 = vld [vmem:[#allocation8 + $0x1f0] sm:$0xff]
        %v3382 = vld [vmem:[#allocation8 + $0x1f8] sm:$0xff]
        %v3383 = vld [vmem:[#allocation8 + $0x200] sm:$0xff]
        %v3384 = vld [vmem:[#allocation8 + $0x208] sm:$0xff]
        %v3385 = vld [vmem:[#allocation8 + $0x210] sm:$0xff]
        %v3386 = vld [vmem:[#allocation8 + $0x218] sm:$0xff]
        %v3387 = vld [vmem:[#allocation8 + $0x220] sm:$0xff]
        %v3388 = vld [vmem:[#allocation8 + $0x228] sm:$0xff]
        %v3389 = vld [vmem:[#allocation8 + $0x230] sm:$0xff]
        %v3390 = vld [vmem:[#allocation8 + $0x238] sm:$0xff]
        %v3391 = vld [vmem:[#allocation8 + $0x240] sm:$0xff]
        %v3392 = vld [vmem:[#allocation8 + $0x248] sm:$0xff]
        %v3393 = vld [vmem:[#allocation8 + $0x250] sm:$0xff]
        %v3394 = vld [vmem:[#allocation8 + $0x258] sm:$0xff]
        %v3395 = vld [vmem:[#allocation8 + $0x260] sm:$0xff]
        %v3396 = vld [vmem:[#allocation8 + $0x268] sm:$0xff]
        %v3397 = vld [vmem:[#allocation8 + $0x270] sm:$0xff]
        %v3398 = vld [vmem:[#allocation8 + $0x278] sm:$0xff]
        %v3399 = vld [vmem:[#allocation8 + $0x280] sm:$0xff]
        %v3400 = vld [vmem:[#allocation8 + $0x288] sm:$0xff]
        %v3401 = vld [vmem:[#allocation8 + $0x290] sm:$0xff]
        %v3402 = vld [vmem:[#allocation8 + $0x298] sm:$0xff]
        %v3403 = vld [vmem:[#allocation8 + $0x2a0] sm:$0xff]
        %v3404 = vld [vmem:[#allocation8 + $0x2a8] sm:$0xff]
        %v3405 = vld [vmem:[#allocation8 + $0x2b0] sm:$0xff]
        %v3406 = vld [vmem:[#allocation8 + $0x2b8] sm:$0xff]
        %v3407 = vld [vmem:[#allocation8 + $0x2c0] sm:$0xff]
        %v3408 = vld [vmem:[#allocation8 + $0x2c8] sm:$0xff]
        %v3409 = vld [vmem:[#allocation8 + $0x2d0] sm:$0xff]
        %v3410 = vld [vmem:[#allocation8 + $0x2d8] sm:$0xff]
        %v3411 = vld [vmem:[#allocation8 + $0x2e0] sm:$0xff]
        %v3412 = vld [vmem:[#allocation8 + $0x2e8] sm:$0xff]
        %v3413 = vld [vmem:[#allocation8 + $0x2f0] sm:$0xff]
        %v3414 = vld [vmem:[#allocation8 + $0x2f8] sm:$0xff]
        %s3415 = scalar_lea.vmem [#allocation8], 768
        %v3416 = vld [vmem:[%s3415] sm:$0xff]
        %v3417 = vld [vmem:[%s3415 + $0x8] sm:$0xff]
        %v3418 = vld [vmem:[%s3415 + $0x10] sm:$0xff]
        %v3419 = vld [vmem:[%s3415 + $0x18] sm:$0xff]
        %v3420 = vld [vmem:[%s3415 + $0x20] sm:$0xff]
        %v3421 = vld [vmem:[%s3415 + $0x28] sm:$0xff]
        %v3422 = vld [vmem:[%s3415 + $0x30] sm:$0xff]
        %v3423 = vld [vmem:[%s3415 + $0x38] sm:$0xff]
        %v3424 = vld [vmem:[%s3415 + $0x40] sm:$0xff]
        %v3425 = vld [vmem:[%s3415 + $0x48] sm:$0xff]
        %v3426 = vld [vmem:[%s3415 + $0x50] sm:$0xff]
        %v3427 = vld [vmem:[%s3415 + $0x58] sm:$0xff]
        %v3428 = vld [vmem:[%s3415 + $0x60] sm:$0xff]
        %v3429 = vld [vmem:[%s3415 + $0x68] sm:$0xff]
        %v3430 = vld [vmem:[%s3415 + $0x70] sm:$0xff]
        %v3431 = vld [vmem:[%s3415 + $0x78] sm:$0xff]
        %v3432 = vld [vmem:[%s3415 + $0x80] sm:$0xff]
        %v3433 = vld [vmem:[%s3415 + $0x88] sm:$0xff]
        %v3434 = vld [vmem:[%s3415 + $0x90] sm:$0xff]
        %v3435 = vld [vmem:[%s3415 + $0x98] sm:$0xff]
        %v3436 = vld [vmem:[%s3415 + $0xa0] sm:$0xff]
        %v3437 = vld [vmem:[%s3415 + $0xa8] sm:$0xff]
        %v3438 = vld [vmem:[%s3415 + $0xb0] sm:$0xff]
        %v3439 = vld [vmem:[%s3415 + $0xb8] sm:$0xff]
        %v3440 = vld [vmem:[%s3415 + $0xc0] sm:$0xff]
        %v3441 = vld [vmem:[%s3415 + $0xc8] sm:$0xff]
        %v3442 = vld [vmem:[%s3415 + $0xd0] sm:$0xff]
        %v3443 = vld [vmem:[%s3415 + $0xd8] sm:$0xff]
        %v3444 = vld [vmem:[%s3415 + $0xe0] sm:$0xff]
        %v3445 = vld [vmem:[%s3415 + $0xe8] sm:$0xff]
        %v3446 = vld [vmem:[%s3415 + $0xf0] sm:$0xff]
        %v3447 = vld [vmem:[%s3415 + $0xf8] sm:$0xff]
        %v3448 = vld [vmem:[%s3415 + $0x100] sm:$0xff]
        %v3449 = vld [vmem:[%s3415 + $0x108] sm:$0xff]
        %v3450 = vld [vmem:[%s3415 + $0x110] sm:$0xff]
        %v3451 = vld [vmem:[%s3415 + $0x118] sm:$0xff]
        %v3452 = vld [vmem:[%s3415 + $0x120] sm:$0xff]
        %v3453 = vld [vmem:[%s3415 + $0x128] sm:$0xff]
        %v3454 = vld [vmem:[%s3415 + $0x130] sm:$0xff]
        %v3455 = vld [vmem:[%s3415 + $0x138] sm:$0xff]
        %v3456 = vld [vmem:[%s3415 + $0x140] sm:$0xff]
        %v3457 = vld [vmem:[%s3415 + $0x148] sm:$0xff]
        %v3458 = vld [vmem:[%s3415 + $0x150] sm:$0xff]
        %v3459 = vld [vmem:[%s3415 + $0x158] sm:$0xff]
        %v3460 = vld [vmem:[%s3415 + $0x160] sm:$0xff]
        %v3461 = vld [vmem:[%s3415 + $0x168] sm:$0xff]
        %v3462 = vld [vmem:[%s3415 + $0x170] sm:$0xff]
        %v3463 = vld [vmem:[%s3415 + $0x178] sm:$0xff]
        %v3464 = vld [vmem:[%s3415 + $0x180] sm:$0xff]
        %v3465 = vld [vmem:[%s3415 + $0x188] sm:$0xff]
        %v3466 = vld [vmem:[%s3415 + $0x190] sm:$0xff]
        %v3467 = vld [vmem:[%s3415 + $0x198] sm:$0xff]
        %v3468 = vld [vmem:[%s3415 + $0x1a0] sm:$0xff]
        %v3469 = vld [vmem:[%s3415 + $0x1a8] sm:$0xff]
        %v3470 = vld [vmem:[%s3415 + $0x1b0] sm:$0xff]
        %v3471 = vld [vmem:[%s3415 + $0x1b8] sm:$0xff]
        %v3472 = vld [vmem:[%s3415 + $0x1c0] sm:$0xff]
        %v3473 = vld [vmem:[%s3415 + $0x1c8] sm:$0xff]
        %v3474 = vld [vmem:[%s3415 + $0x1d0] sm:$0xff]
        %v3475 = vld [vmem:[%s3415 + $0x1d8] sm:$0xff]
        %v3476 = vld [vmem:[%s3415 + $0x1e0] sm:$0xff]
        %v3477 = vld [vmem:[%s3415 + $0x1e8] sm:$0xff]
        %v3478 = vld [vmem:[%s3415 + $0x1f0] sm:$0xff]
        %v3479 = vld [vmem:[%s3415 + $0x1f8] sm:$0xff]
        %v3480 = vld [vmem:[%s3415 + $0x200] sm:$0xff]
        %v3481 = vld [vmem:[%s3415 + $0x208] sm:$0xff]
        %v3482 = vld [vmem:[%s3415 + $0x210] sm:$0xff]
        %v3483 = vld [vmem:[%s3415 + $0x218] sm:$0xff]
        %v3484 = vld [vmem:[%s3415 + $0x220] sm:$0xff]
        %v3485 = vld [vmem:[%s3415 + $0x228] sm:$0xff]
        %v3486 = vld [vmem:[%s3415 + $0x230] sm:$0xff]
        %v3487 = vld [vmem:[%s3415 + $0x238] sm:$0xff]
        %v3488 = vld [vmem:[%s3415 + $0x240] sm:$0xff]
        %v3489 = vld [vmem:[%s3415 + $0x248] sm:$0xff]
        %v3490 = vld [vmem:[%s3415 + $0x250] sm:$0xff]
        %v3491 = vld [vmem:[%s3415 + $0x258] sm:$0xff]
        %v3492 = vld [vmem:[%s3415 + $0x260] sm:$0xff]
        %v3493 = vld [vmem:[%s3415 + $0x268] sm:$0xff]
        %v3494 = vld [vmem:[%s3415 + $0x270] sm:$0xff]
        %v3495 = vld [vmem:[%s3415 + $0x278] sm:$0xff]
        %v3496 = vld [vmem:[%s3415 + $0x280] sm:$0xff]
        %v3497 = vld [vmem:[%s3415 + $0x288] sm:$0xff]
        %v3498 = vld [vmem:[%s3415 + $0x290] sm:$0xff]
        %v3499 = vld [vmem:[%s3415 + $0x298] sm:$0xff]
        %v3500 = vld [vmem:[%s3415 + $0x2a0] sm:$0xff]
        %v3501 = vld [vmem:[%s3415 + $0x2a8] sm:$0xff]
        %v3502 = vld [vmem:[%s3415 + $0x2b0] sm:$0xff]
        %v3503 = vld [vmem:[%s3415 + $0x2b8] sm:$0xff]
        %v3504 = vld [vmem:[%s3415 + $0x2c0] sm:$0xff]
        %v3505 = vld [vmem:[%s3415 + $0x2c8] sm:$0xff]
        %v3506 = vld [vmem:[%s3415 + $0x2d0] sm:$0xff]
        %v3507 = vld [vmem:[%s3415 + $0x2d8] sm:$0xff]
        %v3508 = vld [vmem:[%s3415 + $0x2e0] sm:$0xff]
        %v3509 = vld [vmem:[%s3415 + $0x2e8] sm:$0xff]
        %v3510 = vld [vmem:[%s3415 + $0x2f0] sm:$0xff]
        %v3511 = vld [vmem:[%s3415 + $0x2f8] sm:$0xff]
        %v3518 = vrot.slane %v858, 1
        %v3519 = vrot.slane %v1350, 1
        %v3520 = vrot.slane %v1842, 1
        %v3521 = vrot.slane %v2334, 1
        %v3522 = vrot.slane %v2826, 1
        %v3523 = vrot.slane %v3318, 1
        %v3626 = vunpack.c.l.b16 %v3416
        %v3627 = vunpack.c.h.b16 %v3416
        %v3628 = vunpack.c.l.b16 %v3417
        %v3629 = vunpack.c.h.b16 %v3417
        %v3630 = vunpack.c.l.b16 %v3418
        %v3631 = vunpack.c.h.b16 %v3418
        %v3632 = vunpack.c.l.b16 %v3419
        %v3633 = vunpack.c.h.b16 %v3419
        %v3634 = vunpack.c.l.b16 %v3420
        %v3635 = vunpack.c.h.b16 %v3420
        %v3636 = vunpack.c.l.b16 %v3421
        %v3637 = vunpack.c.h.b16 %v3421
        %v3638 = vunpack.c.l.b16 %v3422
        %v3639 = vunpack.c.h.b16 %v3422
        %v3640 = vunpack.c.l.b16 %v3423
        %v3641 = vunpack.c.h.b16 %v3423
        %v3642 = vunpack.c.l.b16 %v3424
        %v3643 = vunpack.c.h.b16 %v3424
        %v3644 = vunpack.c.l.b16 %v3425
        %v3645 = vunpack.c.h.b16 %v3425
        %v3646 = vunpack.c.l.b16 %v3426
        %v3647 = vunpack.c.h.b16 %v3426
        %v3648 = vunpack.c.l.b16 %v3427
        %v3649 = vunpack.c.h.b16 %v3427
        %v3650 = vunpack.c.l.b16 %v3428
        %v3651 = vunpack.c.h.b16 %v3428
        %v3652 = vunpack.c.l.b16 %v3429
        %v3653 = vunpack.c.h.b16 %v3429
        %v3654 = vunpack.c.l.b16 %v3430
        %v3655 = vunpack.c.h.b16 %v3430
        %v3656 = vunpack.c.l.b16 %v3431
        %v3657 = vunpack.c.h.b16 %v3431
        %v3658 = vunpack.c.l.b16 %v3432
        %v3659 = vunpack.c.h.b16 %v3432
        %v3660 = vunpack.c.l.b16 %v3433
        %v3661 = vunpack.c.h.b16 %v3433
        %v3662 = vunpack.c.l.b16 %v3434
        %v3663 = vunpack.c.h.b16 %v3434
        %v3664 = vunpack.c.l.b16 %v3435
        %v3665 = vunpack.c.h.b16 %v3435
        %v3666 = vunpack.c.l.b16 %v3436
        %v3667 = vunpack.c.h.b16 %v3436
        %v3668 = vunpack.c.l.b16 %v3437
        %v3669 = vunpack.c.h.b16 %v3437
        %v3670 = vunpack.c.l.b16 %v3438
        %v3671 = vunpack.c.h.b16 %v3438
        %v3672 = vunpack.c.l.b16 %v3439
        %v3673 = vunpack.c.h.b16 %v3439
        %v3674 = vunpack.c.l.b16 %v3440
        %v3675 = vunpack.c.h.b16 %v3440
        %v3676 = vunpack.c.l.b16 %v3441
        %v3677 = vunpack.c.h.b16 %v3441
        %v3678 = vunpack.c.l.b16 %v3442
        %v3679 = vunpack.c.h.b16 %v3442
        %v3680 = vunpack.c.l.b16 %v3443
        %v3681 = vunpack.c.h.b16 %v3443
        %v3682 = vunpack.c.l.b16 %v3444
        %v3683 = vunpack.c.h.b16 %v3444
        %v3684 = vunpack.c.l.b16 %v3445
        %v3685 = vunpack.c.h.b16 %v3445
        %v3686 = vunpack.c.l.b16 %v3446
        %v3687 = vunpack.c.h.b16 %v3446
        %v3688 = vunpack.c.l.b16 %v3447
        %v3689 = vunpack.c.h.b16 %v3447
        %v3690 = vunpack.c.l.b16 %v3448
        %v3691 = vunpack.c.h.b16 %v3448
        %v3692 = vunpack.c.l.b16 %v3449
        %v3693 = vunpack.c.h.b16 %v3449
        %v3694 = vunpack.c.l.b16 %v3450
        %v3695 = vunpack.c.h.b16 %v3450
        %v3696 = vunpack.c.l.b16 %v3451
        %v3697 = vunpack.c.h.b16 %v3451
        %v3698 = vunpack.c.l.b16 %v3452
        %v3699 = vunpack.c.h.b16 %v3452
        %v3700 = vunpack.c.l.b16 %v3453
        %v3701 = vunpack.c.h.b16 %v3453
        %v3702 = vunpack.c.l.b16 %v3454
        %v3703 = vunpack.c.h.b16 %v3454
        %v3704 = vunpack.c.l.b16 %v3455
        %v3705 = vunpack.c.h.b16 %v3455
        %v3706 = vunpack.c.l.b16 %v3456
        %v3707 = vunpack.c.h.b16 %v3456
        %v3708 = vunpack.c.l.b16 %v3457
        %v3709 = vunpack.c.h.b16 %v3457
        %v3710 = vunpack.c.l.b16 %v3458
        %v3711 = vunpack.c.h.b16 %v3458
        %v3712 = vunpack.c.l.b16 %v3459
        %v3713 = vunpack.c.h.b16 %v3459
        %v3714 = vunpack.c.l.b16 %v3460
        %v3715 = vunpack.c.h.b16 %v3460
        %v3716 = vunpack.c.l.b16 %v3461
        %v3717 = vunpack.c.h.b16 %v3461
        %v3718 = vunpack.c.l.b16 %v3462
        %v3719 = vunpack.c.h.b16 %v3462
        %v3720 = vunpack.c.l.b16 %v3463
        %v3721 = vunpack.c.h.b16 %v3463
        %v3722 = vunpack.c.l.b16 %v3464
        %v3723 = vunpack.c.h.b16 %v3464
        %v3724 = vunpack.c.l.b16 %v3465
        %v3725 = vunpack.c.h.b16 %v3465
        %v3726 = vunpack.c.l.b16 %v3466
        %v3727 = vunpack.c.h.b16 %v3466
        %v3728 = vunpack.c.l.b16 %v3467
        %v3729 = vunpack.c.h.b16 %v3467
        %v3730 = vunpack.c.l.b16 %v3468
        %v3731 = vunpack.c.h.b16 %v3468
        %v3732 = vunpack.c.l.b16 %v3469
        %v3733 = vunpack.c.h.b16 %v3469
        %v3734 = vunpack.c.l.b16 %v3470
        %v3735 = vunpack.c.h.b16 %v3470
        %v3736 = vunpack.c.l.b16 %v3471
        %v3737 = vunpack.c.h.b16 %v3471
        %v3738 = vunpack.c.l.b16 %v3472
        %v3739 = vunpack.c.h.b16 %v3472
        %v3740 = vunpack.c.l.b16 %v3473
        %v3741 = vunpack.c.h.b16 %v3473
        %v3742 = vunpack.c.l.b16 %v3474
        %v3743 = vunpack.c.h.b16 %v3474
        %v3744 = vunpack.c.l.b16 %v3475
        %v3745 = vunpack.c.h.b16 %v3475
        %v3746 = vunpack.c.l.b16 %v3476
        %v3747 = vunpack.c.h.b16 %v3476
        %v3748 = vunpack.c.l.b16 %v3477
        %v3749 = vunpack.c.h.b16 %v3477
        %v3750 = vunpack.c.l.b16 %v3478
        %v3751 = vunpack.c.h.b16 %v3478
        %v3752 = vunpack.c.l.b16 %v3479
        %v3753 = vunpack.c.h.b16 %v3479
        %v3754 = vunpack.c.l.b16 %v3480
        %v3755 = vunpack.c.h.b16 %v3480
        %v3756 = vunpack.c.l.b16 %v3481
        %v3757 = vunpack.c.h.b16 %v3481
        %v3758 = vunpack.c.l.b16 %v3482
        %v3759 = vunpack.c.h.b16 %v3482
        %v3760 = vunpack.c.l.b16 %v3483
        %v3761 = vunpack.c.h.b16 %v3483
        %v3762 = vunpack.c.l.b16 %v3484
        %v3763 = vunpack.c.h.b16 %v3484
        %v3764 = vunpack.c.l.b16 %v3485
        %v3765 = vunpack.c.h.b16 %v3485
        %v3766 = vunpack.c.l.b16 %v3486
        %v3767 = vunpack.c.h.b16 %v3486
        %v3768 = vunpack.c.l.b16 %v3487
        %v3769 = vunpack.c.h.b16 %v3487
        %v3770 = vunpack.c.l.b16 %v3488
        %v3771 = vunpack.c.h.b16 %v3488
        %v3772 = vunpack.c.l.b16 %v3489
        %v3773 = vunpack.c.h.b16 %v3489
        %v3774 = vunpack.c.l.b16 %v3490
        %v3775 = vunpack.c.h.b16 %v3490
        %v3776 = vunpack.c.l.b16 %v3491
        %v3777 = vunpack.c.h.b16 %v3491
        %v3778 = vunpack.c.l.b16 %v3492
        %v3779 = vunpack.c.h.b16 %v3492
        %v3780 = vunpack.c.l.b16 %v3493
        %v3781 = vunpack.c.h.b16 %v3493
        %v3782 = vunpack.c.l.b16 %v3494
        %v3783 = vunpack.c.h.b16 %v3494
        %v3784 = vunpack.c.l.b16 %v3495
        %v3785 = vunpack.c.h.b16 %v3495
        %v3786 = vunpack.c.l.b16 %v3496
        %v3787 = vunpack.c.h.b16 %v3496
        %v3788 = vunpack.c.l.b16 %v3497
        %v3789 = vunpack.c.h.b16 %v3497
        %v3790 = vunpack.c.l.b16 %v3498
        %v3791 = vunpack.c.h.b16 %v3498
        %v3792 = vunpack.c.l.b16 %v3499
        %v3793 = vunpack.c.h.b16 %v3499
        %v3794 = vunpack.c.l.b16 %v3500
        %v3795 = vunpack.c.h.b16 %v3500
        %v3796 = vunpack.c.l.b16 %v3501
        %v3797 = vunpack.c.h.b16 %v3501
        %v3798 = vunpack.c.l.b16 %v3502
        %v3799 = vunpack.c.h.b16 %v3502
        %v3800 = vunpack.c.l.b16 %v3503
        %v3801 = vunpack.c.h.b16 %v3503
        %v3802 = vunpack.c.l.b16 %v3504
        %v3803 = vunpack.c.h.b16 %v3504
        %v3804 = vunpack.c.l.b16 %v3505
        %v3805 = vunpack.c.h.b16 %v3505
        %v3806 = vunpack.c.l.b16 %v3506
        %v3807 = vunpack.c.h.b16 %v3506
        %v3808 = vunpack.c.l.b16 %v3507
        %v3809 = vunpack.c.h.b16 %v3507
        %v3810 = vunpack.c.l.b16 %v3508
        %v3811 = vunpack.c.h.b16 %v3508
        %v3812 = vunpack.c.l.b16 %v3509
        %v3813 = vunpack.c.h.b16 %v3509
        %v3814 = vunpack.c.l.b16 %v3510
        %v3815 = vunpack.c.h.b16 %v3510
        %v3816 = vunpack.c.l.b16 %v3511
        %v3817 = vunpack.c.h.b16 %v3511
        %v3818 = vpack.c.b16 %v3628, %v3626
        %v3819 = vpack.c.b16 %v3629, %v3627
        %v3820 = vpack.c.b16 %v3632, %v3630
        %v3821 = vpack.c.b16 %v3633, %v3631
        %v3822 = vpack.c.b16 %v3636, %v3634
        %v3823 = vpack.c.b16 %v3637, %v3635
        %v3824 = vpack.c.b16 %v3640, %v3638
        %v3825 = vpack.c.b16 %v3641, %v3639
        %v3826 = vpack.c.b16 %v3644, %v3642
        %v3827 = vpack.c.b16 %v3645, %v3643
        %v3828 = vpack.c.b16 %v3648, %v3646
        %v3829 = vpack.c.b16 %v3649, %v3647
        %v3830 = vpack.c.b16 %v3652, %v3650
        %v3831 = vpack.c.b16 %v3653, %v3651
        %v3832 = vpack.c.b16 %v3656, %v3654
        %v3833 = vpack.c.b16 %v3657, %v3655
        %v3834 = vpack.c.b16 %v3660, %v3658
        %v3835 = vpack.c.b16 %v3661, %v3659
        %v3836 = vpack.c.b16 %v3664, %v3662
        %v3837 = vpack.c.b16 %v3665, %v3663
        %v3838 = vpack.c.b16 %v3668, %v3666
        %v3839 = vpack.c.b16 %v3669, %v3667
        %v3840 = vpack.c.b16 %v3672, %v3670
        %v3841 = vpack.c.b16 %v3673, %v3671
        %v3842 = vpack.c.b16 %v3676, %v3674
        %v3843 = vpack.c.b16 %v3677, %v3675
        %v3844 = vpack.c.b16 %v3680, %v3678
        %v3845 = vpack.c.b16 %v3681, %v3679
        %v3846 = vpack.c.b16 %v3684, %v3682
        %v3847 = vpack.c.b16 %v3685, %v3683
        %v3848 = vpack.c.b16 %v3688, %v3686
        %v3849 = vpack.c.b16 %v3689, %v3687
        %v3850 = vpack.c.b16 %v3692, %v3690
        %v3851 = vpack.c.b16 %v3693, %v3691
        %v3852 = vpack.c.b16 %v3696, %v3694
        %v3853 = vpack.c.b16 %v3697, %v3695
        %v3854 = vpack.c.b16 %v3700, %v3698
        %v3855 = vpack.c.b16 %v3701, %v3699
        %v3856 = vpack.c.b16 %v3704, %v3702
        %v3857 = vpack.c.b16 %v3705, %v3703
        %v3858 = vpack.c.b16 %v3708, %v3706
        %v3859 = vpack.c.b16 %v3709, %v3707
        %v3860 = vpack.c.b16 %v3712, %v3710
        %v3861 = vpack.c.b16 %v3713, %v3711
        %v3862 = vpack.c.b16 %v3716, %v3714
        %v3863 = vpack.c.b16 %v3717, %v3715
        %v3864 = vpack.c.b16 %v3720, %v3718
        %v3865 = vpack.c.b16 %v3721, %v3719
        %v3866 = vpack.c.b16 %v3724, %v3722
        %v3867 = vpack.c.b16 %v3725, %v3723
        %v3868 = vpack.c.b16 %v3728, %v3726
        %v3869 = vpack.c.b16 %v3729, %v3727
        %v3870 = vpack.c.b16 %v3732, %v3730
        %v3871 = vpack.c.b16 %v3733, %v3731
        %v3872 = vpack.c.b16 %v3736, %v3734
        %v3873 = vpack.c.b16 %v3737, %v3735
        %v3874 = vpack.c.b16 %v3740, %v3738
        %v3875 = vpack.c.b16 %v3741, %v3739
        %v3876 = vpack.c.b16 %v3744, %v3742
        %v3877 = vpack.c.b16 %v3745, %v3743
        %v3878 = vpack.c.b16 %v3748, %v3746
        %v3879 = vpack.c.b16 %v3749, %v3747
        %v3880 = vpack.c.b16 %v3752, %v3750
        %v3881 = vpack.c.b16 %v3753, %v3751
        %v3882 = vpack.c.b16 %v3756, %v3754
        %v3883 = vpack.c.b16 %v3757, %v3755
        %v3884 = vpack.c.b16 %v3760, %v3758
        %v3885 = vpack.c.b16 %v3761, %v3759
        %v3886 = vpack.c.b16 %v3764, %v3762
        %v3887 = vpack.c.b16 %v3765, %v3763
        %v3888 = vpack.c.b16 %v3768, %v3766
        %v3889 = vpack.c.b16 %v3769, %v3767
        %v3890 = vpack.c.b16 %v3772, %v3770
        %v3891 = vpack.c.b16 %v3773, %v3771
        %v3892 = vpack.c.b16 %v3776, %v3774
        %v3893 = vpack.c.b16 %v3777, %v3775
        %v3894 = vpack.c.b16 %v3780, %v3778
        %v3895 = vpack.c.b16 %v3781, %v3779
        %v3896 = vpack.c.b16 %v3784, %v3782
        %v3897 = vpack.c.b16 %v3785, %v3783
        %v3898 = vpack.c.b16 %v3788, %v3786
        %v3899 = vpack.c.b16 %v3789, %v3787
        %v3900 = vpack.c.b16 %v3792, %v3790
        %v3901 = vpack.c.b16 %v3793, %v3791
        %v3902 = vpack.c.b16 %v3796, %v3794
        %v3903 = vpack.c.b16 %v3797, %v3795
        %v3904 = vpack.c.b16 %v3800, %v3798
        %v3905 = vpack.c.b16 %v3801, %v3799
        %v3906 = vpack.c.b16 %v3804, %v3802
        %v3907 = vpack.c.b16 %v3805, %v3803
        %v3908 = vpack.c.b16 %v3808, %v3806
        %v3909 = vpack.c.b16 %v3809, %v3807
        %v3910 = vpack.c.b16 %v3812, %v3810
        %v3911 = vpack.c.b16 %v3813, %v3811
        %v3912 = vpack.c.b16 %v3816, %v3814
        %v3913 = vpack.c.b16 %v3817, %v3815
        %4010 = vmatprep.subr.bf16.mxu0 %v3833
        %4011 = vmatpush1.bf16.msra.mxu0 %v3832
        %4012 = vmatprep.subr.bf16.mxu0 %v3831
        %4013 = vmatpush1.bf16.msra.mxu0 %v3830
        %4014 = vmatprep.subr.bf16.mxu0 %v3829
        %4015 = vmatpush1.bf16.msra.mxu0 %v3828
        %4016 = vmatprep.subr.bf16.mxu0 %v3827
        %4017 = vmatpush1.bf16.msra.mxu0 %v3826
        %4018 = vmatprep.subr.bf16.mxu0 %v3825
        %4019 = vmatpush1.bf16.msra.mxu0 %v3824
        %4020 = vmatprep.subr.bf16.mxu0 %v3823
        %4021 = vmatpush1.bf16.msra.mxu0 %v3822
        %4022 = vmatprep.subr.bf16.mxu0 %v3821
        %4023 = vmatpush1.bf16.msra.mxu0 %v3820
        %4024 = vmatprep.subr.bf16.mxu0 %v3819
        %4025 = vmatpush1.bf16.msra.mxu0 %v3818
        %4026 = vmatprep.subr.bf16.mxu0 %v3849
        %4027 = vmatpush2.bf16.msra.mxu0 %v3848
        %4028 = vmatprep.subr.bf16.mxu0 %v3847
        %4029 = vmatpush2.bf16.msra.mxu0 %v3846
        %4030 = vmatprep.subr.bf16.mxu0 %v3845
        %4031 = vmatpush2.bf16.msra.mxu0 %v3844
        %4032 = vmatprep.subr.bf16.mxu0 %v3843
        %4033 = vmatpush2.bf16.msra.mxu0 %v3842
        %4034 = vmatprep.subr.bf16.mxu0 %v3841
        %4035 = vmatpush2.bf16.msra.mxu0 %v3840
        %4036 = vmatprep.subr.bf16.mxu0 %v3839
        %4037 = vmatpush2.bf16.msra.mxu0 %v3838
        %4038 = vmatprep.subr.bf16.mxu0 %v3837
        %4039 = vmatpush2.bf16.msra.mxu0 %v3836
        %4040 = vmatprep.subr.bf16.mxu0 %v3835
        %4041 = vmatpush2.bf16.msra.mxu0 %v3834
        %4042 = vmatprep.mubr.bf16.mxu0 %v3519
        %4043 = vmatmul.mubr.bf16.gmra.mxu0 %v3518
        %v4044 = vpop.f32.mrf.mxu0
        %v4045 = vadd.f32 0.0, %v4044
        %v4046 = vpop.f32.mrf.mxu0
        %v4047 = vadd.f32 0.0, %v4046
        %v4048 = vpop.f32.mrf.mxu0
        %v4049 = vpop.f32.mrf.mxu0
        %4050 = vdwg.mxu0
        %4051 = vmatprep.subr.bf16.mxu0 %v3865
        %4052 = vmatpush1.bf16.msra.mxu0 %v3864
        %4053 = vmatprep.subr.bf16.mxu0 %v3863
        %4054 = vmatpush1.bf16.msra.mxu0 %v3862
        %4055 = vmatprep.subr.bf16.mxu0 %v3861
        %4056 = vmatpush1.bf16.msra.mxu0 %v3860
        %4057 = vmatprep.subr.bf16.mxu0 %v3859
        %4058 = vmatpush1.bf16.msra.mxu0 %v3858
        %4059 = vmatprep.subr.bf16.mxu0 %v3857
        %4060 = vmatpush1.bf16.msra.mxu0 %v3856
        %4061 = vmatprep.subr.bf16.mxu0 %v3855
        %4062 = vmatpush1.bf16.msra.mxu0 %v3854
        %4063 = vmatprep.subr.bf16.mxu0 %v3853
        %4064 = vmatpush1.bf16.msra.mxu0 %v3852
        %4065 = vmatprep.subr.bf16.mxu0 %v3851
        %4066 = vmatpush1.bf16.msra.mxu0 %v3850
        %4067 = vmatprep.subr.bf16.mxu0 %v3881
        %4068 = vmatpush2.bf16.msra.mxu0 %v3880
        %4069 = vmatprep.subr.bf16.mxu0 %v3879
        %4070 = vmatpush2.bf16.msra.mxu0 %v3878
        %4071 = vmatprep.subr.bf16.mxu0 %v3877
        %4072 = vmatpush2.bf16.msra.mxu0 %v3876
        %4073 = vmatprep.subr.bf16.mxu0 %v3875
        %4074 = vmatpush2.bf16.msra.mxu0 %v3874
        %4075 = vmatprep.subr.bf16.mxu0 %v3873
        %4076 = vmatpush2.bf16.msra.mxu0 %v3872
        %4077 = vmatprep.subr.bf16.mxu0 %v3871
        %4078 = vmatpush2.bf16.msra.mxu0 %v3870
        %4079 = vmatprep.subr.bf16.mxu0 %v3869
        %4080 = vmatpush2.bf16.msra.mxu0 %v3868
        %4081 = vmatprep.subr.bf16.mxu0 %v3867
        %4082 = vmatpush2.bf16.msra.mxu0 %v3866
        %4083 = vmatprep.mubr.bf16.mxu0 %v3521
        %4084 = vmatmul.mubr.bf16.gmra.mxu0 %v3520
        %v4085 = vpop.f32.mrf.mxu0
        %v4086 = vadd.f32 %v4045, %v4085
        %v4087 = vpop.f32.mrf.mxu0
        %v4088 = vadd.f32 %v4047, %v4087
        %v4089 = vpop.f32.mrf.mxu0
        %v4090 = vpop.f32.mrf.mxu0
        %4091 = vdwg.mxu0
        %4092 = vmatprep.subr.bf16.mxu0 %v3897
        %4093 = vmatpush1.bf16.msra.mxu0 %v3896
        %4094 = vmatprep.subr.bf16.mxu0 %v3895
        %4095 = vmatpush1.bf16.msra.mxu0 %v3894
        %4096 = vmatprep.subr.bf16.mxu0 %v3893
        %4097 = vmatpush1.bf16.msra.mxu0 %v3892
        %4098 = vmatprep.subr.bf16.mxu0 %v3891
        %4099 = vmatpush1.bf16.msra.mxu0 %v3890
        %4100 = vmatprep.subr.bf16.mxu0 %v3889
        %4101 = vmatpush1.bf16.msra.mxu0 %v3888
        %4102 = vmatprep.subr.bf16.mxu0 %v3887
        %4103 = vmatpush1.bf16.msra.mxu0 %v3886
        %4104 = vmatprep.subr.bf16.mxu0 %v3885
        %4105 = vmatpush1.bf16.msra.mxu0 %v3884
        %4106 = vmatprep.subr.bf16.mxu0 %v3883
        %4107 = vmatpush1.bf16.msra.mxu0 %v3882
        %4108 = vmatprep.subr.bf16.mxu0 %v3913
        %4109 = vmatpush2.bf16.msra.mxu0 %v3912
        %4110 = vmatprep.subr.bf16.mxu0 %v3911
        %4111 = vmatpush2.bf16.msra.mxu0 %v3910
        %4112 = vmatprep.subr.bf16.mxu0 %v3909
        %4113 = vmatpush2.bf16.msra.mxu0 %v3908
        %4114 = vmatprep.subr.bf16.mxu0 %v3907
        %4115 = vmatpush2.bf16.msra.mxu0 %v3906
        %4116 = vmatprep.subr.bf16.mxu0 %v3905
        %4117 = vmatpush2.bf16.msra.mxu0 %v3904
        %4118 = vmatprep.subr.bf16.mxu0 %v3903
        %4119 = vmatpush2.bf16.msra.mxu0 %v3902
        %4120 = vmatprep.subr.bf16.mxu0 %v3901
        %4121 = vmatpush2.bf16.msra.mxu0 %v3900
        %4122 = vmatprep.subr.bf16.mxu0 %v3899
        %4123 = vmatpush2.bf16.msra.mxu0 %v3898
        %4124 = vmatprep.mubr.bf16.mxu0 %v3523
        %4125 = vmatmul.mubr.bf16.gmra.mxu0 %v3522
        %v4126 = vpop.f32.mrf.mxu0
        %v4127 = vadd.f32 %v4086, %v4126
        %v4128 = vpop.f32.mrf.mxu0
        %v4129 = vadd.f32 %v4088, %v4128
        %v4130 = vpop.f32.mrf.mxu0
        %v4131 = vpop.f32.mrf.mxu0
        %4132 = vdwg.mxu0
        %v4229 = vunpack.c.l.b16 %v3319
        %v4230 = vunpack.c.h.b16 %v3319
        %v4231 = vunpack.c.l.b16 %v3320
        %v4232 = vunpack.c.h.b16 %v3320
        %v4233 = vunpack.c.l.b16 %v3321
        %v4234 = vunpack.c.h.b16 %v3321
        %v4235 = vunpack.c.l.b16 %v3322
        %v4236 = vunpack.c.h.b16 %v3322
        %v4237 = vunpack.c.l.b16 %v3323
        %v4238 = vunpack.c.h.b16 %v3323
        %v4239 = vunpack.c.l.b16 %v3324
        %v4240 = vunpack.c.h.b16 %v3324
        %v4241 = vunpack.c.l.b16 %v3325
        %v4242 = vunpack.c.h.b16 %v3325
        %v4243 = vunpack.c.l.b16 %v3326
        %v4244 = vunpack.c.h.b16 %v3326
        %v4245 = vunpack.c.l.b16 %v3327
        %v4246 = vunpack.c.h.b16 %v3327
        %v4247 = vunpack.c.l.b16 %v3328
        %v4248 = vunpack.c.h.b16 %v3328
        %v4249 = vunpack.c.l.b16 %v3329
        %v4250 = vunpack.c.h.b16 %v3329
        %v4251 = vunpack.c.l.b16 %v3330
        %v4252 = vunpack.c.h.b16 %v3330
        %v4253 = vunpack.c.l.b16 %v3331
        %v4254 = vunpack.c.h.b16 %v3331
        %v4255 = vunpack.c.l.b16 %v3332
        %v4256 = vunpack.c.h.b16 %v3332
        %v4257 = vunpack.c.l.b16 %v3333
        %v4258 = vunpack.c.h.b16 %v3333
        %v4259 = vunpack.c.l.b16 %v3334
        %v4260 = vunpack.c.h.b16 %v3334
        %v4261 = vunpack.c.l.b16 %v3335
        %v4262 = vunpack.c.h.b16 %v3335
        %v4263 = vunpack.c.l.b16 %v3336
        %v4264 = vunpack.c.h.b16 %v3336
        %v4265 = vunpack.c.l.b16 %v3337
        %v4266 = vunpack.c.h.b16 %v3337
        %v4267 = vunpack.c.l.b16 %v3338
        %v4268 = vunpack.c.h.b16 %v3338
        %v4269 = vunpack.c.l.b16 %v3339
        %v4270 = vunpack.c.h.b16 %v3339
        %v4271 = vunpack.c.l.b16 %v3340
        %v4272 = vunpack.c.h.b16 %v3340
        %v4273 = vunpack.c.l.b16 %v3341
        %v4274 = vunpack.c.h.b16 %v3341
        %v4275 = vunpack.c.l.b16 %v3342
        %v4276 = vunpack.c.h.b16 %v3342
        %v4277 = vunpack.c.l.b16 %v3343
        %v4278 = vunpack.c.h.b16 %v3343
        %v4279 = vunpack.c.l.b16 %v3344
        %v4280 = vunpack.c.h.b16 %v3344
        %v4281 = vunpack.c.l.b16 %v3345
        %v4282 = vunpack.c.h.b16 %v3345
        %v4283 = vunpack.c.l.b16 %v3346
        %v4284 = vunpack.c.h.b16 %v3346
        %v4285 = vunpack.c.l.b16 %v3347
        %v4286 = vunpack.c.h.b16 %v3347
        %v4287 = vunpack.c.l.b16 %v3348
        %v4288 = vunpack.c.h.b16 %v3348
        %v4289 = vunpack.c.l.b16 %v3349
        %v4290 = vunpack.c.h.b16 %v3349
        %v4291 = vunpack.c.l.b16 %v3350
        %v4292 = vunpack.c.h.b16 %v3350
        %v4293 = vunpack.c.l.b16 %v3351
        %v4294 = vunpack.c.h.b16 %v3351
        %v4295 = vunpack.c.l.b16 %v3352
        %v4296 = vunpack.c.h.b16 %v3352
        %v4297 = vunpack.c.l.b16 %v3353
        %v4298 = vunpack.c.h.b16 %v3353
        %v4299 = vunpack.c.l.b16 %v3354
        %v4300 = vunpack.c.h.b16 %v3354
        %v4301 = vunpack.c.l.b16 %v3355
        %v4302 = vunpack.c.h.b16 %v3355
        %v4303 = vunpack.c.l.b16 %v3356
        %v4304 = vunpack.c.h.b16 %v3356
        %v4305 = vunpack.c.l.b16 %v3357
        %v4306 = vunpack.c.h.b16 %v3357
        %v4307 = vunpack.c.l.b16 %v3358
        %v4308 = vunpack.c.h.b16 %v3358
        %v4309 = vunpack.c.l.b16 %v3359
        %v4310 = vunpack.c.h.b16 %v3359
        %v4311 = vunpack.c.l.b16 %v3360
        %v4312 = vunpack.c.h.b16 %v3360
        %v4313 = vunpack.c.l.b16 %v3361
        %v4314 = vunpack.c.h.b16 %v3361
        %v4315 = vunpack.c.l.b16 %v3362
        %v4316 = vunpack.c.h.b16 %v3362
        %v4317 = vunpack.c.l.b16 %v3363
        %v4318 = vunpack.c.h.b16 %v3363
        %v4319 = vunpack.c.l.b16 %v3364
        %v4320 = vunpack.c.h.b16 %v3364
        %v4321 = vunpack.c.l.b16 %v3365
        %v4322 = vunpack.c.h.b16 %v3365
        %v4323 = vunpack.c.l.b16 %v3366
        %v4324 = vunpack.c.h.b16 %v3366
        %v4325 = vunpack.c.l.b16 %v3367
        %v4326 = vunpack.c.h.b16 %v3367
        %v4327 = vunpack.c.l.b16 %v3368
        %v4328 = vunpack.c.h.b16 %v3368
        %v4329 = vunpack.c.l.b16 %v3369
        %v4330 = vunpack.c.h.b16 %v3369
        %v4331 = vunpack.c.l.b16 %v3370
        %v4332 = vunpack.c.h.b16 %v3370
        %v4333 = vunpack.c.l.b16 %v3371
        %v4334 = vunpack.c.h.b16 %v3371
        %v4335 = vunpack.c.l.b16 %v3372
        %v4336 = vunpack.c.h.b16 %v3372
        %v4337 = vunpack.c.l.b16 %v3373
        %v4338 = vunpack.c.h.b16 %v3373
        %v4339 = vunpack.c.l.b16 %v3374
        %v4340 = vunpack.c.h.b16 %v3374
        %v4341 = vunpack.c.l.b16 %v3375
        %v4342 = vunpack.c.h.b16 %v3375
        %v4343 = vunpack.c.l.b16 %v3376
        %v4344 = vunpack.c.h.b16 %v3376
        %v4345 = vunpack.c.l.b16 %v3377
        %v4346 = vunpack.c.h.b16 %v3377
        %v4347 = vunpack.c.l.b16 %v3378
        %v4348 = vunpack.c.h.b16 %v3378
        %v4349 = vunpack.c.l.b16 %v3379
        %v4350 = vunpack.c.h.b16 %v3379
        %v4351 = vunpack.c.l.b16 %v3380
        %v4352 = vunpack.c.h.b16 %v3380
        %v4353 = vunpack.c.l.b16 %v3381
        %v4354 = vunpack.c.h.b16 %v3381
        %v4355 = vunpack.c.l.b16 %v3382
        %v4356 = vunpack.c.h.b16 %v3382
        %v4357 = vunpack.c.l.b16 %v3383
        %v4358 = vunpack.c.h.b16 %v3383
        %v4359 = vunpack.c.l.b16 %v3384
        %v4360 = vunpack.c.h.b16 %v3384
        %v4361 = vunpack.c.l.b16 %v3385
        %v4362 = vunpack.c.h.b16 %v3385
        %v4363 = vunpack.c.l.b16 %v3386
        %v4364 = vunpack.c.h.b16 %v3386
        %v4365 = vunpack.c.l.b16 %v3387
        %v4366 = vunpack.c.h.b16 %v3387
        %v4367 = vunpack.c.l.b16 %v3388
        %v4368 = vunpack.c.h.b16 %v3388
        %v4369 = vunpack.c.l.b16 %v3389
        %v4370 = vunpack.c.h.b16 %v3389
        %v4371 = vunpack.c.l.b16 %v3390
        %v4372 = vunpack.c.h.b16 %v3390
        %v4373 = vunpack.c.l.b16 %v3391
        %v4374 = vunpack.c.h.b16 %v3391
        %v4375 = vunpack.c.l.b16 %v3392
        %v4376 = vunpack.c.h.b16 %v3392
        %v4377 = vunpack.c.l.b16 %v3393
        %v4378 = vunpack.c.h.b16 %v3393
        %v4379 = vunpack.c.l.b16 %v3394
        %v4380 = vunpack.c.h.b16 %v3394
        %v4381 = vunpack.c.l.b16 %v3395
        %v4382 = vunpack.c.h.b16 %v3395
        %v4383 = vunpack.c.l.b16 %v3396
        %v4384 = vunpack.c.h.b16 %v3396
        %v4385 = vunpack.c.l.b16 %v3397
        %v4386 = vunpack.c.h.b16 %v3397
        %v4387 = vunpack.c.l.b16 %v3398
        %v4388 = vunpack.c.h.b16 %v3398
        %v4389 = vunpack.c.l.b16 %v3399
        %v4390 = vunpack.c.h.b16 %v3399
        %v4391 = vunpack.c.l.b16 %v3400
        %v4392 = vunpack.c.h.b16 %v3400
        %v4393 = vunpack.c.l.b16 %v3401
        %v4394 = vunpack.c.h.b16 %v3401
        %v4395 = vunpack.c.l.b16 %v3402
        %v4396 = vunpack.c.h.b16 %v3402
        %v4397 = vunpack.c.l.b16 %v3403
        %v4398 = vunpack.c.h.b16 %v3403
        %v4399 = vunpack.c.l.b16 %v3404
        %v4400 = vunpack.c.h.b16 %v3404
        %v4401 = vunpack.c.l.b16 %v3405
        %v4402 = vunpack.c.h.b16 %v3405
        %v4403 = vunpack.c.l.b16 %v3406
        %v4404 = vunpack.c.h.b16 %v3406
        %v4405 = vunpack.c.l.b16 %v3407
        %v4406 = vunpack.c.h.b16 %v3407
        %v4407 = vunpack.c.l.b16 %v3408
        %v4408 = vunpack.c.h.b16 %v3408
        %v4409 = vunpack.c.l.b16 %v3409
        %v4410 = vunpack.c.h.b16 %v3409
        %v4411 = vunpack.c.l.b16 %v3410
        %v4412 = vunpack.c.h.b16 %v3410
        %v4413 = vunpack.c.l.b16 %v3411
        %v4414 = vunpack.c.h.b16 %v3411
        %v4415 = vunpack.c.l.b16 %v3412
        %v4416 = vunpack.c.h.b16 %v3412
        %v4417 = vunpack.c.l.b16 %v3413
        %v4418 = vunpack.c.h.b16 %v3413
        %v4419 = vunpack.c.l.b16 %v3414
        %v4420 = vunpack.c.h.b16 %v3414
        %v4421 = vpack.c.b16 %v4231, %v4229
        %v4422 = vpack.c.b16 %v4232, %v4230
        %v4423 = vpack.c.b16 %v4235, %v4233
        %v4424 = vpack.c.b16 %v4236, %v4234
        %v4425 = vpack.c.b16 %v4239, %v4237
        %v4426 = vpack.c.b16 %v4240, %v4238
        %v4427 = vpack.c.b16 %v4243, %v4241
        %v4428 = vpack.c.b16 %v4244, %v4242
        %v4429 = vpack.c.b16 %v4247, %v4245
        %v4430 = vpack.c.b16 %v4248, %v4246
        %v4431 = vpack.c.b16 %v4251, %v4249
        %v4432 = vpack.c.b16 %v4252, %v4250
        %v4433 = vpack.c.b16 %v4255, %v4253
        %v4434 = vpack.c.b16 %v4256, %v4254
        %v4435 = vpack.c.b16 %v4259, %v4257
        %v4436 = vpack.c.b16 %v4260, %v4258
        %v4437 = vpack.c.b16 %v4263, %v4261
        %v4438 = vpack.c.b16 %v4264, %v4262
        %v4439 = vpack.c.b16 %v4267, %v4265
        %v4440 = vpack.c.b16 %v4268, %v4266
        %v4441 = vpack.c.b16 %v4271, %v4269
        %v4442 = vpack.c.b16 %v4272, %v4270
        %v4443 = vpack.c.b16 %v4275, %v4273
        %v4444 = vpack.c.b16 %v4276, %v4274
        %v4445 = vpack.c.b16 %v4279, %v4277
        %v4446 = vpack.c.b16 %v4280, %v4278
        %v4447 = vpack.c.b16 %v4283, %v4281
        %v4448 = vpack.c.b16 %v4284, %v4282
        %v4449 = vpack.c.b16 %v4287, %v4285
        %v4450 = vpack.c.b16 %v4288, %v4286
        %v4451 = vpack.c.b16 %v4291, %v4289
        %v4452 = vpack.c.b16 %v4292, %v4290
        %v4453 = vpack.c.b16 %v4295, %v4293
        %v4454 = vpack.c.b16 %v4296, %v4294
        %v4455 = vpack.c.b16 %v4299, %v4297
        %v4456 = vpack.c.b16 %v4300, %v4298
        %v4457 = vpack.c.b16 %v4303, %v4301
        %v4458 = vpack.c.b16 %v4304, %v4302
        %v4459 = vpack.c.b16 %v4307, %v4305
        %v4460 = vpack.c.b16 %v4308, %v4306
        %v4461 = vpack.c.b16 %v4311, %v4309
        %v4462 = vpack.c.b16 %v4312, %v4310
        %v4463 = vpack.c.b16 %v4315, %v4313
        %v4464 = vpack.c.b16 %v4316, %v4314
        %v4465 = vpack.c.b16 %v4319, %v4317
        %v4466 = vpack.c.b16 %v4320, %v4318
        %v4467 = vpack.c.b16 %v4323, %v4321
        %v4468 = vpack.c.b16 %v4324, %v4322
        %v4469 = vpack.c.b16 %v4327, %v4325
        %v4470 = vpack.c.b16 %v4328, %v4326
        %v4471 = vpack.c.b16 %v4331, %v4329
        %v4472 = vpack.c.b16 %v4332, %v4330
        %v4473 = vpack.c.b16 %v4335, %v4333
        %v4474 = vpack.c.b16 %v4336, %v4334
        %v4475 = vpack.c.b16 %v4339, %v4337
        %v4476 = vpack.c.b16 %v4340, %v4338
        %v4477 = vpack.c.b16 %v4343, %v4341
        %v4478 = vpack.c.b16 %v4344, %v4342
        %v4479 = vpack.c.b16 %v4347, %v4345
        %v4480 = vpack.c.b16 %v4348, %v4346
        %v4481 = vpack.c.b16 %v4351, %v4349
        %v4482 = vpack.c.b16 %v4352, %v4350
        %v4483 = vpack.c.b16 %v4355, %v4353
        %v4484 = vpack.c.b16 %v4356, %v4354
        %v4485 = vpack.c.b16 %v4359, %v4357
        %v4486 = vpack.c.b16 %v4360, %v4358
        %v4487 = vpack.c.b16 %v4363, %v4361
        %v4488 = vpack.c.b16 %v4364, %v4362
        %v4489 = vpack.c.b16 %v4367, %v4365
        %v4490 = vpack.c.b16 %v4368, %v4366
        %v4491 = vpack.c.b16 %v4371, %v4369
        %v4492 = vpack.c.b16 %v4372, %v4370
        %v4493 = vpack.c.b16 %v4375, %v4373
        %v4494 = vpack.c.b16 %v4376, %v4374
        %v4495 = vpack.c.b16 %v4379, %v4377
        %v4496 = vpack.c.b16 %v4380, %v4378
        %v4497 = vpack.c.b16 %v4383, %v4381
        %v4498 = vpack.c.b16 %v4384, %v4382
        %v4499 = vpack.c.b16 %v4387, %v4385
        %v4500 = vpack.c.b16 %v4388, %v4386
        %v4501 = vpack.c.b16 %v4391, %v4389
        %v4502 = vpack.c.b16 %v4392, %v4390
        %v4503 = vpack.c.b16 %v4395, %v4393
        %v4504 = vpack.c.b16 %v4396, %v4394
        %v4505 = vpack.c.b16 %v4399, %v4397
        %v4506 = vpack.c.b16 %v4400, %v4398
        %v4507 = vpack.c.b16 %v4403, %v4401
        %v4508 = vpack.c.b16 %v4404, %v4402
        %v4509 = vpack.c.b16 %v4407, %v4405
        %v4510 = vpack.c.b16 %v4408, %v4406
        %v4511 = vpack.c.b16 %v4411, %v4409
        %v4512 = vpack.c.b16 %v4412, %v4410
        %v4513 = vpack.c.b16 %v4415, %v4413
        %v4514 = vpack.c.b16 %v4416, %v4414
        %v4515 = vpack.c.b16 %v4419, %v4417
        %v4516 = vpack.c.b16 %v4420, %v4418
        %4613 = vmatprep.subr.bf16.mxu0 %v4436
        %4614 = vmatpush1.bf16.msra.mxu0 %v4435
        %4615 = vmatprep.subr.bf16.mxu0 %v4434
        %4616 = vmatpush1.bf16.msra.mxu0 %v4433
        %4617 = vmatprep.subr.bf16.mxu0 %v4432
        %4618 = vmatpush1.bf16.msra.mxu0 %v4431
        %4619 = vmatprep.subr.bf16.mxu0 %v4430
        %4620 = vmatpush1.bf16.msra.mxu0 %v4429
        %4621 = vmatprep.subr.bf16.mxu0 %v4428
        %4622 = vmatpush1.bf16.msra.mxu0 %v4427
        %4623 = vmatprep.subr.bf16.mxu0 %v4426
        %4624 = vmatpush1.bf16.msra.mxu0 %v4425
        %4625 = vmatprep.subr.bf16.mxu0 %v4424
        %4626 = vmatpush1.bf16.msra.mxu0 %v4423
        %4627 = vmatprep.subr.bf16.mxu0 %v4422
        %4628 = vmatpush1.bf16.msra.mxu0 %v4421
        %4629 = vmatprep.subr.bf16.mxu0 %v4452
        %4630 = vmatpush2.bf16.msra.mxu0 %v4451
        %4631 = vmatprep.subr.bf16.mxu0 %v4450
        %4632 = vmatpush2.bf16.msra.mxu0 %v4449
        %4633 = vmatprep.subr.bf16.mxu0 %v4448
        %4634 = vmatpush2.bf16.msra.mxu0 %v4447
        %4635 = vmatprep.subr.bf16.mxu0 %v4446
        %4636 = vmatpush2.bf16.msra.mxu0 %v4445
        %4637 = vmatprep.subr.bf16.mxu0 %v4444
        %4638 = vmatpush2.bf16.msra.mxu0 %v4443
        %4639 = vmatprep.subr.bf16.mxu0 %v4442
        %4640 = vmatpush2.bf16.msra.mxu0 %v4441
        %4641 = vmatprep.subr.bf16.mxu0 %v4440
        %4642 = vmatpush2.bf16.msra.mxu0 %v4439
        %4643 = vmatprep.subr.bf16.mxu0 %v4438
        %4644 = vmatpush2.bf16.msra.mxu0 %v4437
        %4645 = vmatprep.mubr.bf16.mxu0 %v1350
        %4646 = vmatmul.mubr.bf16.gmra.mxu0 %v858
        %v4647 = vpop.f32.mrf.mxu0
        %v4648 = vadd.f32 %v4127, %v4647
        %v4649 = vpop.f32.mrf.mxu0
        %v4650 = vadd.f32 %v4129, %v4649
        %v4651 = vpop.f32.mrf.mxu0
        %v4652 = vpop.f32.mrf.mxu0
        %4653 = vdwg.mxu0
        %4654 = vmatprep.subr.bf16.mxu0 %v4468
        %4655 = vmatpush1.bf16.msra.mxu0 %v4467
        %4656 = vmatprep.subr.bf16.mxu0 %v4466
        %4657 = vmatpush1.bf16.msra.mxu0 %v4465
        %4658 = vmatprep.subr.bf16.mxu0 %v4464
        %4659 = vmatpush1.bf16.msra.mxu0 %v4463
        %4660 = vmatprep.subr.bf16.mxu0 %v4462
        %4661 = vmatpush1.bf16.msra.mxu0 %v4461
        %4662 = vmatprep.subr.bf16.mxu0 %v4460
        %4663 = vmatpush1.bf16.msra.mxu0 %v4459
        %4664 = vmatprep.subr.bf16.mxu0 %v4458
        %4665 = vmatpush1.bf16.msra.mxu0 %v4457
        %4666 = vmatprep.subr.bf16.mxu0 %v4456
        %4667 = vmatpush1.bf16.msra.mxu0 %v4455
        %4668 = vmatprep.subr.bf16.mxu0 %v4454
        %4669 = vmatpush1.bf16.msra.mxu0 %v4453
        %4670 = vmatprep.subr.bf16.mxu0 %v4484
        %4671 = vmatpush2.bf16.msra.mxu0 %v4483
        %4672 = vmatprep.subr.bf16.mxu0 %v4482
        %4673 = vmatpush2.bf16.msra.mxu0 %v4481
        %4674 = vmatprep.subr.bf16.mxu0 %v4480
        %4675 = vmatpush2.bf16.msra.mxu0 %v4479
        %4676 = vmatprep.subr.bf16.mxu0 %v4478
        %4677 = vmatpush2.bf16.msra.mxu0 %v4477
        %4678 = vmatprep.subr.bf16.mxu0 %v4476
        %4679 = vmatpush2.bf16.msra.mxu0 %v4475
        %4680 = vmatprep.subr.bf16.mxu0 %v4474
        %4681 = vmatpush2.bf16.msra.mxu0 %v4473
        %4682 = vmatprep.subr.bf16.mxu0 %v4472
        %4683 = vmatpush2.bf16.msra.mxu0 %v4471
        %4684 = vmatprep.subr.bf16.mxu0 %v4470
        %4685 = vmatpush2.bf16.msra.mxu0 %v4469
        %4686 = vmatprep.mubr.bf16.mxu0 %v2334
        %4687 = vmatmul.mubr.bf16.gmra.mxu0 %v1842
        %v4688 = vpop.f32.mrf.mxu0
        %v4689 = vadd.f32 %v4648, %v4688
        %v4690 = vpop.f32.mrf.mxu0
        %v4691 = vadd.f32 %v4650, %v4690
        %v4692 = vpop.f32.mrf.mxu0
        %v4693 = vpop.f32.mrf.mxu0
        %4694 = vdwg.mxu0
        %4695 = vmatprep.subr.bf16.mxu0 %v4500
        %4696 = vmatpush1.bf16.msra.mxu0 %v4499
        %4697 = vmatprep.subr.bf16.mxu0 %v4498
        %4698 = vmatpush1.bf16.msra.mxu0 %v4497
        %4699 = vmatprep.subr.bf16.mxu0 %v4496
        %4700 = vmatpush1.bf16.msra.mxu0 %v4495
        %4701 = vmatprep.subr.bf16.mxu0 %v4494
        %4702 = vmatpush1.bf16.msra.mxu0 %v4493
        %4703 = vmatprep.subr.bf16.mxu0 %v4492
        %4704 = vmatpush1.bf16.msra.mxu0 %v4491
        %4705 = vmatprep.subr.bf16.mxu0 %v4490
        %4706 = vmatpush1.bf16.msra.mxu0 %v4489
        %4707 = vmatprep.subr.bf16.mxu0 %v4488
        %4708 = vmatpush1.bf16.msra.mxu0 %v4487
        %4709 = vmatprep.subr.bf16.mxu0 %v4486
        %4710 = vmatpush1.bf16.msra.mxu0 %v4485
        %4711 = vmatprep.subr.bf16.mxu0 %v4516
        %4712 = vmatpush2.bf16.msra.mxu0 %v4515
        %4713 = vmatprep.subr.bf16.mxu0 %v4514
        %4714 = vmatpush2.bf16.msra.mxu0 %v4513
        %4715 = vmatprep.subr.bf16.mxu0 %v4512
        %4716 = vmatpush2.bf16.msra.mxu0 %v4511
        %4717 = vmatprep.subr.bf16.mxu0 %v4510
        %4718 = vmatpush2.bf16.msra.mxu0 %v4509
        %4719 = vmatprep.subr.bf16.mxu0 %v4508
        %4720 = vmatpush2.bf16.msra.mxu0 %v4507
        %4721 = vmatprep.subr.bf16.mxu0 %v4506
        %4722 = vmatpush2.bf16.msra.mxu0 %v4505
        %4723 = vmatprep.subr.bf16.mxu0 %v4504
        %4724 = vmatpush2.bf16.msra.mxu0 %v4503
        %4725 = vmatprep.subr.bf16.mxu0 %v4502
        %4726 = vmatpush2.bf16.msra.mxu0 %v4501
        %4727 = vmatprep.mubr.bf16.mxu0 %v3318
        %4728 = vmatmul.mubr.bf16.gmra.mxu0 %v2826
        %v4729 = vpop.f32.mrf.mxu0
        %v4730 = vadd.f32 %v4689, %v4729
        %v4731 = vpop.f32.mrf.mxu0
        %v4732 = vadd.f32 %v4691, %v4731
        %v4733 = vpop.f32.mrf.mxu0
        %v4734 = vpop.f32.mrf.mxu0
        %4735 = vdwg.mxu0
        %s4736 = scalar_lea.vmem [#allocation8], 1536
        %v4737 = vld [vmem:[%s4736] sm:$0xff]
        %v4738 = vld [vmem:[%s4736 + $0x8] sm:$0xff]
        %v4739 = vld [vmem:[%s4736 + $0x10] sm:$0xff]
        %v4740 = vld [vmem:[%s4736 + $0x18] sm:$0xff]
        %v4741 = vld [vmem:[%s4736 + $0x20] sm:$0xff]
        %v4742 = vld [vmem:[%s4736 + $0x28] sm:$0xff]
        %v4743 = vld [vmem:[%s4736 + $0x30] sm:$0xff]
        %v4744 = vld [vmem:[%s4736 + $0x38] sm:$0xff]
        %v4745 = vld [vmem:[%s4736 + $0x40] sm:$0xff]
        %v4746 = vld [vmem:[%s4736 + $0x48] sm:$0xff]
        %v4747 = vld [vmem:[%s4736 + $0x50] sm:$0xff]
        %v4748 = vld [vmem:[%s4736 + $0x58] sm:$0xff]
        %v4749 = vld [vmem:[%s4736 + $0x60] sm:$0xff]
        %v4750 = vld [vmem:[%s4736 + $0x68] sm:$0xff]
        %v4751 = vld [vmem:[%s4736 + $0x70] sm:$0xff]
        %v4752 = vld [vmem:[%s4736 + $0x78] sm:$0xff]
        %v4753 = vld [vmem:[%s4736 + $0x80] sm:$0xff]
        %v4754 = vld [vmem:[%s4736 + $0x88] sm:$0xff]
        %v4755 = vld [vmem:[%s4736 + $0x90] sm:$0xff]
        %v4756 = vld [vmem:[%s4736 + $0x98] sm:$0xff]
        %v4757 = vld [vmem:[%s4736 + $0xa0] sm:$0xff]
        %v4758 = vld [vmem:[%s4736 + $0xa8] sm:$0xff]
        %v4759 = vld [vmem:[%s4736 + $0xb0] sm:$0xff]
        %v4760 = vld [vmem:[%s4736 + $0xb8] sm:$0xff]
        %v4761 = vld [vmem:[%s4736 + $0xc0] sm:$0xff]
        %v4762 = vld [vmem:[%s4736 + $0xc8] sm:$0xff]
        %v4763 = vld [vmem:[%s4736 + $0xd0] sm:$0xff]
        %v4764 = vld [vmem:[%s4736 + $0xd8] sm:$0xff]
        %v4765 = vld [vmem:[%s4736 + $0xe0] sm:$0xff]
        %v4766 = vld [vmem:[%s4736 + $0xe8] sm:$0xff]
        %v4767 = vld [vmem:[%s4736 + $0xf0] sm:$0xff]
        %v4768 = vld [vmem:[%s4736 + $0xf8] sm:$0xff]
        %v4769 = vld [vmem:[%s4736 + $0x100] sm:$0xff]
        %v4770 = vld [vmem:[%s4736 + $0x108] sm:$0xff]
        %v4771 = vld [vmem:[%s4736 + $0x110] sm:$0xff]
        %v4772 = vld [vmem:[%s4736 + $0x118] sm:$0xff]
        %v4773 = vld [vmem:[%s4736 + $0x120] sm:$0xff]
        %v4774 = vld [vmem:[%s4736 + $0x128] sm:$0xff]
        %v4775 = vld [vmem:[%s4736 + $0x130] sm:$0xff]
        %v4776 = vld [vmem:[%s4736 + $0x138] sm:$0xff]
        %v4777 = vld [vmem:[%s4736 + $0x140] sm:$0xff]
        %v4778 = vld [vmem:[%s4736 + $0x148] sm:$0xff]
        %v4779 = vld [vmem:[%s4736 + $0x150] sm:$0xff]
        %v4780 = vld [vmem:[%s4736 + $0x158] sm:$0xff]
        %v4781 = vld [vmem:[%s4736 + $0x160] sm:$0xff]
        %v4782 = vld [vmem:[%s4736 + $0x168] sm:$0xff]
        %v4783 = vld [vmem:[%s4736 + $0x170] sm:$0xff]
        %v4784 = vld [vmem:[%s4736 + $0x178] sm:$0xff]
        %v4785 = vld [vmem:[%s4736 + $0x180] sm:$0xff]
        %v4786 = vld [vmem:[%s4736 + $0x188] sm:$0xff]
        %v4787 = vld [vmem:[%s4736 + $0x190] sm:$0xff]
        %v4788 = vld [vmem:[%s4736 + $0x198] sm:$0xff]
        %v4789 = vld [vmem:[%s4736 + $0x1a0] sm:$0xff]
        %v4790 = vld [vmem:[%s4736 + $0x1a8] sm:$0xff]
        %v4791 = vld [vmem:[%s4736 + $0x1b0] sm:$0xff]
        %v4792 = vld [vmem:[%s4736 + $0x1b8] sm:$0xff]
        %v4793 = vld [vmem:[%s4736 + $0x1c0] sm:$0xff]
        %v4794 = vld [vmem:[%s4736 + $0x1c8] sm:$0xff]
        %v4795 = vld [vmem:[%s4736 + $0x1d0] sm:$0xff]
        %v4796 = vld [vmem:[%s4736 + $0x1d8] sm:$0xff]
        %v4797 = vld [vmem:[%s4736 + $0x1e0] sm:$0xff]
        %v4798 = vld [vmem:[%s4736 + $0x1e8] sm:$0xff]
        %v4799 = vld [vmem:[%s4736 + $0x1f0] sm:$0xff]
        %v4800 = vld [vmem:[%s4736 + $0x1f8] sm:$0xff]
        %v4801 = vld [vmem:[%s4736 + $0x200] sm:$0xff]
        %v4802 = vld [vmem:[%s4736 + $0x208] sm:$0xff]
        %v4803 = vld [vmem:[%s4736 + $0x210] sm:$0xff]
        %v4804 = vld [vmem:[%s4736 + $0x218] sm:$0xff]
        %v4805 = vld [vmem:[%s4736 + $0x220] sm:$0xff]
        %v4806 = vld [vmem:[%s4736 + $0x228] sm:$0xff]
        %v4807 = vld [vmem:[%s4736 + $0x230] sm:$0xff]
        %v4808 = vld [vmem:[%s4736 + $0x238] sm:$0xff]
        %v4809 = vld [vmem:[%s4736 + $0x240] sm:$0xff]
        %v4810 = vld [vmem:[%s4736 + $0x248] sm:$0xff]
        %v4811 = vld [vmem:[%s4736 + $0x250] sm:$0xff]
        %v4812 = vld [vmem:[%s4736 + $0x258] sm:$0xff]
        %v4813 = vld [vmem:[%s4736 + $0x260] sm:$0xff]
        %v4814 = vld [vmem:[%s4736 + $0x268] sm:$0xff]
        %v4815 = vld [vmem:[%s4736 + $0x270] sm:$0xff]
        %v4816 = vld [vmem:[%s4736 + $0x278] sm:$0xff]
        %v4817 = vld [vmem:[%s4736 + $0x280] sm:$0xff]
        %v4818 = vld [vmem:[%s4736 + $0x288] sm:$0xff]
        %v4819 = vld [vmem:[%s4736 + $0x290] sm:$0xff]
        %v4820 = vld [vmem:[%s4736 + $0x298] sm:$0xff]
        %v4821 = vld [vmem:[%s4736 + $0x2a0] sm:$0xff]
        %v4822 = vld [vmem:[%s4736 + $0x2a8] sm:$0xff]
        %v4823 = vld [vmem:[%s4736 + $0x2b0] sm:$0xff]
        %v4824 = vld [vmem:[%s4736 + $0x2b8] sm:$0xff]
        %v4825 = vld [vmem:[%s4736 + $0x2c0] sm:$0xff]
        %v4826 = vld [vmem:[%s4736 + $0x2c8] sm:$0xff]
        %v4827 = vld [vmem:[%s4736 + $0x2d0] sm:$0xff]
        %v4828 = vld [vmem:[%s4736 + $0x2d8] sm:$0xff]
        %v4829 = vld [vmem:[%s4736 + $0x2e0] sm:$0xff]
        %v4830 = vld [vmem:[%s4736 + $0x2e8] sm:$0xff]
        %v4831 = vld [vmem:[%s4736 + $0x2f0] sm:$0xff]
        %v4832 = vld [vmem:[%s4736 + $0x2f8] sm:$0xff]
        %v4833 = vrot.slane %v858, 2
        %v4834 = vrot.slane %v1350, 2
        %v4835 = vrot.slane %v1842, 2
        %v4836 = vrot.slane %v2334, 2
        %v4837 = vrot.slane %v2826, 2
        %v4838 = vrot.slane %v3318, 2
        %v4941 = vunpack.c.l.b16 %v4737
        %v4942 = vunpack.c.h.b16 %v4737
        %v4943 = vunpack.c.l.b16 %v4738
        %v4944 = vunpack.c.h.b16 %v4738
        %v4945 = vunpack.c.l.b16 %v4739
        %v4946 = vunpack.c.h.b16 %v4739
        %v4947 = vunpack.c.l.b16 %v4740
        %v4948 = vunpack.c.h.b16 %v4740
        %v4949 = vunpack.c.l.b16 %v4741
        %v4950 = vunpack.c.h.b16 %v4741
        %v4951 = vunpack.c.l.b16 %v4742
        %v4952 = vunpack.c.h.b16 %v4742
        %v4953 = vunpack.c.l.b16 %v4743
        %v4954 = vunpack.c.h.b16 %v4743
        %v4955 = vunpack.c.l.b16 %v4744
        %v4956 = vunpack.c.h.b16 %v4744
        %v4957 = vunpack.c.l.b16 %v4745
        %v4958 = vunpack.c.h.b16 %v4745
        %v4959 = vunpack.c.l.b16 %v4746
        %v4960 = vunpack.c.h.b16 %v4746
        %v4961 = vunpack.c.l.b16 %v4747
        %v4962 = vunpack.c.h.b16 %v4747
        %v4963 = vunpack.c.l.b16 %v4748
        %v4964 = vunpack.c.h.b16 %v4748
        %v4965 = vunpack.c.l.b16 %v4749
        %v4966 = vunpack.c.h.b16 %v4749
        %v4967 = vunpack.c.l.b16 %v4750
        %v4968 = vunpack.c.h.b16 %v4750
        %v4969 = vunpack.c.l.b16 %v4751
        %v4970 = vunpack.c.h.b16 %v4751
        %v4971 = vunpack.c.l.b16 %v4752
        %v4972 = vunpack.c.h.b16 %v4752
        %v4973 = vunpack.c.l.b16 %v4753
        %v4974 = vunpack.c.h.b16 %v4753
        %v4975 = vunpack.c.l.b16 %v4754
        %v4976 = vunpack.c.h.b16 %v4754
        %v4977 = vunpack.c.l.b16 %v4755
        %v4978 = vunpack.c.h.b16 %v4755
        %v4979 = vunpack.c.l.b16 %v4756
        %v4980 = vunpack.c.h.b16 %v4756
        %v4981 = vunpack.c.l.b16 %v4757
        %v4982 = vunpack.c.h.b16 %v4757
        %v4983 = vunpack.c.l.b16 %v4758
        %v4984 = vunpack.c.h.b16 %v4758
        %v4985 = vunpack.c.l.b16 %v4759
        %v4986 = vunpack.c.h.b16 %v4759
        %v4987 = vunpack.c.l.b16 %v4760
        %v4988 = vunpack.c.h.b16 %v4760
        %v4989 = vunpack.c.l.b16 %v4761
        %v4990 = vunpack.c.h.b16 %v4761
        %v4991 = vunpack.c.l.b16 %v4762
        %v4992 = vunpack.c.h.b16 %v4762
        %v4993 = vunpack.c.l.b16 %v4763
        %v4994 = vunpack.c.h.b16 %v4763
        %v4995 = vunpack.c.l.b16 %v4764
        %v4996 = vunpack.c.h.b16 %v4764
        %v4997 = vunpack.c.l.b16 %v4765
        %v4998 = vunpack.c.h.b16 %v4765
        %v4999 = vunpack.c.l.b16 %v4766
        %v5000 = vunpack.c.h.b16 %v4766
        %v5001 = vunpack.c.l.b16 %v4767
        %v5002 = vunpack.c.h.b16 %v4767
        %v5003 = vunpack.c.l.b16 %v4768
        %v5004 = vunpack.c.h.b16 %v4768
        %v5005 = vunpack.c.l.b16 %v4769
        %v5006 = vunpack.c.h.b16 %v4769
        %v5007 = vunpack.c.l.b16 %v4770
        %v5008 = vunpack.c.h.b16 %v4770
        %v5009 = vunpack.c.l.b16 %v4771
        %v5010 = vunpack.c.h.b16 %v4771
        %v5011 = vunpack.c.l.b16 %v4772
        %v5012 = vunpack.c.h.b16 %v4772
        %v5013 = vunpack.c.l.b16 %v4773
        %v5014 = vunpack.c.h.b16 %v4773
        %v5015 = vunpack.c.l.b16 %v4774
        %v5016 = vunpack.c.h.b16 %v4774
        %v5017 = vunpack.c.l.b16 %v4775
        %v5018 = vunpack.c.h.b16 %v4775
        %v5019 = vunpack.c.l.b16 %v4776
        %v5020 = vunpack.c.h.b16 %v4776
        %v5021 = vunpack.c.l.b16 %v4777
        %v5022 = vunpack.c.h.b16 %v4777
        %v5023 = vunpack.c.l.b16 %v4778
        %v5024 = vunpack.c.h.b16 %v4778
        %v5025 = vunpack.c.l.b16 %v4779
        %v5026 = vunpack.c.h.b16 %v4779
        %v5027 = vunpack.c.l.b16 %v4780
        %v5028 = vunpack.c.h.b16 %v4780
        %v5029 = vunpack.c.l.b16 %v4781
        %v5030 = vunpack.c.h.b16 %v4781
        %v5031 = vunpack.c.l.b16 %v4782
        %v5032 = vunpack.c.h.b16 %v4782
        %v5033 = vunpack.c.l.b16 %v4783
        %v5034 = vunpack.c.h.b16 %v4783
        %v5035 = vunpack.c.l.b16 %v4784
        %v5036 = vunpack.c.h.b16 %v4784
        %v5037 = vunpack.c.l.b16 %v4785
        %v5038 = vunpack.c.h.b16 %v4785
        %v5039 = vunpack.c.l.b16 %v4786
        %v5040 = vunpack.c.h.b16 %v4786
        %v5041 = vunpack.c.l.b16 %v4787
        %v5042 = vunpack.c.h.b16 %v4787
        %v5043 = vunpack.c.l.b16 %v4788
        %v5044 = vunpack.c.h.b16 %v4788
        %v5045 = vunpack.c.l.b16 %v4789
        %v5046 = vunpack.c.h.b16 %v4789
        %v5047 = vunpack.c.l.b16 %v4790
        %v5048 = vunpack.c.h.b16 %v4790
        %v5049 = vunpack.c.l.b16 %v4791
        %v5050 = vunpack.c.h.b16 %v4791
        %v5051 = vunpack.c.l.b16 %v4792
        %v5052 = vunpack.c.h.b16 %v4792
        %v5053 = vunpack.c.l.b16 %v4793
        %v5054 = vunpack.c.h.b16 %v4793
        %v5055 = vunpack.c.l.b16 %v4794
        %v5056 = vunpack.c.h.b16 %v4794
        %v5057 = vunpack.c.l.b16 %v4795
        %v5058 = vunpack.c.h.b16 %v4795
        %v5059 = vunpack.c.l.b16 %v4796
        %v5060 = vunpack.c.h.b16 %v4796
        %v5061 = vunpack.c.l.b16 %v4797
        %v5062 = vunpack.c.h.b16 %v4797
        %v5063 = vunpack.c.l.b16 %v4798
        %v5064 = vunpack.c.h.b16 %v4798
        %v5065 = vunpack.c.l.b16 %v4799
        %v5066 = vunpack.c.h.b16 %v4799
        %v5067 = vunpack.c.l.b16 %v4800
        %v5068 = vunpack.c.h.b16 %v4800
        %v5069 = vunpack.c.l.b16 %v4801
        %v5070 = vunpack.c.h.b16 %v4801
        %v5071 = vunpack.c.l.b16 %v4802
        %v5072 = vunpack.c.h.b16 %v4802
        %v5073 = vunpack.c.l.b16 %v4803
        %v5074 = vunpack.c.h.b16 %v4803
        %v5075 = vunpack.c.l.b16 %v4804
        %v5076 = vunpack.c.h.b16 %v4804
        %v5077 = vunpack.c.l.b16 %v4805
        %v5078 = vunpack.c.h.b16 %v4805
        %v5079 = vunpack.c.l.b16 %v4806
        %v5080 = vunpack.c.h.b16 %v4806
        %v5081 = vunpack.c.l.b16 %v4807
        %v5082 = vunpack.c.h.b16 %v4807
        %v5083 = vunpack.c.l.b16 %v4808
        %v5084 = vunpack.c.h.b16 %v4808
        %v5085 = vunpack.c.l.b16 %v4809
        %v5086 = vunpack.c.h.b16 %v4809
        %v5087 = vunpack.c.l.b16 %v4810
        %v5088 = vunpack.c.h.b16 %v4810
        %v5089 = vunpack.c.l.b16 %v4811
        %v5090 = vunpack.c.h.b16 %v4811
        %v5091 = vunpack.c.l.b16 %v4812
        %v5092 = vunpack.c.h.b16 %v4812
        %v5093 = vunpack.c.l.b16 %v4813
        %v5094 = vunpack.c.h.b16 %v4813
        %v5095 = vunpack.c.l.b16 %v4814
        %v5096 = vunpack.c.h.b16 %v4814
        %v5097 = vunpack.c.l.b16 %v4815
        %v5098 = vunpack.c.h.b16 %v4815
        %v5099 = vunpack.c.l.b16 %v4816
        %v5100 = vunpack.c.h.b16 %v4816
        %v5101 = vunpack.c.l.b16 %v4817
        %v5102 = vunpack.c.h.b16 %v4817
        %v5103 = vunpack.c.l.b16 %v4818
        %v5104 = vunpack.c.h.b16 %v4818
        %v5105 = vunpack.c.l.b16 %v4819
        %v5106 = vunpack.c.h.b16 %v4819
        %v5107 = vunpack.c.l.b16 %v4820
        %v5108 = vunpack.c.h.b16 %v4820
        %v5109 = vunpack.c.l.b16 %v4821
        %v5110 = vunpack.c.h.b16 %v4821
        %v5111 = vunpack.c.l.b16 %v4822
        %v5112 = vunpack.c.h.b16 %v4822
        %v5113 = vunpack.c.l.b16 %v4823
        %v5114 = vunpack.c.h.b16 %v4823
        %v5115 = vunpack.c.l.b16 %v4824
        %v5116 = vunpack.c.h.b16 %v4824
        %v5117 = vunpack.c.l.b16 %v4825
        %v5118 = vunpack.c.h.b16 %v4825
        %v5119 = vunpack.c.l.b16 %v4826
        %v5120 = vunpack.c.h.b16 %v4826
        %v5121 = vunpack.c.l.b16 %v4827
        %v5122 = vunpack.c.h.b16 %v4827
        %v5123 = vunpack.c.l.b16 %v4828
        %v5124 = vunpack.c.h.b16 %v4828
        %v5125 = vunpack.c.l.b16 %v4829
        %v5126 = vunpack.c.h.b16 %v4829
        %v5127 = vunpack.c.l.b16 %v4830
        %v5128 = vunpack.c.h.b16 %v4830
        %v5129 = vunpack.c.l.b16 %v4831
        %v5130 = vunpack.c.h.b16 %v4831
        %v5131 = vunpack.c.l.b16 %v4832
        %v5132 = vunpack.c.h.b16 %v4832
        %v5133 = vpack.c.b16 %v4943, %v4941
        %v5134 = vpack.c.b16 %v4944, %v4942
        %v5135 = vpack.c.b16 %v4947, %v4945
        %v5136 = vpack.c.b16 %v4948, %v4946
        %v5137 = vpack.c.b16 %v4951, %v4949
        %v5138 = vpack.c.b16 %v4952, %v4950
        %v5139 = vpack.c.b16 %v4955, %v4953
        %v5140 = vpack.c.b16 %v4956, %v4954
        %v5141 = vpack.c.b16 %v4959, %v4957
        %v5142 = vpack.c.b16 %v4960, %v4958
        %v5143 = vpack.c.b16 %v4963, %v4961
        %v5144 = vpack.c.b16 %v4964, %v4962
        %v5145 = vpack.c.b16 %v4967, %v4965
        %v5146 = vpack.c.b16 %v4968, %v4966
        %v5147 = vpack.c.b16 %v4971, %v4969
        %v5148 = vpack.c.b16 %v4972, %v4970
        %v5149 = vpack.c.b16 %v4975, %v4973
        %v5150 = vpack.c.b16 %v4976, %v4974
        %v5151 = vpack.c.b16 %v4979, %v4977
        %v5152 = vpack.c.b16 %v4980, %v4978
        %v5153 = vpack.c.b16 %v4983, %v4981
        %v5154 = vpack.c.b16 %v4984, %v4982
        %v5155 = vpack.c.b16 %v4987, %v4985
        %v5156 = vpack.c.b16 %v4988, %v4986
        %v5157 = vpack.c.b16 %v4991, %v4989
        %v5158 = vpack.c.b16 %v4992, %v4990
        %v5159 = vpack.c.b16 %v4995, %v4993
        %v5160 = vpack.c.b16 %v4996, %v4994
        %v5161 = vpack.c.b16 %v4999, %v4997
        %v5162 = vpack.c.b16 %v5000, %v4998
        %v5163 = vpack.c.b16 %v5003, %v5001
        %v5164 = vpack.c.b16 %v5004, %v5002
        %v5165 = vpack.c.b16 %v5007, %v5005
        %v5166 = vpack.c.b16 %v5008, %v5006
        %v5167 = vpack.c.b16 %v5011, %v5009
        %v5168 = vpack.c.b16 %v5012, %v5010
        %v5169 = vpack.c.b16 %v5015, %v5013
        %v5170 = vpack.c.b16 %v5016, %v5014
        %v5171 = vpack.c.b16 %v5019, %v5017
        %v5172 = vpack.c.b16 %v5020, %v5018
        %v5173 = vpack.c.b16 %v5023, %v5021
        %v5174 = vpack.c.b16 %v5024, %v5022
        %v5175 = vpack.c.b16 %v5027, %v5025
        %v5176 = vpack.c.b16 %v5028, %v5026
        %v5177 = vpack.c.b16 %v5031, %v5029
        %v5178 = vpack.c.b16 %v5032, %v5030
        %v5179 = vpack.c.b16 %v5035, %v5033
        %v5180 = vpack.c.b16 %v5036, %v5034
        %v5181 = vpack.c.b16 %v5039, %v5037
        %v5182 = vpack.c.b16 %v5040, %v5038
        %v5183 = vpack.c.b16 %v5043, %v5041
        %v5184 = vpack.c.b16 %v5044, %v5042
        %v5185 = vpack.c.b16 %v5047, %v5045
        %v5186 = vpack.c.b16 %v5048, %v5046
        %v5187 = vpack.c.b16 %v5051, %v5049
        %v5188 = vpack.c.b16 %v5052, %v5050
        %v5189 = vpack.c.b16 %v5055, %v5053
        %v5190 = vpack.c.b16 %v5056, %v5054
        %v5191 = vpack.c.b16 %v5059, %v5057
        %v5192 = vpack.c.b16 %v5060, %v5058
        %v5193 = vpack.c.b16 %v5063, %v5061
        %v5194 = vpack.c.b16 %v5064, %v5062
        %v5195 = vpack.c.b16 %v5067, %v5065
        %v5196 = vpack.c.b16 %v5068, %v5066
        %v5197 = vpack.c.b16 %v5071, %v5069
        %v5198 = vpack.c.b16 %v5072, %v5070
        %v5199 = vpack.c.b16 %v5075, %v5073
        %v5200 = vpack.c.b16 %v5076, %v5074
        %v5201 = vpack.c.b16 %v5079, %v5077
        %v5202 = vpack.c.b16 %v5080, %v5078
        %v5203 = vpack.c.b16 %v5083, %v5081
        %v5204 = vpack.c.b16 %v5084, %v5082
        %v5205 = vpack.c.b16 %v5087, %v5085
        %v5206 = vpack.c.b16 %v5088, %v5086
        %v5207 = vpack.c.b16 %v5091, %v5089
        %v5208 = vpack.c.b16 %v5092, %v5090
        %v5209 = vpack.c.b16 %v5095, %v5093
        %v5210 = vpack.c.b16 %v5096, %v5094
        %v5211 = vpack.c.b16 %v5099, %v5097
        %v5212 = vpack.c.b16 %v5100, %v5098
        %v5213 = vpack.c.b16 %v5103, %v5101
        %v5214 = vpack.c.b16 %v5104, %v5102
        %v5215 = vpack.c.b16 %v5107, %v5105
        %v5216 = vpack.c.b16 %v5108, %v5106
        %v5217 = vpack.c.b16 %v5111, %v5109
        %v5218 = vpack.c.b16 %v5112, %v5110
        %v5219 = vpack.c.b16 %v5115, %v5113
        %v5220 = vpack.c.b16 %v5116, %v5114
        %v5221 = vpack.c.b16 %v5119, %v5117
        %v5222 = vpack.c.b16 %v5120, %v5118
        %v5223 = vpack.c.b16 %v5123, %v5121
        %v5224 = vpack.c.b16 %v5124, %v5122
        %v5225 = vpack.c.b16 %v5127, %v5125
        %v5226 = vpack.c.b16 %v5128, %v5126
        %v5227 = vpack.c.b16 %v5131, %v5129
        %v5228 = vpack.c.b16 %v5132, %v5130
        %5325 = vmatprep.subr.bf16.mxu0 %v5148
        %5326 = vmatpush1.bf16.msra.mxu0 %v5147
        %5327 = vmatprep.subr.bf16.mxu0 %v5146
        %5328 = vmatpush1.bf16.msra.mxu0 %v5145
        %5329 = vmatprep.subr.bf16.mxu0 %v5144
        %5330 = vmatpush1.bf16.msra.mxu0 %v5143
        %5331 = vmatprep.subr.bf16.mxu0 %v5142
        %5332 = vmatpush1.bf16.msra.mxu0 %v5141
        %5333 = vmatprep.subr.bf16.mxu0 %v5140
        %5334 = vmatpush1.bf16.msra.mxu0 %v5139
        %5335 = vmatprep.subr.bf16.mxu0 %v5138
        %5336 = vmatpush1.bf16.msra.mxu0 %v5137
        %5337 = vmatprep.subr.bf16.mxu0 %v5136
        %5338 = vmatpush1.bf16.msra.mxu0 %v5135
        %5339 = vmatprep.subr.bf16.mxu0 %v5134
        %5340 = vmatpush1.bf16.msra.mxu0 %v5133
        %5341 = vmatprep.subr.bf16.mxu0 %v5164
        %5342 = vmatpush2.bf16.msra.mxu0 %v5163
        %5343 = vmatprep.subr.bf16.mxu0 %v5162
        %5344 = vmatpush2.bf16.msra.mxu0 %v5161
        %5345 = vmatprep.subr.bf16.mxu0 %v5160
        %5346 = vmatpush2.bf16.msra.mxu0 %v5159
        %5347 = vmatprep.subr.bf16.mxu0 %v5158
        %5348 = vmatpush2.bf16.msra.mxu0 %v5157
        %5349 = vmatprep.subr.bf16.mxu0 %v5156
        %5350 = vmatpush2.bf16.msra.mxu0 %v5155
        %5351 = vmatprep.subr.bf16.mxu0 %v5154
        %5352 = vmatpush2.bf16.msra.mxu0 %v5153
        %5353 = vmatprep.subr.bf16.mxu0 %v5152
        %5354 = vmatpush2.bf16.msra.mxu0 %v5151
        %5355 = vmatprep.subr.bf16.mxu0 %v5150
        %5356 = vmatpush2.bf16.msra.mxu0 %v5149
        %5357 = vmatprep.mubr.bf16.mxu0 %v4834
        %5358 = vmatmul.mubr.bf16.gmra.mxu0 %v4833
        %v5359 = vpop.f32.mrf.mxu0
        %v5360 = vadd.f32 0.0, %v5359
        %v5361 = vpop.f32.mrf.mxu0
        %v5362 = vadd.f32 0.0, %v5361
        %v5363 = vpop.f32.mrf.mxu0
        %v5364 = vpop.f32.mrf.mxu0
        %5365 = vdwg.mxu0
        %5366 = vmatprep.subr.bf16.mxu0 %v5180
        %5367 = vmatpush1.bf16.msra.mxu0 %v5179
        %5368 = vmatprep.subr.bf16.mxu0 %v5178
        %5369 = vmatpush1.bf16.msra.mxu0 %v5177
        %5370 = vmatprep.subr.bf16.mxu0 %v5176
        %5371 = vmatpush1.bf16.msra.mxu0 %v5175
        %5372 = vmatprep.subr.bf16.mxu0 %v5174
        %5373 = vmatpush1.bf16.msra.mxu0 %v5173
        %5374 = vmatprep.subr.bf16.mxu0 %v5172
        %5375 = vmatpush1.bf16.msra.mxu0 %v5171
        %5376 = vmatprep.subr.bf16.mxu0 %v5170
        %5377 = vmatpush1.bf16.msra.mxu0 %v5169
        %5378 = vmatprep.subr.bf16.mxu0 %v5168
        %5379 = vmatpush1.bf16.msra.mxu0 %v5167
        %5380 = vmatprep.subr.bf16.mxu0 %v5166
        %5381 = vmatpush1.bf16.msra.mxu0 %v5165
        %5382 = vmatprep.subr.bf16.mxu0 %v5196
        %5383 = vmatpush2.bf16.msra.mxu0 %v5195
        %5384 = vmatprep.subr.bf16.mxu0 %v5194
        %5385 = vmatpush2.bf16.msra.mxu0 %v5193
        %5386 = vmatprep.subr.bf16.mxu0 %v5192
        %5387 = vmatpush2.bf16.msra.mxu0 %v5191
        %5388 = vmatprep.subr.bf16.mxu0 %v5190
        %5389 = vmatpush2.bf16.msra.mxu0 %v5189
        %5390 = vmatprep.subr.bf16.mxu0 %v5188
        %5391 = vmatpush2.bf16.msra.mxu0 %v5187
        %5392 = vmatprep.subr.bf16.mxu0 %v5186
        %5393 = vmatpush2.bf16.msra.mxu0 %v5185
        %5394 = vmatprep.subr.bf16.mxu0 %v5184
        %5395 = vmatpush2.bf16.msra.mxu0 %v5183
        %5396 = vmatprep.subr.bf16.mxu0 %v5182
        %5397 = vmatpush2.bf16.msra.mxu0 %v5181
        %5398 = vmatprep.mubr.bf16.mxu0 %v4836
        %5399 = vmatmul.mubr.bf16.gmra.mxu0 %v4835
        %v5400 = vpop.f32.mrf.mxu0
        %v5401 = vadd.f32 %v5360, %v5400
        %v5402 = vpop.f32.mrf.mxu0
        %v5403 = vadd.f32 %v5362, %v5402
        %v5404 = vpop.f32.mrf.mxu0
        %v5405 = vpop.f32.mrf.mxu0
        %5406 = vdwg.mxu0
        %5407 = vmatprep.subr.bf16.mxu0 %v5212
        %5408 = vmatpush1.bf16.msra.mxu0 %v5211
        %5409 = vmatprep.subr.bf16.mxu0 %v5210
        %5410 = vmatpush1.bf16.msra.mxu0 %v5209
        %5411 = vmatprep.subr.bf16.mxu0 %v5208
        %5412 = vmatpush1.bf16.msra.mxu0 %v5207
        %5413 = vmatprep.subr.bf16.mxu0 %v5206
        %5414 = vmatpush1.bf16.msra.mxu0 %v5205
        %5415 = vmatprep.subr.bf16.mxu0 %v5204
        %5416 = vmatpush1.bf16.msra.mxu0 %v5203
        %5417 = vmatprep.subr.bf16.mxu0 %v5202
        %5418 = vmatpush1.bf16.msra.mxu0 %v5201
        %5419 = vmatprep.subr.bf16.mxu0 %v5200
        %5420 = vmatpush1.bf16.msra.mxu0 %v5199
        %5421 = vmatprep.subr.bf16.mxu0 %v5198
        %5422 = vmatpush1.bf16.msra.mxu0 %v5197
        %5423 = vmatprep.subr.bf16.mxu0 %v5228
        %5424 = vmatpush2.bf16.msra.mxu0 %v5227
        %5425 = vmatprep.subr.bf16.mxu0 %v5226
        %5426 = vmatpush2.bf16.msra.mxu0 %v5225
        %5427 = vmatprep.subr.bf16.mxu0 %v5224
        %5428 = vmatpush2.bf16.msra.mxu0 %v5223
        %5429 = vmatprep.subr.bf16.mxu0 %v5222
        %5430 = vmatpush2.bf16.msra.mxu0 %v5221
        %5431 = vmatprep.subr.bf16.mxu0 %v5220
        %5432 = vmatpush2.bf16.msra.mxu0 %v5219
        %5433 = vmatprep.subr.bf16.mxu0 %v5218
        %5434 = vmatpush2.bf16.msra.mxu0 %v5217
        %5435 = vmatprep.subr.bf16.mxu0 %v5216
        %5436 = vmatpush2.bf16.msra.mxu0 %v5215
        %5437 = vmatprep.subr.bf16.mxu0 %v5214
        %5438 = vmatpush2.bf16.msra.mxu0 %v5213
        %5439 = vmatprep.mubr.bf16.mxu0 %v4838
        %5440 = vmatmul.mubr.bf16.gmra.mxu0 %v4837
        %v5441 = vpop.f32.mrf.mxu0
        %v5442 = vadd.f32 %v5401, %v5441
        %v5443 = vpop.f32.mrf.mxu0
        %v5444 = vadd.f32 %v5403, %v5443
        %v5445 = vpop.f32.mrf.mxu0
        %v5446 = vpop.f32.mrf.mxu0
        %5447 = vdwg.mxu0
        %v5448 = vadd.f32 %v4730, %v5442
        %v5449 = vadd.f32 %v4732, %v5444
        %s5450 = scalar_lea.vmem [#allocation8], 2304
        %v5451 = vld [vmem:[%s5450] sm:$0xff]
        %v5452 = vld [vmem:[%s5450 + $0x8] sm:$0xff]
        %v5453 = vld [vmem:[%s5450 + $0x10] sm:$0xff]
        %v5454 = vld [vmem:[%s5450 + $0x18] sm:$0xff]
        %v5455 = vld [vmem:[%s5450 + $0x20] sm:$0xff]
        %v5456 = vld [vmem:[%s5450 + $0x28] sm:$0xff]
        %v5457 = vld [vmem:[%s5450 + $0x30] sm:$0xff]
        %v5458 = vld [vmem:[%s5450 + $0x38] sm:$0xff]
        %v5459 = vld [vmem:[%s5450 + $0x40] sm:$0xff]
        %v5460 = vld [vmem:[%s5450 + $0x48] sm:$0xff]
        %v5461 = vld [vmem:[%s5450 + $0x50] sm:$0xff]
        %v5462 = vld [vmem:[%s5450 + $0x58] sm:$0xff]
        %v5463 = vld [vmem:[%s5450 + $0x60] sm:$0xff]
        %v5464 = vld [vmem:[%s5450 + $0x68] sm:$0xff]
        %v5465 = vld [vmem:[%s5450 + $0x70] sm:$0xff]
        %v5466 = vld [vmem:[%s5450 + $0x78] sm:$0xff]
        %v5467 = vld [vmem:[%s5450 + $0x80] sm:$0xff]
        %v5468 = vld [vmem:[%s5450 + $0x88] sm:$0xff]
        %v5469 = vld [vmem:[%s5450 + $0x90] sm:$0xff]
        %v5470 = vld [vmem:[%s5450 + $0x98] sm:$0xff]
        %v5471 = vld [vmem:[%s5450 + $0xa0] sm:$0xff]
        %v5472 = vld [vmem:[%s5450 + $0xa8] sm:$0xff]
        %v5473 = vld [vmem:[%s5450 + $0xb0] sm:$0xff]
        %v5474 = vld [vmem:[%s5450 + $0xb8] sm:$0xff]
        %v5475 = vld [vmem:[%s5450 + $0xc0] sm:$0xff]
        %v5476 = vld [vmem:[%s5450 + $0xc8] sm:$0xff]
        %v5477 = vld [vmem:[%s5450 + $0xd0] sm:$0xff]
        %v5478 = vld [vmem:[%s5450 + $0xd8] sm:$0xff]
        %v5479 = vld [vmem:[%s5450 + $0xe0] sm:$0xff]
        %v5480 = vld [vmem:[%s5450 + $0xe8] sm:$0xff]
        %v5481 = vld [vmem:[%s5450 + $0xf0] sm:$0xff]
        %v5482 = vld [vmem:[%s5450 + $0xf8] sm:$0xff]
        %v5483 = vld [vmem:[%s5450 + $0x100] sm:$0xff]
        %v5484 = vld [vmem:[%s5450 + $0x108] sm:$0xff]
        %v5485 = vld [vmem:[%s5450 + $0x110] sm:$0xff]
        %v5486 = vld [vmem:[%s5450 + $0x118] sm:$0xff]
        %v5487 = vld [vmem:[%s5450 + $0x120] sm:$0xff]
        %v5488 = vld [vmem:[%s5450 + $0x128] sm:$0xff]
        %v5489 = vld [vmem:[%s5450 + $0x130] sm:$0xff]
        %v5490 = vld [vmem:[%s5450 + $0x138] sm:$0xff]
        %v5491 = vld [vmem:[%s5450 + $0x140] sm:$0xff]
        %v5492 = vld [vmem:[%s5450 + $0x148] sm:$0xff]
        %v5493 = vld [vmem:[%s5450 + $0x150] sm:$0xff]
        %v5494 = vld [vmem:[%s5450 + $0x158] sm:$0xff]
        %v5495 = vld [vmem:[%s5450 + $0x160] sm:$0xff]
        %v5496 = vld [vmem:[%s5450 + $0x168] sm:$0xff]
        %v5497 = vld [vmem:[%s5450 + $0x170] sm:$0xff]
        %v5498 = vld [vmem:[%s5450 + $0x178] sm:$0xff]
        %v5499 = vld [vmem:[%s5450 + $0x180] sm:$0xff]
        %v5500 = vld [vmem:[%s5450 + $0x188] sm:$0xff]
        %v5501 = vld [vmem:[%s5450 + $0x190] sm:$0xff]
        %v5502 = vld [vmem:[%s5450 + $0x198] sm:$0xff]
        %v5503 = vld [vmem:[%s5450 + $0x1a0] sm:$0xff]
        %v5504 = vld [vmem:[%s5450 + $0x1a8] sm:$0xff]
        %v5505 = vld [vmem:[%s5450 + $0x1b0] sm:$0xff]
        %v5506 = vld [vmem:[%s5450 + $0x1b8] sm:$0xff]
        %v5507 = vld [vmem:[%s5450 + $0x1c0] sm:$0xff]
        %v5508 = vld [vmem:[%s5450 + $0x1c8] sm:$0xff]
        %v5509 = vld [vmem:[%s5450 + $0x1d0] sm:$0xff]
        %v5510 = vld [vmem:[%s5450 + $0x1d8] sm:$0xff]
        %v5511 = vld [vmem:[%s5450 + $0x1e0] sm:$0xff]
        %v5512 = vld [vmem:[%s5450 + $0x1e8] sm:$0xff]
        %v5513 = vld [vmem:[%s5450 + $0x1f0] sm:$0xff]
        %v5514 = vld [vmem:[%s5450 + $0x1f8] sm:$0xff]
        %v5515 = vld [vmem:[%s5450 + $0x200] sm:$0xff]
        %v5516 = vld [vmem:[%s5450 + $0x208] sm:$0xff]
        %v5517 = vld [vmem:[%s5450 + $0x210] sm:$0xff]
        %v5518 = vld [vmem:[%s5450 + $0x218] sm:$0xff]
        %v5519 = vld [vmem:[%s5450 + $0x220] sm:$0xff]
        %v5520 = vld [vmem:[%s5450 + $0x228] sm:$0xff]
        %v5521 = vld [vmem:[%s5450 + $0x230] sm:$0xff]
        %v5522 = vld [vmem:[%s5450 + $0x238] sm:$0xff]
        %v5523 = vld [vmem:[%s5450 + $0x240] sm:$0xff]
        %v5524 = vld [vmem:[%s5450 + $0x248] sm:$0xff]
        %v5525 = vld [vmem:[%s5450 + $0x250] sm:$0xff]
        %v5526 = vld [vmem:[%s5450 + $0x258] sm:$0xff]
        %v5527 = vld [vmem:[%s5450 + $0x260] sm:$0xff]
        %v5528 = vld [vmem:[%s5450 + $0x268] sm:$0xff]
        %v5529 = vld [vmem:[%s5450 + $0x270] sm:$0xff]
        %v5530 = vld [vmem:[%s5450 + $0x278] sm:$0xff]
        %v5531 = vld [vmem:[%s5450 + $0x280] sm:$0xff]
        %v5532 = vld [vmem:[%s5450 + $0x288] sm:$0xff]
        %v5533 = vld [vmem:[%s5450 + $0x290] sm:$0xff]
        %v5534 = vld [vmem:[%s5450 + $0x298] sm:$0xff]
        %v5535 = vld [vmem:[%s5450 + $0x2a0] sm:$0xff]
        %v5536 = vld [vmem:[%s5450 + $0x2a8] sm:$0xff]
        %v5537 = vld [vmem:[%s5450 + $0x2b0] sm:$0xff]
        %v5538 = vld [vmem:[%s5450 + $0x2b8] sm:$0xff]
        %v5539 = vld [vmem:[%s5450 + $0x2c0] sm:$0xff]
        %v5540 = vld [vmem:[%s5450 + $0x2c8] sm:$0xff]
        %v5541 = vld [vmem:[%s5450 + $0x2d0] sm:$0xff]
        %v5542 = vld [vmem:[%s5450 + $0x2d8] sm:$0xff]
        %v5543 = vld [vmem:[%s5450 + $0x2e0] sm:$0xff]
        %v5544 = vld [vmem:[%s5450 + $0x2e8] sm:$0xff]
        %v5545 = vld [vmem:[%s5450 + $0x2f0] sm:$0xff]
        %v5546 = vld [vmem:[%s5450 + $0x2f8] sm:$0xff]
        %v5547 = vrot.slane %v858, 3
        %v5548 = vrot.slane %v1350, 3
        %v5549 = vrot.slane %v1842, 3
        %v5550 = vrot.slane %v2334, 3
        %v5551 = vrot.slane %v2826, 3
        %v5552 = vrot.slane %v3318, 3
        %v5655 = vunpack.c.l.b16 %v5451
        %v5656 = vunpack.c.h.b16 %v5451
        %v5657 = vunpack.c.l.b16 %v5452
        %v5658 = vunpack.c.h.b16 %v5452
        %v5659 = vunpack.c.l.b16 %v5453
        %v5660 = vunpack.c.h.b16 %v5453
        %v5661 = vunpack.c.l.b16 %v5454
        %v5662 = vunpack.c.h.b16 %v5454
        %v5663 = vunpack.c.l.b16 %v5455
        %v5664 = vunpack.c.h.b16 %v5455
        %v5665 = vunpack.c.l.b16 %v5456
        %v5666 = vunpack.c.h.b16 %v5456
        %v5667 = vunpack.c.l.b16 %v5457
        %v5668 = vunpack.c.h.b16 %v5457
        %v5669 = vunpack.c.l.b16 %v5458
        %v5670 = vunpack.c.h.b16 %v5458
        %v5671 = vunpack.c.l.b16 %v5459
        %v5672 = vunpack.c.h.b16 %v5459
        %v5673 = vunpack.c.l.b16 %v5460
        %v5674 = vunpack.c.h.b16 %v5460
        %v5675 = vunpack.c.l.b16 %v5461
        %v5676 = vunpack.c.h.b16 %v5461
        %v5677 = vunpack.c.l.b16 %v5462
        %v5678 = vunpack.c.h.b16 %v5462
        %v5679 = vunpack.c.l.b16 %v5463
        %v5680 = vunpack.c.h.b16 %v5463
        %v5681 = vunpack.c.l.b16 %v5464
        %v5682 = vunpack.c.h.b16 %v5464
        %v5683 = vunpack.c.l.b16 %v5465
        %v5684 = vunpack.c.h.b16 %v5465
        %v5685 = vunpack.c.l.b16 %v5466
        %v5686 = vunpack.c.h.b16 %v5466
        %v5687 = vunpack.c.l.b16 %v5467
        %v5688 = vunpack.c.h.b16 %v5467
        %v5689 = vunpack.c.l.b16 %v5468
        %v5690 = vunpack.c.h.b16 %v5468
        %v5691 = vunpack.c.l.b16 %v5469
        %v5692 = vunpack.c.h.b16 %v5469
        %v5693 = vunpack.c.l.b16 %v5470
        %v5694 = vunpack.c.h.b16 %v5470
        %v5695 = vunpack.c.l.b16 %v5471
        %v5696 = vunpack.c.h.b16 %v5471
        %v5697 = vunpack.c.l.b16 %v5472
        %v5698 = vunpack.c.h.b16 %v5472
        %v5699 = vunpack.c.l.b16 %v5473
        %v5700 = vunpack.c.h.b16 %v5473
        %v5701 = vunpack.c.l.b16 %v5474
        %v5702 = vunpack.c.h.b16 %v5474
        %v5703 = vunpack.c.l.b16 %v5475
        %v5704 = vunpack.c.h.b16 %v5475
        %v5705 = vunpack.c.l.b16 %v5476
        %v5706 = vunpack.c.h.b16 %v5476
        %v5707 = vunpack.c.l.b16 %v5477
        %v5708 = vunpack.c.h.b16 %v5477
        %v5709 = vunpack.c.l.b16 %v5478
        %v5710 = vunpack.c.h.b16 %v5478
        %v5711 = vunpack.c.l.b16 %v5479
        %v5712 = vunpack.c.h.b16 %v5479
        %v5713 = vunpack.c.l.b16 %v5480
        %v5714 = vunpack.c.h.b16 %v5480
        %v5715 = vunpack.c.l.b16 %v5481
        %v5716 = vunpack.c.h.b16 %v5481
        %v5717 = vunpack.c.l.b16 %v5482
        %v5718 = vunpack.c.h.b16 %v5482
        %v5719 = vunpack.c.l.b16 %v5483
        %v5720 = vunpack.c.h.b16 %v5483
        %v5721 = vunpack.c.l.b16 %v5484
        %v5722 = vunpack.c.h.b16 %v5484
        %v5723 = vunpack.c.l.b16 %v5485
        %v5724 = vunpack.c.h.b16 %v5485
        %v5725 = vunpack.c.l.b16 %v5486
        %v5726 = vunpack.c.h.b16 %v5486
        %v5727 = vunpack.c.l.b16 %v5487
        %v5728 = vunpack.c.h.b16 %v5487
        %v5729 = vunpack.c.l.b16 %v5488
        %v5730 = vunpack.c.h.b16 %v5488
        %v5731 = vunpack.c.l.b16 %v5489
        %v5732 = vunpack.c.h.b16 %v5489
        %v5733 = vunpack.c.l.b16 %v5490
        %v5734 = vunpack.c.h.b16 %v5490
        %v5735 = vunpack.c.l.b16 %v5491
        %v5736 = vunpack.c.h.b16 %v5491
        %v5737 = vunpack.c.l.b16 %v5492
        %v5738 = vunpack.c.h.b16 %v5492
        %v5739 = vunpack.c.l.b16 %v5493
        %v5740 = vunpack.c.h.b16 %v5493
        %v5741 = vunpack.c.l.b16 %v5494
        %v5742 = vunpack.c.h.b16 %v5494
        %v5743 = vunpack.c.l.b16 %v5495
        %v5744 = vunpack.c.h.b16 %v5495
        %v5745 = vunpack.c.l.b16 %v5496
        %v5746 = vunpack.c.h.b16 %v5496
        %v5747 = vunpack.c.l.b16 %v5497
        %v5748 = vunpack.c.h.b16 %v5497
        %v5749 = vunpack.c.l.b16 %v5498
        %v5750 = vunpack.c.h.b16 %v5498
        %v5751 = vunpack.c.l.b16 %v5499
        %v5752 = vunpack.c.h.b16 %v5499
        %v5753 = vunpack.c.l.b16 %v5500
        %v5754 = vunpack.c.h.b16 %v5500
        %v5755 = vunpack.c.l.b16 %v5501
        %v5756 = vunpack.c.h.b16 %v5501
        %v5757 = vunpack.c.l.b16 %v5502
        %v5758 = vunpack.c.h.b16 %v5502
        %v5759 = vunpack.c.l.b16 %v5503
        %v5760 = vunpack.c.h.b16 %v5503
        %v5761 = vunpack.c.l.b16 %v5504
        %v5762 = vunpack.c.h.b16 %v5504
        %v5763 = vunpack.c.l.b16 %v5505
        %v5764 = vunpack.c.h.b16 %v5505
        %v5765 = vunpack.c.l.b16 %v5506
        %v5766 = vunpack.c.h.b16 %v5506
        %v5767 = vunpack.c.l.b16 %v5507
        %v5768 = vunpack.c.h.b16 %v5507
        %v5769 = vunpack.c.l.b16 %v5508
        %v5770 = vunpack.c.h.b16 %v5508
        %v5771 = vunpack.c.l.b16 %v5509
        %v5772 = vunpack.c.h.b16 %v5509
        %v5773 = vunpack.c.l.b16 %v5510
        %v5774 = vunpack.c.h.b16 %v5510
        %v5775 = vunpack.c.l.b16 %v5511
        %v5776 = vunpack.c.h.b16 %v5511
        %v5777 = vunpack.c.l.b16 %v5512
        %v5778 = vunpack.c.h.b16 %v5512
        %v5779 = vunpack.c.l.b16 %v5513
        %v5780 = vunpack.c.h.b16 %v5513
        %v5781 = vunpack.c.l.b16 %v5514
        %v5782 = vunpack.c.h.b16 %v5514
        %v5783 = vunpack.c.l.b16 %v5515
        %v5784 = vunpack.c.h.b16 %v5515
        %v5785 = vunpack.c.l.b16 %v5516
        %v5786 = vunpack.c.h.b16 %v5516
        %v5787 = vunpack.c.l.b16 %v5517
        %v5788 = vunpack.c.h.b16 %v5517
        %v5789 = vunpack.c.l.b16 %v5518
        %v5790 = vunpack.c.h.b16 %v5518
        %v5791 = vunpack.c.l.b16 %v5519
        %v5792 = vunpack.c.h.b16 %v5519
        %v5793 = vunpack.c.l.b16 %v5520
        %v5794 = vunpack.c.h.b16 %v5520
        %v5795 = vunpack.c.l.b16 %v5521
        %v5796 = vunpack.c.h.b16 %v5521
        %v5797 = vunpack.c.l.b16 %v5522
        %v5798 = vunpack.c.h.b16 %v5522
        %v5799 = vunpack.c.l.b16 %v5523
        %v5800 = vunpack.c.h.b16 %v5523
        %v5801 = vunpack.c.l.b16 %v5524
        %v5802 = vunpack.c.h.b16 %v5524
        %v5803 = vunpack.c.l.b16 %v5525
        %v5804 = vunpack.c.h.b16 %v5525
        %v5805 = vunpack.c.l.b16 %v5526
        %v5806 = vunpack.c.h.b16 %v5526
        %v5807 = vunpack.c.l.b16 %v5527
        %v5808 = vunpack.c.h.b16 %v5527
        %v5809 = vunpack.c.l.b16 %v5528
        %v5810 = vunpack.c.h.b16 %v5528
        %v5811 = vunpack.c.l.b16 %v5529
        %v5812 = vunpack.c.h.b16 %v5529
        %v5813 = vunpack.c.l.b16 %v5530
        %v5814 = vunpack.c.h.b16 %v5530
        %v5815 = vunpack.c.l.b16 %v5531
        %v5816 = vunpack.c.h.b16 %v5531
        %v5817 = vunpack.c.l.b16 %v5532
        %v5818 = vunpack.c.h.b16 %v5532
        %v5819 = vunpack.c.l.b16 %v5533
        %v5820 = vunpack.c.h.b16 %v5533
        %v5821 = vunpack.c.l.b16 %v5534
        %v5822 = vunpack.c.h.b16 %v5534
        %v5823 = vunpack.c.l.b16 %v5535
        %v5824 = vunpack.c.h.b16 %v5535
        %v5825 = vunpack.c.l.b16 %v5536
        %v5826 = vunpack.c.h.b16 %v5536
        %v5827 = vunpack.c.l.b16 %v5537
        %v5828 = vunpack.c.h.b16 %v5537
        %v5829 = vunpack.c.l.b16 %v5538
        %v5830 = vunpack.c.h.b16 %v5538
        %v5831 = vunpack.c.l.b16 %v5539
        %v5832 = vunpack.c.h.b16 %v5539
        %v5833 = vunpack.c.l.b16 %v5540
        %v5834 = vunpack.c.h.b16 %v5540
        %v5835 = vunpack.c.l.b16 %v5541
        %v5836 = vunpack.c.h.b16 %v5541
        %v5837 = vunpack.c.l.b16 %v5542
        %v5838 = vunpack.c.h.b16 %v5542
        %v5839 = vunpack.c.l.b16 %v5543
        %v5840 = vunpack.c.h.b16 %v5543
        %v5841 = vunpack.c.l.b16 %v5544
        %v5842 = vunpack.c.h.b16 %v5544
        %v5843 = vunpack.c.l.b16 %v5545
        %v5844 = vunpack.c.h.b16 %v5545
        %v5845 = vunpack.c.l.b16 %v5546
        %v5846 = vunpack.c.h.b16 %v5546
        %v5847 = vpack.c.b16 %v5657, %v5655
        %v5848 = vpack.c.b16 %v5658, %v5656
        %v5849 = vpack.c.b16 %v5661, %v5659
        %v5850 = vpack.c.b16 %v5662, %v5660
        %v5851 = vpack.c.b16 %v5665, %v5663
        %v5852 = vpack.c.b16 %v5666, %v5664
        %v5853 = vpack.c.b16 %v5669, %v5667
        %v5854 = vpack.c.b16 %v5670, %v5668
        %v5855 = vpack.c.b16 %v5673, %v5671
        %v5856 = vpack.c.b16 %v5674, %v5672
        %v5857 = vpack.c.b16 %v5677, %v5675
        %v5858 = vpack.c.b16 %v5678, %v5676
        %v5859 = vpack.c.b16 %v5681, %v5679
        %v5860 = vpack.c.b16 %v5682, %v5680
        %v5861 = vpack.c.b16 %v5685, %v5683
        %v5862 = vpack.c.b16 %v5686, %v5684
        %v5863 = vpack.c.b16 %v5689, %v5687
        %v5864 = vpack.c.b16 %v5690, %v5688
        %v5865 = vpack.c.b16 %v5693, %v5691
        %v5866 = vpack.c.b16 %v5694, %v5692
        %v5867 = vpack.c.b16 %v5697, %v5695
        %v5868 = vpack.c.b16 %v5698, %v5696
        %v5869 = vpack.c.b16 %v5701, %v5699
        %v5870 = vpack.c.b16 %v5702, %v5700
        %v5871 = vpack.c.b16 %v5705, %v5703
        %v5872 = vpack.c.b16 %v5706, %v5704
        %v5873 = vpack.c.b16 %v5709, %v5707
        %v5874 = vpack.c.b16 %v5710, %v5708
        %v5875 = vpack.c.b16 %v5713, %v5711
        %v5876 = vpack.c.b16 %v5714, %v5712
        %v5877 = vpack.c.b16 %v5717, %v5715
        %v5878 = vpack.c.b16 %v5718, %v5716
        %v5879 = vpack.c.b16 %v5721, %v5719
        %v5880 = vpack.c.b16 %v5722, %v5720
        %v5881 = vpack.c.b16 %v5725, %v5723
        %v5882 = vpack.c.b16 %v5726, %v5724
        %v5883 = vpack.c.b16 %v5729, %v5727
        %v5884 = vpack.c.b16 %v5730, %v5728
        %v5885 = vpack.c.b16 %v5733, %v5731
        %v5886 = vpack.c.b16 %v5734, %v5732
        %v5887 = vpack.c.b16 %v5737, %v5735
        %v5888 = vpack.c.b16 %v5738, %v5736
        %v5889 = vpack.c.b16 %v5741, %v5739
        %v5890 = vpack.c.b16 %v5742, %v5740
        %v5891 = vpack.c.b16 %v5745, %v5743
        %v5892 = vpack.c.b16 %v5746, %v5744
        %v5893 = vpack.c.b16 %v5749, %v5747
        %v5894 = vpack.c.b16 %v5750, %v5748
        %v5895 = vpack.c.b16 %v5753, %v5751
        %v5896 = vpack.c.b16 %v5754, %v5752
        %v5897 = vpack.c.b16 %v5757, %v5755
        %v5898 = vpack.c.b16 %v5758, %v5756
        %v5899 = vpack.c.b16 %v5761, %v5759
        %v5900 = vpack.c.b16 %v5762, %v5760
        %v5901 = vpack.c.b16 %v5765, %v5763
        %v5902 = vpack.c.b16 %v5766, %v5764
        %v5903 = vpack.c.b16 %v5769, %v5767
        %v5904 = vpack.c.b16 %v5770, %v5768
        %v5905 = vpack.c.b16 %v5773, %v5771
        %v5906 = vpack.c.b16 %v5774, %v5772
        %v5907 = vpack.c.b16 %v5777, %v5775
        %v5908 = vpack.c.b16 %v5778, %v5776
        %v5909 = vpack.c.b16 %v5781, %v5779
        %v5910 = vpack.c.b16 %v5782, %v5780
        %v5911 = vpack.c.b16 %v5785, %v5783
        %v5912 = vpack.c.b16 %v5786, %v5784
        %v5913 = vpack.c.b16 %v5789, %v5787
        %v5914 = vpack.c.b16 %v5790, %v5788
        %v5915 = vpack.c.b16 %v5793, %v5791
        %v5916 = vpack.c.b16 %v5794, %v5792
        %v5917 = vpack.c.b16 %v5797, %v5795
        %v5918 = vpack.c.b16 %v5798, %v5796
        %v5919 = vpack.c.b16 %v5801, %v5799
        %v5920 = vpack.c.b16 %v5802, %v5800
        %v5921 = vpack.c.b16 %v5805, %v5803
        %v5922 = vpack.c.b16 %v5806, %v5804
        %v5923 = vpack.c.b16 %v5809, %v5807
        %v5924 = vpack.c.b16 %v5810, %v5808
        %v5925 = vpack.c.b16 %v5813, %v5811
        %v5926 = vpack.c.b16 %v5814, %v5812
        %v5927 = vpack.c.b16 %v5817, %v5815
        %v5928 = vpack.c.b16 %v5818, %v5816
        %v5929 = vpack.c.b16 %v5821, %v5819
        %v5930 = vpack.c.b16 %v5822, %v5820
        %v5931 = vpack.c.b16 %v5825, %v5823
        %v5932 = vpack.c.b16 %v5826, %v5824
        %v5933 = vpack.c.b16 %v5829, %v5827
        %v5934 = vpack.c.b16 %v5830, %v5828
        %v5935 = vpack.c.b16 %v5833, %v5831
        %v5936 = vpack.c.b16 %v5834, %v5832
        %v5937 = vpack.c.b16 %v5837, %v5835
        %v5938 = vpack.c.b16 %v5838, %v5836
        %v5939 = vpack.c.b16 %v5841, %v5839
        %v5940 = vpack.c.b16 %v5842, %v5840
        %v5941 = vpack.c.b16 %v5845, %v5843
        %v5942 = vpack.c.b16 %v5846, %v5844
        %6039 = vmatprep.subr.bf16.mxu0 %v5862
        %6040 = vmatpush1.bf16.msra.mxu0 %v5861
        %6041 = vmatprep.subr.bf16.mxu0 %v5860
        %6042 = vmatpush1.bf16.msra.mxu0 %v5859
        %6043 = vmatprep.subr.bf16.mxu0 %v5858
        %6044 = vmatpush1.bf16.msra.mxu0 %v5857
        %6045 = vmatprep.subr.bf16.mxu0 %v5856
        %6046 = vmatpush1.bf16.msra.mxu0 %v5855
        %6047 = vmatprep.subr.bf16.mxu0 %v5854
        %6048 = vmatpush1.bf16.msra.mxu0 %v5853
        %6049 = vmatprep.subr.bf16.mxu0 %v5852
        %6050 = vmatpush1.bf16.msra.mxu0 %v5851
        %6051 = vmatprep.subr.bf16.mxu0 %v5850
        %6052 = vmatpush1.bf16.msra.mxu0 %v5849
        %6053 = vmatprep.subr.bf16.mxu0 %v5848
        %6054 = vmatpush1.bf16.msra.mxu0 %v5847
        %6055 = vmatprep.subr.bf16.mxu0 %v5878
        %6056 = vmatpush2.bf16.msra.mxu0 %v5877
        %6057 = vmatprep.subr.bf16.mxu0 %v5876
        %6058 = vmatpush2.bf16.msra.mxu0 %v5875
        %6059 = vmatprep.subr.bf16.mxu0 %v5874
        %6060 = vmatpush2.bf16.msra.mxu0 %v5873
        %6061 = vmatprep.subr.bf16.mxu0 %v5872
        %6062 = vmatpush2.bf16.msra.mxu0 %v5871
        %6063 = vmatprep.subr.bf16.mxu0 %v5870
        %6064 = vmatpush2.bf16.msra.mxu0 %v5869
        %6065 = vmatprep.subr.bf16.mxu0 %v5868
        %6066 = vmatpush2.bf16.msra.mxu0 %v5867
        %6067 = vmatprep.subr.bf16.mxu0 %v5866
        %6068 = vmatpush2.bf16.msra.mxu0 %v5865
        %6069 = vmatprep.subr.bf16.mxu0 %v5864
        %6070 = vmatpush2.bf16.msra.mxu0 %v5863
        %6071 = vmatprep.mubr.bf16.mxu0 %v5548
        %6072 = vmatmul.mubr.bf16.gmra.mxu0 %v5547
        %v6073 = vpop.f32.mrf.mxu0
        %v6074 = vadd.f32 0.0, %v6073
        %v6075 = vpop.f32.mrf.mxu0
        %v6076 = vadd.f32 0.0, %v6075
        %v6077 = vpop.f32.mrf.mxu0
        %v6078 = vpop.f32.mrf.mxu0
        %6079 = vdwg.mxu0
        %6080 = vmatprep.subr.bf16.mxu0 %v5894
        %6081 = vmatpush1.bf16.msra.mxu0 %v5893
        %6082 = vmatprep.subr.bf16.mxu0 %v5892
        %6083 = vmatpush1.bf16.msra.mxu0 %v5891
        %6084 = vmatprep.subr.bf16.mxu0 %v5890
        %6085 = vmatpush1.bf16.msra.mxu0 %v5889
        %6086 = vmatprep.subr.bf16.mxu0 %v5888
        %6087 = vmatpush1.bf16.msra.mxu0 %v5887
        %6088 = vmatprep.subr.bf16.mxu0 %v5886
        %6089 = vmatpush1.bf16.msra.mxu0 %v5885
        %6090 = vmatprep.subr.bf16.mxu0 %v5884
        %6091 = vmatpush1.bf16.msra.mxu0 %v5883
        %6092 = vmatprep.subr.bf16.mxu0 %v5882
        %6093 = vmatpush1.bf16.msra.mxu0 %v5881
        %6094 = vmatprep.subr.bf16.mxu0 %v5880
        %6095 = vmatpush1.bf16.msra.mxu0 %v5879
        %6096 = vmatprep.subr.bf16.mxu0 %v5910
        %6097 = vmatpush2.bf16.msra.mxu0 %v5909
        %6098 = vmatprep.subr.bf16.mxu0 %v5908
        %6099 = vmatpush2.bf16.msra.mxu0 %v5907
        %6100 = vmatprep.subr.bf16.mxu0 %v5906
        %6101 = vmatpush2.bf16.msra.mxu0 %v5905
        %6102 = vmatprep.subr.bf16.mxu0 %v5904
        %6103 = vmatpush2.bf16.msra.mxu0 %v5903
        %6104 = vmatprep.subr.bf16.mxu0 %v5902
        %6105 = vmatpush2.bf16.msra.mxu0 %v5901
        %6106 = vmatprep.subr.bf16.mxu0 %v5900
        %6107 = vmatpush2.bf16.msra.mxu0 %v5899
        %6108 = vmatprep.subr.bf16.mxu0 %v5898
        %6109 = vmatpush2.bf16.msra.mxu0 %v5897
        %6110 = vmatprep.subr.bf16.mxu0 %v5896
        %6111 = vmatpush2.bf16.msra.mxu0 %v5895
        %6112 = vmatprep.mubr.bf16.mxu0 %v5550
        %6113 = vmatmul.mubr.bf16.gmra.mxu0 %v5549
        %v6114 = vpop.f32.mrf.mxu0
        %v6115 = vadd.f32 %v6074, %v6114
        %v6116 = vpop.f32.mrf.mxu0
        %v6117 = vadd.f32 %v6076, %v6116
        %v6118 = vpop.f32.mrf.mxu0
        %v6119 = vpop.f32.mrf.mxu0
        %6120 = vdwg.mxu0
        %6121 = vmatprep.subr.bf16.mxu0 %v5926
        %6122 = vmatpush1.bf16.msra.mxu0 %v5925
        %6123 = vmatprep.subr.bf16.mxu0 %v5924
        %6124 = vmatpush1.bf16.msra.mxu0 %v5923
        %6125 = vmatprep.subr.bf16.mxu0 %v5922
        %6126 = vmatpush1.bf16.msra.mxu0 %v5921
        %6127 = vmatprep.subr.bf16.mxu0 %v5920
        %6128 = vmatpush1.bf16.msra.mxu0 %v5919
        %6129 = vmatprep.subr.bf16.mxu0 %v5918
        %6130 = vmatpush1.bf16.msra.mxu0 %v5917
        %6131 = vmatprep.subr.bf16.mxu0 %v5916
        %6132 = vmatpush1.bf16.msra.mxu0 %v5915
        %6133 = vmatprep.subr.bf16.mxu0 %v5914
        %6134 = vmatpush1.bf16.msra.mxu0 %v5913
        %6135 = vmatprep.subr.bf16.mxu0 %v5912
        %6136 = vmatpush1.bf16.msra.mxu0 %v5911
        %6137 = vmatprep.subr.bf16.mxu0 %v5942
        %6138 = vmatpush2.bf16.msra.mxu0 %v5941
        %6139 = vmatprep.subr.bf16.mxu0 %v5940
        %6140 = vmatpush2.bf16.msra.mxu0 %v5939
        %6141 = vmatprep.subr.bf16.mxu0 %v5938
        %6142 = vmatpush2.bf16.msra.mxu0 %v5937
        %6143 = vmatprep.subr.bf16.mxu0 %v5936
        %6144 = vmatpush2.bf16.msra.mxu0 %v5935
        %6145 = vmatprep.subr.bf16.mxu0 %v5934
        %6146 = vmatpush2.bf16.msra.mxu0 %v5933
        %6147 = vmatprep.subr.bf16.mxu0 %v5932
        %6148 = vmatpush2.bf16.msra.mxu0 %v5931
        %6149 = vmatprep.subr.bf16.mxu0 %v5930
        %6150 = vmatpush2.bf16.msra.mxu0 %v5929
        %6151 = vmatprep.subr.bf16.mxu0 %v5928
        %6152 = vmatpush2.bf16.msra.mxu0 %v5927
        %6153 = vmatprep.mubr.bf16.mxu0 %v5552
        %6154 = vmatmul.mubr.bf16.gmra.mxu0 %v5551
        %v6155 = vpop.f32.mrf.mxu0
        %v6156 = vadd.f32 %v6115, %v6155
        %v6157 = vpop.f32.mrf.mxu0
        %v6158 = vadd.f32 %v6117, %v6157
        %v6159 = vpop.f32.mrf.mxu0
        %v6160 = vpop.f32.mrf.mxu0
        %6161 = vdwg.mxu0
        %v6162 = vadd.f32 %v5448, %v6156
        %v6163 = vadd.f32 %v5449, %v6158
        %s6164 = scalar_lea.vmem [#allocation8], 3072
        %v6165 = vld [vmem:[%s6164] sm:$0xff]
        %v6166 = vld [vmem:[%s6164 + $0x8] sm:$0xff]
        %v6167 = vld [vmem:[%s6164 + $0x10] sm:$0xff]
        %v6168 = vld [vmem:[%s6164 + $0x18] sm:$0xff]
        %v6169 = vld [vmem:[%s6164 + $0x20] sm:$0xff]
        %v6170 = vld [vmem:[%s6164 + $0x28] sm:$0xff]
        %v6171 = vld [vmem:[%s6164 + $0x30] sm:$0xff]
        %v6172 = vld [vmem:[%s6164 + $0x38] sm:$0xff]
        %v6173 = vld [vmem:[%s6164 + $0x40] sm:$0xff]
        %v6174 = vld [vmem:[%s6164 + $0x48] sm:$0xff]
        %v6175 = vld [vmem:[%s6164 + $0x50] sm:$0xff]
        %v6176 = vld [vmem:[%s6164 + $0x58] sm:$0xff]
        %v6177 = vld [vmem:[%s6164 + $0x60] sm:$0xff]
        %v6178 = vld [vmem:[%s6164 + $0x68] sm:$0xff]
        %v6179 = vld [vmem:[%s6164 + $0x70] sm:$0xff]
        %v6180 = vld [vmem:[%s6164 + $0x78] sm:$0xff]
        %v6181 = vld [vmem:[%s6164 + $0x80] sm:$0xff]
        %v6182 = vld [vmem:[%s6164 + $0x88] sm:$0xff]
        %v6183 = vld [vmem:[%s6164 + $0x90] sm:$0xff]
        %v6184 = vld [vmem:[%s6164 + $0x98] sm:$0xff]
        %v6185 = vld [vmem:[%s6164 + $0xa0] sm:$0xff]
        %v6186 = vld [vmem:[%s6164 + $0xa8] sm:$0xff]
        %v6187 = vld [vmem:[%s6164 + $0xb0] sm:$0xff]
        %v6188 = vld [vmem:[%s6164 + $0xb8] sm:$0xff]
        %v6189 = vld [vmem:[%s6164 + $0xc0] sm:$0xff]
        %v6190 = vld [vmem:[%s6164 + $0xc8] sm:$0xff]
        %v6191 = vld [vmem:[%s6164 + $0xd0] sm:$0xff]
        %v6192 = vld [vmem:[%s6164 + $0xd8] sm:$0xff]
        %v6193 = vld [vmem:[%s6164 + $0xe0] sm:$0xff]
        %v6194 = vld [vmem:[%s6164 + $0xe8] sm:$0xff]
        %v6195 = vld [vmem:[%s6164 + $0xf0] sm:$0xff]
        %v6196 = vld [vmem:[%s6164 + $0xf8] sm:$0xff]
        %v6197 = vld [vmem:[%s6164 + $0x100] sm:$0xff]
        %v6198 = vld [vmem:[%s6164 + $0x108] sm:$0xff]
        %v6199 = vld [vmem:[%s6164 + $0x110] sm:$0xff]
        %v6200 = vld [vmem:[%s6164 + $0x118] sm:$0xff]
        %v6201 = vld [vmem:[%s6164 + $0x120] sm:$0xff]
        %v6202 = vld [vmem:[%s6164 + $0x128] sm:$0xff]
        %v6203 = vld [vmem:[%s6164 + $0x130] sm:$0xff]
        %v6204 = vld [vmem:[%s6164 + $0x138] sm:$0xff]
        %v6205 = vld [vmem:[%s6164 + $0x140] sm:$0xff]
        %v6206 = vld [vmem:[%s6164 + $0x148] sm:$0xff]
        %v6207 = vld [vmem:[%s6164 + $0x150] sm:$0xff]
        %v6208 = vld [vmem:[%s6164 + $0x158] sm:$0xff]
        %v6209 = vld [vmem:[%s6164 + $0x160] sm:$0xff]
        %v6210 = vld [vmem:[%s6164 + $0x168] sm:$0xff]
        %v6211 = vld [vmem:[%s6164 + $0x170] sm:$0xff]
        %v6212 = vld [vmem:[%s6164 + $0x178] sm:$0xff]
        %v6213 = vld [vmem:[%s6164 + $0x180] sm:$0xff]
        %v6214 = vld [vmem:[%s6164 + $0x188] sm:$0xff]
        %v6215 = vld [vmem:[%s6164 + $0x190] sm:$0xff]
        %v6216 = vld [vmem:[%s6164 + $0x198] sm:$0xff]
        %v6217 = vld [vmem:[%s6164 + $0x1a0] sm:$0xff]
        %v6218 = vld [vmem:[%s6164 + $0x1a8] sm:$0xff]
        %v6219 = vld [vmem:[%s6164 + $0x1b0] sm:$0xff]
        %v6220 = vld [vmem:[%s6164 + $0x1b8] sm:$0xff]
        %v6221 = vld [vmem:[%s6164 + $0x1c0] sm:$0xff]
        %v6222 = vld [vmem:[%s6164 + $0x1c8] sm:$0xff]
        %v6223 = vld [vmem:[%s6164 + $0x1d0] sm:$0xff]
        %v6224 = vld [vmem:[%s6164 + $0x1d8] sm:$0xff]
        %v6225 = vld [vmem:[%s6164 + $0x1e0] sm:$0xff]
        %v6226 = vld [vmem:[%s6164 + $0x1e8] sm:$0xff]
        %v6227 = vld [vmem:[%s6164 + $0x1f0] sm:$0xff]
        %v6228 = vld [vmem:[%s6164 + $0x1f8] sm:$0xff]
        %v6229 = vld [vmem:[%s6164 + $0x200] sm:$0xff]
        %v6230 = vld [vmem:[%s6164 + $0x208] sm:$0xff]
        %v6231 = vld [vmem:[%s6164 + $0x210] sm:$0xff]
        %v6232 = vld [vmem:[%s6164 + $0x218] sm:$0xff]
        %v6233 = vld [vmem:[%s6164 + $0x220] sm:$0xff]
        %v6234 = vld [vmem:[%s6164 + $0x228] sm:$0xff]
        %v6235 = vld [vmem:[%s6164 + $0x230] sm:$0xff]
        %v6236 = vld [vmem:[%s6164 + $0x238] sm:$0xff]
        %v6237 = vld [vmem:[%s6164 + $0x240] sm:$0xff]
        %v6238 = vld [vmem:[%s6164 + $0x248] sm:$0xff]
        %v6239 = vld [vmem:[%s6164 + $0x250] sm:$0xff]
        %v6240 = vld [vmem:[%s6164 + $0x258] sm:$0xff]
        %v6241 = vld [vmem:[%s6164 + $0x260] sm:$0xff]
        %v6242 = vld [vmem:[%s6164 + $0x268] sm:$0xff]
        %v6243 = vld [vmem:[%s6164 + $0x270] sm:$0xff]
        %v6244 = vld [vmem:[%s6164 + $0x278] sm:$0xff]
        %v6245 = vld [vmem:[%s6164 + $0x280] sm:$0xff]
        %v6246 = vld [vmem:[%s6164 + $0x288] sm:$0xff]
        %v6247 = vld [vmem:[%s6164 + $0x290] sm:$0xff]
        %v6248 = vld [vmem:[%s6164 + $0x298] sm:$0xff]
        %v6249 = vld [vmem:[%s6164 + $0x2a0] sm:$0xff]
        %v6250 = vld [vmem:[%s6164 + $0x2a8] sm:$0xff]
        %v6251 = vld [vmem:[%s6164 + $0x2b0] sm:$0xff]
        %v6252 = vld [vmem:[%s6164 + $0x2b8] sm:$0xff]
        %v6253 = vld [vmem:[%s6164 + $0x2c0] sm:$0xff]
        %v6254 = vld [vmem:[%s6164 + $0x2c8] sm:$0xff]
        %v6255 = vld [vmem:[%s6164 + $0x2d0] sm:$0xff]
        %v6256 = vld [vmem:[%s6164 + $0x2d8] sm:$0xff]
        %v6257 = vld [vmem:[%s6164 + $0x2e0] sm:$0xff]
        %v6258 = vld [vmem:[%s6164 + $0x2e8] sm:$0xff]
        %v6259 = vld [vmem:[%s6164 + $0x2f0] sm:$0xff]
        %v6260 = vld [vmem:[%s6164 + $0x2f8] sm:$0xff]
        %v6261 = vrot.slane %v858, 4
        %v6262 = vrot.slane %v1350, 4
        %v6263 = vrot.slane %v1842, 4
        %v6264 = vrot.slane %v2334, 4
        %v6265 = vrot.slane %v2826, 4
        %v6266 = vrot.slane %v3318, 4
        %v6369 = vunpack.c.l.b16 %v6165
        %v6370 = vunpack.c.h.b16 %v6165
        %v6371 = vunpack.c.l.b16 %v6166
        %v6372 = vunpack.c.h.b16 %v6166
        %v6373 = vunpack.c.l.b16 %v6167
        %v6374 = vunpack.c.h.b16 %v6167
        %v6375 = vunpack.c.l.b16 %v6168
        %v6376 = vunpack.c.h.b16 %v6168
        %v6377 = vunpack.c.l.b16 %v6169
        %v6378 = vunpack.c.h.b16 %v6169
        %v6379 = vunpack.c.l.b16 %v6170
        %v6380 = vunpack.c.h.b16 %v6170
        %v6381 = vunpack.c.l.b16 %v6171
        %v6382 = vunpack.c.h.b16 %v6171
        %v6383 = vunpack.c.l.b16 %v6172
        %v6384 = vunpack.c.h.b16 %v6172
        %v6385 = vunpack.c.l.b16 %v6173
        %v6386 = vunpack.c.h.b16 %v6173
        %v6387 = vunpack.c.l.b16 %v6174
        %v6388 = vunpack.c.h.b16 %v6174
        %v6389 = vunpack.c.l.b16 %v6175
        %v6390 = vunpack.c.h.b16 %v6175
        %v6391 = vunpack.c.l.b16 %v6176
        %v6392 = vunpack.c.h.b16 %v6176
        %v6393 = vunpack.c.l.b16 %v6177
        %v6394 = vunpack.c.h.b16 %v6177
        %v6395 = vunpack.c.l.b16 %v6178
        %v6396 = vunpack.c.h.b16 %v6178
        %v6397 = vunpack.c.l.b16 %v6179
        %v6398 = vunpack.c.h.b16 %v6179
        %v6399 = vunpack.c.l.b16 %v6180
        %v6400 = vunpack.c.h.b16 %v6180
        %v6401 = vunpack.c.l.b16 %v6181
        %v6402 = vunpack.c.h.b16 %v6181
        %v6403 = vunpack.c.l.b16 %v6182
        %v6404 = vunpack.c.h.b16 %v6182
        %v6405 = vunpack.c.l.b16 %v6183
        %v6406 = vunpack.c.h.b16 %v6183
        %v6407 = vunpack.c.l.b16 %v6184
        %v6408 = vunpack.c.h.b16 %v6184
        %v6409 = vunpack.c.l.b16 %v6185
        %v6410 = vunpack.c.h.b16 %v6185
        %v6411 = vunpack.c.l.b16 %v6186
        %v6412 = vunpack.c.h.b16 %v6186
        %v6413 = vunpack.c.l.b16 %v6187
        %v6414 = vunpack.c.h.b16 %v6187
        %v6415 = vunpack.c.l.b16 %v6188
        %v6416 = vunpack.c.h.b16 %v6188
        %v6417 = vunpack.c.l.b16 %v6189
        %v6418 = vunpack.c.h.b16 %v6189
        %v6419 = vunpack.c.l.b16 %v6190
        %v6420 = vunpack.c.h.b16 %v6190
        %v6421 = vunpack.c.l.b16 %v6191
        %v6422 = vunpack.c.h.b16 %v6191
        %v6423 = vunpack.c.l.b16 %v6192
        %v6424 = vunpack.c.h.b16 %v6192
        %v6425 = vunpack.c.l.b16 %v6193
        %v6426 = vunpack.c.h.b16 %v6193
        %v6427 = vunpack.c.l.b16 %v6194
        %v6428 = vunpack.c.h.b16 %v6194
        %v6429 = vunpack.c.l.b16 %v6195
        %v6430 = vunpack.c.h.b16 %v6195
        %v6431 = vunpack.c.l.b16 %v6196
        %v6432 = vunpack.c.h.b16 %v6196
        %v6433 = vunpack.c.l.b16 %v6197
        %v6434 = vunpack.c.h.b16 %v6197
        %v6435 = vunpack.c.l.b16 %v6198
        %v6436 = vunpack.c.h.b16 %v6198
        %v6437 = vunpack.c.l.b16 %v6199
        %v6438 = vunpack.c.h.b16 %v6199
        %v6439 = vunpack.c.l.b16 %v6200
        %v6440 = vunpack.c.h.b16 %v6200
        %v6441 = vunpack.c.l.b16 %v6201
        %v6442 = vunpack.c.h.b16 %v6201
        %v6443 = vunpack.c.l.b16 %v6202
        %v6444 = vunpack.c.h.b16 %v6202
        %v6445 = vunpack.c.l.b16 %v6203
        %v6446 = vunpack.c.h.b16 %v6203
        %v6447 = vunpack.c.l.b16 %v6204
        %v6448 = vunpack.c.h.b16 %v6204
        %v6449 = vunpack.c.l.b16 %v6205
        %v6450 = vunpack.c.h.b16 %v6205
        %v6451 = vunpack.c.l.b16 %v6206
        %v6452 = vunpack.c.h.b16 %v6206
        %v6453 = vunpack.c.l.b16 %v6207
        %v6454 = vunpack.c.h.b16 %v6207
        %v6455 = vunpack.c.l.b16 %v6208
        %v6456 = vunpack.c.h.b16 %v6208
        %v6457 = vunpack.c.l.b16 %v6209
        %v6458 = vunpack.c.h.b16 %v6209
        %v6459 = vunpack.c.l.b16 %v6210
        %v6460 = vunpack.c.h.b16 %v6210
        %v6461 = vunpack.c.l.b16 %v6211
        %v6462 = vunpack.c.h.b16 %v6211
        %v6463 = vunpack.c.l.b16 %v6212
        %v6464 = vunpack.c.h.b16 %v6212
        %v6465 = vunpack.c.l.b16 %v6213
        %v6466 = vunpack.c.h.b16 %v6213
        %v6467 = vunpack.c.l.b16 %v6214
        %v6468 = vunpack.c.h.b16 %v6214
        %v6469 = vunpack.c.l.b16 %v6215
        %v6470 = vunpack.c.h.b16 %v6215
        %v6471 = vunpack.c.l.b16 %v6216
        %v6472 = vunpack.c.h.b16 %v6216
        %v6473 = vunpack.c.l.b16 %v6217
        %v6474 = vunpack.c.h.b16 %v6217
        %v6475 = vunpack.c.l.b16 %v6218
        %v6476 = vunpack.c.h.b16 %v6218
        %v6477 = vunpack.c.l.b16 %v6219
        %v6478 = vunpack.c.h.b16 %v6219
        %v6479 = vunpack.c.l.b16 %v6220
        %v6480 = vunpack.c.h.b16 %v6220
        %v6481 = vunpack.c.l.b16 %v6221
        %v6482 = vunpack.c.h.b16 %v6221
        %v6483 = vunpack.c.l.b16 %v6222
        %v6484 = vunpack.c.h.b16 %v6222
        %v6485 = vunpack.c.l.b16 %v6223
        %v6486 = vunpack.c.h.b16 %v6223
        %v6487 = vunpack.c.l.b16 %v6224
        %v6488 = vunpack.c.h.b16 %v6224
        %v6489 = vunpack.c.l.b16 %v6225
        %v6490 = vunpack.c.h.b16 %v6225
        %v6491 = vunpack.c.l.b16 %v6226
        %v6492 = vunpack.c.h.b16 %v6226
        %v6493 = vunpack.c.l.b16 %v6227
        %v6494 = vunpack.c.h.b16 %v6227
        %v6495 = vunpack.c.l.b16 %v6228
        %v6496 = vunpack.c.h.b16 %v6228
        %v6497 = vunpack.c.l.b16 %v6229
        %v6498 = vunpack.c.h.b16 %v6229
        %v6499 = vunpack.c.l.b16 %v6230
        %v6500 = vunpack.c.h.b16 %v6230
        %v6501 = vunpack.c.l.b16 %v6231
        %v6502 = vunpack.c.h.b16 %v6231
        %v6503 = vunpack.c.l.b16 %v6232
        %v6504 = vunpack.c.h.b16 %v6232
        %v6505 = vunpack.c.l.b16 %v6233
        %v6506 = vunpack.c.h.b16 %v6233
        %v6507 = vunpack.c.l.b16 %v6234
        %v6508 = vunpack.c.h.b16 %v6234
        %v6509 = vunpack.c.l.b16 %v6235
        %v6510 = vunpack.c.h.b16 %v6235
        %v6511 = vunpack.c.l.b16 %v6236
        %v6512 = vunpack.c.h.b16 %v6236
        %v6513 = vunpack.c.l.b16 %v6237
        %v6514 = vunpack.c.h.b16 %v6237
        %v6515 = vunpack.c.l.b16 %v6238
        %v6516 = vunpack.c.h.b16 %v6238
        %v6517 = vunpack.c.l.b16 %v6239
        %v6518 = vunpack.c.h.b16 %v6239
        %v6519 = vunpack.c.l.b16 %v6240
        %v6520 = vunpack.c.h.b16 %v6240
        %v6521 = vunpack.c.l.b16 %v6241
        %v6522 = vunpack.c.h.b16 %v6241
        %v6523 = vunpack.c.l.b16 %v6242
        %v6524 = vunpack.c.h.b16 %v6242
        %v6525 = vunpack.c.l.b16 %v6243
        %v6526 = vunpack.c.h.b16 %v6243
        %v6527 = vunpack.c.l.b16 %v6244
        %v6528 = vunpack.c.h.b16 %v6244
        %v6529 = vunpack.c.l.b16 %v6245
        %v6530 = vunpack.c.h.b16 %v6245
        %v6531 = vunpack.c.l.b16 %v6246
        %v6532 = vunpack.c.h.b16 %v6246
        %v6533 = vunpack.c.l.b16 %v6247
        %v6534 = vunpack.c.h.b16 %v6247
        %v6535 = vunpack.c.l.b16 %v6248
        %v6536 = vunpack.c.h.b16 %v6248
        %v6537 = vunpack.c.l.b16 %v6249
        %v6538 = vunpack.c.h.b16 %v6249
        %v6539 = vunpack.c.l.b16 %v6250
        %v6540 = vunpack.c.h.b16 %v6250
        %v6541 = vunpack.c.l.b16 %v6251
        %v6542 = vunpack.c.h.b16 %v6251
        %v6543 = vunpack.c.l.b16 %v6252
        %v6544 = vunpack.c.h.b16 %v6252
        %v6545 = vunpack.c.l.b16 %v6253
        %v6546 = vunpack.c.h.b16 %v6253
        %v6547 = vunpack.c.l.b16 %v6254
        %v6548 = vunpack.c.h.b16 %v6254
        %v6549 = vunpack.c.l.b16 %v6255
        %v6550 = vunpack.c.h.b16 %v6255
        %v6551 = vunpack.c.l.b16 %v6256
        %v6552 = vunpack.c.h.b16 %v6256
        %v6553 = vunpack.c.l.b16 %v6257
        %v6554 = vunpack.c.h.b16 %v6257
        %v6555 = vunpack.c.l.b16 %v6258
        %v6556 = vunpack.c.h.b16 %v6258
        %v6557 = vunpack.c.l.b16 %v6259
        %v6558 = vunpack.c.h.b16 %v6259
        %v6559 = vunpack.c.l.b16 %v6260
        %v6560 = vunpack.c.h.b16 %v6260
        %v6561 = vpack.c.b16 %v6371, %v6369
        %v6562 = vpack.c.b16 %v6372, %v6370
        %v6563 = vpack.c.b16 %v6375, %v6373
        %v6564 = vpack.c.b16 %v6376, %v6374
        %v6565 = vpack.c.b16 %v6379, %v6377
        %v6566 = vpack.c.b16 %v6380, %v6378
        %v6567 = vpack.c.b16 %v6383, %v6381
        %v6568 = vpack.c.b16 %v6384, %v6382
        %v6569 = vpack.c.b16 %v6387, %v6385
        %v6570 = vpack.c.b16 %v6388, %v6386
        %v6571 = vpack.c.b16 %v6391, %v6389
        %v6572 = vpack.c.b16 %v6392, %v6390
        %v6573 = vpack.c.b16 %v6395, %v6393
        %v6574 = vpack.c.b16 %v6396, %v6394
        %v6575 = vpack.c.b16 %v6399, %v6397
        %v6576 = vpack.c.b16 %v6400, %v6398
        %v6577 = vpack.c.b16 %v6403, %v6401
        %v6578 = vpack.c.b16 %v6404, %v6402
        %v6579 = vpack.c.b16 %v6407, %v6405
        %v6580 = vpack.c.b16 %v6408, %v6406
        %v6581 = vpack.c.b16 %v6411, %v6409
        %v6582 = vpack.c.b16 %v6412, %v6410
        %v6583 = vpack.c.b16 %v6415, %v6413
        %v6584 = vpack.c.b16 %v6416, %v6414
        %v6585 = vpack.c.b16 %v6419, %v6417
        %v6586 = vpack.c.b16 %v6420, %v6418
        %v6587 = vpack.c.b16 %v6423, %v6421
        %v6588 = vpack.c.b16 %v6424, %v6422
        %v6589 = vpack.c.b16 %v6427, %v6425
        %v6590 = vpack.c.b16 %v6428, %v6426
        %v6591 = vpack.c.b16 %v6431, %v6429
        %v6592 = vpack.c.b16 %v6432, %v6430
        %v6593 = vpack.c.b16 %v6435, %v6433
        %v6594 = vpack.c.b16 %v6436, %v6434
        %v6595 = vpack.c.b16 %v6439, %v6437
        %v6596 = vpack.c.b16 %v6440, %v6438
        %v6597 = vpack.c.b16 %v6443, %v6441
        %v6598 = vpack.c.b16 %v6444, %v6442
        %v6599 = vpack.c.b16 %v6447, %v6445
        %v6600 = vpack.c.b16 %v6448, %v6446
        %v6601 = vpack.c.b16 %v6451, %v6449
        %v6602 = vpack.c.b16 %v6452, %v6450
        %v6603 = vpack.c.b16 %v6455, %v6453
        %v6604 = vpack.c.b16 %v6456, %v6454
        %v6605 = vpack.c.b16 %v6459, %v6457
        %v6606 = vpack.c.b16 %v6460, %v6458
        %v6607 = vpack.c.b16 %v6463, %v6461
        %v6608 = vpack.c.b16 %v6464, %v6462
        %v6609 = vpack.c.b16 %v6467, %v6465
        %v6610 = vpack.c.b16 %v6468, %v6466
        %v6611 = vpack.c.b16 %v6471, %v6469
        %v6612 = vpack.c.b16 %v6472, %v6470
        %v6613 = vpack.c.b16 %v6475, %v6473
        %v6614 = vpack.c.b16 %v6476, %v6474
        %v6615 = vpack.c.b16 %v6479, %v6477
        %v6616 = vpack.c.b16 %v6480, %v6478
        %v6617 = vpack.c.b16 %v6483, %v6481
        %v6618 = vpack.c.b16 %v6484, %v6482
        %v6619 = vpack.c.b16 %v6487, %v6485
        %v6620 = vpack.c.b16 %v6488, %v6486
        %v6621 = vpack.c.b16 %v6491, %v6489
        %v6622 = vpack.c.b16 %v6492, %v6490
        %v6623 = vpack.c.b16 %v6495, %v6493
        %v6624 = vpack.c.b16 %v6496, %v6494
        %v6625 = vpack.c.b16 %v6499, %v6497
        %v6626 = vpack.c.b16 %v6500, %v6498
        %v6627 = vpack.c.b16 %v6503, %v6501
        %v6628 = vpack.c.b16 %v6504, %v6502
        %v6629 = vpack.c.b16 %v6507, %v6505
        %v6630 = vpack.c.b16 %v6508, %v6506
        %v6631 = vpack.c.b16 %v6511, %v6509
        %v6632 = vpack.c.b16 %v6512, %v6510
        %v6633 = vpack.c.b16 %v6515, %v6513
        %v6634 = vpack.c.b16 %v6516, %v6514
        %v6635 = vpack.c.b16 %v6519, %v6517
        %v6636 = vpack.c.b16 %v6520, %v6518
        %v6637 = vpack.c.b16 %v6523, %v6521
        %v6638 = vpack.c.b16 %v6524, %v6522
        %v6639 = vpack.c.b16 %v6527, %v6525
        %v6640 = vpack.c.b16 %v6528, %v6526
        %v6641 = vpack.c.b16 %v6531, %v6529
        %v6642 = vpack.c.b16 %v6532, %v6530
        %v6643 = vpack.c.b16 %v6535, %v6533
        %v6644 = vpack.c.b16 %v6536, %v6534
        %v6645 = vpack.c.b16 %v6539, %v6537
        %v6646 = vpack.c.b16 %v6540, %v6538
        %v6647 = vpack.c.b16 %v6543, %v6541
        %v6648 = vpack.c.b16 %v6544, %v6542
        %v6649 = vpack.c.b16 %v6547, %v6545
        %v6650 = vpack.c.b16 %v6548, %v6546
        %v6651 = vpack.c.b16 %v6551, %v6549
        %v6652 = vpack.c.b16 %v6552, %v6550
        %v6653 = vpack.c.b16 %v6555, %v6553
        %v6654 = vpack.c.b16 %v6556, %v6554
        %v6655 = vpack.c.b16 %v6559, %v6557
        %v6656 = vpack.c.b16 %v6560, %v6558
        %6753 = vmatprep.subr.bf16.mxu0 %v6576
        %6754 = vmatpush1.bf16.msra.mxu0 %v6575
        %6755 = vmatprep.subr.bf16.mxu0 %v6574
        %6756 = vmatpush1.bf16.msra.mxu0 %v6573
        %6757 = vmatprep.subr.bf16.mxu0 %v6572
        %6758 = vmatpush1.bf16.msra.mxu0 %v6571
        %6759 = vmatprep.subr.bf16.mxu0 %v6570
        %6760 = vmatpush1.bf16.msra.mxu0 %v6569
        %6761 = vmatprep.subr.bf16.mxu0 %v6568
        %6762 = vmatpush1.bf16.msra.mxu0 %v6567
        %6763 = vmatprep.subr.bf16.mxu0 %v6566
        %6764 = vmatpush1.bf16.msra.mxu0 %v6565
        %6765 = vmatprep.subr.bf16.mxu0 %v6564
        %6766 = vmatpush1.bf16.msra.mxu0 %v6563
        %6767 = vmatprep.subr.bf16.mxu0 %v6562
        %6768 = vmatpush1.bf16.msra.mxu0 %v6561
        %6769 = vmatprep.subr.bf16.mxu0 %v6592
        %6770 = vmatpush2.bf16.msra.mxu0 %v6591
        %6771 = vmatprep.subr.bf16.mxu0 %v6590
        %6772 = vmatpush2.bf16.msra.mxu0 %v6589
        %6773 = vmatprep.subr.bf16.mxu0 %v6588
        %6774 = vmatpush2.bf16.msra.mxu0 %v6587
        %6775 = vmatprep.subr.bf16.mxu0 %v6586
        %6776 = vmatpush2.bf16.msra.mxu0 %v6585
        %6777 = vmatprep.subr.bf16.mxu0 %v6584
        %6778 = vmatpush2.bf16.msra.mxu0 %v6583
        %6779 = vmatprep.subr.bf16.mxu0 %v6582
        %6780 = vmatpush2.bf16.msra.mxu0 %v6581
        %6781 = vmatprep.subr.bf16.mxu0 %v6580
        %6782 = vmatpush2.bf16.msra.mxu0 %v6579
        %6783 = vmatprep.subr.bf16.mxu0 %v6578
        %6784 = vmatpush2.bf16.msra.mxu0 %v6577
        %6785 = vmatprep.mubr.bf16.mxu0 %v6262
        %6786 = vmatmul.mubr.bf16.gmra.mxu0 %v6261
        %v6787 = vpop.f32.mrf.mxu0
        %v6788 = vadd.f32 0.0, %v6787
        %v6789 = vpop.f32.mrf.mxu0
        %v6790 = vadd.f32 0.0, %v6789
        %v6791 = vpop.f32.mrf.mxu0
        %v6792 = vpop.f32.mrf.mxu0
        %6793 = vdwg.mxu0
        %6794 = vmatprep.subr.bf16.mxu0 %v6608
        %6795 = vmatpush1.bf16.msra.mxu0 %v6607
        %6796 = vmatprep.subr.bf16.mxu0 %v6606
        %6797 = vmatpush1.bf16.msra.mxu0 %v6605
        %6798 = vmatprep.subr.bf16.mxu0 %v6604
        %6799 = vmatpush1.bf16.msra.mxu0 %v6603
        %6800 = vmatprep.subr.bf16.mxu0 %v6602
        %6801 = vmatpush1.bf16.msra.mxu0 %v6601
        %6802 = vmatprep.subr.bf16.mxu0 %v6600
        %6803 = vmatpush1.bf16.msra.mxu0 %v6599
        %6804 = vmatprep.subr.bf16.mxu0 %v6598
        %6805 = vmatpush1.bf16.msra.mxu0 %v6597
        %6806 = vmatprep.subr.bf16.mxu0 %v6596
        %6807 = vmatpush1.bf16.msra.mxu0 %v6595
        %6808 = vmatprep.subr.bf16.mxu0 %v6594
        %6809 = vmatpush1.bf16.msra.mxu0 %v6593
        %6810 = vmatprep.subr.bf16.mxu0 %v6624
        %6811 = vmatpush2.bf16.msra.mxu0 %v6623
        %6812 = vmatprep.subr.bf16.mxu0 %v6622
        %6813 = vmatpush2.bf16.msra.mxu0 %v6621
        %6814 = vmatprep.subr.bf16.mxu0 %v6620
        %6815 = vmatpush2.bf16.msra.mxu0 %v6619
        %6816 = vmatprep.subr.bf16.mxu0 %v6618
        %6817 = vmatpush2.bf16.msra.mxu0 %v6617
        %6818 = vmatprep.subr.bf16.mxu0 %v6616
        %6819 = vmatpush2.bf16.msra.mxu0 %v6615
        %6820 = vmatprep.subr.bf16.mxu0 %v6614
        %6821 = vmatpush2.bf16.msra.mxu0 %v6613
        %6822 = vmatprep.subr.bf16.mxu0 %v6612
        %6823 = vmatpush2.bf16.msra.mxu0 %v6611
        %6824 = vmatprep.subr.bf16.mxu0 %v6610
        %6825 = vmatpush2.bf16.msra.mxu0 %v6609
        %6826 = vmatprep.mubr.bf16.mxu0 %v6264
        %6827 = vmatmul.mubr.bf16.gmra.mxu0 %v6263
        %v6828 = vpop.f32.mrf.mxu0
        %v6829 = vadd.f32 %v6788, %v6828
        %v6830 = vpop.f32.mrf.mxu0
        %v6831 = vadd.f32 %v6790, %v6830
        %v6832 = vpop.f32.mrf.mxu0
        %v6833 = vpop.f32.mrf.mxu0
        %6834 = vdwg.mxu0
        %6835 = vmatprep.subr.bf16.mxu0 %v6640
        %6836 = vmatpush1.bf16.msra.mxu0 %v6639
        %6837 = vmatprep.subr.bf16.mxu0 %v6638
        %6838 = vmatpush1.bf16.msra.mxu0 %v6637
        %6839 = vmatprep.subr.bf16.mxu0 %v6636
        %6840 = vmatpush1.bf16.msra.mxu0 %v6635
        %6841 = vmatprep.subr.bf16.mxu0 %v6634
        %6842 = vmatpush1.bf16.msra.mxu0 %v6633
        %6843 = vmatprep.subr.bf16.mxu0 %v6632
        %6844 = vmatpush1.bf16.msra.mxu0 %v6631
        %6845 = vmatprep.subr.bf16.mxu0 %v6630
        %6846 = vmatpush1.bf16.msra.mxu0 %v6629
        %6847 = vmatprep.subr.bf16.mxu0 %v6628
        %6848 = vmatpush1.bf16.msra.mxu0 %v6627
        %6849 = vmatprep.subr.bf16.mxu0 %v6626
        %6850 = vmatpush1.bf16.msra.mxu0 %v6625
        %6851 = vmatprep.subr.bf16.mxu0 %v6656
        %6852 = vmatpush2.bf16.msra.mxu0 %v6655
        %6853 = vmatprep.subr.bf16.mxu0 %v6654
        %6854 = vmatpush2.bf16.msra.mxu0 %v6653
        %6855 = vmatprep.subr.bf16.mxu0 %v6652
        %6856 = vmatpush2.bf16.msra.mxu0 %v6651
        %6857 = vmatprep.subr.bf16.mxu0 %v6650
        %6858 = vmatpush2.bf16.msra.mxu0 %v6649
        %6859 = vmatprep.subr.bf16.mxu0 %v6648
        %6860 = vmatpush2.bf16.msra.mxu0 %v6647
        %6861 = vmatprep.subr.bf16.mxu0 %v6646
        %6862 = vmatpush2.bf16.msra.mxu0 %v6645
        %6863 = vmatprep.subr.bf16.mxu0 %v6644
        %6864 = vmatpush2.bf16.msra.mxu0 %v6643
        %6865 = vmatprep.subr.bf16.mxu0 %v6642
        %6866 = vmatpush2.bf16.msra.mxu0 %v6641
        %6867 = vmatprep.mubr.bf16.mxu0 %v6266
        %6868 = vmatmul.mubr.bf16.gmra.mxu0 %v6265
        %v6869 = vpop.f32.mrf.mxu0
        %v6870 = vadd.f32 %v6829, %v6869
        %v6871 = vpop.f32.mrf.mxu0
        %v6872 = vadd.f32 %v6831, %v6871
        %v6873 = vpop.f32.mrf.mxu0
        %v6874 = vpop.f32.mrf.mxu0
        %6875 = vdwg.mxu0
        %v6876 = vadd.f32 %v6162, %v6870
        %v6877 = vadd.f32 %v6163, %v6872
        %v6880 = vrot.slane %v6876, 2
        %v6881 = vrot.slane %v6877, 2
        %v6884 = vmax.f32 %v6876, %v6880
        %v6885 = vmax.f32 %v6877, %v6881
        %v6886 = vmax.f32 %v6884, %v6885
        %v6887 = vadd.f32 %v6886, %v299
        %v6888 = vmax.f32 %v6887, 0.0
        %6889 = vst [vmem:[%s295] sm:$0x1] %v6888
        %s6890 = sand.u32 %s142, 1
        %s6891 = scalar_lea.sflag [#allocation4], %s6890
        %s6892 = sand.u32 %s142, 1
        %s6893 = scalar_lea.vmem [#allocation11], %s6892
        // Predicated region
        $region61: #{tpu_custom_call.1} parent=39 // pred_check
          %p6894 = pneg %p152
        $region62: #{tpu_custom_call.1} parent=39 // pred_check_branch
          %6896 = sbr.rel (%p6894) target = $region64
        $region63: #{tpu_custom_call.1} parent=39 // pred_region
          %s6898 = ssub.s32 16, 16
          %6899 = vsyncadd %s6891, %s6898
          %s6900 = smul.addr %s24, 16
          %s6901 = scalar_lea.hbm %s5, %s6900
          %s6903 = sshll.u32 %s6893, 4
          %s6904 = int_to_ptr.vmem [resolvable:$true] %s6903
          %6906 = dma.vmem_to_hbm [thread:$0]  %s6904, 16, %s6901, %s6891
        $region64: #{tpu_custom_call.1} parent=39 // pred_fallthru
          _
      $region40: #{tpu_custom_call.1} parent=5 // pred_fallthru
        _
      %p6907 = scmp.le.s32.totalorder 2, %s19
      // Predicated region
      $region65: #{tpu_custom_call.1} parent=5 // pred_check
        %p6908 = pneg %p6907
      $region66: #{tpu_custom_call.1} parent=5 // pred_check_branch
        %6910 = sbr.rel (%p6908) target = $region68
      $region67: #{tpu_custom_call.1} parent=5 // pred_region
        %s6911 = ssub.s32 %s19, 2
        // Predicated region
        $region69: #{tpu_custom_call.1} parent=67 // pred_check
          %p6912 = pneg %p158
        $region70: #{tpu_custom_call.1} parent=67 // pred_check_branch
          %6914 = sbr.rel (%p6912) target = $region72
        $region71: #{tpu_custom_call.1} parent=67 // pred_region
          %s6915 = sand.u32 %s143, 1
          %s6916 = scalar_lea.sflag [#allocation4], %s6915
          %s6917 = sand.u32 %s143, 1
          %s6918 = scalar_lea.vmem [#allocation11], %s6917
          %6919 = dma.done %s6916, 16
        $region72: #{tpu_custom_call.1} parent=67 // pred_fallthru
          _
      $region68: #{tpu_custom_call.1} parent=5 // pred_fallthru
        _
    $region6: #{tpu_custom_call.1} parent=1 // loop_footer
      %s23 = sadd.s32 1, %s19
    $region7: #{tpu_custom_call.1} parent=1 // loop_footer_branch
      %18 = sbr.rel target = $region3
    $region8: #{tpu_custom_call.1} parent=1 // loop_exit
      _
    %6920 = vsyncpa [#allocation3], 1
    %s6921 = scalar_lea.sflag [#allocation3], 1
    %6922 = vsyncpa %s6921, 1
    %6923 = vsyncpa [#allocation6], 1
    %6924 = vsyncpa [#allocation9], 1
    %6925 = vsyncpa [#allocation4], 1
    %s6926 = scalar_lea.sflag [#allocation4], 1
    %6927 = vsyncpa %s6926, 1

</llo_original>
